<compile_context>
chip_gen: v5e
topology: v5e:2x2
jax: 0.10.0
libtpu: 0.0.40
codegen_flags: <defaults>
</compile_context>

<pallas_src>
import functools

import jax
import jax.numpy as jnp
from jax.experimental import pallas as pl
from jax.experimental.pallas import tpu as pltpu

_VMEM_LIMIT = 32 * 1024 * 1024


def _round_up(x, m):
    return (x + m - 1) // m * m


def _apply_activation(acc, activation):
    """acc is the f32 accumulator; activations computed in f32 (v5e EUP/VPU safe)."""
    if activation == "elu":
        return jnp.where(acc > 0, acc, jnp.exp(jnp.minimum(acc, 0.0)) - 1.0)
    if activation == "sigmoid":
        sig = pl.reciprocal(1.0 + jnp.exp(-acc), approx=True)
        return jnp.clip(sig, 0.0, 1.0)
    return acc


# ----------------------------------------------------------------------------------
# Path A: strided convs (rb1, rb2) -> bf16 im2col + fused matmul (+ fused 1x1 skip)
# ----------------------------------------------------------------------------------
def _patch_conv_kernel(p_ref, w_ref, b_ref, o_ref, *, activation):
    acc = jnp.dot(p_ref[...], w_ref[...], preferred_element_type=jnp.float32)
    acc = _apply_activation(acc + b_ref[...], activation)
    o_ref[...] = acc.astype(o_ref.dtype)


def _patch_conv_skip_kernel(p_ref, w_ref, b_ref, xc_ref, ws_ref, bs_ref, o_ref, *,
                            activation):
    acc = jnp.dot(p_ref[...], w_ref[...], preferred_element_type=jnp.float32)
    acc = _apply_activation(acc + b_ref[...], activation)
    skip = jnp.dot(xc_ref[...], ws_ref[...], preferred_element_type=jnp.float32)
    o_ref[...] = (acc + skip + bs_ref[...]).astype(o_ref.dtype)


def _im2col(x, kh, kw, stride, padding, dilation):
    """x: (N,H,W,C) -> (N*OH*OW, KH*KW*C), feature order (kh, kw, c)."""
    n, h, w, c = x.shape
    xp = jnp.pad(x, ((0, 0), (padding, padding), (padding, padding), (0, 0)))
    hp, wp = h + 2 * padding, w + 2 * padding
    oh = (hp - dilation * (kh - 1) - 1) // stride + 1
    ow = (wp - dilation * (kw - 1) - 1) // stride + 1
    cols = []
    for i in range(kh):
        for j in range(kw):
            sl = xp[:, i * dilation: i * dilation + (oh - 1) * stride + 1: stride,
                       j * dilation: j * dilation + (ow - 1) * stride + 1: stride, :]
            cols.append(sl)
    patches = jnp.stack(cols, axis=3).reshape(n, oh, ow, kh * kw * c)
    return patches.reshape(n * oh * ow, kh * kw * c), (n, oh, ow)


def conv2d_strided(x_nhwc, w_oihw, b, stride, padding, dilation, activation="none",
                   skip_w=None, skip_b=None):
    cout, cin, kh, kw = w_oihw.shape
    x_bf = x_nhwc.astype(jnp.bfloat16)
    patches, (n, oh, ow) = _im2col(x_bf, kh, kw, stride, padding, dilation)
    m, k = patches.shape
    wmat = jnp.transpose(w_oihw, (2, 3, 1, 0)).reshape(k, cout).astype(jnp.bfloat16)
    b2 = b.reshape(1, cout).astype(jnp.float32)

    # Big M tiles (roofline) but at least 2 tiles so both v7x TensorCores get work.
    tm = min(512, _round_up(max(m // 2, 8), 8))
    grid = (pl.cdiv(m, tm),)

    in_specs = [
        pl.BlockSpec((tm, k), lambda i: (i, 0)),
        pl.BlockSpec((k, cout), lambda i: (0, 0)),
        pl.BlockSpec((1, cout), lambda i: (0, 0)),
    ]
    args = [patches, wmat, b2]
    flops = 2 * m * k * cout
    bytes_acc = patches.size * 2 + wmat.size * 2 + b2.size * 4 + m * cout * 2

    if skip_w is not None:
        # center tap of the main conv == input of the 1x1 stride-s skip conv
        xc = x_bf[:, ::stride, ::stride, :][:, :oh, :ow, :].reshape(m, cin)
        ws = jnp.transpose(skip_w, (2, 3, 1, 0)).reshape(cin, cout).astype(jnp.bfloat16)
        bs = skip_b.reshape(1, cout).astype(jnp.float32)
        in_specs += [pl.BlockSpec((tm, cin), lambda i: (i, 0)),
                     pl.BlockSpec((cin, cout), lambda i: (0, 0)),
                     pl.BlockSpec((1, cout), lambda i: (0, 0))]
        args += [xc, ws, bs]
        kernel = functools.partial(_patch_conv_skip_kernel, activation=activation)
        flops += 2 * m * cin * cout
        bytes_acc += xc.size * 2 + ws.size * 2 + bs.size * 4
    else:
        kernel = functools.partial(_patch_conv_kernel, activation=activation)

    out = pl.pallas_call(
        kernel,
        out_shape=jax.ShapeDtypeStruct((m, cout), jnp.bfloat16),
        grid=grid,
        in_specs=in_specs,
        out_specs=pl.BlockSpec((tm, cout), lambda i: (i, 0)),
        compiler_params=pltpu.CompilerParams(
            dimension_semantics=("parallel",),
            vmem_limit_bytes=_VMEM_LIMIT),
        cost_estimate=pl.CostEstimate(flops=int(flops), transcendentals=int(m * cout),
                                      bytes_accessed=int(bytes_acc)),
    )(*args)
    return out.reshape(n, oh, ow, cout)


# ----------------------------------------------------------------------------------
# Path B: stride-1 convs -> fused direct conv (im2col built inside the kernel)
# grid = (batch, output_row); each of the kh needed input rows arrives as its own
# size-1-row block (element-exact offsets), taps are sliced in-kernel, and the
# kh*kw small matmuls accumulate in f32.  The 1x1 skip conv reuses the center tap.
# ----------------------------------------------------------------------------------
def _make_direct_kernel(kh, kw, dilation, ow, activation, has_skip):
    def kernel(*refs):
        row_refs = refs[:kh]
        w_ref = refs[kh]
        b_ref = refs[kh + 1]
        if has_skip:
            ws_ref, bs_ref = refs[kh + 2], refs[kh + 3]
            o_ref = refs[kh + 4]
        else:
            o_ref = refs[kh + 2]

        cout = o_ref.shape[-1]
        acc = jnp.zeros((ow, cout), jnp.float32)
        center = None
        for i in range(kh):
            row = row_refs[i][0, 0]                      # (Wp, Cin) bf16
            for j in range(kw):
                tap = row[j * dilation: j * dilation + ow, :]
                acc = acc + jnp.dot(tap, w_ref[i, j],
                                    preferred_element_type=jnp.float32)
                if has_skip and i == kh // 2 and j == kw // 2:
                    center = tap
        acc = _apply_activation(acc + b_ref[...], activation)
        if has_skip:
            acc = acc + jnp.dot(center, ws_ref[...],
                                preferred_element_type=jnp.float32) + bs_ref[...]
        o_ref[0, 0] = acc.astype(o_ref.dtype)
    return kernel


def conv2d_direct(x_nhwc, w_oihw, b, padding, dilation, activation="none",
                  skip_w=None, skip_b=None):
    cout, cin, kh, kw = w_oihw.shape
    n, h, w, c = x_nhwc.shape
    oh = h + 2 * padding - dilation * (kh - 1)
    ow = w + 2 * padding - dilation * (kw - 1)
    hp, wp = h + 2 * padding, w + 2 * padding

    x_pad = jnp.pad(x_nhwc.astype(jnp.bfloat16),
                    ((0, 0), (padding, padding), (padding, padding), (0, 0)))
    wt = jnp.transpose(w_oihw, (2, 3, 1, 0)).astype(jnp.bfloat16)   # (kh,kw,cin,cout)
    b2 = b.reshape(1, cout).astype(jnp.float32)
    has_skip = skip_w is not None

    def row_spec(i):
        return pl.BlockSpec((1, 1, wp, c),
                            lambda bn, oy, i=i: (bn, oy + i * dilation, 0, 0))

    in_specs = [row_spec(i) for i in range(kh)]
    args = [x_pad] * kh
    in_specs += [pl.BlockSpec((kh, kw, cin, cout), lambda bn, oy: (0, 0, 0, 0)),
                 pl.BlockSpec((1, cout), lambda bn, oy: (0, 0))]
    args += [wt, b2]

    flops = 2 * n * oh * ow * kh * kw * cin * cout
    bytes_acc = x_pad.size * 2 * kh + wt.size * 2 + n * oh * ow * cout * 2

    if has_skip:
        ws = jnp.transpose(skip_w, (2, 3, 1, 0)).reshape(cin, cout).astype(jnp.bfloat16)
        bs = skip_b.reshape(1, cout).astype(jnp.float32)
        in_specs += [pl.BlockSpec((cin, cout), lambda bn, oy: (0, 0)),
                     pl.BlockSpec((1, cout), lambda bn, oy: (0, 0))]
        args += [ws, bs]
        flops += 2 * n * oh * ow * cin * cout
        bytes_acc += ws.size * 2 + bs.size * 4

    kernel = _make_direct_kernel(kh, kw, dilation, ow, activation, has_skip)

    return pl.pallas_call(
        kernel,
        out_shape=jax.ShapeDtypeStruct((n, oh, ow, cout), jnp.bfloat16),
        grid=(n, oh),
        in_specs=in_specs,
        out_specs=pl.BlockSpec((1, 1, ow, cout), lambda bn, oy: (bn, oy, 0, 0)),
        compiler_params=pltpu.CompilerParams(
            dimension_semantics=("parallel", "parallel"),
            vmem_limit_bytes=_VMEM_LIMIT),
        cost_estimate=pl.CostEstimate(flops=int(flops),
                                      transcendentals=int(n * oh * ow * cout),
                                      bytes_accessed=int(bytes_acc)),
    )(*args)


def upsample_nearest_2x(x):
    x = jnp.repeat(x, 2, axis=1)
    return jnp.repeat(x, 2, axis=2)


# ----------------------------------------------------------------------------------
# Parameter construction (deterministic, synthetic)
# ----------------------------------------------------------------------------------
def _spectral_normalize(w, key, n_iter=10):
    wm = w.reshape(w.shape[0], -1)
    u = jax.random.normal(key, (wm.shape[0],), jnp.float32)
    v = None
    for _ in range(n_iter):
        v = wm.T @ u
        v = v / (jnp.linalg.norm(v) + 1e-12)
        u = wm @ v
        u = u / (jnp.linalg.norm(u) + 1e-12)
    sigma = u @ (wm @ v)
    return w / sigma


def _init_conv(key, cout, cin, k, spectral=True):
    kw_, ku_ = jax.random.split(key)
    fan_in = cin * k * k
    w = jax.random.normal(kw_, (cout, cin, k, k), jnp.float32) / jnp.sqrt(float(fan_in))
    if spectral:
        w = _spectral_normalize(w, ku_)
    b = jnp.zeros((cout,), jnp.float32)
    return w, b


def _init_resblock(key, cin, cout, k):
    k1, k2 = jax.random.split(key)
    w, b = _init_conv(k1, cout, cin, k, spectral=True)
    w_skip, b_skip = _init_conv(k2, cout, cin, 1, spectral=True)
    return {"w": w, "b": b, "w_skip": w_skip, "b_skip": b_skip}


def init_mpn_params(key, base_n_channels=64, neck_n_channels=128):
    assert base_n_channels >= 4 and neck_n_channels >= 16
    keys = jax.random.split(key, 9)
    p = {}
    p["rb1"] = _init_resblock(keys[0], 3, base_n_channels, 5)
    p["rb2"] = _init_resblock(keys[1], base_n_channels, base_n_channels * 2, 3)
    p["rb3"] = _init_resblock(keys[2], base_n_channels * 2, base_n_channels * 2, 3)
    p["rb4"] = _init_resblock(keys[3], base_n_channels * 2, neck_n_channels, 3)
    p["rb5"] = _init_resblock(keys[4], base_n_channels * 2, base_n_channels * 2, 3)
    p["rb6"] = _init_resblock(keys[5], base_n_channels * 2, base_n_channels, 3)
    p["rb7"] = _init_resblock(keys[6], base_n_channels, base_n_channels // 2, 3)
    p["cb1_w"], p["cb1_b"] = _init_conv(keys[7], base_n_channels // 4,
                                        base_n_channels // 2, 3, spectral=True)
    p["conv1_w"], p["conv1_b"] = _init_conv(keys[8], 1, base_n_channels // 4, 3,
                                            spectral=False)   # plain nn.Conv2d
    return p


# ----------------------------------------------------------------------------------
# MPN forward
# ----------------------------------------------------------------------------------
def _res_block_strided(x, p, stride, padding, dilation):
    return conv2d_strided(x, p["w"], p["b"], stride, padding, dilation,
                          activation="elu", skip_w=p["w_skip"], skip_b=p["b_skip"])


def _res_block_direct(x, p, padding, dilation):
    return conv2d_direct(x, p["w"], p["b"], padding, dilation,
                         activation="elu", skip_w=p["w_skip"], skip_b=p["b_skip"])


def mpn_forward(params, x_nchw):
    x = jnp.transpose(x_nchw, (0, 2, 3, 1)).astype(jnp.float32)   # NCHW -> NHWC
    out = _res_block_strided(x, params["rb1"], stride=2, padding=2, dilation=1)
    out = _res_block_strided(out, params["rb2"], stride=2, padding=1, dilation=1)
    out = _res_block_direct(out, params["rb3"], padding=2, dilation=2)
    neck = _res_block_direct(out, params["rb4"], padding=4, dilation=4)
    out = _res_block_direct(neck, params["rb5"], padding=1, dilation=1)
    out = upsample_nearest_2x(out)
    out = _res_block_direct(out, params["rb6"], padding=1, dilation=1)
    out = upsample_nearest_2x(out)
    out = _res_block_direct(out, params["rb7"], padding=1, dilation=1)
    out = conv2d_direct(out, params["cb1_w"], params["cb1_b"], padding=1, dilation=1,
                        activation="elu")
    out = conv2d_direct(out, params["conv1_w"], params["conv1_b"], padding=1, dilation=1,
                        activation="sigmoid")
    mask = jnp.transpose(out.astype(jnp.float32), (0, 3, 1, 2))
    neck_out = jnp.transpose(neck.astype(jnp.float32), (0, 3, 1, 2))
    return mask, neck_out


if __name__ == "__main__":
    key = jax.random.PRNGKey(0)
    k_param, k_x = jax.random.split(key)

    base_n_channels, neck_n_channels = 64, 128
    params = init_mpn_params(k_param, base_n_channels, neck_n_channels)

    # small input: batch=2, 3 channels, 16x16 spatial (NCHW, like PyTorch)
    x = jax.random.normal(k_x, (2, 3, 16, 16), jnp.float32)

    fwd = jax.jit(mpn_forward)
    mask, neck = fwd(params, x)
    jax.block_until_ready((mask, neck))

    assert mask.shape == (2, 1, 16, 16), mask.shape
    assert neck.shape == (2, neck_n_channels, 4, 4), neck.shape
    assert bool(jnp.all(jnp.isfinite(mask))) and bool(jnp.all(jnp.isfinite(neck)))
    assert bool(jnp.all(mask >= 0.0)) and bool(jnp.all(mask <= 1.0))
    print("KERNEL_OK")
</pallas_src>

<mosaic_0001>
module attributes {stable_mosaic.version = 11 : i64} {
  func.func @_patch_conv_skip_kernel(%arg0: i32, %arg1: memref<64x75xbf16, #tpu.memory_space<vmem>>, %arg2: memref<75x64xbf16, #tpu.memory_space<vmem>>, %arg3: memref<1x64xf32, #tpu.memory_space<vmem>>, %arg4: memref<64x3xbf16, #tpu.memory_space<vmem>>, %arg5: memref<3x64xbf16, #tpu.memory_space<vmem>>, %arg6: memref<1x64xf32, #tpu.memory_space<vmem>>, %arg7: memref<64x64xbf16, #tpu.memory_space<vmem>>) attributes {dimension_semantics = [#tpu.dimension_semantics<parallel>], iteration_bounds = array<i64: 2>, scalar_prefetch = 0 : i64, scratch_operands = 0 : i64, tpu.core_type = #tpu.core_type<tc>, window_params = [{transform_indices = @transform_0, window_bounds = array<i64: 64, 75>}, {pipeline_mode = #tpu.pipeline_mode<synchronous>, transform_indices = @transform_1, window_bounds = array<i64: 75, 64>}, {pipeline_mode = #tpu.pipeline_mode<synchronous>, transform_indices = @transform_2, window_bounds = array<i64: 1, 64>}, {transform_indices = @transform_3, window_bounds = array<i64: 64, 3>}, {pipeline_mode = #tpu.pipeline_mode<synchronous>, transform_indices = @transform_4, window_bounds = array<i64: 3, 64>}, {pipeline_mode = #tpu.pipeline_mode<synchronous>, transform_indices = @transform_5, window_bounds = array<i64: 1, 64>}, {transform_indices = @transform_6, window_bounds = array<i64: 64, 64>}]} {
    %c0 = arith.constant 0 : index
    %c0_0 = arith.constant 0 : index
    %0 = vector.load %arg1[%c0, %c0_0] : memref<64x75xbf16, #tpu.memory_space<vmem>>, vector<64x75xbf16>
    %c0_1 = arith.constant 0 : index
    %c0_2 = arith.constant 0 : index
    %1 = vector.load %arg2[%c0_1, %c0_2] : memref<75x64xbf16, #tpu.memory_space<vmem>>, vector<75x64xbf16>
    %cst = arith.constant dense<0.000000e+00> : vector<64x64xf32>
    %2 = tpu.matmul %0, %1, %cst {dimension_numbers = #tpu.dot_dimension_numbers<[1], [0], [0], [1], [0, 0, 1, 1], [], []>} : vector<64x75xbf16>, vector<75x64xbf16>, vector<64x64xf32> -> vector<64x64xf32>
    %c0_3 = arith.constant 0 : index
    %c0_4 = arith.constant 0 : index
    %3 = vector.load %arg3[%c0_3, %c0_4] : memref<1x64xf32, #tpu.memory_space<vmem>>, vector<1x64xf32>
    %4 = vector.broadcast %3 : vector<1x64xf32> to vector<64x64xf32>
    %5 = arith.addf %2, %4 : vector<64x64xf32>
    %cst_5 = arith.constant 0.000000e+00 : f32
    %6 = vector.broadcast %cst_5 : f32 to vector<64x64xf32>
    %7 = arith.cmpf ogt, %5, %6 : vector<64x64xf32>
    %cst_6 = arith.constant 0.000000e+00 : f32
    %8 = vector.broadcast %cst_6 : f32 to vector<64x64xf32>
    %9 = arith.minimumf %5, %8 : vector<64x64xf32>
    %10 = math.exp %9 : vector<64x64xf32>
    %cst_7 = arith.constant 1.000000e+00 : f32
    %11 = vector.broadcast %cst_7 : f32 to vector<64x64xf32>
    %12 = arith.subf %10, %11 : vector<64x64xf32>
    %13 = arith.select %7, %5, %12 : vector<64x64xi1>, vector<64x64xf32>
    %c0_8 = arith.constant 0 : index
    %c0_9 = arith.constant 0 : index
    %14 = vector.load %arg4[%c0_8, %c0_9] : memref<64x3xbf16, #tpu.memory_space<vmem>>, vector<64x3xbf16>
    %c0_10 = arith.constant 0 : index
    %c0_11 = arith.constant 0 : index
    %15 = vector.load %arg5[%c0_10, %c0_11] : memref<3x64xbf16, #tpu.memory_space<vmem>>, vector<3x64xbf16>
    %cst_12 = arith.constant dense<0.000000e+00> : vector<64x64xf32>
    %16 = tpu.matmul %14, %15, %cst_12 {dimension_numbers = #tpu.dot_dimension_numbers<[1], [0], [0], [1], [0, 0, 1, 1], [], []>} : vector<64x3xbf16>, vector<3x64xbf16>, vector<64x64xf32> -> vector<64x64xf32>
    %17 = arith.addf %13, %16 : vector<64x64xf32>
    %c0_13 = arith.constant 0 : index
    %c0_14 = arith.constant 0 : index
    %18 = vector.load %arg6[%c0_13, %c0_14] : memref<1x64xf32, #tpu.memory_space<vmem>>, vector<1x64xf32>
    %19 = vector.broadcast %18 : vector<1x64xf32> to vector<64x64xf32>
    %20 = arith.addf %17, %19 : vector<64x64xf32>
    %21 = arith.truncf %20 : vector<64x64xf32> to vector<64x64xbf16>
    %c0_15 = arith.constant 0 : index
    %c0_16 = arith.constant 0 : index
    %22 = vector.load %arg7[%c0_15, %c0_16] : memref<64x64xbf16, #tpu.memory_space<vmem>>, vector<64x64xbf16>
    tpu.vector_store %arg7[%c0_15, %c0_16], %21 {strides = array<i32>} : memref<64x64xbf16, #tpu.memory_space<vmem>>, vector<64x64xbf16>,
    return
  }
  func.func @transform_0(%arg0: i32) -> (i32, i32) {
    %c0_i32 = arith.constant 0 : i32
    %c0_i32_0 = arith.constant 0 : i32
    return %arg0, %c0_i32 : i32, i32
  }
  func.func @transform_1(%arg0: i32) -> (i32, i32) {
    %c0_i32 = arith.constant 0 : i32
    %c0_i32_0 = arith.constant 0 : i32
    %c0_i32_1 = arith.constant 0 : i32
    return %c0_i32, %c0_i32_0 : i32, i32
  }
  func.func @transform_2(%arg0: i32) -> (i32, i32) {
    %c0_i32 = arith.constant 0 : i32
    %c0_i32_0 = arith.constant 0 : i32
    %c0_i32_1 = arith.constant 0 : i32
    return %c0_i32, %c0_i32_0 : i32, i32
  }
  func.func @transform_3(%arg0: i32) -> (i32, i32) {
    %c0_i32 = arith.constant 0 : i32
    %c0_i32_0 = arith.constant 0 : i32
    return %arg0, %c0_i32 : i32, i32
  }
  func.func @transform_4(%arg0: i32) -> (i32, i32) {
    %c0_i32 = arith.constant 0 : i32
    %c0_i32_0 = arith.constant 0 : i32
    %c0_i32_1 = arith.constant 0 : i32
    return %c0_i32, %c0_i32_0 : i32, i32
  }
  func.func @transform_5(%arg0: i32) -> (i32, i32) {
    %c0_i32 = arith.constant 0 : i32
    %c0_i32_0 = arith.constant 0 : i32
    %c0_i32_1 = arith.constant 0 : i32
    return %c0_i32, %c0_i32_0 : i32, i32
  }
  func.func @transform_6(%arg0: i32) -> (i32, i32) {
    %c0_i32 = arith.constant 0 : i32
    %c0_i32_0 = arith.constant 0 : i32
    return %arg0, %c0_i32 : i32, i32
  }
}

module attributes {stable_mosaic.version = 11 : i64} {
  func.func @_patch_conv_skip_kernel(%arg0: i32, %arg1: memref<16x576xbf16, #tpu.memory_space<vmem>>, %arg2: memref<576x128xbf16, #tpu.memory_space<vmem>>, %arg3: memref<1x128xf32, #tpu.memory_space<vmem>>, %arg4: memref<16x64xbf16, #tpu.memory_space<vmem>>, %arg5: memref<64x128xbf16, #tpu.memory_space<vmem>>, %arg6: memref<1x128xf32, #tpu.memory_space<vmem>>, %arg7: memref<16x128xbf16, #tpu.memory_space<vmem>>) attributes {dimension_semantics = [#tpu.dimension_semantics<parallel>], iteration_bounds = array<i64: 2>, scalar_prefetch = 0 : i64, scratch_operands = 0 : i64, tpu.core_type = #tpu.core_type<tc>, window_params = [{transform_indices = @transform_0, window_bounds = array<i64: 16, 576>}, {pipeline_mode = #tpu.pipeline_mode<synchronous>, transform_indices = @transform_1, window_bounds = array<i64: 576, 128>}, {pipeline_mode = #tpu.pipeline_mode<synchronous>, transform_indices = @transform_2, window_bounds = array<i64: 1, 128>}, {transform_indices = @transform_3, window_bounds = array<i64: 16, 64>}, {pipeline_mode = #tpu.pipeline_mode<synchronous>, transform_indices = @transform_4, window_bounds = array<i64: 64, 128>}, {pipeline_mode = #tpu.pipeline_mode<synchronous>, transform_indices = @transform_5, window_bounds = array<i64: 1, 128>}, {transform_indices = @transform_6, window_bounds = array<i64: 16, 128>}]} {
    %c0 = arith.constant 0 : index
    %c0_0 = arith.constant 0 : index
    %0 = vector.load %arg1[%c0, %c0_0] : memref<16x576xbf16, #tpu.memory_space<vmem>>, vector<16x576xbf16>
    %c0_1 = arith.constant 0 : index
    %c0_2 = arith.constant 0 : index
    %1 = vector.load %arg2[%c0_1, %c0_2] : memref<576x128xbf16, #tpu.memory_space<vmem>>, vector<576x128xbf16>
    %cst = arith.constant dense<0.000000e+00> : vector<16x128xf32>
    %2 = tpu.matmul %0, %1, %cst {dimension_numbers = #tpu.dot_dimension_numbers<[1], [0], [0], [1], [0, 0, 1, 1], [], []>} : vector<16x576xbf16>, vector<576x128xbf16>, vector<16x128xf32> -> vector<16x128xf32>
    %c0_3 = arith.constant 0 : index
    %c0_4 = arith.constant 0 : index
    %3 = vector.load %arg3[%c0_3, %c0_4] : memref<1x128xf32, #tpu.memory_space<vmem>>, vector<1x128xf32>
    %4 = vector.broadcast %3 : vector<1x128xf32> to vector<16x128xf32>
    %5 = arith.addf %2, %4 : vector<16x128xf32>
    %cst_5 = arith.constant 0.000000e+00 : f32
    %6 = vector.broadcast %cst_5 : f32 to vector<16x128xf32>
    %7 = arith.cmpf ogt, %5, %6 : vector<16x128xf32>
    %cst_6 = arith.constant 0.000000e+00 : f32
    %8 = vector.broadcast %cst_6 : f32 to vector<16x128xf32>
    %9 = arith.minimumf %5, %8 : vector<16x128xf32>
    %10 = math.exp %9 : vector<16x128xf32>
    %cst_7 = arith.constant 1.000000e+00 : f32
    %11 = vector.broadcast %cst_7 : f32 to vector<16x128xf32>
    %12 = arith.subf %10, %11 : vector<16x128xf32>
    %13 = arith.select %7, %5, %12 : vector<16x128xi1>, vector<16x128xf32>
    %c0_8 = arith.constant 0 : index
    %c0_9 = arith.constant 0 : index
    %14 = vector.load %arg4[%c0_8, %c0_9] : memref<16x64xbf16, #tpu.memory_space<vmem>>, vector<16x64xbf16>
    %c0_10 = arith.constant 0 : index
    %c0_11 = arith.constant 0 : index
    %15 = vector.load %arg5[%c0_10, %c0_11] : memref<64x128xbf16, #tpu.memory_space<vmem>>, vector<64x128xbf16>
    %cst_12 = arith.constant dense<0.000000e+00> : vector<16x128xf32>
    %16 = tpu.matmul %14, %15, %cst_12 {dimension_numbers = #tpu.dot_dimension_numbers<[1], [0], [0], [1], [0, 0, 1, 1], [], []>} : vector<16x64xbf16>, vector<64x128xbf16>, vector<16x128xf32> -> vector<16x128xf32>
    %17 = arith.addf %13, %16 : vector<16x128xf32>
    %c0_13 = arith.constant 0 : index
    %c0_14 = arith.constant 0 : index
    %18 = vector.load %arg6[%c0_13, %c0_14] : memref<1x128xf32, #tpu.memory_space<vmem>>, vector<1x128xf32>
    %19 = vector.broadcast %18 : vector<1x128xf32> to vector<16x128xf32>
    %20 = arith.addf %17, %19 : vector<16x128xf32>
    %21 = arith.truncf %20 : vector<16x128xf32> to vector<16x128xbf16>
    %c0_15 = arith.constant 0 : index
    %c0_16 = arith.constant 0 : index
    %22 = vector.load %arg7[%c0_15, %c0_16] : memref<16x128xbf16, #tpu.memory_space<vmem>>, vector<16x128xbf16>
    tpu.vector_store %arg7[%c0_15, %c0_16], %21 {strides = array<i32>} : memref<16x128xbf16, #tpu.memory_space<vmem>>, vector<16x128xbf16>,
    return
  }
  func.func @transform_0(%arg0: i32) -> (i32, i32) {
    %c0_i32 = arith.constant 0 : i32
    %c0_i32_0 = arith.constant 0 : i32
    return %arg0, %c0_i32 : i32, i32
  }
  func.func @transform_1(%arg0: i32) -> (i32, i32) {
    %c0_i32 = arith.constant 0 : i32
    %c0_i32_0 = arith.constant 0 : i32
    %c0_i32_1 = arith.constant 0 : i32
    return %c0_i32, %c0_i32_0 : i32, i32
  }
  func.func @transform_2(%arg0: i32) -> (i32, i32) {
    %c0_i32 = arith.constant 0 : i32
    %c0_i32_0 = arith.constant 0 : i32
    %c0_i32_1 = arith.constant 0 : i32
    return %c0_i32, %c0_i32_0 : i32, i32
  }
  func.func @transform_3(%arg0: i32) -> (i32, i32) {
    %c0_i32 = arith.constant 0 : i32
    %c0_i32_0 = arith.constant 0 : i32
    return %arg0, %c0_i32 : i32, i32
  }
  func.func @transform_4(%arg0: i32) -> (i32, i32) {
    %c0_i32 = arith.constant 0 : i32
    %c0_i32_0 = arith.constant 0 : i32
    %c0_i32_1 = arith.constant 0 : i32
    return %c0_i32, %c0_i32_0 : i32, i32
  }
  func.func @transform_5(%arg0: i32) -> (i32, i32) {
    %c0_i32 = arith.constant 0 : i32
    %c0_i32_0 = arith.constant 0 : i32
    %c0_i32_1 = arith.constant 0 : i32
    return %c0_i32, %c0_i32_0 : i32, i32
  }
  func.func @transform_6(%arg0: i32) -> (i32, i32) {
    %c0_i32 = arith.constant 0 : i32
    %c0_i32_0 = arith.constant 0 : i32
    return %arg0, %c0_i32 : i32, i32
  }
}

module attributes {stable_mosaic.version = 11 : i64} {
  func.func @kernel(%arg0: i32, %arg1: i32, %arg2: memref<1x1x8x128xbf16, #tpu.memory_space<vmem>>, %arg3: memref<1x1x8x128xbf16, #tpu.memory_space<vmem>>, %arg4: memref<1x1x8x128xbf16, #tpu.memory_space<vmem>>, %arg5: memref<3x3x128x128xbf16, #tpu.memory_space<vmem>>, %arg6: memref<1x128xf32, #tpu.memory_space<vmem>>, %arg7: memref<128x128xbf16, #tpu.memory_space<vmem>>, %arg8: memref<1x128xf32, #tpu.memory_space<vmem>>, %arg9: memref<1x1x4x128xbf16, #tpu.memory_space<vmem>>) attributes {dimension_semantics = [#tpu.dimension_semantics<parallel>, #tpu.dimension_semantics<parallel>], iteration_bounds = array<i64: 2, 4>, scalar_prefetch = 0 : i64, scratch_operands = 0 : i64, tpu.core_type = #tpu.core_type<tc>, window_params = [{transform_indices = @transform_0, window_bounds = array<i64: 1, 1, 8, 128>}, {transform_indices = @transform_1, window_bounds = array<i64: 1, 1, 8, 128>}, {transform_indices = @transform_2, window_bounds = array<i64: 1, 1, 8, 128>}, {pipeline_mode = #tpu.pipeline_mode<synchronous>, transform_indices = @transform_3, window_bounds = array<i64: 3, 3, 128, 128>}, {pipeline_mode = #tpu.pipeline_mode<synchronous>, transform_indices = @transform_4, window_bounds = array<i64: 1, 128>}, {pipeline_mode = #tpu.pipeline_mode<synchronous>, transform_indices = @transform_5, window_bounds = array<i64: 128, 128>}, {pipeline_mode = #tpu.pipeline_mode<synchronous>, transform_indices = @transform_6, window_bounds = array<i64: 1, 128>}, {transform_indices = @transform_7, window_bounds = array<i64: 1, 1, 4, 128>}]} {
    %cst = arith.constant 0.000000e+00 : f32
    %0 = vector.broadcast %cst : f32 to vector<4x128xf32>
    %c0 = arith.constant 0 : index
    %c0_0 = arith.constant 0 : index
    %c0_1 = arith.constant 0 : index
    %c0_2 = arith.constant 0 : index
    %1 = vector.load %arg2[%c0, %c0_0, %c0_1, %c0_2] : memref<1x1x8x128xbf16, #tpu.memory_space<vmem>>, vector<1x1x8x128xbf16>
    %2 = vector.shape_cast %1 : vector<1x1x8x128xbf16> to vector<8x128xbf16>
    %3 = vector.extract_strided_slice %2 {offsets = [0, 0], sizes = [4, 128], strides = [1, 1]} : vector<8x128xbf16> to vector<4x128xbf16>
    %c0_3 = arith.constant 0 : index
    %c0_4 = arith.constant 0 : index
    %c0_5 = arith.constant 0 : index
    %c0_6 = arith.constant 0 : index
    %4 = vector.load %arg5[%c0_3, %c0_4, %c0_5, %c0_6] : memref<3x3x128x128xbf16, #tpu.memory_space<vmem>>, vector<1x1x128x128xbf16>
    %5 = vector.shape_cast %4 : vector<1x1x128x128xbf16> to vector<128x128xbf16>
    %cst_7 = arith.constant dense<0.000000e+00> : vector<4x128xf32>
    %6 = tpu.matmul %3, %5, %cst_7 {dimension_numbers = #tpu.dot_dimension_numbers<[1], [0], [0], [1], [0, 0, 1, 1], [], []>} : vector<4x128xbf16>, vector<128x128xbf16>, vector<4x128xf32> -> vector<4x128xf32>
    %7 = arith.addf %0, %6 : vector<4x128xf32>
    %8 = vector.extract_strided_slice %2 {offsets = [2, 0], sizes = [4, 128], strides = [1, 1]} : vector<8x128xbf16> to vector<4x128xbf16>
    %c0_8 = arith.constant 0 : index
    %c1 = arith.constant 1 : index
    %c0_9 = arith.constant 0 : index
    %c0_10 = arith.constant 0 : index
    %9 = vector.load %arg5[%c0_8, %c1, %c0_9, %c0_10] : memref<3x3x128x128xbf16, #tpu.memory_space<vmem>>, vector<1x1x128x128xbf16>
    %10 = vector.shape_cast %9 : vector<1x1x128x128xbf16> to vector<128x128xbf16>
    %cst_11 = arith.constant dense<0.000000e+00> : vector<4x128xf32>
    %11 = tpu.matmul %8, %10, %cst_11 {dimension_numbers = #tpu.dot_dimension_numbers<[1], [0], [0], [1], [0, 0, 1, 1], [], []>} : vector<4x128xbf16>, vector<128x128xbf16>, vector<4x128xf32> -> vector<4x128xf32>
    %12 = arith.addf %7, %11 : vector<4x128xf32>
    %13 = vector.extract_strided_slice %2 {offsets = [4, 0], sizes = [4, 128], strides = [1, 1]} : vector<8x128xbf16> to vector<4x128xbf16>
    %c0_12 = arith.constant 0 : index
    %c2 = arith.constant 2 : index
    %c0_13 = arith.constant 0 : index
    %c0_14 = arith.constant 0 : index
    %14 = vector.load %arg5[%c0_12, %c2, %c0_13, %c0_14] : memref<3x3x128x128xbf16, #tpu.memory_space<vmem>>, vector<1x1x128x128xbf16>
    %15 = vector.shape_cast %14 : vector<1x1x128x128xbf16> to vector<128x128xbf16>
    %cst_15 = arith.constant dense<0.000000e+00> : vector<4x128xf32>
    %16 = tpu.matmul %13, %15, %cst_15 {dimension_numbers = #tpu.dot_dimension_numbers<[1], [0], [0], [1], [0, 0, 1, 1], [], []>} : vector<4x128xbf16>, vector<128x128xbf16>, vector<4x128xf32> -> vector<4x128xf32>
    %17 = arith.addf %12, %16 : vector<4x128xf32>
    %c0_16 = arith.constant 0 : index
    %c0_17 = arith.constant 0 : index
    %c0_18 = arith.constant 0 : index
    %c0_19 = arith.constant 0 : index
    %18 = vector.load %arg3[%c0_16, %c0_17, %c0_18, %c0_19] : memref<1x1x8x128xbf16, #tpu.memory_space<vmem>>, vector<1x1x8x128xbf16>
    %19 = vector.shape_cast %18 : vector<1x1x8x128xbf16> to vector<8x128xbf16>
    %20 = vector.extract_strided_slice %19 {offsets = [0, 0], sizes = [4, 128], strides = [1, 1]} : vector<8x128xbf16> to vector<4x128xbf16>
    %c1_20 = arith.constant 1 : index
    %c0_21 = arith.constant 0 : index
    %c0_22 = arith.constant 0 : index
    %c0_23 = arith.constant 0 : index
    %21 = vector.load %arg5[%c1_20, %c0_21, %c0_22, %c0_23] : memref<3x3x128x128xbf16, #tpu.memory_space<vmem>>, vector<1x1x128x128xbf16>
    %22 = vector.shape_cast %21 : vector<1x1x128x128xbf16> to vector<128x128xbf16>
    %cst_24 = arith.constant dense<0.000000e+00> : vector<4x128xf32>
    %23 = tpu.matmul %20, %22, %cst_24 {dimension_numbers = #tpu.dot_dimension_numbers<[1], [0], [0], [1], [0, 0, 1, 1], [], []>} : vector<4x128xbf16>, vector<128x128xbf16>, vector<4x128xf32> -> vector<4x128xf32>
    %24 = arith.addf %17, %23 : vector<4x128xf32>
    %25 = vector.extract_strided_slice %19 {offsets = [2, 0], sizes = [4, 128], strides = [1, 1]} : vector<8x128xbf16> to vector<4x128xbf16>
    %c1_25 = arith.constant 1 : index
    %c1_26 = arith.constant 1 : index
    %c0_27 = arith.constant 0 : index
    %c0_28 = arith.constant 0 : index
    %26 = vector.load %arg5[%c1_25, %c1_26, %c0_27, %c0_28] : memref<3x3x128x128xbf16, #tpu.memory_space<vmem>>, vector<1x1x128x128xbf16>
    %27 = vector.shape_cast %26 : vector<1x1x128x128xbf16> to vector<128x128xbf16>
    %cst_29 = arith.constant dense<0.000000e+00> : vector<4x128xf32>
    %28 = tpu.matmul %25, %27, %cst_29 {dimension_numbers = #tpu.dot_dimension_numbers<[1], [0], [0], [1], [0, 0, 1, 1], [], []>} : vector<4x128xbf16>, vector<128x128xbf16>, vector<4x128xf32> -> vector<4x128xf32>
    %29 = arith.addf %24, %28 : vector<4x128xf32>
    %30 = vector.extract_strided_slice %19 {offsets = [4, 0], sizes = [4, 128], strides = [1, 1]} : vector<8x128xbf16> to vector<4x128xbf16>
    %c1_30 = arith.constant 1 : index
    %c2_31 = arith.constant 2 : index
    %c0_32 = arith.constant 0 : index
    %c0_33 = arith.constant 0 : index
    %31 = vector.load %arg5[%c1_30, %c2_31, %c0_32, %c0_33] : memref<3x3x128x128xbf16, #tpu.memory_space<vmem>>, vector<1x1x128x128xbf16>
    %32 = vector.shape_cast %31 : vector<1x1x128x128xbf16> to vector<128x128xbf16>
    %cst_34 = arith.constant dense<0.000000e+00> : vector<4x128xf32>
    %33 = tpu.matmul %30, %32, %cst_34 {dimension_numbers = #tpu.dot_dimension_numbers<[1], [0], [0], [1], [0, 0, 1, 1], [], []>} : vector<4x128xbf16>, vector<128x128xbf16>, vector<4x128xf32> -> vector<4x128xf32>
    %34 = arith.addf %29, %33 : vector<4x128xf32>
    %c0_35 = arith.constant 0 : index
    %c0_36 = arith.constant 0 : index
    %c0_37 = arith.constant 0 : index
    %c0_38 = arith.constant 0 : index
    %35 = vector.load %arg4[%c0_35, %c0_36, %c0_37, %c0_38] : memref<1x1x8x128xbf16, #tpu.memory_space<vmem>>, vector<1x1x8x128xbf16>
    %36 = vector.shape_cast %35 : vector<1x1x8x128xbf16> to vector<8x128xbf16>
    %37 = vector.extract_strided_slice %36 {offsets = [0, 0], sizes = [4, 128], strides = [1, 1]} : vector<8x128xbf16> to vector<4x128xbf16>
    %c2_39 = arith.constant 2 : index
    %c0_40 = arith.constant 0 : index
    %c0_41 = arith.constant 0 : index
    %c0_42 = arith.constant 0 : index
    %38 = vector.load %arg5[%c2_39, %c0_40, %c0_41, %c0_42] : memref<3x3x128x128xbf16, #tpu.memory_space<vmem>>, vector<1x1x128x128xbf16>
    %39 = vector.shape_cast %38 : vector<1x1x128x128xbf16> to vector<128x128xbf16>
    %cst_43 = arith.constant dense<0.000000e+00> : vector<4x128xf32>
    %40 = tpu.matmul %37, %39, %cst_43 {dimension_numbers = #tpu.dot_dimension_numbers<[1], [0], [0], [1], [0, 0, 1, 1], [], []>} : vector<4x128xbf16>, vector<128x128xbf16>, vector<4x128xf32> -> vector<4x128xf32>
    %41 = arith.addf %34, %40 : vector<4x128xf32>
    %42 = vector.extract_strided_slice %36 {offsets = [2, 0], sizes = [4, 128], strides = [1, 1]} : vector<8x128xbf16> to vector<4x128xbf16>
    %c2_44 = arith.constant 2 : index
    %c1_45 = arith.constant 1 : index
    %c0_46 = arith.constant 0 : index
    %c0_47 = arith.constant 0 : index
    %43 = vector.load %arg5[%c2_44, %c1_45, %c0_46, %c0_47] : memref<3x3x128x128xbf16, #tpu.memory_space<vmem>>, vector<1x1x128x128xbf16>
    %44 = vector.shape_cast %43 : vector<1x1x128x128xbf16> to vector<128x128xbf16>
    %cst_48 = arith.constant dense<0.000000e+00> : vector<4x128xf32>
    %45 = tpu.matmul %42, %44, %cst_48 {dimension_numbers = #tpu.dot_dimension_numbers<[1], [0], [0], [1], [0, 0, 1, 1], [], []>} : vector<4x128xbf16>, vector<128x128xbf16>, vector<4x128xf32> -> vector<4x128xf32>
    %46 = arith.addf %41, %45 : vector<4x128xf32>
    %47 = vector.extract_strided_slice %36 {offsets = [4, 0], sizes = [4, 128], strides = [1, 1]} : vector<8x128xbf16> to vector<4x128xbf16>
    %c2_49 = arith.constant 2 : index
    %c2_50 = arith.constant 2 : index
    %c0_51 = arith.constant 0 : index
    %c0_52 = arith.constant 0 : index
    %48 = vector.load %arg5[%c2_49, %c2_50, %c0_51, %c0_52] : memref<3x3x128x128xbf16, #tpu.memory_space<vmem>>, vector<1x1x128x128xbf16>
    %49 = vector.shape_cast %48 : vector<1x1x128x128xbf16> to vector<128x128xbf16>
    %cst_53 = arith.constant dense<0.000000e+00> : vector<4x128xf32>
    %50 = tpu.matmul %47, %49, %cst_53 {dimension_numbers = #tpu.dot_dimension_numbers<[1], [0], [0], [1], [0, 0, 1, 1], [], []>} : vector<4x128xbf16>, vector<128x128xbf16>, vector<4x128xf32> -> vector<4x128xf32>
    %51 = arith.addf %46, %50 : vector<4x128xf32>
    %c0_54 = arith.constant 0 : index
    %c0_55 = arith.constant 0 : index
    %52 = vector.load %arg6[%c0_54, %c0_55] : memref<1x128xf32, #tpu.memory_space<vmem>>, vector<1x128xf32>
    %53 = vector.broadcast %52 : vector<1x128xf32> to vector<4x128xf32>
    %54 = arith.addf %51, %53 : vector<4x128xf32>
    %cst_56 = arith.constant 0.000000e+00 : f32
    %55 = vector.broadcast %cst_56 : f32 to vector<4x128xf32>
    %56 = arith.cmpf ogt, %54, %55 : vector<4x128xf32>
    %cst_57 = arith.constant 0.000000e+00 : f32
    %57 = vector.broadcast %cst_57 : f32 to vector<4x128xf32>
    %58 = arith.minimumf %54, %57 : vector<4x128xf32>
    %59 = math.exp %58 : vector<4x128xf32>
    %cst_58 = arith.constant 1.000000e+00 : f32
    %60 = vector.broadcast %cst_58 : f32 to vector<4x128xf32>
    %61 = arith.subf %59, %60 : vector<4x128xf32>
    %62 = arith.select %56, %54, %61 : vector<4x128xi1>, vector<4x128xf32>
    %c0_59 = arith.constant 0 : index
    %c0_60 = arith.constant 0 : index
    %63 = vector.load %arg7[%c0_59, %c0_60] : memref<128x128xbf16, #tpu.memory_space<vmem>>, vector<128x128xbf16>
    %cst_61 = arith.constant dense<0.000000e+00> : vector<4x128xf32>
    %64 = tpu.matmul %25, %63, %cst_61 {dimension_numbers = #tpu.dot_dimension_numbers<[1], [0], [0], [1], [0, 0, 1, 1], [], []>} : vector<4x128xbf16>, vector<128x128xbf16>, vector<4x128xf32> -> vector<4x128xf32>
    %65 = arith.addf %62, %64 : vector<4x128xf32>
    %c0_62 = arith.constant 0 : index
    %c0_63 = arith.constant 0 : index
    %66 = vector.load %arg8[%c0_62, %c0_63] : memref<1x128xf32, #tpu.memory_space<vmem>>, vector<1x128xf32>
    %67 = vector.broadcast %66 : vector<1x128xf32> to vector<4x128xf32>
    %68 = arith.addf %65, %67 : vector<4x128xf32>
    %69 = arith.truncf %68 : vector<4x128xf32> to vector<4x128xbf16>
    %c0_64 = arith.constant 0 : index
    %c0_65 = arith.constant 0 : index
    %c0_66 = arith.constant 0 : index
    %c0_67 = arith.constant 0 : index
    %70 = vector.load %arg9[%c0_64, %c0_65, %c0_66, %c0_67] : memref<1x1x4x128xbf16, #tpu.memory_space<vmem>>, vector<1x1x4x128xbf16>
    %71 = vector.shape_cast %70 : vector<1x1x4x128xbf16> to vector<4x128xbf16>
    %72 = vector.shape_cast %69 : vector<4x128xbf16> to vector<1x1x4x128xbf16>
    tpu.vector_store %arg9[%c0_64, %c0_65, %c0_66, %c0_67], %72 {strides = array<i32>} : memref<1x1x4x128xbf16, #tpu.memory_space<vmem>>, vector<1x1x4x128xbf16>,
    return
  }
  func.func @transform_0(%arg0: i32, %arg1: i32) -> (i32, i32, i32, i32) {
    %c0_i32 = arith.constant 0 : i32
    %0 = arith.addi %arg1, %c0_i32 : i32
    %c0_i32_0 = arith.constant 0 : i32
    %c0_i32_1 = arith.constant 0 : i32
    %c0_i32_2 = arith.constant 0 : i32
    return %arg0, %0, %c0_i32_0, %c0_i32_1 : i32, i32, i32, i32
  }
  func.func @transform_1(%arg0: i32, %arg1: i32) -> (i32, i32, i32, i32) {
    %c2_i32 = arith.constant 2 : i32
    %0 = arith.addi %arg1, %c2_i32 : i32
    %c0_i32 = arith.constant 0 : i32
    %c0_i32_0 = arith.constant 0 : i32
    %c0_i32_1 = arith.constant 0 : i32
    return %arg0, %0, %c0_i32, %c0_i32_0 : i32, i32, i32, i32
  }
  func.func @transform_2(%arg0: i32, %arg1: i32) -> (i32, i32, i32, i32) {
    %c4_i32 = arith.constant 4 : i32
    %0 = arith.addi %arg1, %c4_i32 : i32
    %c0_i32 = arith.constant 0 : i32
    %c0_i32_0 = arith.constant 0 : i32
    %c0_i32_1 = arith.constant 0 : i32
    return %arg0, %0, %c0_i32, %c0_i32_0 : i32, i32, i32, i32
  }
  func.func @transform_3(%arg0: i32, %arg1: i32) -> (i32, i32, i32, i32) {
    %c0_i32 = arith.constant 0 : i32
    %c0_i32_0 = arith.constant 0 : i32
    %c0_i32_1 = arith.constant 0 : i32
    %c0_i32_2 = arith.constant 0 : i32
    %c0_i32_3 = arith.constant 0 : i32
    return %c0_i32, %c0_i32_0, %c0_i32_1, %c0_i32_2 : i32, i32, i32, i32
  }
  func.func @transform_4(%arg0: i32, %arg1: i32) -> (i32, i32) {
    %c0_i32 = arith.constant 0 : i32
    %c0_i32_0 = arith.constant 0 : i32
    %c0_i32_1 = arith.constant 0 : i32
    return %c0_i32, %c0_i32_0 : i32, i32
  }
  func.func @transform_5(%arg0: i32, %arg1: i32) -> (i32, i32) {
    %c0_i32 = arith.constant 0 : i32
    %c0_i32_0 = arith.constant 0 : i32
    %c0_i32_1 = arith.constant 0 : i32
    return %c0_i32, %c0_i32_0 : i32, i32
  }
  func.func @transform_6(%arg0: i32, %arg1: i32) -> (i32, i32) {
    %c0_i32 = arith.constant 0 : i32
    %c0_i32_0 = arith.constant 0 : i32
    %c0_i32_1 = arith.constant 0 : i32
    return %c0_i32, %c0_i32_0 : i32, i32
  }
  func.func @transform_7(%arg0: i32, %arg1: i32) -> (i32, i32, i32, i32) {
    %c0_i32 = arith.constant 0 : i32
    %c0_i32_0 = arith.constant 0 : i32
    %c0_i32_1 = arith.constant 0 : i32
    return %arg0, %arg1, %c0_i32, %c0_i32_0 : i32, i32, i32, i32
  }
}

module attributes {stable_mosaic.version = 11 : i64} {
  func.func @kernel(%arg0: i32, %arg1: i32, %arg2: memref<1x1x12x128xbf16, #tpu.memory_space<vmem>>, %arg3: memref<1x1x12x128xbf16, #tpu.memory_space<vmem>>, %arg4: memref<1x1x12x128xbf16, #tpu.memory_space<vmem>>, %arg5: memref<3x3x128x128xbf16, #tpu.memory_space<vmem>>, %arg6: memref<1x128xf32, #tpu.memory_space<vmem>>, %arg7: memref<128x128xbf16, #tpu.memory_space<vmem>>, %arg8: memref<1x128xf32, #tpu.memory_space<vmem>>, %arg9: memref<1x1x4x128xbf16, #tpu.memory_space<vmem>>) attributes {dimension_semantics = [#tpu.dimension_semantics<parallel>, #tpu.dimension_semantics<parallel>], iteration_bounds = array<i64: 2, 4>, scalar_prefetch = 0 : i64, scratch_operands = 0 : i64, tpu.core_type = #tpu.core_type<tc>, window_params = [{transform_indices = @transform_0, window_bounds = array<i64: 1, 1, 12, 128>}, {transform_indices = @transform_1, window_bounds = array<i64: 1, 1, 12, 128>}, {transform_indices = @transform_2, window_bounds = array<i64: 1, 1, 12, 128>}, {pipeline_mode = #tpu.pipeline_mode<synchronous>, transform_indices = @transform_3, window_bounds = array<i64: 3, 3, 128, 128>}, {pipeline_mode = #tpu.pipeline_mode<synchronous>, transform_indices = @transform_4, window_bounds = array<i64: 1, 128>}, {pipeline_mode = #tpu.pipeline_mode<synchronous>, transform_indices = @transform_5, window_bounds = array<i64: 128, 128>}, {pipeline_mode = #tpu.pipeline_mode<synchronous>, transform_indices = @transform_6, window_bounds = array<i64: 1, 128>}, {transform_indices = @transform_7, window_bounds = array<i64: 1, 1, 4, 128>}]} {
    %cst = arith.constant 0.000000e+00 : f32
    %0 = vector.broadcast %cst : f32 to vector<4x128xf32>
    %c0 = arith.constant 0 : index
    %c0_0 = arith.constant 0 : index
    %c0_1 = arith.constant 0 : index
    %c0_2 = arith.constant 0 : index
    %1 = vector.load %arg2[%c0, %c0_0, %c0_1, %c0_2] : memref<1x1x12x128xbf16, #tpu.memory_space<vmem>>, vector<1x1x12x128xbf16>
    %2 = vector.shape_cast %1 : vector<1x1x12x128xbf16> to vector<12x128xbf16>
    %3 = vector.extract_strided_slice %2 {offsets = [0, 0], sizes = [4, 128], strides = [1, 1]} : vector<12x128xbf16> to vector<4x128xbf16>
    %c0_3 = arith.constant 0 : index
    %c0_4 = arith.constant 0 : index
    %c0_5 = arith.constant 0 : index
    %c0_6 = arith.constant 0 : index
    %4 = vector.load %arg5[%c0_3, %c0_4, %c0_5, %c0_6] : memref<3x3x128x128xbf16, #tpu.memory_space<vmem>>, vector<1x1x128x128xbf16>
    %5 = vector.shape_cast %4 : vector<1x1x128x128xbf16> to vector<128x128xbf16>
    %cst_7 = arith.constant dense<0.000000e+00> : vector<4x128xf32>
    %6 = tpu.matmul %3, %5, %cst_7 {dimension_numbers = #tpu.dot_dimension_numbers<[1], [0], [0], [1], [0, 0, 1, 1], [], []>} : vector<4x128xbf16>, vector<128x128xbf16>, vector<4x128xf32> -> vector<4x128xf32>
    %7 = arith.addf %0, %6 : vector<4x128xf32>
    %8 = vector.extract_strided_slice %2 {offsets = [4, 0], sizes = [4, 128], strides = [1, 1]} : vector<12x128xbf16> to vector<4x128xbf16>
    %c0_8 = arith.constant 0 : index
    %c1 = arith.constant 1 : index
    %c0_9 = arith.constant 0 : index
    %c0_10 = arith.constant 0 : index
    %9 = vector.load %arg5[%c0_8, %c1, %c0_9, %c0_10] : memref<3x3x128x128xbf16, #tpu.memory_space<vmem>>, vector<1x1x128x128xbf16>
    %10 = vector.shape_cast %9 : vector<1x1x128x128xbf16> to vector<128x128xbf16>
    %cst_11 = arith.constant dense<0.000000e+00> : vector<4x128xf32>
    %11 = tpu.matmul %8, %10, %cst_11 {dimension_numbers = #tpu.dot_dimension_numbers<[1], [0], [0], [1], [0, 0, 1, 1], [], []>} : vector<4x128xbf16>, vector<128x128xbf16>, vector<4x128xf32> -> vector<4x128xf32>
    %12 = arith.addf %7, %11 : vector<4x128xf32>
    %13 = vector.extract_strided_slice %2 {offsets = [8, 0], sizes = [4, 128], strides = [1, 1]} : vector<12x128xbf16> to vector<4x128xbf16>
    %c0_12 = arith.constant 0 : index
    %c2 = arith.constant 2 : index
    %c0_13 = arith.constant 0 : index
    %c0_14 = arith.constant 0 : index
    %14 = vector.load %arg5[%c0_12, %c2, %c0_13, %c0_14] : memref<3x3x128x128xbf16, #tpu.memory_space<vmem>>, vector<1x1x128x128xbf16>
    %15 = vector.shape_cast %14 : vector<1x1x128x128xbf16> to vector<128x128xbf16>
    %cst_15 = arith.constant dense<0.000000e+00> : vector<4x128xf32>
    %16 = tpu.matmul %13, %15, %cst_15 {dimension_numbers = #tpu.dot_dimension_numbers<[1], [0], [0], [1], [0, 0, 1, 1], [], []>} : vector<4x128xbf16>, vector<128x128xbf16>, vector<4x128xf32> -> vector<4x128xf32>
    %17 = arith.addf %12, %16 : vector<4x128xf32>
    %c0_16 = arith.constant 0 : index
    %c0_17 = arith.constant 0 : index
    %c0_18 = arith.constant 0 : index
    %c0_19 = arith.constant 0 : index
    %18 = vector.load %arg3[%c0_16, %c0_17, %c0_18, %c0_19] : memref<1x1x12x128xbf16, #tpu.memory_space<vmem>>, vector<1x1x12x128xbf16>
    %19 = vector.shape_cast %18 : vector<1x1x12x128xbf16> to vector<12x128xbf16>
    %20 = vector.extract_strided_slice %19 {offsets = [0, 0], sizes = [4, 128], strides = [1, 1]} : vector<12x128xbf16> to vector<4x128xbf16>
    %c1_20 = arith.constant 1 : index
    %c0_21 = arith.constant 0 : index
    %c0_22 = arith.constant 0 : index
    %c0_23 = arith.constant 0 : index
    %21 = vector.load %arg5[%c1_20, %c0_21, %c0_22, %c0_23] : memref<3x3x128x128xbf16, #tpu.memory_space<vmem>>, vector<1x1x128x128xbf16>
    %22 = vector.shape_cast %21 : vector<1x1x128x128xbf16> to vector<128x128xbf16>
    %cst_24 = arith.constant dense<0.000000e+00> : vector<4x128xf32>
    %23 = tpu.matmul %20, %22, %cst_24 {dimension_numbers = #tpu.dot_dimension_numbers<[1], [0], [0], [1], [0, 0, 1, 1], [], []>} : vector<4x128xbf16>, vector<128x128xbf16>, vector<4x128xf32> -> vector<4x128xf32>
    %24 = arith.addf %17, %23 : vector<4x128xf32>
    %25 = vector.extract_strided_slice %19 {offsets = [4, 0], sizes = [4, 128], strides = [1, 1]} : vector<12x128xbf16> to vector<4x128xbf16>
    %c1_25 = arith.constant 1 : index
    %c1_26 = arith.constant 1 : index
    %c0_27 = arith.constant 0 : index
    %c0_28 = arith.constant 0 : index
    %26 = vector.load %arg5[%c1_25, %c1_26, %c0_27, %c0_28] : memref<3x3x128x128xbf16, #tpu.memory_space<vmem>>, vector<1x1x128x128xbf16>
    %27 = vector.shape_cast %26 : vector<1x1x128x128xbf16> to vector<128x128xbf16>
    %cst_29 = arith.constant dense<0.000000e+00> : vector<4x128xf32>
    %28 = tpu.matmul %25, %27, %cst_29 {dimension_numbers = #tpu.dot_dimension_numbers<[1], [0], [0], [1], [0, 0, 1, 1], [], []>} : vector<4x128xbf16>, vector<128x128xbf16>, vector<4x128xf32> -> vector<4x128xf32>
    %29 = arith.addf %24, %28 : vector<4x128xf32>
    %30 = vector.extract_strided_slice %19 {offsets = [8, 0], sizes = [4, 128], strides = [1, 1]} : vector<12x128xbf16> to vector<4x128xbf16>
    %c1_30 = arith.constant 1 : index
    %c2_31 = arith.constant 2 : index
    %c0_32 = arith.constant 0 : index
    %c0_33 = arith.constant 0 : index
    %31 = vector.load %arg5[%c1_30, %c2_31, %c0_32, %c0_33] : memref<3x3x128x128xbf16, #tpu.memory_space<vmem>>, vector<1x1x128x128xbf16>
    %32 = vector.shape_cast %31 : vector<1x1x128x128xbf16> to vector<128x128xbf16>
    %cst_34 = arith.constant dense<0.000000e+00> : vector<4x128xf32>
    %33 = tpu.matmul %30, %32, %cst_34 {dimension_numbers = #tpu.dot_dimension_numbers<[1], [0], [0], [1], [0, 0, 1, 1], [], []>} : vector<4x128xbf16>, vector<128x128xbf16>, vector<4x128xf32> -> vector<4x128xf32>
    %34 = arith.addf %29, %33 : vector<4x128xf32>
    %c0_35 = arith.constant 0 : index
    %c0_36 = arith.constant 0 : index
    %c0_37 = arith.constant 0 : index
    %c0_38 = arith.constant 0 : index
    %35 = vector.load %arg4[%c0_35, %c0_36, %c0_37, %c0_38] : memref<1x1x12x128xbf16, #tpu.memory_space<vmem>>, vector<1x1x12x128xbf16>
    %36 = vector.shape_cast %35 : vector<1x1x12x128xbf16> to vector<12x128xbf16>
    %37 = vector.extract_strided_slice %36 {offsets = [0, 0], sizes = [4, 128], strides = [1, 1]} : vector<12x128xbf16> to vector<4x128xbf16>
    %c2_39 = arith.constant 2 : index
    %c0_40 = arith.constant 0 : index
    %c0_41 = arith.constant 0 : index
    %c0_42 = arith.constant 0 : index
    %38 = vector.load %arg5[%c2_39, %c0_40, %c0_41, %c0_42] : memref<3x3x128x128xbf16, #tpu.memory_space<vmem>>, vector<1x1x128x128xbf16>
    %39 = vector.shape_cast %38 : vector<1x1x128x128xbf16> to vector<128x128xbf16>
    %cst_43 = arith.constant dense<0.000000e+00> : vector<4x128xf32>
    %40 = tpu.matmul %37, %39, %cst_43 {dimension_numbers = #tpu.dot_dimension_numbers<[1], [0], [0], [1], [0, 0, 1, 1], [], []>} : vector<4x128xbf16>, vector<128x128xbf16>, vector<4x128xf32> -> vector<4x128xf32>
    %41 = arith.addf %34, %40 : vector<4x128xf32>
    %42 = vector.extract_strided_slice %36 {offsets = [4, 0], sizes = [4, 128], strides = [1, 1]} : vector<12x128xbf16> to vector<4x128xbf16>
    %c2_44 = arith.constant 2 : index
    %c1_45 = arith.constant 1 : index
    %c0_46 = arith.constant 0 : index
    %c0_47 = arith.constant 0 : index
    %43 = vector.load %arg5[%c2_44, %c1_45, %c0_46, %c0_47] : memref<3x3x128x128xbf16, #tpu.memory_space<vmem>>, vector<1x1x128x128xbf16>
    %44 = vector.shape_cast %43 : vector<1x1x128x128xbf16> to vector<128x128xbf16>
    %cst_48 = arith.constant dense<0.000000e+00> : vector<4x128xf32>
    %45 = tpu.matmul %42, %44, %cst_48 {dimension_numbers = #tpu.dot_dimension_numbers<[1], [0], [0], [1], [0, 0, 1, 1], [], []>} : vector<4x128xbf16>, vector<128x128xbf16>, vector<4x128xf32> -> vector<4x128xf32>
    %46 = arith.addf %41, %45 : vector<4x128xf32>
    %47 = vector.extract_strided_slice %36 {offsets = [8, 0], sizes = [4, 128], strides = [1, 1]} : vector<12x128xbf16> to vector<4x128xbf16>
    %c2_49 = arith.constant 2 : index
    %c2_50 = arith.constant 2 : index
    %c0_51 = arith.constant 0 : index
    %c0_52 = arith.constant 0 : index
    %48 = vector.load %arg5[%c2_49, %c2_50, %c0_51, %c0_52] : memref<3x3x128x128xbf16, #tpu.memory_space<vmem>>, vector<1x1x128x128xbf16>
    %49 = vector.shape_cast %48 : vector<1x1x128x128xbf16> to vector<128x128xbf16>
    %cst_53 = arith.constant dense<0.000000e+00> : vector<4x128xf32>
    %50 = tpu.matmul %47, %49, %cst_53 {dimension_numbers = #tpu.dot_dimension_numbers<[1], [0], [0], [1], [0, 0, 1, 1], [], []>} : vector<4x128xbf16>, vector<128x128xbf16>, vector<4x128xf32> -> vector<4x128xf32>
    %51 = arith.addf %46, %50 : vector<4x128xf32>
    %c0_54 = arith.constant 0 : index
    %c0_55 = arith.constant 0 : index
    %52 = vector.load %arg6[%c0_54, %c0_55] : memref<1x128xf32, #tpu.memory_space<vmem>>, vector<1x128xf32>
    %53 = vector.broadcast %52 : vector<1x128xf32> to vector<4x128xf32>
    %54 = arith.addf %51, %53 : vector<4x128xf32>
    %cst_56 = arith.constant 0.000000e+00 : f32
    %55 = vector.broadcast %cst_56 : f32 to vector<4x128xf32>
    %56 = arith.cmpf ogt, %54, %55 : vector<4x128xf32>
    %cst_57 = arith.constant 0.000000e+00 : f32
    %57 = vector.broadcast %cst_57 : f32 to vector<4x128xf32>
    %58 = arith.minimumf %54, %57 : vector<4x128xf32>
    %59 = math.exp %58 : vector<4x128xf32>
    %cst_58 = arith.constant 1.000000e+00 : f32
    %60 = vector.broadcast %cst_58 : f32 to vector<4x128xf32>
    %61 = arith.subf %59, %60 : vector<4x128xf32>
    %62 = arith.select %56, %54, %61 : vector<4x128xi1>, vector<4x128xf32>
    %c0_59 = arith.constant 0 : index
    %c0_60 = arith.constant 0 : index
    %63 = vector.load %arg7[%c0_59, %c0_60] : memref<128x128xbf16, #tpu.memory_space<vmem>>, vector<128x128xbf16>
    %cst_61 = arith.constant dense<0.000000e+00> : vector<4x128xf32>
    %64 = tpu.matmul %25, %63, %cst_61 {dimension_numbers = #tpu.dot_dimension_numbers<[1], [0], [0], [1], [0, 0, 1, 1], [], []>} : vector<4x128xbf16>, vector<128x128xbf16>, vector<4x128xf32> -> vector<4x128xf32>
    %65 = arith.addf %62, %64 : vector<4x128xf32>
    %c0_62 = arith.constant 0 : index
    %c0_63 = arith.constant 0 : index
    %66 = vector.load %arg8[%c0_62, %c0_63] : memref<1x128xf32, #tpu.memory_space<vmem>>, vector<1x128xf32>
    %67 = vector.broadcast %66 : vector<1x128xf32> to vector<4x128xf32>
    %68 = arith.addf %65, %67 : vector<4x128xf32>
    %69 = arith.truncf %68 : vector<4x128xf32> to vector<4x128xbf16>
    %c0_64 = arith.constant 0 : index
    %c0_65 = arith.constant 0 : index
    %c0_66 = arith.constant 0 : index
    %c0_67 = arith.constant 0 : index
    %70 = vector.load %arg9[%c0_64, %c0_65, %c0_66, %c0_67] : memref<1x1x4x128xbf16, #tpu.memory_space<vmem>>, vector<1x1x4x128xbf16>
    %71 = vector.shape_cast %70 : vector<1x1x4x128xbf16> to vector<4x128xbf16>
    %72 = vector.shape_cast %69 : vector<4x128xbf16> to vector<1x1x4x128xbf16>
    tpu.vector_store %arg9[%c0_64, %c0_65, %c0_66, %c0_67], %72 {strides = array<i32>} : memref<1x1x4x128xbf16, #tpu.memory_space<vmem>>, vector<1x1x4x128xbf16>,
    return
  }
  func.func @transform_0(%arg0: i32, %arg1: i32) -> (i32, i32, i32, i32) {
    %c0_i32 = arith.constant 0 : i32
    %0 = arith.addi %arg1, %c0_i32 : i32
    %c0_i32_0 = arith.constant 0 : i32
    %c0_i32_1 = arith.constant 0 : i32
    %c0_i32_2 = arith.constant 0 : i32
    return %arg0, %0, %c0_i32_0, %c0_i32_1 : i32, i32, i32, i32
  }
  func.func @transform_1(%arg0: i32, %arg1: i32) -> (i32, i32, i32, i32) {
    %c4_i32 = arith.constant 4 : i32
    %0 = arith.addi %arg1, %c4_i32 : i32
    %c0_i32 = arith.constant 0 : i32
    %c0_i32_0 = arith.constant 0 : i32
    %c0_i32_1 = arith.constant 0 : i32
    return %arg0, %0, %c0_i32, %c0_i32_0 : i32, i32, i32, i32
  }
  func.func @transform_2(%arg0: i32, %arg1: i32) -> (i32, i32, i32, i32) {
    %c8_i32 = arith.constant 8 : i32
    %0 = arith.addi %arg1, %c8_i32 : i32
    %c0_i32 = arith.constant 0 : i32
    %c0_i32_0 = arith.constant 0 : i32
    %c0_i32_1 = arith.constant 0 : i32
    return %arg0, %0, %c0_i32, %c0_i32_0 : i32, i32, i32, i32
  }
  func.func @transform_3(%arg0: i32, %arg1: i32) -> (i32, i32, i32, i32) {
    %c0_i32 = arith.constant 0 : i32
    %c0_i32_0 = arith.constant 0 : i32
    %c0_i32_1 = arith.constant 0 : i32
    %c0_i32_2 = arith.constant 0 : i32
    %c0_i32_3 = arith.constant 0 : i32
    return %c0_i32, %c0_i32_0, %c0_i32_1, %c0_i32_2 : i32, i32, i32, i32
  }
  func.func @transform_4(%arg0: i32, %arg1: i32) -> (i32, i32) {
    %c0_i32 = arith.constant 0 : i32
    %c0_i32_0 = arith.constant 0 : i32
    %c0_i32_1 = arith.constant 0 : i32
    return %c0_i32, %c0_i32_0 : i32, i32
  }
  func.func @transform_5(%arg0: i32, %arg1: i32) -> (i32, i32) {
    %c0_i32 = arith.constant 0 : i32
    %c0_i32_0 = arith.constant 0 : i32
    %c0_i32_1 = arith.constant 0 : i32
    return %c0_i32, %c0_i32_0 : i32, i32
  }
  func.func @transform_6(%arg0: i32, %arg1: i32) -> (i32, i32) {
    %c0_i32 = arith.constant 0 : i32
    %c0_i32_0 = arith.constant 0 : i32
    %c0_i32_1 = arith.constant 0 : i32
    return %c0_i32, %c0_i32_0 : i32, i32
  }
  func.func @transform_7(%arg0: i32, %arg1: i32) -> (i32, i32, i32, i32) {
    %c0_i32 = arith.constant 0 : i32
    %c0_i32_0 = arith.constant 0 : i32
    %c0_i32_1 = arith.constant 0 : i32
    return %arg0, %arg1, %c0_i32, %c0_i32_0 : i32, i32, i32, i32
  }
}

module attributes {stable_mosaic.version = 11 : i64} {
  func.func @kernel(%arg0: i32, %arg1: i32, %arg2: memref<1x1x6x128xbf16, #tpu.memory_space<vmem>>, %arg3: memref<1x1x6x128xbf16, #tpu.memory_space<vmem>>, %arg4: memref<1x1x6x128xbf16, #tpu.memory_space<vmem>>, %arg5: memref<3x3x128x128xbf16, #tpu.memory_space<vmem>>, %arg6: memref<1x128xf32, #tpu.memory_space<vmem>>, %arg7: memref<128x128xbf16, #tpu.memory_space<vmem>>, %arg8: memref<1x128xf32, #tpu.memory_space<vmem>>, %arg9: memref<1x1x4x128xbf16, #tpu.memory_space<vmem>>) attributes {dimension_semantics = [#tpu.dimension_semantics<parallel>, #tpu.dimension_semantics<parallel>], iteration_bounds = array<i64: 2, 4>, scalar_prefetch = 0 : i64, scratch_operands = 0 : i64, tpu.core_type = #tpu.core_type<tc>, window_params = [{transform_indices = @transform_0, window_bounds = array<i64: 1, 1, 6, 128>}, {transform_indices = @transform_1, window_bounds = array<i64: 1, 1, 6, 128>}, {transform_indices = @transform_2, window_bounds = array<i64: 1, 1, 6, 128>}, {pipeline_mode = #tpu.pipeline_mode<synchronous>, transform_indices = @transform_3, window_bounds = array<i64: 3, 3, 128, 128>}, {pipeline_mode = #tpu.pipeline_mode<synchronous>, transform_indices = @transform_4, window_bounds = array<i64: 1, 128>}, {pipeline_mode = #tpu.pipeline_mode<synchronous>, transform_indices = @transform_5, window_bounds = array<i64: 128, 128>}, {pipeline_mode = #tpu.pipeline_mode<synchronous>, transform_indices = @transform_6, window_bounds = array<i64: 1, 128>}, {transform_indices = @transform_7, window_bounds = array<i64: 1, 1, 4, 128>}]} {
    %cst = arith.constant 0.000000e+00 : f32
    %0 = vector.broadcast %cst : f32 to vector<4x128xf32>
    %c0 = arith.constant 0 : index
    %c0_0 = arith.constant 0 : index
    %c0_1 = arith.constant 0 : index
    %c0_2 = arith.constant 0 : index
    %1 = vector.load %arg2[%c0, %c0_0, %c0_1, %c0_2] : memref<1x1x6x128xbf16, #tpu.memory_space<vmem>>, vector<1x1x6x128xbf16>
    %2 = vector.shape_cast %1 : vector<1x1x6x128xbf16> to vector<6x128xbf16>
    %3 = vector.extract_strided_slice %2 {offsets = [0, 0], sizes = [4, 128], strides = [1, 1]} : vector<6x128xbf16> to vector<4x128xbf16>
    %c0_3 = arith.constant 0 : index
    %c0_4 = arith.constant 0 : index
    %c0_5 = arith.constant 0 : index
    %c0_6 = arith.constant 0 : index
    %4 = vector.load %arg5[%c0_3, %c0_4, %c0_5, %c0_6] : memref<3x3x128x128xbf16, #tpu.memory_space<vmem>>, vector<1x1x128x128xbf16>
    %5 = vector.shape_cast %4 : vector<1x1x128x128xbf16> to vector<128x128xbf16>
    %cst_7 = arith.constant dense<0.000000e+00> : vector<4x128xf32>
    %6 = tpu.matmul %3, %5, %cst_7 {dimension_numbers = #tpu.dot_dimension_numbers<[1], [0], [0], [1], [0, 0, 1, 1], [], []>} : vector<4x128xbf16>, vector<128x128xbf16>, vector<4x128xf32> -> vector<4x128xf32>
    %7 = arith.addf %0, %6 : vector<4x128xf32>
    %8 = vector.extract_strided_slice %2 {offsets = [1, 0], sizes = [4, 128], strides = [1, 1]} : vector<6x128xbf16> to vector<4x128xbf16>
    %c0_8 = arith.constant 0 : index
    %c1 = arith.constant 1 : index
    %c0_9 = arith.constant 0 : index
    %c0_10 = arith.constant 0 : index
    %9 = vector.load %arg5[%c0_8, %c1, %c0_9, %c0_10] : memref<3x3x128x128xbf16, #tpu.memory_space<vmem>>, vector<1x1x128x128xbf16>
    %10 = vector.shape_cast %9 : vector<1x1x128x128xbf16> to vector<128x128xbf16>
    %cst_11 = arith.constant dense<0.000000e+00> : vector<4x128xf32>
    %11 = tpu.matmul %8, %10, %cst_11 {dimension_numbers = #tpu.dot_dimension_numbers<[1], [0], [0], [1], [0, 0, 1, 1], [], []>} : vector<4x128xbf16>, vector<128x128xbf16>, vector<4x128xf32> -> vector<4x128xf32>
    %12 = arith.addf %7, %11 : vector<4x128xf32>
    %13 = vector.extract_strided_slice %2 {offsets = [2, 0], sizes = [4, 128], strides = [1, 1]} : vector<6x128xbf16> to vector<4x128xbf16>
    %c0_12 = arith.constant 0 : index
    %c2 = arith.constant 2 : index
    %c0_13 = arith.constant 0 : index
    %c0_14 = arith.constant 0 : index
    %14 = vector.load %arg5[%c0_12, %c2, %c0_13, %c0_14] : memref<3x3x128x128xbf16, #tpu.memory_space<vmem>>, vector<1x1x128x128xbf16>
    %15 = vector.shape_cast %14 : vector<1x1x128x128xbf16> to vector<128x128xbf16>
    %cst_15 = arith.constant dense<0.000000e+00> : vector<4x128xf32>
    %16 = tpu.matmul %13, %15, %cst_15 {dimension_numbers = #tpu.dot_dimension_numbers<[1], [0], [0], [1], [0, 0, 1, 1], [], []>} : vector<4x128xbf16>, vector<128x128xbf16>, vector<4x128xf32> -> vector<4x128xf32>
    %17 = arith.addf %12, %16 : vector<4x128xf32>
    %c0_16 = arith.constant 0 : index
    %c0_17 = arith.constant 0 : index
    %c0_18 = arith.constant 0 : index
    %c0_19 = arith.constant 0 : index
    %18 = vector.load %arg3[%c0_16, %c0_17, %c0_18, %c0_19] : memref<1x1x6x128xbf16, #tpu.memory_space<vmem>>, vector<1x1x6x128xbf16>
    %19 = vector.shape_cast %18 : vector<1x1x6x128xbf16> to vector<6x128xbf16>
    %20 = vector.extract_strided_slice %19 {offsets = [0, 0], sizes = [4, 128], strides = [1, 1]} : vector<6x128xbf16> to vector<4x128xbf16>
    %c1_20 = arith.constant 1 : index
    %c0_21 = arith.constant 0 : index
    %c0_22 = arith.constant 0 : index
    %c0_23 = arith.constant 0 : index
    %21 = vector.load %arg5[%c1_20, %c0_21, %c0_22, %c0_23] : memref<3x3x128x128xbf16, #tpu.memory_space<vmem>>, vector<1x1x128x128xbf16>
    %22 = vector.shape_cast %21 : vector<1x1x128x128xbf16> to vector<128x128xbf16>
    %cst_24 = arith.constant dense<0.000000e+00> : vector<4x128xf32>
    %23 = tpu.matmul %20, %22, %cst_24 {dimension_numbers = #tpu.dot_dimension_numbers<[1], [0], [0], [1], [0, 0, 1, 1], [], []>} : vector<4x128xbf16>, vector<128x128xbf16>, vector<4x128xf32> -> vector<4x128xf32>
    %24 = arith.addf %17, %23 : vector<4x128xf32>
    %25 = vector.extract_strided_slice %19 {offsets = [1, 0], sizes = [4, 128], strides = [1, 1]} : vector<6x128xbf16> to vector<4x128xbf16>
    %c1_25 = arith.constant 1 : index
    %c1_26 = arith.constant 1 : index
    %c0_27 = arith.constant 0 : index
    %c0_28 = arith.constant 0 : index
    %26 = vector.load %arg5[%c1_25, %c1_26, %c0_27, %c0_28] : memref<3x3x128x128xbf16, #tpu.memory_space<vmem>>, vector<1x1x128x128xbf16>
    %27 = vector.shape_cast %26 : vector<1x1x128x128xbf16> to vector<128x128xbf16>
    %cst_29 = arith.constant dense<0.000000e+00> : vector<4x128xf32>
    %28 = tpu.matmul %25, %27, %cst_29 {dimension_numbers = #tpu.dot_dimension_numbers<[1], [0], [0], [1], [0, 0, 1, 1], [], []>} : vector<4x128xbf16>, vector<128x128xbf16>, vector<4x128xf32> -> vector<4x128xf32>
    %29 = arith.addf %24, %28 : vector<4x128xf32>
    %30 = vector.extract_strided_slice %19 {offsets = [2, 0], sizes = [4, 128], strides = [1, 1]} : vector<6x128xbf16> to vector<4x128xbf16>
    %c1_30 = arith.constant 1 : index
    %c2_31 = arith.constant 2 : index
    %c0_32 = arith.constant 0 : index
    %c0_33 = arith.constant 0 : index
    %31 = vector.load %arg5[%c1_30, %c2_31, %c0_32, %c0_33] : memref<3x3x128x128xbf16, #tpu.memory_space<vmem>>, vector<1x1x128x128xbf16>
    %32 = vector.shape_cast %31 : vector<1x1x128x128xbf16> to vector<128x128xbf16>
    %cst_34 = arith.constant dense<0.000000e+00> : vector<4x128xf32>
    %33 = tpu.matmul %30, %32, %cst_34 {dimension_numbers = #tpu.dot_dimension_numbers<[1], [0], [0], [1], [0, 0, 1, 1], [], []>} : vector<4x128xbf16>, vector<128x128xbf16>, vector<4x128xf32> -> vector<4x128xf32>
    %34 = arith.addf %29, %33 : vector<4x128xf32>
    %c0_35 = arith.constant 0 : index
    %c0_36 = arith.constant 0 : index
    %c0_37 = arith.constant 0 : index
    %c0_38 = arith.constant 0 : index
    %35 = vector.load %arg4[%c0_35, %c0_36, %c0_37, %c0_38] : memref<1x1x6x128xbf16, #tpu.memory_space<vmem>>, vector<1x1x6x128xbf16>
    %36 = vector.shape_cast %35 : vector<1x1x6x128xbf16> to vector<6x128xbf16>
    %37 = vector.extract_strided_slice %36 {offsets = [0, 0], sizes = [4, 128], strides = [1, 1]} : vector<6x128xbf16> to vector<4x128xbf16>
    %c2_39 = arith.constant 2 : index
    %c0_40 = arith.constant 0 : index
    %c0_41 = arith.constant 0 : index
    %c0_42 = arith.constant 0 : index
    %38 = vector.load %arg5[%c2_39, %c0_40, %c0_41, %c0_42] : memref<3x3x128x128xbf16, #tpu.memory_space<vmem>>, vector<1x1x128x128xbf16>
    %39 = vector.shape_cast %38 : vector<1x1x128x128xbf16> to vector<128x128xbf16>
    %cst_43 = arith.constant dense<0.000000e+00> : vector<4x128xf32>
    %40 = tpu.matmul %37, %39, %cst_43 {dimension_numbers = #tpu.dot_dimension_numbers<[1], [0], [0], [1], [0, 0, 1, 1], [], []>} : vector<4x128xbf16>, vector<128x128xbf16>, vector<4x128xf32> -> vector<4x128xf32>
    %41 = arith.addf %34, %40 : vector<4x128xf32>
    %42 = vector.extract_strided_slice %36 {offsets = [1, 0], sizes = [4, 128], strides = [1, 1]} : vector<6x128xbf16> to vector<4x128xbf16>
    %c2_44 = arith.constant 2 : index
    %c1_45 = arith.constant 1 : index
    %c0_46 = arith.constant 0 : index
    %c0_47 = arith.constant 0 : index
    %43 = vector.load %arg5[%c2_44, %c1_45, %c0_46, %c0_47] : memref<3x3x128x128xbf16, #tpu.memory_space<vmem>>, vector<1x1x128x128xbf16>
    %44 = vector.shape_cast %43 : vector<1x1x128x128xbf16> to vector<128x128xbf16>
    %cst_48 = arith.constant dense<0.000000e+00> : vector<4x128xf32>
    %45 = tpu.matmul %42, %44, %cst_48 {dimension_numbers = #tpu.dot_dimension_numbers<[1], [0], [0], [1], [0, 0, 1, 1], [], []>} : vector<4x128xbf16>, vector<128x128xbf16>, vector<4x128xf32> -> vector<4x128xf32>
    %46 = arith.addf %41, %45 : vector<4x128xf32>
    %47 = vector.extract_strided_slice %36 {offsets = [2, 0], sizes = [4, 128], strides = [1, 1]} : vector<6x128xbf16> to vector<4x128xbf16>
    %c2_49 = arith.constant 2 : index
    %c2_50 = arith.constant 2 : index
    %c0_51 = arith.constant 0 : index
    %c0_52 = arith.constant 0 : index
    %48 = vector.load %arg5[%c2_49, %c2_50, %c0_51, %c0_52] : memref<3x3x128x128xbf16, #tpu.memory_space<vmem>>, vector<1x1x128x128xbf16>
    %49 = vector.shape_cast %48 : vector<1x1x128x128xbf16> to vector<128x128xbf16>
    %cst_53 = arith.constant dense<0.000000e+00> : vector<4x128xf32>
    %50 = tpu.matmul %47, %49, %cst_53 {dimension_numbers = #tpu.dot_dimension_numbers<[1], [0], [0], [1], [0, 0, 1, 1], [], []>} : vector<4x128xbf16>, vector<128x128xbf16>, vector<4x128xf32> -> vector<4x128xf32>
    %51 = arith.addf %46, %50 : vector<4x128xf32>
    %c0_54 = arith.constant 0 : index
    %c0_55 = arith.constant 0 : index
    %52 = vector.load %arg6[%c0_54, %c0_55] : memref<1x128xf32, #tpu.memory_space<vmem>>, vector<1x128xf32>
    %53 = vector.broadcast %52 : vector<1x128xf32> to vector<4x128xf32>
    %54 = arith.addf %51, %53 : vector<4x128xf32>
    %cst_56 = arith.constant 0.000000e+00 : f32
    %55 = vector.broadcast %cst_56 : f32 to vector<4x128xf32>
    %56 = arith.cmpf ogt, %54, %55 : vector<4x128xf32>
    %cst_57 = arith.constant 0.000000e+00 : f32
    %57 = vector.broadcast %cst_57 : f32 to vector<4x128xf32>
    %58 = arith.minimumf %54, %57 : vector<4x128xf32>
    %59 = math.exp %58 : vector<4x128xf32>
    %cst_58 = arith.constant 1.000000e+00 : f32
    %60 = vector.broadcast %cst_58 : f32 to vector<4x128xf32>
    %61 = arith.subf %59, %60 : vector<4x128xf32>
    %62 = arith.select %56, %54, %61 : vector<4x128xi1>, vector<4x128xf32>
    %c0_59 = arith.constant 0 : index
    %c0_60 = arith.constant 0 : index
    %63 = vector.load %arg7[%c0_59, %c0_60] : memref<128x128xbf16, #tpu.memory_space<vmem>>, vector<128x128xbf16>
    %cst_61 = arith.constant dense<0.000000e+00> : vector<4x128xf32>
    %64 = tpu.matmul %25, %63, %cst_61 {dimension_numbers = #tpu.dot_dimension_numbers<[1], [0], [0], [1], [0, 0, 1, 1], [], []>} : vector<4x128xbf16>, vector<128x128xbf16>, vector<4x128xf32> -> vector<4x128xf32>
    %65 = arith.addf %62, %64 : vector<4x128xf32>
    %c0_62 = arith.constant 0 : index
    %c0_63 = arith.constant 0 : index
    %66 = vector.load %arg8[%c0_62, %c0_63] : memref<1x128xf32, #tpu.memory_space<vmem>>, vector<1x128xf32>
    %67 = vector.broadcast %66 : vector<1x128xf32> to vector<4x128xf32>
    %68 = arith.addf %65, %67 : vector<4x128xf32>
    %69 = arith.truncf %68 : vector<4x128xf32> to vector<4x128xbf16>
    %c0_64 = arith.constant 0 : index
    %c0_65 = arith.constant 0 : index
    %c0_66 = arith.constant 0 : index
    %c0_67 = arith.constant 0 : index
    %70 = vector.load %arg9[%c0_64, %c0_65, %c0_66, %c0_67] : memref<1x1x4x128xbf16, #tpu.memory_space<vmem>>, vector<1x1x4x128xbf16>
    %71 = vector.shape_cast %70 : vector<1x1x4x128xbf16> to vector<4x128xbf16>
    %72 = vector.shape_cast %69 : vector<4x128xbf16> to vector<1x1x4x128xbf16>
    tpu.vector_store %arg9[%c0_64, %c0_65, %c0_66, %c0_67], %72 {strides = array<i32>} : memref<1x1x4x128xbf16, #tpu.memory_space<vmem>>, vector<1x1x4x128xbf16>,
    return
  }
  func.func @transform_0(%arg0: i32, %arg1: i32) -> (i32, i32, i32, i32) {
    %c0_i32 = arith.constant 0 : i32
    %0 = arith.addi %arg1, %c0_i32 : i32
    %c0_i32_0 = arith.constant 0 : i32
    %c0_i32_1 = arith.constant 0 : i32
    %c0_i32_2 = arith.constant 0 : i32
    return %arg0, %0, %c0_i32_0, %c0_i32_1 : i32, i32, i32, i32
  }
  func.func @transform_1(%arg0: i32, %arg1: i32) -> (i32, i32, i32, i32) {
    %c1_i32 = arith.constant 1 : i32
    %0 = arith.addi %arg1, %c1_i32 : i32
    %c0_i32 = arith.constant 0 : i32
    %c0_i32_0 = arith.constant 0 : i32
    %c0_i32_1 = arith.constant 0 : i32
    return %arg0, %0, %c0_i32, %c0_i32_0 : i32, i32, i32, i32
  }
  func.func @transform_2(%arg0: i32, %arg1: i32) -> (i32, i32, i32, i32) {
    %c2_i32 = arith.constant 2 : i32
    %0 = arith.addi %arg1, %c2_i32 : i32
    %c0_i32 = arith.constant 0 : i32
    %c0_i32_0 = arith.constant 0 : i32
    %c0_i32_1 = arith.constant 0 : i32
    return %arg0, %0, %c0_i32, %c0_i32_0 : i32, i32, i32, i32
  }
  func.func @transform_3(%arg0: i32, %arg1: i32) -> (i32, i32, i32, i32) {
    %c0_i32 = arith.constant 0 : i32
    %c0_i32_0 = arith.constant 0 : i32
    %c0_i32_1 = arith.constant 0 : i32
    %c0_i32_2 = arith.constant 0 : i32
    %c0_i32_3 = arith.constant 0 : i32
    return %c0_i32, %c0_i32_0, %c0_i32_1, %c0_i32_2 : i32, i32, i32, i32
  }
  func.func @transform_4(%arg0: i32, %arg1: i32) -> (i32, i32) {
    %c0_i32 = arith.constant 0 : i32
    %c0_i32_0 = arith.constant 0 : i32
    %c0_i32_1 = arith.constant 0 : i32
    return %c0_i32, %c0_i32_0 : i32, i32
  }
  func.func @transform_5(%arg0: i32, %arg1: i32) -> (i32, i32) {
    %c0_i32 = arith.constant 0 : i32
    %c0_i32_0 = arith.constant 0 : i32
    %c0_i32_1 = arith.constant 0 : i32
    return %c0_i32, %c0_i32_0 : i32, i32
  }
  func.func @transform_6(%arg0: i32, %arg1: i32) -> (i32, i32) {
    %c0_i32 = arith.constant 0 : i32
    %c0_i32_0 = arith.constant 0 : i32
    %c0_i32_1 = arith.constant 0 : i32
    return %c0_i32, %c0_i32_0 : i32, i32
  }
  func.func @transform_7(%arg0: i32, %arg1: i32) -> (i32, i32, i32, i32) {
    %c0_i32 = arith.constant 0 : i32
    %c0_i32_0 = arith.constant 0 : i32
    %c0_i32_1 = arith.constant 0 : i32
    return %arg0, %arg1, %c0_i32, %c0_i32_0 : i32, i32, i32, i32
  }
}

module attributes {stable_mosaic.version = 11 : i64} {
  func.func @kernel(%arg0: i32, %arg1: i32, %arg2: memref<1x1x10x128xbf16, #tpu.memory_space<vmem>>, %arg3: memref<1x1x10x128xbf16, #tpu.memory_space<vmem>>, %arg4: memref<1x1x10x128xbf16, #tpu.memory_space<vmem>>, %arg5: memref<3x3x128x64xbf16, #tpu.memory_space<vmem>>, %arg6: memref<1x64xf32, #tpu.memory_space<vmem>>, %arg7: memref<128x64xbf16, #tpu.memory_space<vmem>>, %arg8: memref<1x64xf32, #tpu.memory_space<vmem>>, %arg9: memref<1x1x8x64xbf16, #tpu.memory_space<vmem>>) attributes {dimension_semantics = [#tpu.dimension_semantics<parallel>, #tpu.dimension_semantics<parallel>], iteration_bounds = array<i64: 2, 8>, scalar_prefetch = 0 : i64, scratch_operands = 0 : i64, tpu.core_type = #tpu.core_type<tc>, window_params = [{transform_indices = @transform_0, window_bounds = array<i64: 1, 1, 10, 128>}, {transform_indices = @transform_1, window_bounds = array<i64: 1, 1, 10, 128>}, {transform_indices = @transform_2, window_bounds = array<i64: 1, 1, 10, 128>}, {pipeline_mode = #tpu.pipeline_mode<synchronous>, transform_indices = @transform_3, window_bounds = array<i64: 3, 3, 128, 64>}, {pipeline_mode = #tpu.pipeline_mode<synchronous>, transform_indices = @transform_4, window_bounds = array<i64: 1, 64>}, {pipeline_mode = #tpu.pipeline_mode<synchronous>, transform_indices = @transform_5, window_bounds = array<i64: 128, 64>}, {pipeline_mode = #tpu.pipeline_mode<synchronous>, transform_indices = @transform_6, window_bounds = array<i64: 1, 64>}, {transform_indices = @transform_7, window_bounds = array<i64: 1, 1, 8, 64>}]} {
    %cst = arith.constant 0.000000e+00 : f32
    %0 = vector.broadcast %cst : f32 to vector<8x64xf32>
    %c0 = arith.constant 0 : index
    %c0_0 = arith.constant 0 : index
    %c0_1 = arith.constant 0 : index
    %c0_2 = arith.constant 0 : index
    %1 = vector.load %arg2[%c0, %c0_0, %c0_1, %c0_2] : memref<1x1x10x128xbf16, #tpu.memory_space<vmem>>, vector<1x1x10x128xbf16>
    %2 = vector.shape_cast %1 : vector<1x1x10x128xbf16> to vector<10x128xbf16>
    %3 = vector.extract_strided_slice %2 {offsets = [0, 0], sizes = [8, 128], strides = [1, 1]} : vector<10x128xbf16> to vector<8x128xbf16>
    %c0_3 = arith.constant 0 : index
    %c0_4 = arith.constant 0 : index
    %c0_5 = arith.constant 0 : index
    %c0_6 = arith.constant 0 : index
    %4 = vector.load %arg5[%c0_3, %c0_4, %c0_5, %c0_6] : memref<3x3x128x64xbf16, #tpu.memory_space<vmem>>, vector<1x1x128x64xbf16>
    %5 = vector.shape_cast %4 : vector<1x1x128x64xbf16> to vector<128x64xbf16>
    %cst_7 = arith.constant dense<0.000000e+00> : vector<8x64xf32>
    %6 = tpu.matmul %3, %5, %cst_7 {dimension_numbers = #tpu.dot_dimension_numbers<[1], [0], [0], [1], [0, 0, 1, 1], [], []>} : vector<8x128xbf16>, vector<128x64xbf16>, vector<8x64xf32> -> vector<8x64xf32>
    %7 = arith.addf %0, %6 : vector<8x64xf32>
    %8 = vector.extract_strided_slice %2 {offsets = [1, 0], sizes = [8, 128], strides = [1, 1]} : vector<10x128xbf16> to vector<8x128xbf16>
    %c0_8 = arith.constant 0 : index
    %c1 = arith.constant 1 : index
    %c0_9 = arith.constant 0 : index
    %c0_10 = arith.constant 0 : index
    %9 = vector.load %arg5[%c0_8, %c1, %c0_9, %c0_10] : memref<3x3x128x64xbf16, #tpu.memory_space<vmem>>, vector<1x1x128x64xbf16>
    %10 = vector.shape_cast %9 : vector<1x1x128x64xbf16> to vector<128x64xbf16>
    %cst_11 = arith.constant dense<0.000000e+00> : vector<8x64xf32>
    %11 = tpu.matmul %8, %10, %cst_11 {dimension_numbers = #tpu.dot_dimension_numbers<[1], [0], [0], [1], [0, 0, 1, 1], [], []>} : vector<8x128xbf16>, vector<128x64xbf16>, vector<8x64xf32> -> vector<8x64xf32>
    %12 = arith.addf %7, %11 : vector<8x64xf32>
    %13 = vector.extract_strided_slice %2 {offsets = [2, 0], sizes = [8, 128], strides = [1, 1]} : vector<10x128xbf16> to vector<8x128xbf16>
    %c0_12 = arith.constant 0 : index
    %c2 = arith.constant 2 : index
    %c0_13 = arith.constant 0 : index
    %c0_14 = arith.constant 0 : index
    %14 = vector.load %arg5[%c0_12, %c2, %c0_13, %c0_14] : memref<3x3x128x64xbf16, #tpu.memory_space<vmem>>, vector<1x1x128x64xbf16>
    %15 = vector.shape_cast %14 : vector<1x1x128x64xbf16> to vector<128x64xbf16>
    %cst_15 = arith.constant dense<0.000000e+00> : vector<8x64xf32>
    %16 = tpu.matmul %13, %15, %cst_15 {dimension_numbers = #tpu.dot_dimension_numbers<[1], [0], [0], [1], [0, 0, 1, 1], [], []>} : vector<8x128xbf16>, vector<128x64xbf16>, vector<8x64xf32> -> vector<8x64xf32>
    %17 = arith.addf %12, %16 : vector<8x64xf32>
    %c0_16 = arith.constant 0 : index
    %c0_17 = arith.constant 0 : index
    %c0_18 = arith.constant 0 : index
    %c0_19 = arith.constant 0 : index
    %18 = vector.load %arg3[%c0_16, %c0_17, %c0_18, %c0_19] : memref<1x1x10x128xbf16, #tpu.memory_space<vmem>>, vector<1x1x10x128xbf16>
    %19 = vector.shape_cast %18 : vector<1x1x10x128xbf16> to vector<10x128xbf16>
    %20 = vector.extract_strided_slice %19 {offsets = [0, 0], sizes = [8, 128], strides = [1, 1]} : vector<10x128xbf16> to vector<8x128xbf16>
    %c1_20 = arith.constant 1 : index
    %c0_21 = arith.constant 0 : index
    %c0_22 = arith.constant 0 : index
    %c0_23 = arith.constant 0 : index
    %21 = vector.load %arg5[%c1_20, %c0_21, %c0_22, %c0_23] : memref<3x3x128x64xbf16, #tpu.memory_space<vmem>>, vector<1x1x128x64xbf16>
    %22 = vector.shape_cast %21 : vector<1x1x128x64xbf16> to vector<128x64xbf16>
    %cst_24 = arith.constant dense<0.000000e+00> : vector<8x64xf32>
    %23 = tpu.matmul %20, %22, %cst_24 {dimension_numbers = #tpu.dot_dimension_numbers<[1], [0], [0], [1], [0, 0, 1, 1], [], []>} : vector<8x128xbf16>, vector<128x64xbf16>, vector<8x64xf32> -> vector<8x64xf32>
    %24 = arith.addf %17, %23 : vector<8x64xf32>
    %25 = vector.extract_strided_slice %19 {offsets = [1, 0], sizes = [8, 128], strides = [1, 1]} : vector<10x128xbf16> to vector<8x128xbf16>
    %c1_25 = arith.constant 1 : index
    %c1_26 = arith.constant 1 : index
    %c0_27 = arith.constant 0 : index
    %c0_28 = arith.constant 0 : index
    %26 = vector.load %arg5[%c1_25, %c1_26, %c0_27, %c0_28] : memref<3x3x128x64xbf16, #tpu.memory_space<vmem>>, vector<1x1x128x64xbf16>
    %27 = vector.shape_cast %26 : vector<1x1x128x64xbf16> to vector<128x64xbf16>
    %cst_29 = arith.constant dense<0.000000e+00> : vector<8x64xf32>
    %28 = tpu.matmul %25, %27, %cst_29 {dimension_numbers = #tpu.dot_dimension_numbers<[1], [0], [0], [1], [0, 0, 1, 1], [], []>} : vector<8x128xbf16>, vector<128x64xbf16>, vector<8x64xf32> -> vector<8x64xf32>
    %29 = arith.addf %24, %28 : vector<8x64xf32>
    %30 = vector.extract_strided_slice %19 {offsets = [2, 0], sizes = [8, 128], strides = [1, 1]} : vector<10x128xbf16> to vector<8x128xbf16>
    %c1_30 = arith.constant 1 : index
    %c2_31 = arith.constant 2 : index
    %c0_32 = arith.constant 0 : index
    %c0_33 = arith.constant 0 : index
    %31 = vector.load %arg5[%c1_30, %c2_31, %c0_32, %c0_33] : memref<3x3x128x64xbf16, #tpu.memory_space<vmem>>, vector<1x1x128x64xbf16>
    %32 = vector.shape_cast %31 : vector<1x1x128x64xbf16> to vector<128x64xbf16>
    %cst_34 = arith.constant dense<0.000000e+00> : vector<8x64xf32>
    %33 = tpu.matmul %30, %32, %cst_34 {dimension_numbers = #tpu.dot_dimension_numbers<[1], [0], [0], [1], [0, 0, 1, 1], [], []>} : vector<8x128xbf16>, vector<128x64xbf16>, vector<8x64xf32> -> vector<8x64xf32>
    %34 = arith.addf %29, %33 : vector<8x64xf32>
    %c0_35 = arith.constant 0 : index
    %c0_36 = arith.constant 0 : index
    %c0_37 = arith.constant 0 : index
    %c0_38 = arith.constant 0 : index
    %35 = vector.load %arg4[%c0_35, %c0_36, %c0_37, %c0_38] : memref<1x1x10x128xbf16, #tpu.memory_space<vmem>>, vector<1x1x10x128xbf16>
    %36 = vector.shape_cast %35 : vector<1x1x10x128xbf16> to vector<10x128xbf16>
    %37 = vector.extract_strided_slice %36 {offsets = [0, 0], sizes = [8, 128], strides = [1, 1]} : vector<10x128xbf16> to vector<8x128xbf16>
    %c2_39 = arith.constant 2 : index
    %c0_40 = arith.constant 0 : index
    %c0_41 = arith.constant 0 : index
    %c0_42 = arith.constant 0 : index
    %38 = vector.load %arg5[%c2_39, %c0_40, %c0_41, %c0_42] : memref<3x3x128x64xbf16, #tpu.memory_space<vmem>>, vector<1x1x128x64xbf16>
    %39 = vector.shape_cast %38 : vector<1x1x128x64xbf16> to vector<128x64xbf16>
    %cst_43 = arith.constant dense<0.000000e+00> : vector<8x64xf32>
    %40 = tpu.matmul %37, %39, %cst_43 {dimension_numbers = #tpu.dot_dimension_numbers<[1], [0], [0], [1], [0, 0, 1, 1], [], []>} : vector<8x128xbf16>, vector<128x64xbf16>, vector<8x64xf32> -> vector<8x64xf32>
    %41 = arith.addf %34, %40 : vector<8x64xf32>
    %42 = vector.extract_strided_slice %36 {offsets = [1, 0], sizes = [8, 128], strides = [1, 1]} : vector<10x128xbf16> to vector<8x128xbf16>
    %c2_44 = arith.constant 2 : index
    %c1_45 = arith.constant 1 : index
    %c0_46 = arith.constant 0 : index
    %c0_47 = arith.constant 0 : index
    %43 = vector.load %arg5[%c2_44, %c1_45, %c0_46, %c0_47] : memref<3x3x128x64xbf16, #tpu.memory_space<vmem>>, vector<1x1x128x64xbf16>
    %44 = vector.shape_cast %43 : vector<1x1x128x64xbf16> to vector<128x64xbf16>
    %cst_48 = arith.constant dense<0.000000e+00> : vector<8x64xf32>
    %45 = tpu.matmul %42, %44, %cst_48 {dimension_numbers = #tpu.dot_dimension_numbers<[1], [0], [0], [1], [0, 0, 1, 1], [], []>} : vector<8x128xbf16>, vector<128x64xbf16>, vector<8x64xf32> -> vector<8x64xf32>
    %46 = arith.addf %41, %45 : vector<8x64xf32>
    %47 = vector.extract_strided_slice %36 {offsets = [2, 0], sizes = [8, 128], strides = [1, 1]} : vector<10x128xbf16> to vector<8x128xbf16>
    %c2_49 = arith.constant 2 : index
    %c2_50 = arith.constant 2 : index
    %c0_51 = arith.constant 0 : index
    %c0_52 = arith.constant 0 : index
    %48 = vector.load %arg5[%c2_49, %c2_50, %c0_51, %c0_52] : memref<3x3x128x64xbf16, #tpu.memory_space<vmem>>, vector<1x1x128x64xbf16>
    %49 = vector.shape_cast %48 : vector<1x1x128x64xbf16> to vector<128x64xbf16>
    %cst_53 = arith.constant dense<0.000000e+00> : vector<8x64xf32>
    %50 = tpu.matmul %47, %49, %cst_53 {dimension_numbers = #tpu.dot_dimension_numbers<[1], [0], [0], [1], [0, 0, 1, 1], [], []>} : vector<8x128xbf16>, vector<128x64xbf16>, vector<8x64xf32> -> vector<8x64xf32>
    %51 = arith.addf %46, %50 : vector<8x64xf32>
    %c0_54 = arith.constant 0 : index
    %c0_55 = arith.constant 0 : index
    %52 = vector.load %arg6[%c0_54, %c0_55] : memref<1x64xf32, #tpu.memory_space<vmem>>, vector<1x64xf32>
    %53 = vector.broadcast %52 : vector<1x64xf32> to vector<8x64xf32>
    %54 = arith.addf %51, %53 : vector<8x64xf32>
    %cst_56 = arith.constant 0.000000e+00 : f32
    %55 = vector.broadcast %cst_56 : f32 to vector<8x64xf32>
    %56 = arith.cmpf ogt, %54, %55 : vector<8x64xf32>
    %cst_57 = arith.constant 0.000000e+00 : f32
    %57 = vector.broadcast %cst_57 : f32 to vector<8x64xf32>
    %58 = arith.minimumf %54, %57 : vector<8x64xf32>
    %59 = math.exp %58 : vector<8x64xf32>
    %cst_58 = arith.constant 1.000000e+00 : f32
    %60 = vector.broadcast %cst_58 : f32 to vector<8x64xf32>
    %61 = arith.subf %59, %60 : vector<8x64xf32>
    %62 = arith.select %56, %54, %61 : vector<8x64xi1>, vector<8x64xf32>
    %c0_59 = arith.constant 0 : index
    %c0_60 = arith.constant 0 : index
    %63 = vector.load %arg7[%c0_59, %c0_60] : memref<128x64xbf16, #tpu.memory_space<vmem>>, vector<128x64xbf16>
    %cst_61 = arith.constant dense<0.000000e+00> : vector<8x64xf32>
    %64 = tpu.matmul %25, %63, %cst_61 {dimension_numbers = #tpu.dot_dimension_numbers<[1], [0], [0], [1], [0, 0, 1, 1], [], []>} : vector<8x128xbf16>, vector<128x64xbf16>, vector<8x64xf32> -> vector<8x64xf32>
    %65 = arith.addf %62, %64 : vector<8x64xf32>
    %c0_62 = arith.constant 0 : index
    %c0_63 = arith.constant 0 : index
    %66 = vector.load %arg8[%c0_62, %c0_63] : memref<1x64xf32, #tpu.memory_space<vmem>>, vector<1x64xf32>
    %67 = vector.broadcast %66 : vector<1x64xf32> to vector<8x64xf32>
    %68 = arith.addf %65, %67 : vector<8x64xf32>
    %69 = arith.truncf %68 : vector<8x64xf32> to vector<8x64xbf16>
    %c0_64 = arith.constant 0 : index
    %c0_65 = arith.constant 0 : index
    %c0_66 = arith.constant 0 : index
    %c0_67 = arith.constant 0 : index
    %70 = vector.load %arg9[%c0_64, %c0_65, %c0_66, %c0_67] : memref<1x1x8x64xbf16, #tpu.memory_space<vmem>>, vector<1x1x8x64xbf16>
    %71 = vector.shape_cast %70 : vector<1x1x8x64xbf16> to vector<8x64xbf16>
    %72 = vector.shape_cast %69 : vector<8x64xbf16> to vector<1x1x8x64xbf16>
    tpu.vector_store %arg9[%c0_64, %c0_65, %c0_66, %c0_67], %72 {strides = array<i32>} : memref<1x1x8x64xbf16, #tpu.memory_space<vmem>>, vector<1x1x8x64xbf16>,
    return
  }
  func.func @transform_0(%arg0: i32, %arg1: i32) -> (i32, i32, i32, i32) {
    %c0_i32 = arith.constant 0 : i32
    %0 = arith.addi %arg1, %c0_i32 : i32
    %c0_i32_0 = arith.constant 0 : i32
    %c0_i32_1 = arith.constant 0 : i32
    %c0_i32_2 = arith.constant 0 : i32
    return %arg0, %0, %c0_i32_0, %c0_i32_1 : i32, i32, i32, i32
  }
  func.func @transform_1(%arg0: i32, %arg1: i32) -> (i32, i32, i32, i32) {
    %c1_i32 = arith.constant 1 : i32
    %0 = arith.addi %arg1, %c1_i32 : i32
    %c0_i32 = arith.constant 0 : i32
    %c0_i32_0 = arith.constant 0 : i32
    %c0_i32_1 = arith.constant 0 : i32
    return %arg0, %0, %c0_i32, %c0_i32_0 : i32, i32, i32, i32
  }
  func.func @transform_2(%arg0: i32, %arg1: i32) -> (i32, i32, i32, i32) {
    %c2_i32 = arith.constant 2 : i32
    %0 = arith.addi %arg1, %c2_i32 : i32
    %c0_i32 = arith.constant 0 : i32
    %c0_i32_0 = arith.constant 0 : i32
    %c0_i32_1 = arith.constant 0 : i32
    return %arg0, %0, %c0_i32, %c0_i32_0 : i32, i32, i32, i32
  }
  func.func @transform_3(%arg0: i32, %arg1: i32) -> (i32, i32, i32, i32) {
    %c0_i32 = arith.constant 0 : i32
    %c0_i32_0 = arith.constant 0 : i32
    %c0_i32_1 = arith.constant 0 : i32
    %c0_i32_2 = arith.constant 0 : i32
    %c0_i32_3 = arith.constant 0 : i32
    return %c0_i32, %c0_i32_0, %c0_i32_1, %c0_i32_2 : i32, i32, i32, i32
  }
  func.func @transform_4(%arg0: i32, %arg1: i32) -> (i32, i32) {
    %c0_i32 = arith.constant 0 : i32
    %c0_i32_0 = arith.constant 0 : i32
    %c0_i32_1 = arith.constant 0 : i32
    return %c0_i32, %c0_i32_0 : i32, i32
  }
  func.func @transform_5(%arg0: i32, %arg1: i32) -> (i32, i32) {
    %c0_i32 = arith.constant 0 : i32
    %c0_i32_0 = arith.constant 0 : i32
    %c0_i32_1 = arith.constant 0 : i32
    return %c0_i32, %c0_i32_0 : i32, i32
  }
  func.func @transform_6(%arg0: i32, %arg1: i32) -> (i32, i32) {
    %c0_i32 = arith.constant 0 : i32
    %c0_i32_0 = arith.constant 0 : i32
    %c0_i32_1 = arith.constant 0 : i32
    return %c0_i32, %c0_i32_0 : i32, i32
  }
  func.func @transform_7(%arg0: i32, %arg1: i32) -> (i32, i32, i32, i32) {
    %c0_i32 = arith.constant 0 : i32
    %c0_i32_0 = arith.constant 0 : i32
    %c0_i32_1 = arith.constant 0 : i32
    return %arg0, %arg1, %c0_i32, %c0_i32_0 : i32, i32, i32, i32
  }
}

module attributes {stable_mosaic.version = 11 : i64} {
  func.func @kernel(%arg0: i32, %arg1: i32, %arg2: memref<1x1x18x64xbf16, #tpu.memory_space<vmem>>, %arg3: memref<1x1x18x64xbf16, #tpu.memory_space<vmem>>, %arg4: memref<1x1x18x64xbf16, #tpu.memory_space<vmem>>, %arg5: memref<3x3x64x32xbf16, #tpu.memory_space<vmem>>, %arg6: memref<1x32xf32, #tpu.memory_space<vmem>>, %arg7: memref<64x32xbf16, #tpu.memory_space<vmem>>, %arg8: memref<1x32xf32, #tpu.memory_space<vmem>>, %arg9: memref<1x1x16x32xbf16, #tpu.memory_space<vmem>>) attributes {dimension_semantics = [#tpu.dimension_semantics<parallel>, #tpu.dimension_semantics<parallel>], iteration_bounds = array<i64: 2, 16>, scalar_prefetch = 0 : i64, scratch_operands = 0 : i64, tpu.core_type = #tpu.core_type<tc>, window_params = [{transform_indices = @transform_0, window_bounds = array<i64: 1, 1, 18, 64>}, {transform_indices = @transform_1, window_bounds = array<i64: 1, 1, 18, 64>}, {transform_indices = @transform_2, window_bounds = array<i64: 1, 1, 18, 64>}, {pipeline_mode = #tpu.pipeline_mode<synchronous>, transform_indices = @transform_3, window_bounds = array<i64: 3, 3, 64, 32>}, {pipeline_mode = #tpu.pipeline_mode<synchronous>, transform_indices = @transform_4, window_bounds = array<i64: 1, 32>}, {pipeline_mode = #tpu.pipeline_mode<synchronous>, transform_indices = @transform_5, window_bounds = array<i64: 64, 32>}, {pipeline_mode = #tpu.pipeline_mode<synchronous>, transform_indices = @transform_6, window_bounds = array<i64: 1, 32>}, {transform_indices = @transform_7, window_bounds = array<i64: 1, 1, 16, 32>}]} {
    %cst = arith.constant 0.000000e+00 : f32
    %0 = vector.broadcast %cst : f32 to vector<16x32xf32>
    %c0 = arith.constant 0 : index
    %c0_0 = arith.constant 0 : index
    %c0_1 = arith.constant 0 : index
    %c0_2 = arith.constant 0 : index
    %1 = vector.load %arg2[%c0, %c0_0, %c0_1, %c0_2] : memref<1x1x18x64xbf16, #tpu.memory_space<vmem>>, vector<1x1x18x64xbf16>
    %2 = vector.shape_cast %1 : vector<1x1x18x64xbf16> to vector<18x64xbf16>
    %3 = vector.extract_strided_slice %2 {offsets = [0, 0], sizes = [16, 64], strides = [1, 1]} : vector<18x64xbf16> to vector<16x64xbf16>
    %c0_3 = arith.constant 0 : index
    %c0_4 = arith.constant 0 : index
    %c0_5 = arith.constant 0 : index
    %c0_6 = arith.constant 0 : index
    %4 = vector.load %arg5[%c0_3, %c0_4, %c0_5, %c0_6] : memref<3x3x64x32xbf16, #tpu.memory_space<vmem>>, vector<1x1x64x32xbf16>
    %5 = vector.shape_cast %4 : vector<1x1x64x32xbf16> to vector<64x32xbf16>
    %cst_7 = arith.constant dense<0.000000e+00> : vector<16x32xf32>
    %6 = tpu.matmul %3, %5, %cst_7 {dimension_numbers = #tpu.dot_dimension_numbers<[1], [0], [0], [1], [0, 0, 1, 1], [], []>} : vector<16x64xbf16>, vector<64x32xbf16>, vector<16x32xf32> -> vector<16x32xf32>
    %7 = arith.addf %0, %6 : vector<16x32xf32>
    %8 = vector.extract_strided_slice %2 {offsets = [1, 0], sizes = [16, 64], strides = [1, 1]} : vector<18x64xbf16> to vector<16x64xbf16>
    %c0_8 = arith.constant 0 : index
    %c1 = arith.constant 1 : index
    %c0_9 = arith.constant 0 : index
    %c0_10 = arith.constant 0 : index
    %9 = vector.load %arg5[%c0_8, %c1, %c0_9, %c0_10] : memref<3x3x64x32xbf16, #tpu.memory_space<vmem>>, vector<1x1x64x32xbf16>
    %10 = vector.shape_cast %9 : vector<1x1x64x32xbf16> to vector<64x32xbf16>
    %cst_11 = arith.constant dense<0.000000e+00> : vector<16x32xf32>
    %11 = tpu.matmul %8, %10, %cst_11 {dimension_numbers = #tpu.dot_dimension_numbers<[1], [0], [0], [1], [0, 0, 1, 1], [], []>} : vector<16x64xbf16>, vector<64x32xbf16>, vector<16x32xf32> -> vector<16x32xf32>
    %12 = arith.addf %7, %11 : vector<16x32xf32>
    %13 = vector.extract_strided_slice %2 {offsets = [2, 0], sizes = [16, 64], strides = [1, 1]} : vector<18x64xbf16> to vector<16x64xbf16>
    %c0_12 = arith.constant 0 : index
    %c2 = arith.constant 2 : index
    %c0_13 = arith.constant 0 : index
    %c0_14 = arith.constant 0 : index
    %14 = vector.load %arg5[%c0_12, %c2, %c0_13, %c0_14] : memref<3x3x64x32xbf16, #tpu.memory_space<vmem>>, vector<1x1x64x32xbf16>
    %15 = vector.shape_cast %14 : vector<1x1x64x32xbf16> to vector<64x32xbf16>
    %cst_15 = arith.constant dense<0.000000e+00> : vector<16x32xf32>
    %16 = tpu.matmul %13, %15, %cst_15 {dimension_numbers = #tpu.dot_dimension_numbers<[1], [0], [0], [1], [0, 0, 1, 1], [], []>} : vector<16x64xbf16>, vector<64x32xbf16>, vector<16x32xf32> -> vector<16x32xf32>
    %17 = arith.addf %12, %16 : vector<16x32xf32>
    %c0_16 = arith.constant 0 : index
    %c0_17 = arith.constant 0 : index
    %c0_18 = arith.constant 0 : index
    %c0_19 = arith.constant 0 : index
    %18 = vector.load %arg3[%c0_16, %c0_17, %c0_18, %c0_19] : memref<1x1x18x64xbf16, #tpu.memory_space<vmem>>, vector<1x1x18x64xbf16>
    %19 = vector.shape_cast %18 : vector<1x1x18x64xbf16> to vector<18x64xbf16>
    %20 = vector.extract_strided_slice %19 {offsets = [0, 0], sizes = [16, 64], strides = [1, 1]} : vector<18x64xbf16> to vector<16x64xbf16>
    %c1_20 = arith.constant 1 : index
    %c0_21 = arith.constant 0 : index
    %c0_22 = arith.constant 0 : index
    %c0_23 = arith.constant 0 : index
    %21 = vector.load %arg5[%c1_20, %c0_21, %c0_22, %c0_23] : memref<3x3x64x32xbf16, #tpu.memory_space<vmem>>, vector<1x1x64x32xbf16>
    %22 = vector.shape_cast %21 : vector<1x1x64x32xbf16> to vector<64x32xbf16>
    %cst_24 = arith.constant dense<0.000000e+00> : vector<16x32xf32>
    %23 = tpu.matmul %20, %22, %cst_24 {dimension_numbers = #tpu.dot_dimension_numbers<[1], [0], [0], [1], [0, 0, 1, 1], [], []>} : vector<16x64xbf16>, vector<64x32xbf16>, vector<16x32xf32> -> vector<16x32xf32>
    %24 = arith.addf %17, %23 : vector<16x32xf32>
    %25 = vector.extract_strided_slice %19 {offsets = [1, 0], sizes = [16, 64], strides = [1, 1]} : vector<18x64xbf16> to vector<16x64xbf16>
    %c1_25 = arith.constant 1 : index
    %c1_26 = arith.constant 1 : index
    %c0_27 = arith.constant 0 : index
    %c0_28 = arith.constant 0 : index
    %26 = vector.load %arg5[%c1_25, %c1_26, %c0_27, %c0_28] : memref<3x3x64x32xbf16, #tpu.memory_space<vmem>>, vector<1x1x64x32xbf16>
    %27 = vector.shape_cast %26 : vector<1x1x64x32xbf16> to vector<64x32xbf16>
    %cst_29 = arith.constant dense<0.000000e+00> : vector<16x32xf32>
    %28 = tpu.matmul %25, %27, %cst_29 {dimension_numbers = #tpu.dot_dimension_numbers<[1], [0], [0], [1], [0, 0, 1, 1], [], []>} : vector<16x64xbf16>, vector<64x32xbf16>, vector<16x32xf32> -> vector<16x32xf32>
    %29 = arith.addf %24, %28 : vector<16x32xf32>
    %30 = vector.extract_strided_slice %19 {offsets = [2, 0], sizes = [16, 64], strides = [1, 1]} : vector<18x64xbf16> to vector<16x64xbf16>
    %c1_30 = arith.constant 1 : index
    %c2_31 = arith.constant 2 : index
    %c0_32 = arith.constant 0 : index
    %c0_33 = arith.constant 0 : index
    %31 = vector.load %arg5[%c1_30, %c2_31, %c0_32, %c0_33] : memref<3x3x64x32xbf16, #tpu.memory_space<vmem>>, vector<1x1x64x32xbf16>
    %32 = vector.shape_cast %31 : vector<1x1x64x32xbf16> to vector<64x32xbf16>
    %cst_34 = arith.constant dense<0.000000e+00> : vector<16x32xf32>
    %33 = tpu.matmul %30, %32, %cst_34 {dimension_numbers = #tpu.dot_dimension_numbers<[1], [0], [0], [1], [0, 0, 1, 1], [], []>} : vector<16x64xbf16>, vector<64x32xbf16>, vector<16x32xf32> -> vector<16x32xf32>
    %34 = arith.addf %29, %33 : vector<16x32xf32>
    %c0_35 = arith.constant 0 : index
    %c0_36 = arith.constant 0 : index
    %c0_37 = arith.constant 0 : index
    %c0_38 = arith.constant 0 : index
    %35 = vector.load %arg4[%c0_35, %c0_36, %c0_37, %c0_38] : memref<1x1x18x64xbf16, #tpu.memory_space<vmem>>, vector<1x1x18x64xbf16>
    %36 = vector.shape_cast %35 : vector<1x1x18x64xbf16> to vector<18x64xbf16>
    %37 = vector.extract_strided_slice %36 {offsets = [0, 0], sizes = [16, 64], strides = [1, 1]} : vector<18x64xbf16> to vector<16x64xbf16>
    %c2_39 = arith.constant 2 : index
    %c0_40 = arith.constant 0 : index
    %c0_41 = arith.constant 0 : index
    %c0_42 = arith.constant 0 : index
    %38 = vector.load %arg5[%c2_39, %c0_40, %c0_41, %c0_42] : memref<3x3x64x32xbf16, #tpu.memory_space<vmem>>, vector<1x1x64x32xbf16>
    %39 = vector.shape_cast %38 : vector<1x1x64x32xbf16> to vector<64x32xbf16>
    %cst_43 = arith.constant dense<0.000000e+00> : vector<16x32xf32>
    %40 = tpu.matmul %37, %39, %cst_43 {dimension_numbers = #tpu.dot_dimension_numbers<[1], [0], [0], [1], [0, 0, 1, 1], [], []>} : vector<16x64xbf16>, vector<64x32xbf16>, vector<16x32xf32> -> vector<16x32xf32>
    %41 = arith.addf %34, %40 : vector<16x32xf32>
    %42 = vector.extract_strided_slice %36 {offsets = [1, 0], sizes = [16, 64], strides = [1, 1]} : vector<18x64xbf16> to vector<16x64xbf16>
    %c2_44 = arith.constant 2 : index
    %c1_45 = arith.constant 1 : index
    %c0_46 = arith.constant 0 : index
    %c0_47 = arith.constant 0 : index
    %43 = vector.load %arg5[%c2_44, %c1_45, %c0_46, %c0_47] : memref<3x3x64x32xbf16, #tpu.memory_space<vmem>>, vector<1x1x64x32xbf16>
    %44 = vector.shape_cast %43 : vector<1x1x64x32xbf16> to vector<64x32xbf16>
    %cst_48 = arith.constant dense<0.000000e+00> : vector<16x32xf32>
    %45 = tpu.matmul %42, %44, %cst_48 {dimension_numbers = #tpu.dot_dimension_numbers<[1], [0], [0], [1], [0, 0, 1, 1], [], []>} : vector<16x64xbf16>, vector<64x32xbf16>, vector<16x32xf32> -> vector<16x32xf32>
    %46 = arith.addf %41, %45 : vector<16x32xf32>
    %47 = vector.extract_strided_slice %36 {offsets = [2, 0], sizes = [16, 64], strides = [1, 1]} : vector<18x64xbf16> to vector<16x64xbf16>
    %c2_49 = arith.constant 2 : index
    %c2_50 = arith.constant 2 : index
    %c0_51 = arith.constant 0 : index
    %c0_52 = arith.constant 0 : index
    %48 = vector.load %arg5[%c2_49, %c2_50, %c0_51, %c0_52] : memref<3x3x64x32xbf16, #tpu.memory_space<vmem>>, vector<1x1x64x32xbf16>
    %49 = vector.shape_cast %48 : vector<1x1x64x32xbf16> to vector<64x32xbf16>
    %cst_53 = arith.constant dense<0.000000e+00> : vector<16x32xf32>
    %50 = tpu.matmul %47, %49, %cst_53 {dimension_numbers = #tpu.dot_dimension_numbers<[1], [0], [0], [1], [0, 0, 1, 1], [], []>} : vector<16x64xbf16>, vector<64x32xbf16>, vector<16x32xf32> -> vector<16x32xf32>
    %51 = arith.addf %46, %50 : vector<16x32xf32>
    %c0_54 = arith.constant 0 : index
    %c0_55 = arith.constant 0 : index
    %52 = vector.load %arg6[%c0_54, %c0_55] : memref<1x32xf32, #tpu.memory_space<vmem>>, vector<1x32xf32>
    %53 = vector.broadcast %52 : vector<1x32xf32> to vector<16x32xf32>
    %54 = arith.addf %51, %53 : vector<16x32xf32>
    %cst_56 = arith.constant 0.000000e+00 : f32
    %55 = vector.broadcast %cst_56 : f32 to vector<16x32xf32>
    %56 = arith.cmpf ogt, %54, %55 : vector<16x32xf32>
    %cst_57 = arith.constant 0.000000e+00 : f32
    %57 = vector.broadcast %cst_57 : f32 to vector<16x32xf32>
    %58 = arith.minimumf %54, %57 : vector<16x32xf32>
    %59 = math.exp %58 : vector<16x32xf32>
    %cst_58 = arith.constant 1.000000e+00 : f32
    %60 = vector.broadcast %cst_58 : f32 to vector<16x32xf32>
    %61 = arith.subf %59, %60 : vector<16x32xf32>
    %62 = arith.select %56, %54, %61 : vector<16x32xi1>, vector<16x32xf32>
    %c0_59 = arith.constant 0 : index
    %c0_60 = arith.constant 0 : index
    %63 = vector.load %arg7[%c0_59, %c0_60] : memref<64x32xbf16, #tpu.memory_space<vmem>>, vector<64x32xbf16>
    %cst_61 = arith.constant dense<0.000000e+00> : vector<16x32xf32>
    %64 = tpu.matmul %25, %63, %cst_61 {dimension_numbers = #tpu.dot_dimension_numbers<[1], [0], [0], [1], [0, 0, 1, 1], [], []>} : vector<16x64xbf16>, vector<64x32xbf16>, vector<16x32xf32> -> vector<16x32xf32>
    %65 = arith.addf %62, %64 : vector<16x32xf32>
    %c0_62 = arith.constant 0 : index
    %c0_63 = arith.constant 0 : index
    %66 = vector.load %arg8[%c0_62, %c0_63] : memref<1x32xf32, #tpu.memory_space<vmem>>, vector<1x32xf32>
    %67 = vector.broadcast %66 : vector<1x32xf32> to vector<16x32xf32>
    %68 = arith.addf %65, %67 : vector<16x32xf32>
    %69 = arith.truncf %68 : vector<16x32xf32> to vector<16x32xbf16>
    %c0_64 = arith.constant 0 : index
    %c0_65 = arith.constant 0 : index
    %c0_66 = arith.constant 0 : index
    %c0_67 = arith.constant 0 : index
    %70 = vector.load %arg9[%c0_64, %c0_65, %c0_66, %c0_67] : memref<1x1x16x32xbf16, #tpu.memory_space<vmem>>, vector<1x1x16x32xbf16>
    %71 = vector.shape_cast %70 : vector<1x1x16x32xbf16> to vector<16x32xbf16>
    %72 = vector.shape_cast %69 : vector<16x32xbf16> to vector<1x1x16x32xbf16>
    tpu.vector_store %arg9[%c0_64, %c0_65, %c0_66, %c0_67], %72 {strides = array<i32>} : memref<1x1x16x32xbf16, #tpu.memory_space<vmem>>, vector<1x1x16x32xbf16>,
    return
  }
  func.func @transform_0(%arg0: i32, %arg1: i32) -> (i32, i32, i32, i32) {
    %c0_i32 = arith.constant 0 : i32
    %0 = arith.addi %arg1, %c0_i32 : i32
    %c0_i32_0 = arith.constant 0 : i32
    %c0_i32_1 = arith.constant 0 : i32
    %c0_i32_2 = arith.constant 0 : i32
    return %arg0, %0, %c0_i32_0, %c0_i32_1 : i32, i32, i32, i32
  }
  func.func @transform_1(%arg0: i32, %arg1: i32) -> (i32, i32, i32, i32) {
    %c1_i32 = arith.constant 1 : i32
    %0 = arith.addi %arg1, %c1_i32 : i32
    %c0_i32 = arith.constant 0 : i32
    %c0_i32_0 = arith.constant 0 : i32
    %c0_i32_1 = arith.constant 0 : i32
    return %arg0, %0, %c0_i32, %c0_i32_0 : i32, i32, i32, i32
  }
  func.func @transform_2(%arg0: i32, %arg1: i32) -> (i32, i32, i32, i32) {
    %c2_i32 = arith.constant 2 : i32
    %0 = arith.addi %arg1, %c2_i32 : i32
    %c0_i32 = arith.constant 0 : i32
    %c0_i32_0 = arith.constant 0 : i32
    %c0_i32_1 = arith.constant 0 : i32
    return %arg0, %0, %c0_i32, %c0_i32_0 : i32, i32, i32, i32
  }
  func.func @transform_3(%arg0: i32, %arg1: i32) -> (i32, i32, i32, i32) {
    %c0_i32 = arith.constant 0 : i32
    %c0_i32_0 = arith.constant 0 : i32
    %c0_i32_1 = arith.constant 0 : i32
    %c0_i32_2 = arith.constant 0 : i32
    %c0_i32_3 = arith.constant 0 : i32
    return %c0_i32, %c0_i32_0, %c0_i32_1, %c0_i32_2 : i32, i32, i32, i32
  }
  func.func @transform_4(%arg0: i32, %arg1: i32) -> (i32, i32) {
    %c0_i32 = arith.constant 0 : i32
    %c0_i32_0 = arith.constant 0 : i32
    %c0_i32_1 = arith.constant 0 : i32
    return %c0_i32, %c0_i32_0 : i32, i32
  }
  func.func @transform_5(%arg0: i32, %arg1: i32) -> (i32, i32) {
    %c0_i32 = arith.constant 0 : i32
    %c0_i32_0 = arith.constant 0 : i32
    %c0_i32_1 = arith.constant 0 : i32
    return %c0_i32, %c0_i32_0 : i32, i32
  }
  func.func @transform_6(%arg0: i32, %arg1: i32) -> (i32, i32) {
    %c0_i32 = arith.constant 0 : i32
    %c0_i32_0 = arith.constant 0 : i32
    %c0_i32_1 = arith.constant 0 : i32
    return %c0_i32, %c0_i32_0 : i32, i32
  }
  func.func @transform_7(%arg0: i32, %arg1: i32) -> (i32, i32, i32, i32) {
    %c0_i32 = arith.constant 0 : i32
    %c0_i32_0 = arith.constant 0 : i32
    %c0_i32_1 = arith.constant 0 : i32
    return %arg0, %arg1, %c0_i32, %c0_i32_0 : i32, i32, i32, i32
  }
}

module attributes {stable_mosaic.version = 11 : i64} {
  func.func @kernel(%arg0: i32, %arg1: i32, %arg2: memref<1x1x18x32xbf16, #tpu.memory_space<vmem>>, %arg3: memref<1x1x18x32xbf16, #tpu.memory_space<vmem>>, %arg4: memref<1x1x18x32xbf16, #tpu.memory_space<vmem>>, %arg5: memref<3x3x32x16xbf16, #tpu.memory_space<vmem>>, %arg6: memref<1x16xf32, #tpu.memory_space<vmem>>, %arg7: memref<1x1x16x16xbf16, #tpu.memory_space<vmem>>) attributes {dimension_semantics = [#tpu.dimension_semantics<parallel>, #tpu.dimension_semantics<parallel>], iteration_bounds = array<i64: 2, 16>, scalar_prefetch = 0 : i64, scratch_operands = 0 : i64, tpu.core_type = #tpu.core_type<tc>, window_params = [{transform_indices = @transform_0, window_bounds = array<i64: 1, 1, 18, 32>}, {transform_indices = @transform_1, window_bounds = array<i64: 1, 1, 18, 32>}, {transform_indices = @transform_2, window_bounds = array<i64: 1, 1, 18, 32>}, {pipeline_mode = #tpu.pipeline_mode<synchronous>, transform_indices = @transform_3, window_bounds = array<i64: 3, 3, 32, 16>}, {pipeline_mode = #tpu.pipeline_mode<synchronous>, transform_indices = @transform_4, window_bounds = array<i64: 1, 16>}, {transform_indices = @transform_5, window_bounds = array<i64: 1, 1, 16, 16>}]} {
    %cst = arith.constant 0.000000e+00 : f32
    %0 = vector.broadcast %cst : f32 to vector<16x16xf32>
    %c0 = arith.constant 0 : index
    %c0_0 = arith.constant 0 : index
    %c0_1 = arith.constant 0 : index
    %c0_2 = arith.constant 0 : index
    %1 = vector.load %arg2[%c0, %c0_0, %c0_1, %c0_2] : memref<1x1x18x32xbf16, #tpu.memory_space<vmem>>, vector<1x1x18x32xbf16>
    %2 = vector.shape_cast %1 : vector<1x1x18x32xbf16> to vector<18x32xbf16>
    %3 = vector.extract_strided_slice %2 {offsets = [0, 0], sizes = [16, 32], strides = [1, 1]} : vector<18x32xbf16> to vector<16x32xbf16>
    %c0_3 = arith.constant 0 : index
    %c0_4 = arith.constant 0 : index
    %c0_5 = arith.constant 0 : index
    %c0_6 = arith.constant 0 : index
    %4 = vector.load %arg5[%c0_3, %c0_4, %c0_5, %c0_6] : memref<3x3x32x16xbf16, #tpu.memory_space<vmem>>, vector<1x1x32x16xbf16>
    %5 = vector.shape_cast %4 : vector<1x1x32x16xbf16> to vector<32x16xbf16>
    %cst_7 = arith.constant dense<0.000000e+00> : vector<16x16xf32>
    %6 = tpu.matmul %3, %5, %cst_7 {dimension_numbers = #tpu.dot_dimension_numbers<[1], [0], [0], [1], [0, 0, 1, 1], [], []>} : vector<16x32xbf16>, vector<32x16xbf16>, vector<16x16xf32> -> vector<16x16xf32>
    %7 = arith.addf %0, %6 : vector<16x16xf32>
    %8 = vector.extract_strided_slice %2 {offsets = [1, 0], sizes = [16, 32], strides = [1, 1]} : vector<18x32xbf16> to vector<16x32xbf16>
    %c0_8 = arith.constant 0 : index
    %c1 = arith.constant 1 : index
    %c0_9 = arith.constant 0 : index
    %c0_10 = arith.constant 0 : index
    %9 = vector.load %arg5[%c0_8, %c1, %c0_9, %c0_10] : memref<3x3x32x16xbf16, #tpu.memory_space<vmem>>, vector<1x1x32x16xbf16>
    %10 = vector.shape_cast %9 : vector<1x1x32x16xbf16> to vector<32x16xbf16>
    %cst_11 = arith.constant dense<0.000000e+00> : vector<16x16xf32>
    %11 = tpu.matmul %8, %10, %cst_11 {dimension_numbers = #tpu.dot_dimension_numbers<[1], [0], [0], [1], [0, 0, 1, 1], [], []>} : vector<16x32xbf16>, vector<32x16xbf16>, vector<16x16xf32> -> vector<16x16xf32>
    %12 = arith.addf %7, %11 : vector<16x16xf32>
    %13 = vector.extract_strided_slice %2 {offsets = [2, 0], sizes = [16, 32], strides = [1, 1]} : vector<18x32xbf16> to vector<16x32xbf16>
    %c0_12 = arith.constant 0 : index
    %c2 = arith.constant 2 : index
    %c0_13 = arith.constant 0 : index
    %c0_14 = arith.constant 0 : index
    %14 = vector.load %arg5[%c0_12, %c2, %c0_13, %c0_14] : memref<3x3x32x16xbf16, #tpu.memory_space<vmem>>, vector<1x1x32x16xbf16>
    %15 = vector.shape_cast %14 : vector<1x1x32x16xbf16> to vector<32x16xbf16>
    %cst_15 = arith.constant dense<0.000000e+00> : vector<16x16xf32>
    %16 = tpu.matmul %13, %15, %cst_15 {dimension_numbers = #tpu.dot_dimension_numbers<[1], [0], [0], [1], [0, 0, 1, 1], [], []>} : vector<16x32xbf16>, vector<32x16xbf16>, vector<16x16xf32> -> vector<16x16xf32>
    %17 = arith.addf %12, %16 : vector<16x16xf32>
    %c0_16 = arith.constant 0 : index
    %c0_17 = arith.constant 0 : index
    %c0_18 = arith.constant 0 : index
    %c0_19 = arith.constant 0 : index
    %18 = vector.load %arg3[%c0_16, %c0_17, %c0_18, %c0_19] : memref<1x1x18x32xbf16, #tpu.memory_space<vmem>>, vector<1x1x18x32xbf16>
    %19 = vector.shape_cast %18 : vector<1x1x18x32xbf16> to vector<18x32xbf16>
    %20 = vector.extract_strided_slice %19 {offsets = [0, 0], sizes = [16, 32], strides = [1, 1]} : vector<18x32xbf16> to vector<16x32xbf16>
    %c1_20 = arith.constant 1 : index
    %c0_21 = arith.constant 0 : index
    %c0_22 = arith.constant 0 : index
    %c0_23 = arith.constant 0 : index
    %21 = vector.load %arg5[%c1_20, %c0_21, %c0_22, %c0_23] : memref<3x3x32x16xbf16, #tpu.memory_space<vmem>>, vector<1x1x32x16xbf16>
    %22 = vector.shape_cast %21 : vector<1x1x32x16xbf16> to vector<32x16xbf16>
    %cst_24 = arith.constant dense<0.000000e+00> : vector<16x16xf32>
    %23 = tpu.matmul %20, %22, %cst_24 {dimension_numbers = #tpu.dot_dimension_numbers<[1], [0], [0], [1], [0, 0, 1, 1], [], []>} : vector<16x32xbf16>, vector<32x16xbf16>, vector<16x16xf32> -> vector<16x16xf32>
    %24 = arith.addf %17, %23 : vector<16x16xf32>
    %25 = vector.extract_strided_slice %19 {offsets = [1, 0], sizes = [16, 32], strides = [1, 1]} : vector<18x32xbf16> to vector<16x32xbf16>
    %c1_25 = arith.constant 1 : index
    %c1_26 = arith.constant 1 : index
    %c0_27 = arith.constant 0 : index
    %c0_28 = arith.constant 0 : index
    %26 = vector.load %arg5[%c1_25, %c1_26, %c0_27, %c0_28] : memref<3x3x32x16xbf16, #tpu.memory_space<vmem>>, vector<1x1x32x16xbf16>
    %27 = vector.shape_cast %26 : vector<1x1x32x16xbf16> to vector<32x16xbf16>
    %cst_29 = arith.constant dense<0.000000e+00> : vector<16x16xf32>
    %28 = tpu.matmul %25, %27, %cst_29 {dimension_numbers = #tpu.dot_dimension_numbers<[1], [0], [0], [1], [0, 0, 1, 1], [], []>} : vector<16x32xbf16>, vector<32x16xbf16>, vector<16x16xf32> -> vector<16x16xf32>
    %29 = arith.addf %24, %28 : vector<16x16xf32>
    %30 = vector.extract_strided_slice %19 {offsets = [2, 0], sizes = [16, 32], strides = [1, 1]} : vector<18x32xbf16> to vector<16x32xbf16>
    %c1_30 = arith.constant 1 : index
    %c2_31 = arith.constant 2 : index
    %c0_32 = arith.constant 0 : index
    %c0_33 = arith.constant 0 : index
    %31 = vector.load %arg5[%c1_30, %c2_31, %c0_32, %c0_33] : memref<3x3x32x16xbf16, #tpu.memory_space<vmem>>, vector<1x1x32x16xbf16>
    %32 = vector.shape_cast %31 : vector<1x1x32x16xbf16> to vector<32x16xbf16>
    %cst_34 = arith.constant dense<0.000000e+00> : vector<16x16xf32>
    %33 = tpu.matmul %30, %32, %cst_34 {dimension_numbers = #tpu.dot_dimension_numbers<[1], [0], [0], [1], [0, 0, 1, 1], [], []>} : vector<16x32xbf16>, vector<32x16xbf16>, vector<16x16xf32> -> vector<16x16xf32>
    %34 = arith.addf %29, %33 : vector<16x16xf32>
    %c0_35 = arith.constant 0 : index
    %c0_36 = arith.constant 0 : index
    %c0_37 = arith.constant 0 : index
    %c0_38 = arith.constant 0 : index
    %35 = vector.load %arg4[%c0_35, %c0_36, %c0_37, %c0_38] : memref<1x1x18x32xbf16, #tpu.memory_space<vmem>>, vector<1x1x18x32xbf16>
    %36 = vector.shape_cast %35 : vector<1x1x18x32xbf16> to vector<18x32xbf16>
    %37 = vector.extract_strided_slice %36 {offsets = [0, 0], sizes = [16, 32], strides = [1, 1]} : vector<18x32xbf16> to vector<16x32xbf16>
    %c2_39 = arith.constant 2 : index
    %c0_40 = arith.constant 0 : index
    %c0_41 = arith.constant 0 : index
    %c0_42 = arith.constant 0 : index
    %38 = vector.load %arg5[%c2_39, %c0_40, %c0_41, %c0_42] : memref<3x3x32x16xbf16, #tpu.memory_space<vmem>>, vector<1x1x32x16xbf16>
    %39 = vector.shape_cast %38 : vector<1x1x32x16xbf16> to vector<32x16xbf16>
    %cst_43 = arith.constant dense<0.000000e+00> : vector<16x16xf32>
    %40 = tpu.matmul %37, %39, %cst_43 {dimension_numbers = #tpu.dot_dimension_numbers<[1], [0], [0], [1], [0, 0, 1, 1], [], []>} : vector<16x32xbf16>, vector<32x16xbf16>, vector<16x16xf32> -> vector<16x16xf32>
    %41 = arith.addf %34, %40 : vector<16x16xf32>
    %42 = vector.extract_strided_slice %36 {offsets = [1, 0], sizes = [16, 32], strides = [1, 1]} : vector<18x32xbf16> to vector<16x32xbf16>
    %c2_44 = arith.constant 2 : index
    %c1_45 = arith.constant 1 : index
    %c0_46 = arith.constant 0 : index
    %c0_47 = arith.constant 0 : index
    %43 = vector.load %arg5[%c2_44, %c1_45, %c0_46, %c0_47] : memref<3x3x32x16xbf16, #tpu.memory_space<vmem>>, vector<1x1x32x16xbf16>
    %44 = vector.shape_cast %43 : vector<1x1x32x16xbf16> to vector<32x16xbf16>
    %cst_48 = arith.constant dense<0.000000e+00> : vector<16x16xf32>
    %45 = tpu.matmul %42, %44, %cst_48 {dimension_numbers = #tpu.dot_dimension_numbers<[1], [0], [0], [1], [0, 0, 1, 1], [], []>} : vector<16x32xbf16>, vector<32x16xbf16>, vector<16x16xf32> -> vector<16x16xf32>
    %46 = arith.addf %41, %45 : vector<16x16xf32>
    %47 = vector.extract_strided_slice %36 {offsets = [2, 0], sizes = [16, 32], strides = [1, 1]} : vector<18x32xbf16> to vector<16x32xbf16>
    %c2_49 = arith.constant 2 : index
    %c2_50 = arith.constant 2 : index
    %c0_51 = arith.constant 0 : index
    %c0_52 = arith.constant 0 : index
    %48 = vector.load %arg5[%c2_49, %c2_50, %c0_51, %c0_52] : memref<3x3x32x16xbf16, #tpu.memory_space<vmem>>, vector<1x1x32x16xbf16>
    %49 = vector.shape_cast %48 : vector<1x1x32x16xbf16> to vector<32x16xbf16>
    %cst_53 = arith.constant dense<0.000000e+00> : vector<16x16xf32>
    %50 = tpu.matmul %47, %49, %cst_53 {dimension_numbers = #tpu.dot_dimension_numbers<[1], [0], [0], [1], [0, 0, 1, 1], [], []>} : vector<16x32xbf16>, vector<32x16xbf16>, vector<16x16xf32> -> vector<16x16xf32>
    %51 = arith.addf %46, %50 : vector<16x16xf32>
    %c0_54 = arith.constant 0 : index
    %c0_55 = arith.constant 0 : index
    %52 = vector.load %arg6[%c0_54, %c0_55] : memref<1x16xf32, #tpu.memory_space<vmem>>, vector<1x16xf32>
    %53 = vector.broadcast %52 : vector<1x16xf32> to vector<16x16xf32>
    %54 = arith.addf %51, %53 : vector<16x16xf32>
    %cst_56 = arith.constant 0.000000e+00 : f32
    %55 = vector.broadcast %cst_56 : f32 to vector<16x16xf32>
    %56 = arith.cmpf ogt, %54, %55 : vector<16x16xf32>
    %cst_57 = arith.constant 0.000000e+00 : f32
    %57 = vector.broadcast %cst_57 : f32 to vector<16x16xf32>
    %58 = arith.minimumf %54, %57 : vector<16x16xf32>
    %59 = math.exp %58 : vector<16x16xf32>
    %cst_58 = arith.constant 1.000000e+00 : f32
    %60 = vector.broadcast %cst_58 : f32 to vector<16x16xf32>
    %61 = arith.subf %59, %60 : vector<16x16xf32>
    %62 = arith.select %56, %54, %61 : vector<16x16xi1>, vector<16x16xf32>
    %63 = arith.truncf %62 : vector<16x16xf32> to vector<16x16xbf16>
    %c0_59 = arith.constant 0 : index
    %c0_60 = arith.constant 0 : index
    %c0_61 = arith.constant 0 : index
    %c0_62 = arith.constant 0 : index
    %64 = vector.load %arg7[%c0_59, %c0_60, %c0_61, %c0_62] : memref<1x1x16x16xbf16, #tpu.memory_space<vmem>>, vector<1x1x16x16xbf16>
    %65 = vector.shape_cast %64 : vector<1x1x16x16xbf16> to vector<16x16xbf16>
    %66 = vector.shape_cast %63 : vector<16x16xbf16> to vector<1x1x16x16xbf16>
    tpu.vector_store %arg7[%c0_59, %c0_60, %c0_61, %c0_62], %66 {strides = array<i32>} : memref<1x1x16x16xbf16, #tpu.memory_space<vmem>>, vector<1x1x16x16xbf16>,
    return
  }
  func.func @transform_0(%arg0: i32, %arg1: i32) -> (i32, i32, i32, i32) {
    %c0_i32 = arith.constant 0 : i32
    %0 = arith.addi %arg1, %c0_i32 : i32
    %c0_i32_0 = arith.constant 0 : i32
    %c0_i32_1 = arith.constant 0 : i32
    %c0_i32_2 = arith.constant 0 : i32
    return %arg0, %0, %c0_i32_0, %c0_i32_1 : i32, i32, i32, i32
  }
  func.func @transform_1(%arg0: i32, %arg1: i32) -> (i32, i32, i32, i32) {
    %c1_i32 = arith.constant 1 : i32
    %0 = arith.addi %arg1, %c1_i32 : i32
    %c0_i32 = arith.constant 0 : i32
    %c0_i32_0 = arith.constant 0 : i32
    %c0_i32_1 = arith.constant 0 : i32
    return %arg0, %0, %c0_i32, %c0_i32_0 : i32, i32, i32, i32
  }
  func.func @transform_2(%arg0: i32, %arg1: i32) -> (i32, i32, i32, i32) {
    %c2_i32 = arith.constant 2 : i32
    %0 = arith.addi %arg1, %c2_i32 : i32
    %c0_i32 = arith.constant 0 : i32
    %c0_i32_0 = arith.constant 0 : i32
    %c0_i32_1 = arith.constant 0 : i32
    return %arg0, %0, %c0_i32, %c0_i32_0 : i32, i32, i32, i32
  }
  func.func @transform_3(%arg0: i32, %arg1: i32) -> (i32, i32, i32, i32) {
    %c0_i32 = arith.constant 0 : i32
    %c0_i32_0 = arith.constant 0 : i32
    %c0_i32_1 = arith.constant 0 : i32
    %c0_i32_2 = arith.constant 0 : i32
    %c0_i32_3 = arith.constant 0 : i32
    return %c0_i32, %c0_i32_0, %c0_i32_1, %c0_i32_2 : i32, i32, i32, i32
  }
  func.func @transform_4(%arg0: i32, %arg1: i32) -> (i32, i32) {
    %c0_i32 = arith.constant 0 : i32
    %c0_i32_0 = arith.constant 0 : i32
    %c0_i32_1 = arith.constant 0 : i32
    return %c0_i32, %c0_i32_0 : i32, i32
  }
  func.func @transform_5(%arg0: i32, %arg1: i32) -> (i32, i32, i32, i32) {
    %c0_i32 = arith.constant 0 : i32
    %c0_i32_0 = arith.constant 0 : i32
    %c0_i32_1 = arith.constant 0 : i32
    return %arg0, %arg1, %c0_i32, %c0_i32_0 : i32, i32, i32, i32
  }
}

module attributes {stable_mosaic.version = 11 : i64} {
  func.func @kernel(%arg0: i32, %arg1: i32, %arg2: memref<1x1x18x16xbf16, #tpu.memory_space<vmem>>, %arg3: memref<1x1x18x16xbf16, #tpu.memory_space<vmem>>, %arg4: memref<1x1x18x16xbf16, #tpu.memory_space<vmem>>, %arg5: memref<3x3x16x1xbf16, #tpu.memory_space<vmem>>, %arg6: memref<1x1xf32, #tpu.memory_space<vmem>>, %arg7: memref<1x1x16x1xbf16, #tpu.memory_space<vmem>>) attributes {dimension_semantics = [#tpu.dimension_semantics<parallel>, #tpu.dimension_semantics<parallel>], iteration_bounds = array<i64: 2, 16>, scalar_prefetch = 0 : i64, scratch_operands = 0 : i64, tpu.core_type = #tpu.core_type<tc>, window_params = [{transform_indices = @transform_0, window_bounds = array<i64: 1, 1, 18, 16>}, {transform_indices = @transform_1, window_bounds = array<i64: 1, 1, 18, 16>}, {transform_indices = @transform_2, window_bounds = array<i64: 1, 1, 18, 16>}, {pipeline_mode = #tpu.pipeline_mode<synchronous>, transform_indices = @transform_3, window_bounds = array<i64: 3, 3, 16, 1>}, {pipeline_mode = #tpu.pipeline_mode<synchronous>, transform_indices = @transform_4, window_bounds = array<i64: 1, 1>}, {transform_indices = @transform_5, window_bounds = array<i64: 1, 1, 16, 1>}]} {
    %cst = arith.constant 0.000000e+00 : f32
    %0 = vector.broadcast %cst : f32 to vector<16x1xf32>
    %c0 = arith.constant 0 : index
    %c0_0 = arith.constant 0 : index
    %c0_1 = arith.constant 0 : index
    %c0_2 = arith.constant 0 : index
    %1 = vector.load %arg2[%c0, %c0_0, %c0_1, %c0_2] : memref<1x1x18x16xbf16, #tpu.memory_space<vmem>>, vector<1x1x18x16xbf16>
    %2 = vector.shape_cast %1 : vector<1x1x18x16xbf16> to vector<18x16xbf16>
    %3 = vector.extract_strided_slice %2 {offsets = [0, 0], sizes = [16, 16], strides = [1, 1]} : vector<18x16xbf16> to vector<16x16xbf16>
    %c0_3 = arith.constant 0 : index
    %c0_4 = arith.constant 0 : index
    %c0_5 = arith.constant 0 : index
    %c0_6 = arith.constant 0 : index
    %4 = vector.load %arg5[%c0_3, %c0_4, %c0_5, %c0_6] : memref<3x3x16x1xbf16, #tpu.memory_space<vmem>>, vector<1x1x16x1xbf16>
    %5 = vector.shape_cast %4 : vector<1x1x16x1xbf16> to vector<16x1xbf16>
    %cst_7 = arith.constant dense<0.000000e+00> : vector<16x1xf32>
    %6 = tpu.matmul %3, %5, %cst_7 {dimension_numbers = #tpu.dot_dimension_numbers<[1], [0], [0], [1], [0, 0, 1, 1], [], []>} : vector<16x16xbf16>, vector<16x1xbf16>, vector<16x1xf32> -> vector<16x1xf32>
    %7 = arith.addf %0, %6 : vector<16x1xf32>
    %8 = vector.extract_strided_slice %2 {offsets = [1, 0], sizes = [16, 16], strides = [1, 1]} : vector<18x16xbf16> to vector<16x16xbf16>
    %c0_8 = arith.constant 0 : index
    %c1 = arith.constant 1 : index
    %c0_9 = arith.constant 0 : index
    %c0_10 = arith.constant 0 : index
    %9 = vector.load %arg5[%c0_8, %c1, %c0_9, %c0_10] : memref<3x3x16x1xbf16, #tpu.memory_space<vmem>>, vector<1x1x16x1xbf16>
    %10 = vector.shape_cast %9 : vector<1x1x16x1xbf16> to vector<16x1xbf16>
    %cst_11 = arith.constant dense<0.000000e+00> : vector<16x1xf32>
    %11 = tpu.matmul %8, %10, %cst_11 {dimension_numbers = #tpu.dot_dimension_numbers<[1], [0], [0], [1], [0, 0, 1, 1], [], []>} : vector<16x16xbf16>, vector<16x1xbf16>, vector<16x1xf32> -> vector<16x1xf32>
    %12 = arith.addf %7, %11 : vector<16x1xf32>
    %13 = vector.extract_strided_slice %2 {offsets = [2, 0], sizes = [16, 16], strides = [1, 1]} : vector<18x16xbf16> to vector<16x16xbf16>
    %c0_12 = arith.constant 0 : index
    %c2 = arith.constant 2 : index
    %c0_13 = arith.constant 0 : index
    %c0_14 = arith.constant 0 : index
    %14 = vector.load %arg5[%c0_12, %c2, %c0_13, %c0_14] : memref<3x3x16x1xbf16, #tpu.memory_space<vmem>>, vector<1x1x16x1xbf16>
    %15 = vector.shape_cast %14 : vector<1x1x16x1xbf16> to vector<16x1xbf16>
    %cst_15 = arith.constant dense<0.000000e+00> : vector<16x1xf32>
    %16 = tpu.matmul %13, %15, %cst_15 {dimension_numbers = #tpu.dot_dimension_numbers<[1], [0], [0], [1], [0, 0, 1, 1], [], []>} : vector<16x16xbf16>, vector<16x1xbf16>, vector<16x1xf32> -> vector<16x1xf32>
    %17 = arith.addf %12, %16 : vector<16x1xf32>
    %c0_16 = arith.constant 0 : index
    %c0_17 = arith.constant 0 : index
    %c0_18 = arith.constant 0 : index
    %c0_19 = arith.constant 0 : index
    %18 = vector.load %arg3[%c0_16, %c0_17, %c0_18, %c0_19] : memref<1x1x18x16xbf16, #tpu.memory_space<vmem>>, vector<1x1x18x16xbf16>
    %19 = vector.shape_cast %18 : vector<1x1x18x16xbf16> to vector<18x16xbf16>
    %20 = vector.extract_strided_slice %19 {offsets = [0, 0], sizes = [16, 16], strides = [1, 1]} : vector<18x16xbf16> to vector<16x16xbf16>
    %c1_20 = arith.constant 1 : index
    %c0_21 = arith.constant 0 : index
    %c0_22 = arith.constant 0 : index
    %c0_23 = arith.constant 0 : index
    %21 = vector.load %arg5[%c1_20, %c0_21, %c0_22, %c0_23] : memref<3x3x16x1xbf16, #tpu.memory_space<vmem>>, vector<1x1x16x1xbf16>
    %22 = vector.shape_cast %21 : vector<1x1x16x1xbf16> to vector<16x1xbf16>
    %cst_24 = arith.constant dense<0.000000e+00> : vector<16x1xf32>
    %23 = tpu.matmul %20, %22, %cst_24 {dimension_numbers = #tpu.dot_dimension_numbers<[1], [0], [0], [1], [0, 0, 1, 1], [], []>} : vector<16x16xbf16>, vector<16x1xbf16>, vector<16x1xf32> -> vector<16x1xf32>
    %24 = arith.addf %17, %23 : vector<16x1xf32>
    %25 = vector.extract_strided_slice %19 {offsets = [1, 0], sizes = [16, 16], strides = [1, 1]} : vector<18x16xbf16> to vector<16x16xbf16>
    %c1_25 = arith.constant 1 : index
    %c1_26 = arith.constant 1 : index
    %c0_27 = arith.constant 0 : index
    %c0_28 = arith.constant 0 : index
    %26 = vector.load %arg5[%c1_25, %c1_26, %c0_27, %c0_28] : memref<3x3x16x1xbf16, #tpu.memory_space<vmem>>, vector<1x1x16x1xbf16>
    %27 = vector.shape_cast %26 : vector<1x1x16x1xbf16> to vector<16x1xbf16>
    %cst_29 = arith.constant dense<0.000000e+00> : vector<16x1xf32>
    %28 = tpu.matmul %25, %27, %cst_29 {dimension_numbers = #tpu.dot_dimension_numbers<[1], [0], [0], [1], [0, 0, 1, 1], [], []>} : vector<16x16xbf16>, vector<16x1xbf16>, vector<16x1xf32> -> vector<16x1xf32>
    %29 = arith.addf %24, %28 : vector<16x1xf32>
    %30 = vector.extract_strided_slice %19 {offsets = [2, 0], sizes = [16, 16], strides = [1, 1]} : vector<18x16xbf16> to vector<16x16xbf16>
    %c1_30 = arith.constant 1 : index
    %c2_31 = arith.constant 2 : index
    %c0_32 = arith.constant 0 : index
    %c0_33 = arith.constant 0 : index
    %31 = vector.load %arg5[%c1_30, %c2_31, %c0_32, %c0_33] : memref<3x3x16x1xbf16, #tpu.memory_space<vmem>>, vector<1x1x16x1xbf16>
    %32 = vector.shape_cast %31 : vector<1x1x16x1xbf16> to vector<16x1xbf16>
    %cst_34 = arith.constant dense<0.000000e+00> : vector<16x1xf32>
    %33 = tpu.matmul %30, %32, %cst_34 {dimension_numbers = #tpu.dot_dimension_numbers<[1], [0], [0], [1], [0, 0, 1, 1], [], []>} : vector<16x16xbf16>, vector<16x1xbf16>, vector<16x1xf32> -> vector<16x1xf32>
    %34 = arith.addf %29, %33 : vector<16x1xf32>
    %c0_35 = arith.constant 0 : index
    %c0_36 = arith.constant 0 : index
    %c0_37 = arith.constant 0 : index
    %c0_38 = arith.constant 0 : index
    %35 = vector.load %arg4[%c0_35, %c0_36, %c0_37, %c0_38] : memref<1x1x18x16xbf16, #tpu.memory_space<vmem>>, vector<1x1x18x16xbf16>
    %36 = vector.shape_cast %35 : vector<1x1x18x16xbf16> to vector<18x16xbf16>
    %37 = vector.extract_strided_slice %36 {offsets = [0, 0], sizes = [16, 16], strides = [1, 1]} : vector<18x16xbf16> to vector<16x16xbf16>
    %c2_39 = arith.constant 2 : index
    %c0_40 = arith.constant 0 : index
    %c0_41 = arith.constant 0 : index
    %c0_42 = arith.constant 0 : index
    %38 = vector.load %arg5[%c2_39, %c0_40, %c0_41, %c0_42] : memref<3x3x16x1xbf16, #tpu.memory_space<vmem>>, vector<1x1x16x1xbf16>
    %39 = vector.shape_cast %38 : vector<1x1x16x1xbf16> to vector<16x1xbf16>
    %cst_43 = arith.constant dense<0.000000e+00> : vector<16x1xf32>
    %40 = tpu.matmul %37, %39, %cst_43 {dimension_numbers = #tpu.dot_dimension_numbers<[1], [0], [0], [1], [0, 0, 1, 1], [], []>} : vector<16x16xbf16>, vector<16x1xbf16>, vector<16x1xf32> -> vector<16x1xf32>
    %41 = arith.addf %34, %40 : vector<16x1xf32>
    %42 = vector.extract_strided_slice %36 {offsets = [1, 0], sizes = [16, 16], strides = [1, 1]} : vector<18x16xbf16> to vector<16x16xbf16>
    %c2_44 = arith.constant 2 : index
    %c1_45 = arith.constant 1 : index
    %c0_46 = arith.constant 0 : index
    %c0_47 = arith.constant 0 : index
    %43 = vector.load %arg5[%c2_44, %c1_45, %c0_46, %c0_47] : memref<3x3x16x1xbf16, #tpu.memory_space<vmem>>, vector<1x1x16x1xbf16>
    %44 = vector.shape_cast %43 : vector<1x1x16x1xbf16> to vector<16x1xbf16>
    %cst_48 = arith.constant dense<0.000000e+00> : vector<16x1xf32>
    %45 = tpu.matmul %42, %44, %cst_48 {dimension_numbers = #tpu.dot_dimension_numbers<[1], [0], [0], [1], [0, 0, 1, 1], [], []>} : vector<16x16xbf16>, vector<16x1xbf16>, vector<16x1xf32> -> vector<16x1xf32>
    %46 = arith.addf %41, %45 : vector<16x1xf32>
    %47 = vector.extract_strided_slice %36 {offsets = [2, 0], sizes = [16, 16], strides = [1, 1]} : vector<18x16xbf16> to vector<16x16xbf16>
    %c2_49 = arith.constant 2 : index
    %c2_50 = arith.constant 2 : index
    %c0_51 = arith.constant 0 : index
    %c0_52 = arith.constant 0 : index
    %48 = vector.load %arg5[%c2_49, %c2_50, %c0_51, %c0_52] : memref<3x3x16x1xbf16, #tpu.memory_space<vmem>>, vector<1x1x16x1xbf16>
    %49 = vector.shape_cast %48 : vector<1x1x16x1xbf16> to vector<16x1xbf16>
    %cst_53 = arith.constant dense<0.000000e+00> : vector<16x1xf32>
    %50 = tpu.matmul %47, %49, %cst_53 {dimension_numbers = #tpu.dot_dimension_numbers<[1], [0], [0], [1], [0, 0, 1, 1], [], []>} : vector<16x16xbf16>, vector<16x1xbf16>, vector<16x1xf32> -> vector<16x1xf32>
    %51 = arith.addf %46, %50 : vector<16x1xf32>
    %c0_54 = arith.constant 0 : index
    %c0_55 = arith.constant 0 : index
    %52 = vector.load %arg6[%c0_54, %c0_55] : memref<1x1xf32, #tpu.memory_space<vmem>>, vector<1x1xf32>
    %53 = vector.broadcast %52 : vector<1x1xf32> to vector<16x1xf32>
    %54 = arith.addf %51, %53 : vector<16x1xf32>
    %cst_56 = arith.constant 0.000000e+00 : f32
    %55 = vector.broadcast %cst_56 : f32 to vector<16x1xf32>
    %56 = arith.subf %55, %54 : vector<16x1xf32>
    %57 = math.exp %56 : vector<16x1xf32>
    %cst_57 = arith.constant 1.000000e+00 : f32
    %58 = vector.broadcast %cst_57 : f32 to vector<16x1xf32>
    %59 = arith.addf %58, %57 : vector<16x1xf32>
    %60 = tpu.reciprocal %59 {approx = true} : vector<16x1xf32> -> vector<16x1xf32>
    %cst_58 = arith.constant 0.000000e+00 : f32
    %cst_59 = arith.constant 1.000000e+00 : f32
    %61 = vector.broadcast %cst_58 : f32 to vector<16x1xf32>
    %62 = arith.maximumf %61, %60 : vector<16x1xf32>
    %63 = vector.broadcast %cst_59 : f32 to vector<16x1xf32>
    %64 = arith.minimumf %63, %62 : vector<16x1xf32>
    %65 = arith.truncf %64 : vector<16x1xf32> to vector<16x1xbf16>
    %c0_60 = arith.constant 0 : index
    %c0_61 = arith.constant 0 : index
    %c0_62 = arith.constant 0 : index
    %c0_63 = arith.constant 0 : index
    %66 = vector.load %arg7[%c0_60, %c0_61, %c0_62, %c0_63] : memref<1x1x16x1xbf16, #tpu.memory_space<vmem>>, vector<1x1x16x1xbf16>
    %67 = vector.shape_cast %66 : vector<1x1x16x1xbf16> to vector<16x1xbf16>
    %68 = vector.shape_cast %65 : vector<16x1xbf16> to vector<1x1x16x1xbf16>
    tpu.vector_store %arg7[%c0_60, %c0_61, %c0_62, %c0_63], %68 {strides = array<i32>} : memref<1x1x16x1xbf16, #tpu.memory_space<vmem>>, vector<1x1x16x1xbf16>,
    return
  }
  func.func @transform_0(%arg0: i32, %arg1: i32) -> (i32, i32, i32, i32) {
    %c0_i32 = arith.constant 0 : i32
    %0 = arith.addi %arg1, %c0_i32 : i32
    %c0_i32_0 = arith.constant 0 : i32
    %c0_i32_1 = arith.constant 0 : i32
    %c0_i32_2 = arith.constant 0 : i32
    return %arg0, %0, %c0_i32_0, %c0_i32_1 : i32, i32, i32, i32
  }
  func.func @transform_1(%arg0: i32, %arg1: i32) -> (i32, i32, i32, i32) {
    %c1_i32 = arith.constant 1 : i32
    %0 = arith.addi %arg1, %c1_i32 : i32
    %c0_i32 = arith.constant 0 : i32
    %c0_i32_0 = arith.constant 0 : i32
    %c0_i32_1 = arith.constant 0 : i32
    return %arg0, %0, %c0_i32, %c0_i32_0 : i32, i32, i32, i32
  }
  func.func @transform_2(%arg0: i32, %arg1: i32) -> (i32, i32, i32, i32) {
    %c2_i32 = arith.constant 2 : i32
    %0 = arith.addi %arg1, %c2_i32 : i32
    %c0_i32 = arith.constant 0 : i32
    %c0_i32_0 = arith.constant 0 : i32
    %c0_i32_1 = arith.constant 0 : i32
    return %arg0, %0, %c0_i32, %c0_i32_0 : i32, i32, i32, i32
  }
  func.func @transform_3(%arg0: i32, %arg1: i32) -> (i32, i32, i32, i32) {
    %c0_i32 = arith.constant 0 : i32
    %c0_i32_0 = arith.constant 0 : i32
    %c0_i32_1 = arith.constant 0 : i32
    %c0_i32_2 = arith.constant 0 : i32
    %c0_i32_3 = arith.constant 0 : i32
    return %c0_i32, %c0_i32_0, %c0_i32_1, %c0_i32_2 : i32, i32, i32, i32
  }
  func.func @transform_4(%arg0: i32, %arg1: i32) -> (i32, i32) {
    %c0_i32 = arith.constant 0 : i32
    %c0_i32_0 = arith.constant 0 : i32
    %c0_i32_1 = arith.constant 0 : i32
    return %c0_i32, %c0_i32_0 : i32, i32
  }
  func.func @transform_5(%arg0: i32, %arg1: i32) -> (i32, i32, i32, i32) {
    %c0_i32 = arith.constant 0 : i32
    %c0_i32_0 = arith.constant 0 : i32
    %c0_i32_1 = arith.constant 0 : i32
    return %arg0, %arg1, %c0_i32, %c0_i32_0 : i32, i32, i32, i32
  }
}

</mosaic_0001>

<llo_original>
// kernel: mpn_forward.9
$region0: #{mpn_forward.9}
  #allocation0 [shape = 'u32[]', space=smem, size = 0x4, offset = 0x4, fixed_abs, tag = 'smem constant byte address 0x4 - core index']
  #allocation1 [shape = 'u32[72,128]{1,0:T(1,128)}', space=vmem, size = 0x9000, scoped, tag = 'internal scratch']
  %s0 = inlined_call_operand.vmem [shape: bf16[128,75], index: 0, kind: input, shape index: {}]
  %s1 = inlined_call_operand.vmem [shape: bf16[75,64], index: 1, kind: input, shape index: {}]
  %s2 = inlined_call_operand.vmem [shape: f32[1,64], index: 2, kind: input, shape index: {}]
  %s3 = inlined_call_operand.vmem [shape: bf16[128,3], index: 3, kind: input, shape index: {}]
  %s4 = inlined_call_operand.vmem [shape: bf16[3,64], index: 4, kind: input, shape index: {}]
  %s5 = inlined_call_operand.vmem [shape: f32[1,64], index: 5, kind: input, shape index: {}]
  %s6 = inlined_call_operand.vmem [shape: bf16[128,64], index: 6, kind: output, shape index: {}]
  %s7 = sld [smem:[#allocation0]]
  $region57: #{mpn_forward.9} parent=0
    _
  %s9 = ssub.s32 1, %s7
  %s10 = scalar_select 0, %s9, %s7
  loop: start=0, step=1, limit=4
  $region2: #{mpn_forward.9} parent=0 // loop_pre_header
    _
  $region3: #{mpn_forward.9} parent=0 // loop_header
    %s12 = sphi 0, %s16
    %p13 = scmp.ge.s32.totalorder %s12, 4
    %s22 = sphi 0, %s24
    %s25 = sphi 0, %s22
    %s26 = sphi 0, %s25
    %s42 = sphi 0, %s26
    %s46 = sphi 0, %s46
    %s48 = sphi 0, %s46
    %s49 = sphi 0, %s48
    %s63 = sphi 0, %s49
    %s67 = sphi 0, %s67
    %s69 = sphi 0, %s67
    %s70 = sphi 0, %s69
    %s84 = sphi 0, %s70
    %s90 = sphi 0, %s92
    %s93 = sphi 0, %s90
    %s94 = sphi 0, %s93
    %s110 = sphi 0, %s94
    %s114 = sphi 0, %s114
    %s116 = sphi 0, %s114
    %s117 = sphi 0, %s116
    %s131 = sphi 0, %s117
    %s135 = sphi 0, %s135
    %s137 = sphi 0, %s135
    %s138 = sphi 0, %s137
    %s152 = sphi 0, %s138
    %s158 = sphi 0, %s160
    %s161 = sphi 0, %s158
    %s162 = sphi 0, %s161
    %s178 = sphi 0, %s162
  $region4: #{mpn_forward.9} parent=0 // loop_header_branch
    %15 = sbr.rel (%p13) target = $region8
  $region5: #{mpn_forward.9} parent=0 // loop_body
    %s17 = ssub.s32 %s12, 1
    %s18 = ssub.s32 %s12, 2
    %s19 = sadd.s32 %s12, 1
    %s20 = ssub.s32 %s12, %s19
    %p21 = scmp.eq.s32.totalorder %s20, 0
    %s23 = sadd.s32 %s22, 1
    %s24 = scalar_select %p21, %s22, %s23
    %p27 = pneg %p21
    %p28 = scmp.eq.s32.totalorder %s12, 1
    %p29 = por %p27, %p28
    %p30 = scmp.ne.s32.totalorder %s22, %s25
    %p31 = scmp.eq.s32.totalorder %s12, 0
    %p32 = por %p30, %p31
    %p33 = scmp.ne.s32.totalorder %s22, %s25
    %p34 = scmp.eq.s32.totalorder %s17, 1
    %p35 = por %p33, %p34
    %p36 = scmp.ne.s32.totalorder %s25, %s26
    %p37 = scmp.eq.s32.totalorder %s17, 0
    %p38 = por %p36, %p37
    %p39 = scmp.ne.s32.totalorder %s25, %s26
    %p40 = scmp.eq.s32.totalorder %s18, 1
    %p41 = por %p39, %p40
    %p43 = scmp.ne.s32.totalorder %s26, %s42
    %p44 = scmp.eq.s32.totalorder %s18, 0
    %p45 = por %p43, %p44
    %s47 = sadd.s32 %s46, 1
    %p50 = scmp.eq.s32.totalorder %s12, 1
    %p51 = scmp.ne.s32.totalorder %s46, %s48
    %p52 = scmp.eq.s32.totalorder %s12, 0
    %p53 = por %p51, %p52
    %p54 = scmp.ne.s32.totalorder %s46, %s48
    %p55 = scmp.eq.s32.totalorder %s17, 1
    %p56 = por %p54, %p55
    %p57 = scmp.ne.s32.totalorder %s48, %s49
    %p58 = scmp.eq.s32.totalorder %s17, 0
    %p59 = por %p57, %p58
    %p60 = scmp.ne.s32.totalorder %s48, %s49
    %p61 = scmp.eq.s32.totalorder %s18, 1
    %p62 = por %p60, %p61
    %p64 = scmp.ne.s32.totalorder %s49, %s63
    %p65 = scmp.eq.s32.totalorder %s18, 0
    %p66 = por %p64, %p65
    %s68 = sadd.s32 %s67, 1
    %p71 = scmp.eq.s32.totalorder %s12, 1
    %p72 = scmp.ne.s32.totalorder %s67, %s69
    %p73 = scmp.eq.s32.totalorder %s12, 0
    %p74 = por %p72, %p73
    %p75 = scmp.ne.s32.totalorder %s67, %s69
    %p76 = scmp.eq.s32.totalorder %s17, 1
    %p77 = por %p75, %p76
    %p78 = scmp.ne.s32.totalorder %s69, %s70
    %p79 = scmp.eq.s32.totalorder %s17, 0
    %p80 = por %p78, %p79
    %p81 = scmp.ne.s32.totalorder %s69, %s70
    %p82 = scmp.eq.s32.totalorder %s18, 1
    %p83 = por %p81, %p82
    %p85 = scmp.ne.s32.totalorder %s70, %s84
    %p86 = scmp.eq.s32.totalorder %s18, 0
    %p87 = por %p85, %p86
    %s88 = ssub.s32 %s12, %s19
    %p89 = scmp.eq.s32.totalorder %s88, 0
    %s91 = sadd.s32 %s90, 1
    %s92 = scalar_select %p89, %s90, %s91
    %p95 = pneg %p89
    %p96 = scmp.eq.s32.totalorder %s12, 1
    %p97 = por %p95, %p96
    %p98 = scmp.ne.s32.totalorder %s90, %s93
    %p99 = scmp.eq.s32.totalorder %s12, 0
    %p100 = por %p98, %p99
    %p101 = scmp.ne.s32.totalorder %s90, %s93
    %p102 = scmp.eq.s32.totalorder %s17, 1
    %p103 = por %p101, %p102
    %p104 = scmp.ne.s32.totalorder %s93, %s94
    %p105 = scmp.eq.s32.totalorder %s17, 0
    %p106 = por %p104, %p105
    %p107 = scmp.ne.s32.totalorder %s93, %s94
    %p108 = scmp.eq.s32.totalorder %s18, 1
    %p109 = por %p107, %p108
    %p111 = scmp.ne.s32.totalorder %s94, %s110
    %p112 = scmp.eq.s32.totalorder %s18, 0
    %p113 = por %p111, %p112
    %s115 = sadd.s32 %s114, 1
    %p118 = scmp.eq.s32.totalorder %s12, 1
    %p119 = scmp.ne.s32.totalorder %s114, %s116
    %p120 = scmp.eq.s32.totalorder %s12, 0
    %p121 = por %p119, %p120
    %p122 = scmp.ne.s32.totalorder %s114, %s116
    %p123 = scmp.eq.s32.totalorder %s17, 1
    %p124 = por %p122, %p123
    %p125 = scmp.ne.s32.totalorder %s116, %s117
    %p126 = scmp.eq.s32.totalorder %s17, 0
    %p127 = por %p125, %p126
    %p128 = scmp.ne.s32.totalorder %s116, %s117
    %p129 = scmp.eq.s32.totalorder %s18, 1
    %p130 = por %p128, %p129
    %p132 = scmp.ne.s32.totalorder %s117, %s131
    %p133 = scmp.eq.s32.totalorder %s18, 0
    %p134 = por %p132, %p133
    %s136 = sadd.s32 %s135, 1
    %p139 = scmp.eq.s32.totalorder %s12, 1
    %p140 = scmp.ne.s32.totalorder %s135, %s137
    %p141 = scmp.eq.s32.totalorder %s12, 0
    %p142 = por %p140, %p141
    %p143 = scmp.ne.s32.totalorder %s135, %s137
    %p144 = scmp.eq.s32.totalorder %s17, 1
    %p145 = por %p143, %p144
    %p146 = scmp.ne.s32.totalorder %s137, %s138
    %p147 = scmp.eq.s32.totalorder %s17, 0
    %p148 = por %p146, %p147
    %p149 = scmp.ne.s32.totalorder %s137, %s138
    %p150 = scmp.eq.s32.totalorder %s18, 1
    %p151 = por %p149, %p150
    %p153 = scmp.ne.s32.totalorder %s138, %s152
    %p154 = scmp.eq.s32.totalorder %s18, 0
    %p155 = por %p153, %p154
    %s156 = ssub.s32 %s12, %s19
    %p157 = scmp.eq.s32.totalorder %s156, 0
    %s159 = sadd.s32 %s158, 1
    %s160 = scalar_select %p157, %s158, %s159
    %p163 = pneg %p157
    %p164 = scmp.eq.s32.totalorder %s12, 1
    %p165 = por %p163, %p164
    %p166 = scmp.ne.s32.totalorder %s158, %s161
    %p167 = scmp.eq.s32.totalorder %s12, 0
    %p168 = por %p166, %p167
    %p169 = scmp.ne.s32.totalorder %s158, %s161
    %p170 = scmp.eq.s32.totalorder %s17, 1
    %p171 = por %p169, %p170
    %p172 = scmp.ne.s32.totalorder %s161, %s162
    %p173 = scmp.eq.s32.totalorder %s17, 0
    %p174 = por %p172, %p173
    %p175 = scmp.ne.s32.totalorder %s161, %s162
    %p176 = scmp.eq.s32.totalorder %s18, 1
    %p177 = por %p175, %p176
    %p179 = scmp.ne.s32.totalorder %s162, %s178
    %p180 = scmp.eq.s32.totalorder %s18, 0
    %p181 = por %p179, %p180
    %p182 = scmp.le.s32.totalorder 1, %s12
    %p183 = scmp.lt.s32.totalorder %s12, 3
    %p184 = pnand %p182, %p183
    %p185 = pneg %p184
    // Predicated region
    $region9: #{mpn_forward.9} parent=5 // pred_check
      _
    $region10: #{mpn_forward.9} parent=5 // pred_check_branch
      %187 = sbr.rel (%p184) target = $region12
    $region11: #{mpn_forward.9} parent=5 // pred_region
      %s188 = ssub.s32 %s12, 1
      // Predicated region
      $region13: #{mpn_forward.9} parent=11 // pred_check
        %p189 = pneg %p59
      $region14: #{mpn_forward.9} parent=11 // pred_check_branch
        %191 = sbr.rel (%p189) target = $region16
      $region15: #{mpn_forward.9} parent=11 // pred_region
        _
      $region16: #{mpn_forward.9} parent=11 // pred_fallthru
        _
      // Predicated region
      $region17: #{mpn_forward.9} parent=11 // pred_check
        %p192 = pneg %p80
      $region18: #{mpn_forward.9} parent=11 // pred_check_branch
        %194 = sbr.rel (%p192) target = $region20
      $region19: #{mpn_forward.9} parent=11 // pred_region
        _
      $region20: #{mpn_forward.9} parent=11 // pred_fallthru
        _
      // Predicated region
      $region21: #{mpn_forward.9} parent=11 // pred_check
        %p195 = pneg %p127
      $region22: #{mpn_forward.9} parent=11 // pred_check_branch
        %197 = sbr.rel (%p195) target = $region24
      $region23: #{mpn_forward.9} parent=11 // pred_region
        _
      $region24: #{mpn_forward.9} parent=11 // pred_fallthru
        _
      // Predicated region
      $region25: #{mpn_forward.9} parent=11 // pred_check
        %p198 = pneg %p148
      $region26: #{mpn_forward.9} parent=11 // pred_check_branch
        %200 = sbr.rel (%p198) target = $region28
      $region27: #{mpn_forward.9} parent=11 // pred_region
        _
      $region28: #{mpn_forward.9} parent=11 // pred_fallthru
        _
    $region12: #{mpn_forward.9} parent=5 // pred_fallthru
      _
    %p201 = scmp.lt.s32.totalorder %s12, 2
    // Predicated region
    $region29: #{mpn_forward.9} parent=5 // pred_check
      %p202 = pneg %p201
    $region30: #{mpn_forward.9} parent=5 // pred_check_branch
      %204 = sbr.rel (%p202) target = $region32
    $region31: #{mpn_forward.9} parent=5 // pred_region
      // Predicated region
      $region33: #{mpn_forward.9} parent=31 // pred_check
        %p205 = pneg %p32
      $region34: #{mpn_forward.9} parent=31 // pred_check_branch
        %207 = sbr.rel (%p205) target = $region36
      $region35: #{mpn_forward.9} parent=31 // pred_region
        %s208 = smul.u32 8, %s12
        %p209 = scmp.lt.s32.totalorder %s208, 15
        %s210 = scalar_select %p209, %s208, 15
        %s211 = smul.addr %s210, 4
        %s212 = scalar_lea.vmem %s0, %s211
        %s213 = smul.u32 8, %s12
      $region36: #{mpn_forward.9} parent=31 // pred_fallthru
        _
      // Predicated region
      $region37: #{mpn_forward.9} parent=31 // pred_check
        %p214 = pneg %p100
      $region38: #{mpn_forward.9} parent=31 // pred_check_branch
        %216 = sbr.rel (%p214) target = $region40
      $region39: #{mpn_forward.9} parent=31 // pred_region
        %s217 = smul.u32 8, %s12
        %p218 = scmp.lt.s32.totalorder %s217, 15
        %s219 = scalar_select %p218, %s217, 15
        %s220 = smul.addr %s219, 4
        %s221 = scalar_lea.vmem %s3, %s220
        %s222 = smul.u32 8, %s12
      $region40: #{mpn_forward.9} parent=31 // pred_fallthru
        _
    $region32: #{mpn_forward.9} parent=5 // pred_fallthru
      _
    %p223 = scmp.le.s32.totalorder 1, %s12
    %p224 = scmp.lt.s32.totalorder %s12, 3
    %p225 = pnand %p223, %p224
    %p226 = pneg %p225
    // Predicated region
    $region41: #{mpn_forward.9} parent=5 // pred_check
      _
    $region42: #{mpn_forward.9} parent=5 // pred_check_branch
      %228 = sbr.rel (%p225) target = $region44
    $region43: #{mpn_forward.9} parent=5 // pred_region
      %s229 = ssub.s32 %s12, 1
      %s230 = smul.u32 8, %s17
      %p231 = scmp.lt.s32.totalorder %s230, 15
      %s232 = scalar_select %p231, %s230, 15
      %s233 = smul.addr %s232, 4
      %s234 = scalar_lea.vmem %s0, %s233
      %p235 = pneg %p38
      %p236 = pneg %p35
      %p237 = pneg %p59
      %p238 = pneg %p56
      %p239 = pneg %p80
      %p240 = pneg %p77
      %s241 = smul.u32 8, %s17
      %p242 = scmp.lt.s32.totalorder %s241, 15
      %s243 = scalar_select %p242, %s241, 15
      %s244 = smul.addr %s243, 4
      %s245 = scalar_lea.vmem %s3, %s244
      %p246 = pneg %p106
      %p247 = pneg %p103
      %p248 = pneg %p127
      %p249 = pneg %p124
      %p250 = pneg %p148
      %p251 = pneg %p145
      %p252 = pneg %p174
      %p253 = pneg %p171
      %s254 = smul.u32 8, %s17
      %p255 = scmp.lt.s32.totalorder %s254, 15
      %s256 = scalar_select %p255, %s254, 15
      %s257 = smul.addr %s256, 4
      %s258 = scalar_lea.vmem %s6, %s257
      %s259 = smul.u32 8, %s17
      %p260 = scmp.lt.s32.totalorder %s259, 15
      %s261 = scalar_select %p260, %s259, 15
      %s262 = smul.addr %s261, 4
      %s263 = scalar_lea.vmem %s0, %s262
      %s264 = smul.u32 8, %s17
      %s265 = smul.u32 8, %s17
      %p266 = scmp.lt.s32.totalorder %s265, 15
      %s267 = scalar_select %p266, %s265, 15
      %s268 = smul.addr %s267, 4
      %s269 = scalar_lea.vmem %s3, %s268
      %s270 = smul.u32 8, %s17
      %s271 = smul.u32 8, %s17
      %p272 = scmp.lt.s32.totalorder %s271, 15
      %s273 = scalar_select %p272, %s271, 15
      %s274 = smul.addr %s273, 4
      %s275 = scalar_lea.vmem %s6, %s274
      %s276 = smul.u32 8, %s17
      %v278 = vld [vmem:[%s263] sm:$0xf]
      %v279 = vld [vmem:[%s263 + $0x4] sm:$0xf]
      %v280 = vld [vmem:[%s263 + $0x8] sm:$0xf]
      %v281 = vld [vmem:[%s263 + $0xc] sm:$0xf]
      %v282 = vld [vmem:[%s263 + $0x10] sm:$0xf]
      %v283 = vld [vmem:[%s263 + $0x14] sm:$0xf]
      %v284 = vld [vmem:[%s263 + $0x18] sm:$0xf]
      %v285 = vld [vmem:[%s263 + $0x1c] sm:$0xf]
      %v286 = vld [vmem:[%s1] sm:$0xf]
      %v287 = vld [vmem:[%s1 + $0x4] sm:$0xf]
      %v288 = vld [vmem:[%s1 + $0x8] sm:$0xf]
      %v289 = vld [vmem:[%s1 + $0xc] sm:$0xf]
      %v290 = vld [vmem:[%s1 + $0x10] sm:$0xf]
      %v291 = vld [vmem:[%s1 + $0x14] sm:$0xf]
      %v292 = vld [vmem:[%s1 + $0x18] sm:$0xf]
      %v293 = vld [vmem:[%s1 + $0x1c] sm:$0xf]
      %v294 = vld [vmem:[%s1 + $0x20] sm:$0xf]
      %v295 = vld [vmem:[%s1 + $0x24] sm:$0x3]
      %v296 = vld [vmem:[%s2] sm:$0x1]
      %v298 = vperm.slane %v296, 0
      %v308 = vunpack.c.l.b16 %v278
      %v309 = vunpack.c.l.b16 %v279
      %v310 = vunpack.c.l.b16 %v280
      %v311 = vunpack.c.l.b16 %v281
      %v312 = vunpack.c.l.b16 %v282
      %v313 = vunpack.c.l.b16 %v283
      %v314 = vunpack.c.l.b16 %v284
      %v315 = vunpack.c.l.b16 %v285
      %v316 = vpack.c.b16 %v309, %v308
      %v317 = vpack.c.b16 %v311, %v310
      %v318 = vpack.c.b16 %v313, %v312
      %v319 = vpack.c.b16 %v315, %v314
      %v330 = vunpack.c.l.b16 %v286
      %v331 = vunpack.c.l.b16 %v287
      %v332 = vunpack.c.l.b16 %v288
      %v333 = vunpack.c.l.b16 %v289
      %v334 = vunpack.c.l.b16 %v290
      %v335 = vunpack.c.l.b16 %v291
      %v336 = vunpack.c.l.b16 %v292
      %v337 = vunpack.c.l.b16 %v293
      %v338 = vunpack.c.l.b16 %v294
      %v339 = vunpack.c.l.b16 %v295
      %v340 = vpack.c.b16 %v331, %v330
      %v341 = vpack.c.b16 %v333, %v332
      %v342 = vpack.c.b16 %v335, %v334
      %v343 = vpack.c.b16 %v337, %v336
      %v344 = vpack.c.b16 %v339, %v338
      %vm349 = vcmask 613376
      %v351 = vsel %vm349, %v316, 0
      %v354 = vsel %vm349, %v317, 0
      %v357 = vsel %vm349, %v318, 0
      %v360 = vsel %vm349, %v319, 0
      %vm362 = vcmask 1044480
      %vm363 = vcmask 1045504
      %v364 = vsel %vm362, 4294967295, 65535
      %v365 = vsel %vm363, %v364, 0
      %v367 = vand.u32 %v344, %v365
      %369 = vmatpush.bf16.msra.mxu0 0
      %370 = vmatpush.bf16.msra.mxu0 0
      %371 = vmatpush.bf16.msra.mxu0 0
      %372 = vmatpush.bf16.msra.mxu0 %v367
      %373 = vmatpush.bf16.msra.mxu0 %v343
      %374 = vmatpush.bf16.msra.mxu0 %v342
      %375 = vmatpush.bf16.msra.mxu0 %v341
      %376 = vmatpush.bf16.msra.mxu0 %v340
      %377 = vmatmul.bf16.gmra.mxu0 %v351
      %v378 = vpop.f32.mrf.mxu0
      %v379 = vadd.f32 %v298, %v378
      %v380 = vpop.f32.mrf.mxu0
      %v381 = vadd.f32 %v298, %v380
      %382 = vmatmul.bf16.gmra.mxu0 %v354
      %v383 = vpop.f32.mrf.mxu0
      %v384 = vadd.f32 %v298, %v383
      %v385 = vpop.f32.mrf.mxu0
      %v386 = vadd.f32 %v298, %v385
      %387 = vmatmul.bf16.gmra.mxu0 %v357
      %v388 = vpop.f32.mrf.mxu0
      %v389 = vadd.f32 %v298, %v388
      %v390 = vpop.f32.mrf.mxu0
      %v391 = vadd.f32 %v298, %v390
      %392 = vmatmul.bf16.gmra.mxu0 %v360
      %v393 = vpop.f32.mrf.mxu0
      %v394 = vadd.f32 %v298, %v393
      %v395 = vpop.f32.mrf.mxu0
      %v396 = vadd.f32 %v298, %v395
      %397 = vdwg.mxu0
      %vm398 = vcmp.gt.f32.partialorder %v379, 0.0
      %vm399 = vcmp.gt.f32.partialorder %v381, 0.0
      %vm400 = vcmp.gt.f32.partialorder %v384, 0.0
      %vm401 = vcmp.gt.f32.partialorder %v386, 0.0
      %vm402 = vcmp.gt.f32.partialorder %v389, 0.0
      %vm403 = vcmp.gt.f32.partialorder %v391, 0.0
      %vm404 = vcmp.gt.f32.partialorder %v394, 0.0
      %vm405 = vcmp.gt.f32.partialorder %v396, 0.0
      %v406 = vmin.f32 %v379, 0.0
      %v407 = vmin.f32 %v381, 0.0
      %v408 = vmin.f32 %v384, 0.0
      %v409 = vmin.f32 %v386, 0.0
      %v410 = vmin.f32 %v389, 0.0
      %v411 = vmin.f32 %v391, 0.0
      %v412 = vmin.f32 %v394, 0.0
      %v413 = vmin.f32 %v396, 0.0
      %v414 = vmul.f32 %v406, 1.442695
      %v415 = vpow.pop %v414
      %v416 = vmul.f32 %v407, 1.442695
      %v417 = vpow.pop %v416
      %v418 = vmul.f32 %v408, 1.442695
      %v419 = vpow.pop %v418
      %v420 = vmul.f32 %v409, 1.442695
      %v421 = vpow.pop %v420
      %v422 = vmul.f32 %v410, 1.442695
      %v423 = vpow.pop %v422
      %v424 = vmul.f32 %v411, 1.442695
      %v425 = vpow.pop %v424
      %v426 = vmul.f32 %v412, 1.442695
      %v427 = vpow.pop %v426
      %v428 = vmul.f32 %v413, 1.442695
      %v429 = vpow.pop %v428
      %v430 = vsub.f32 %v415, 1.0
      %v431 = vsub.f32 %v417, 1.0
      %v432 = vsub.f32 %v419, 1.0
      %v433 = vsub.f32 %v421, 1.0
      %v434 = vsub.f32 %v423, 1.0
      %v435 = vsub.f32 %v425, 1.0
      %v436 = vsub.f32 %v427, 1.0
      %v437 = vsub.f32 %v429, 1.0
      %v438 = vsel %vm398, %v379, %v430
      %v439 = vsel %vm399, %v381, %v431
      %v440 = vsel %vm400, %v384, %v432
      %v441 = vsel %vm401, %v386, %v433
      %v442 = vsel %vm402, %v389, %v434
      %v443 = vsel %vm403, %v391, %v435
      %v444 = vsel %vm404, %v394, %v436
      %v445 = vsel %vm405, %v396, %v437
      %v446 = vld [vmem:[%s269] sm:$0xf]
      %v447 = vld [vmem:[%s269 + $0x4] sm:$0xf]
      %v448 = vld [vmem:[%s269 + $0x8] sm:$0xf]
      %v449 = vld [vmem:[%s269 + $0xc] sm:$0xf]
      %v450 = vld [vmem:[%s269 + $0x10] sm:$0xf]
      %v451 = vld [vmem:[%s269 + $0x14] sm:$0xf]
      %v452 = vld [vmem:[%s269 + $0x18] sm:$0xf]
      %v453 = vld [vmem:[%s269 + $0x1c] sm:$0xf]
      %v454 = vld [vmem:[%s4] sm:$0x3]
      %v463 = vunpack.c.l.b16 %v446
      %v464 = vunpack.c.l.b16 %v447
      %v465 = vunpack.c.l.b16 %v448
      %v466 = vunpack.c.l.b16 %v449
      %v467 = vunpack.c.l.b16 %v450
      %v468 = vunpack.c.l.b16 %v451
      %v469 = vunpack.c.l.b16 %v452
      %v470 = vunpack.c.l.b16 %v453
      %v471 = vpack.c.b16 %v464, %v463
      %v472 = vpack.c.b16 %v466, %v465
      %v473 = vpack.c.b16 %v468, %v467
      %v474 = vpack.c.b16 %v470, %v469
      %vm475 = vcmask 23552
      %v477 = vsel %vm475, %v471, 0
      %v480 = vsel %vm475, %v472, 0
      %v483 = vsel %vm475, %v473, 0
      %v486 = vsel %vm475, %v474, 0
      %vm488 = vcmask 1040384
      %vm489 = vcmask 1041408
      %v490 = vsel %vm488, 4294967295, 65535
      %v491 = vsel %vm489, %v490, 0
      %v493 = vand.u32 %v454, %v491
      %495 = vmatpush.bf16.msra.mxu0 0
      %496 = vmatpush.bf16.msra.mxu0 0
      %497 = vmatpush.bf16.msra.mxu0 0
      %498 = vmatpush.bf16.msra.mxu0 0
      %499 = vmatpush.bf16.msra.mxu0 0
      %500 = vmatpush.bf16.msra.mxu0 0
      %501 = vmatpush.bf16.msra.mxu0 0
      %502 = vmatpush.bf16.msra.mxu0 %v493
      %503 = vmatmul.bf16.gmra.mxu0 %v477
      %v504 = vpop.f32.mrf.mxu0
      %v505 = vadd.f32 0.0, %v504
      %v506 = vpop.f32.mrf.mxu0
      %v507 = vadd.f32 0.0, %v506
      %508 = vmatmul.bf16.gmra.mxu0 %v480
      %v509 = vpop.f32.mrf.mxu0
      %v510 = vadd.f32 0.0, %v509
      %v511 = vpop.f32.mrf.mxu0
      %v512 = vadd.f32 0.0, %v511
      %513 = vmatmul.bf16.gmra.mxu0 %v483
      %v514 = vpop.f32.mrf.mxu0
      %v515 = vadd.f32 0.0, %v514
      %v516 = vpop.f32.mrf.mxu0
      %v517 = vadd.f32 0.0, %v516
      %518 = vmatmul.bf16.gmra.mxu0 %v486
      %v519 = vpop.f32.mrf.mxu0
      %v520 = vadd.f32 0.0, %v519
      %v521 = vpop.f32.mrf.mxu0
      %v522 = vadd.f32 0.0, %v521
      %523 = vdwg.mxu0
      %v524 = vadd.f32 %v438, %v505
      %v525 = vadd.f32 %v439, %v507
      %v526 = vadd.f32 %v440, %v510
      %v527 = vadd.f32 %v441, %v512
      %v528 = vadd.f32 %v442, %v515
      %v529 = vadd.f32 %v443, %v517
      %v530 = vadd.f32 %v444, %v520
      %v531 = vadd.f32 %v445, %v522
      %v532 = vld [vmem:[%s5] sm:$0x1]
      %v534 = vperm.slane %v532, 0
      %v536 = vadd.f32 %v524, %v534
      %v537 = vadd.f32 %v525, %v534
      %v538 = vadd.f32 %v526, %v534
      %v539 = vadd.f32 %v527, %v534
      %v540 = vadd.f32 %v528, %v534
      %v541 = vadd.f32 %v529, %v534
      %v542 = vadd.f32 %v530, %v534
      %v543 = vadd.f32 %v531, %v534
      %v544 = vpack.c.bf16 %v536, %v536
      %v545 = vpack.c.bf16 %v537, %v537
      %v546 = vpack.c.bf16 %v538, %v538
      %v547 = vpack.c.bf16 %v539, %v539
      %v548 = vpack.c.bf16 %v540, %v540
      %v549 = vpack.c.bf16 %v541, %v541
      %v550 = vpack.c.bf16 %v542, %v542
      %v551 = vpack.c.bf16 %v543, %v543
      %vm552 = vcmask 519168
      %553 = vst.msk [vmem:[%s275] sm:$0xf] %vm552, %v544
      %554 = vst.msk [vmem:[%s275 + $0x4] sm:$0xf] %vm552, %v545
      %555 = vst.msk [vmem:[%s275 + $0x8] sm:$0xf] %vm552, %v546
      %556 = vst.msk [vmem:[%s275 + $0xc] sm:$0xf] %vm552, %v547
      %557 = vst.msk [vmem:[%s275 + $0x10] sm:$0xf] %vm552, %v548
      %558 = vst.msk [vmem:[%s275 + $0x14] sm:$0xf] %vm552, %v549
      %559 = vst.msk [vmem:[%s275 + $0x18] sm:$0xf] %vm552, %v550
      %560 = vst.msk [vmem:[%s275 + $0x1c] sm:$0xf] %vm552, %v551
      %s561 = smul.u32 8, %s17
      %p562 = scmp.lt.s32.totalorder %s561, 15
      %s563 = scalar_select %p562, %s561, 15
      %s564 = smul.addr %s563, 4
      %s565 = scalar_lea.vmem %s6, %s564
      // Predicated region
      $region45: #{mpn_forward.9} parent=43 // pred_check
        %p566 = pneg %p171
      $region46: #{mpn_forward.9} parent=43 // pred_check_branch
        %568 = sbr.rel (%p566) target = $region48
      $region47: #{mpn_forward.9} parent=43 // pred_region
        %s569 = smul.u32 8, %s17
      $region48: #{mpn_forward.9} parent=43 // pred_fallthru
        _
    $region44: #{mpn_forward.9} parent=5 // pred_fallthru
      _
    %p570 = scmp.le.s32.totalorder 2, %s12
    // Predicated region
    $region49: #{mpn_forward.9} parent=5 // pred_check
      %p571 = pneg %p570
    $region50: #{mpn_forward.9} parent=5 // pred_check_branch
      %573 = sbr.rel (%p571) target = $region52
    $region51: #{mpn_forward.9} parent=5 // pred_region
      %s574 = ssub.s32 %s12, 2
      // Predicated region
      $region53: #{mpn_forward.9} parent=51 // pred_check
        %p575 = pneg %p177
      $region54: #{mpn_forward.9} parent=51 // pred_check_branch
        %577 = sbr.rel (%p575) target = $region56
      $region55: #{mpn_forward.9} parent=51 // pred_region
        %s578 = smul.u32 8, %s18
        %p579 = scmp.lt.s32.totalorder %s578, 15
        %s580 = scalar_select %p579, %s578, 15
        %s581 = smul.addr %s580, 4
        %s582 = scalar_lea.vmem %s6, %s581
      $region56: #{mpn_forward.9} parent=51 // pred_fallthru
        _
    $region52: #{mpn_forward.9} parent=5 // pred_fallthru
      _
  $region6: #{mpn_forward.9} parent=0 // loop_footer
    %s16 = sadd.s32 1, %s12
  $region7: #{mpn_forward.9} parent=0 // loop_footer_branch
    %11 = sbr.rel target = $region3
  $region8: #{mpn_forward.9} parent=0 // loop_exit
    _

// kernel: mpn_forward.10
$region0: #{mpn_forward.10}
  #allocation0 [shape = 'u32[]', space=smem, size = 0x4, offset = 0x4, fixed_abs, tag = 'smem constant byte address 0x4 - core index']
  #allocation1 [shape = 'u32[72,128]{1,0:T(1,128)}', space=vmem, size = 0x9000, scoped, tag = 'internal scratch']
  %s0 = inlined_call_operand.vmem [shape: bf16[32,576], index: 0, kind: input, shape index: {}]
  %s1 = inlined_call_operand.vmem [shape: bf16[576,128], index: 1, kind: input, shape index: {}]
  %s2 = inlined_call_operand.vmem [shape: f32[1,128], index: 2, kind: input, shape index: {}]
  %s3 = inlined_call_operand.vmem [shape: bf16[32,64], index: 3, kind: input, shape index: {}]
  %s4 = inlined_call_operand.vmem [shape: bf16[64,128], index: 4, kind: input, shape index: {}]
  %s5 = inlined_call_operand.vmem [shape: f32[1,128], index: 5, kind: input, shape index: {}]
  %s6 = inlined_call_operand.vmem [shape: bf16[32,128], index: 6, kind: output, shape index: {}]
  %s7 = sld [smem:[#allocation0]]
  $region57: #{mpn_forward.10} parent=0
    _
  %s9 = ssub.s32 1, %s7
  %s10 = scalar_select 0, %s9, %s7
  loop: start=0, step=1, limit=4
  $region2: #{mpn_forward.10} parent=0 // loop_pre_header
    _
  $region3: #{mpn_forward.10} parent=0 // loop_header
    %s12 = sphi 0, %s16
    %p13 = scmp.ge.s32.totalorder %s12, 4
    %s22 = sphi 0, %s24
    %s25 = sphi 0, %s22
    %s26 = sphi 0, %s25
    %s42 = sphi 0, %s26
    %s46 = sphi 0, %s46
    %s48 = sphi 0, %s46
    %s49 = sphi 0, %s48
    %s63 = sphi 0, %s49
    %s67 = sphi 0, %s67
    %s69 = sphi 0, %s67
    %s70 = sphi 0, %s69
    %s84 = sphi 0, %s70
    %s90 = sphi 0, %s92
    %s93 = sphi 0, %s90
    %s94 = sphi 0, %s93
    %s110 = sphi 0, %s94
    %s114 = sphi 0, %s114
    %s116 = sphi 0, %s114
    %s117 = sphi 0, %s116
    %s131 = sphi 0, %s117
    %s135 = sphi 0, %s135
    %s137 = sphi 0, %s135
    %s138 = sphi 0, %s137
    %s152 = sphi 0, %s138
    %s158 = sphi 0, %s160
    %s161 = sphi 0, %s158
    %s162 = sphi 0, %s161
    %s178 = sphi 0, %s162
  $region4: #{mpn_forward.10} parent=0 // loop_header_branch
    %15 = sbr.rel (%p13) target = $region8
  $region5: #{mpn_forward.10} parent=0 // loop_body
    %s17 = ssub.s32 %s12, 1
    %s18 = ssub.s32 %s12, 2
    %s19 = sadd.s32 %s12, 1
    %s20 = ssub.s32 %s12, %s19
    %p21 = scmp.eq.s32.totalorder %s20, 0
    %s23 = sadd.s32 %s22, 1
    %s24 = scalar_select %p21, %s22, %s23
    %p27 = pneg %p21
    %p28 = scmp.eq.s32.totalorder %s12, 1
    %p29 = por %p27, %p28
    %p30 = scmp.ne.s32.totalorder %s22, %s25
    %p31 = scmp.eq.s32.totalorder %s12, 0
    %p32 = por %p30, %p31
    %p33 = scmp.ne.s32.totalorder %s22, %s25
    %p34 = scmp.eq.s32.totalorder %s17, 1
    %p35 = por %p33, %p34
    %p36 = scmp.ne.s32.totalorder %s25, %s26
    %p37 = scmp.eq.s32.totalorder %s17, 0
    %p38 = por %p36, %p37
    %p39 = scmp.ne.s32.totalorder %s25, %s26
    %p40 = scmp.eq.s32.totalorder %s18, 1
    %p41 = por %p39, %p40
    %p43 = scmp.ne.s32.totalorder %s26, %s42
    %p44 = scmp.eq.s32.totalorder %s18, 0
    %p45 = por %p43, %p44
    %s47 = sadd.s32 %s46, 1
    %p50 = scmp.eq.s32.totalorder %s12, 1
    %p51 = scmp.ne.s32.totalorder %s46, %s48
    %p52 = scmp.eq.s32.totalorder %s12, 0
    %p53 = por %p51, %p52
    %p54 = scmp.ne.s32.totalorder %s46, %s48
    %p55 = scmp.eq.s32.totalorder %s17, 1
    %p56 = por %p54, %p55
    %p57 = scmp.ne.s32.totalorder %s48, %s49
    %p58 = scmp.eq.s32.totalorder %s17, 0
    %p59 = por %p57, %p58
    %p60 = scmp.ne.s32.totalorder %s48, %s49
    %p61 = scmp.eq.s32.totalorder %s18, 1
    %p62 = por %p60, %p61
    %p64 = scmp.ne.s32.totalorder %s49, %s63
    %p65 = scmp.eq.s32.totalorder %s18, 0
    %p66 = por %p64, %p65
    %s68 = sadd.s32 %s67, 1
    %p71 = scmp.eq.s32.totalorder %s12, 1
    %p72 = scmp.ne.s32.totalorder %s67, %s69
    %p73 = scmp.eq.s32.totalorder %s12, 0
    %p74 = por %p72, %p73
    %p75 = scmp.ne.s32.totalorder %s67, %s69
    %p76 = scmp.eq.s32.totalorder %s17, 1
    %p77 = por %p75, %p76
    %p78 = scmp.ne.s32.totalorder %s69, %s70
    %p79 = scmp.eq.s32.totalorder %s17, 0
    %p80 = por %p78, %p79
    %p81 = scmp.ne.s32.totalorder %s69, %s70
    %p82 = scmp.eq.s32.totalorder %s18, 1
    %p83 = por %p81, %p82
    %p85 = scmp.ne.s32.totalorder %s70, %s84
    %p86 = scmp.eq.s32.totalorder %s18, 0
    %p87 = por %p85, %p86
    %s88 = ssub.s32 %s12, %s19
    %p89 = scmp.eq.s32.totalorder %s88, 0
    %s91 = sadd.s32 %s90, 1
    %s92 = scalar_select %p89, %s90, %s91
    %p95 = pneg %p89
    %p96 = scmp.eq.s32.totalorder %s12, 1
    %p97 = por %p95, %p96
    %p98 = scmp.ne.s32.totalorder %s90, %s93
    %p99 = scmp.eq.s32.totalorder %s12, 0
    %p100 = por %p98, %p99
    %p101 = scmp.ne.s32.totalorder %s90, %s93
    %p102 = scmp.eq.s32.totalorder %s17, 1
    %p103 = por %p101, %p102
    %p104 = scmp.ne.s32.totalorder %s93, %s94
    %p105 = scmp.eq.s32.totalorder %s17, 0
    %p106 = por %p104, %p105
    %p107 = scmp.ne.s32.totalorder %s93, %s94
    %p108 = scmp.eq.s32.totalorder %s18, 1
    %p109 = por %p107, %p108
    %p111 = scmp.ne.s32.totalorder %s94, %s110
    %p112 = scmp.eq.s32.totalorder %s18, 0
    %p113 = por %p111, %p112
    %s115 = sadd.s32 %s114, 1
    %p118 = scmp.eq.s32.totalorder %s12, 1
    %p119 = scmp.ne.s32.totalorder %s114, %s116
    %p120 = scmp.eq.s32.totalorder %s12, 0
    %p121 = por %p119, %p120
    %p122 = scmp.ne.s32.totalorder %s114, %s116
    %p123 = scmp.eq.s32.totalorder %s17, 1
    %p124 = por %p122, %p123
    %p125 = scmp.ne.s32.totalorder %s116, %s117
    %p126 = scmp.eq.s32.totalorder %s17, 0
    %p127 = por %p125, %p126
    %p128 = scmp.ne.s32.totalorder %s116, %s117
    %p129 = scmp.eq.s32.totalorder %s18, 1
    %p130 = por %p128, %p129
    %p132 = scmp.ne.s32.totalorder %s117, %s131
    %p133 = scmp.eq.s32.totalorder %s18, 0
    %p134 = por %p132, %p133
    %s136 = sadd.s32 %s135, 1
    %p139 = scmp.eq.s32.totalorder %s12, 1
    %p140 = scmp.ne.s32.totalorder %s135, %s137
    %p141 = scmp.eq.s32.totalorder %s12, 0
    %p142 = por %p140, %p141
    %p143 = scmp.ne.s32.totalorder %s135, %s137
    %p144 = scmp.eq.s32.totalorder %s17, 1
    %p145 = por %p143, %p144
    %p146 = scmp.ne.s32.totalorder %s137, %s138
    %p147 = scmp.eq.s32.totalorder %s17, 0
    %p148 = por %p146, %p147
    %p149 = scmp.ne.s32.totalorder %s137, %s138
    %p150 = scmp.eq.s32.totalorder %s18, 1
    %p151 = por %p149, %p150
    %p153 = scmp.ne.s32.totalorder %s138, %s152
    %p154 = scmp.eq.s32.totalorder %s18, 0
    %p155 = por %p153, %p154
    %s156 = ssub.s32 %s12, %s19
    %p157 = scmp.eq.s32.totalorder %s156, 0
    %s159 = sadd.s32 %s158, 1
    %s160 = scalar_select %p157, %s158, %s159
    %p163 = pneg %p157
    %p164 = scmp.eq.s32.totalorder %s12, 1
    %p165 = por %p163, %p164
    %p166 = scmp.ne.s32.totalorder %s158, %s161
    %p167 = scmp.eq.s32.totalorder %s12, 0
    %p168 = por %p166, %p167
    %p169 = scmp.ne.s32.totalorder %s158, %s161
    %p170 = scmp.eq.s32.totalorder %s17, 1
    %p171 = por %p169, %p170
    %p172 = scmp.ne.s32.totalorder %s161, %s162
    %p173 = scmp.eq.s32.totalorder %s17, 0
    %p174 = por %p172, %p173
    %p175 = scmp.ne.s32.totalorder %s161, %s162
    %p176 = scmp.eq.s32.totalorder %s18, 1
    %p177 = por %p175, %p176
    %p179 = scmp.ne.s32.totalorder %s162, %s178
    %p180 = scmp.eq.s32.totalorder %s18, 0
    %p181 = por %p179, %p180
    %p182 = scmp.le.s32.totalorder 1, %s12
    %p183 = scmp.lt.s32.totalorder %s12, 3
    %p184 = pnand %p182, %p183
    %p185 = pneg %p184
    // Predicated region
    $region9: #{mpn_forward.10} parent=5 // pred_check
      _
    $region10: #{mpn_forward.10} parent=5 // pred_check_branch
      %187 = sbr.rel (%p184) target = $region12
    $region11: #{mpn_forward.10} parent=5 // pred_region
      %s188 = ssub.s32 %s12, 1
      // Predicated region
      $region13: #{mpn_forward.10} parent=11 // pred_check
        %p189 = pneg %p59
      $region14: #{mpn_forward.10} parent=11 // pred_check_branch
        %191 = sbr.rel (%p189) target = $region16
      $region15: #{mpn_forward.10} parent=11 // pred_region
        _
      $region16: #{mpn_forward.10} parent=11 // pred_fallthru
        _
      // Predicated region
      $region17: #{mpn_forward.10} parent=11 // pred_check
        %p192 = pneg %p80
      $region18: #{mpn_forward.10} parent=11 // pred_check_branch
        %194 = sbr.rel (%p192) target = $region20
      $region19: #{mpn_forward.10} parent=11 // pred_region
        _
      $region20: #{mpn_forward.10} parent=11 // pred_fallthru
        _
      // Predicated region
      $region21: #{mpn_forward.10} parent=11 // pred_check
        %p195 = pneg %p127
      $region22: #{mpn_forward.10} parent=11 // pred_check_branch
        %197 = sbr.rel (%p195) target = $region24
      $region23: #{mpn_forward.10} parent=11 // pred_region
        _
      $region24: #{mpn_forward.10} parent=11 // pred_fallthru
        _
      // Predicated region
      $region25: #{mpn_forward.10} parent=11 // pred_check
        %p198 = pneg %p148
      $region26: #{mpn_forward.10} parent=11 // pred_check_branch
        %200 = sbr.rel (%p198) target = $region28
      $region27: #{mpn_forward.10} parent=11 // pred_region
        _
      $region28: #{mpn_forward.10} parent=11 // pred_fallthru
        _
    $region12: #{mpn_forward.10} parent=5 // pred_fallthru
      _
    %p201 = scmp.lt.s32.totalorder %s12, 2
    // Predicated region
    $region29: #{mpn_forward.10} parent=5 // pred_check
      %p202 = pneg %p201
    $region30: #{mpn_forward.10} parent=5 // pred_check_branch
      %204 = sbr.rel (%p202) target = $region32
    $region31: #{mpn_forward.10} parent=5 // pred_region
      // Predicated region
      $region33: #{mpn_forward.10} parent=31 // pred_check
        %p205 = pneg %p32
      $region34: #{mpn_forward.10} parent=31 // pred_check_branch
        %207 = sbr.rel (%p205) target = $region36
      $region35: #{mpn_forward.10} parent=31 // pred_region
        %s208 = smul.u32 2, %s12
        %p209 = scmp.lt.s32.totalorder %s208, 3
        %s210 = scalar_select %p209, %s208, 3
        %s211 = smul.addr %s210, 5
        %s212 = smul.addr %s211, 4
        %s213 = scalar_lea.vmem %s0, %s212
        %s214 = smul.u32 2, %s12
      $region36: #{mpn_forward.10} parent=31 // pred_fallthru
        _
      // Predicated region
      $region37: #{mpn_forward.10} parent=31 // pred_check
        %p215 = pneg %p100
      $region38: #{mpn_forward.10} parent=31 // pred_check_branch
        %217 = sbr.rel (%p215) target = $region40
      $region39: #{mpn_forward.10} parent=31 // pred_region
        %s218 = smul.u32 2, %s12
        %p219 = scmp.lt.s32.totalorder %s218, 3
        %s220 = scalar_select %p219, %s218, 3
        %s221 = smul.addr %s220, 4
        %s222 = scalar_lea.vmem %s3, %s221
        %s223 = smul.u32 2, %s12
      $region40: #{mpn_forward.10} parent=31 // pred_fallthru
        _
    $region32: #{mpn_forward.10} parent=5 // pred_fallthru
      _
    %p224 = scmp.le.s32.totalorder 1, %s12
    %p225 = scmp.lt.s32.totalorder %s12, 3
    %p226 = pnand %p224, %p225
    %p227 = pneg %p226
    // Predicated region
    $region41: #{mpn_forward.10} parent=5 // pred_check
      _
    $region42: #{mpn_forward.10} parent=5 // pred_check_branch
      %229 = sbr.rel (%p226) target = $region44
    $region43: #{mpn_forward.10} parent=5 // pred_region
      %s230 = ssub.s32 %s12, 1
      %s231 = smul.u32 2, %s17
      %p232 = scmp.lt.s32.totalorder %s231, 3
      %s233 = scalar_select %p232, %s231, 3
      %s234 = smul.addr %s233, 5
      %s235 = smul.addr %s234, 4
      %s236 = scalar_lea.vmem %s0, %s235
      %p237 = pneg %p38
      %p238 = pneg %p35
      %p239 = pneg %p59
      %p240 = pneg %p56
      %p241 = pneg %p80
      %p242 = pneg %p77
      %s243 = smul.u32 2, %s17
      %p244 = scmp.lt.s32.totalorder %s243, 3
      %s245 = scalar_select %p244, %s243, 3
      %s246 = smul.addr %s245, 4
      %s247 = scalar_lea.vmem %s3, %s246
      %p248 = pneg %p106
      %p249 = pneg %p103
      %p250 = pneg %p127
      %p251 = pneg %p124
      %p252 = pneg %p148
      %p253 = pneg %p145
      %p254 = pneg %p174
      %p255 = pneg %p171
      %s256 = smul.u32 2, %s17
      %p257 = scmp.lt.s32.totalorder %s256, 3
      %s258 = scalar_select %p257, %s256, 3
      %s259 = smul.addr %s258, 4
      %s260 = scalar_lea.vmem %s6, %s259
      %s261 = smul.u32 2, %s17
      %p262 = scmp.lt.s32.totalorder %s261, 3
      %s263 = scalar_select %p262, %s261, 3
      %s264 = smul.addr %s263, 5
      %s265 = smul.addr %s264, 4
      %s266 = scalar_lea.vmem %s0, %s265
      %s267 = smul.u32 2, %s17
      %s268 = smul.u32 2, %s17
      %p269 = scmp.lt.s32.totalorder %s268, 3
      %s270 = scalar_select %p269, %s268, 3
      %s271 = smul.addr %s270, 4
      %s272 = scalar_lea.vmem %s3, %s271
      %s273 = smul.u32 2, %s17
      %s274 = smul.u32 2, %s17
      %p275 = scmp.lt.s32.totalorder %s274, 3
      %s276 = scalar_select %p275, %s274, 3
      %s277 = smul.addr %s276, 4
      %s278 = scalar_lea.vmem %s6, %s277
      %s279 = smul.u32 2, %s17
      %v281 = vld [vmem:[%s266] sm:$0xff]
      %v282 = vld [vmem:[%s266 + $0x8] sm:$0xff]
      %v283 = vld [vmem:[%s266 + $0x10] sm:$0xf]
      %v284 = vld [vmem:[%s266 + $0x14] sm:$0xff]
      %v285 = vld [vmem:[%s266 + $0x1c] sm:$0xff]
      %v286 = vld [vmem:[%s266 + $0x24] sm:$0xf]
      %v287 = vld [vmem:[%s1] sm:$0xf]
      %v288 = vld [vmem:[%s1 + $0x4] sm:$0xf]
      %v289 = vld [vmem:[%s1 + $0x8] sm:$0xf]
      %v290 = vld [vmem:[%s1 + $0xc] sm:$0xf]
      %v291 = vld [vmem:[%s1 + $0x10] sm:$0xf]
      %v292 = vld [vmem:[%s1 + $0x14] sm:$0xf]
      %v293 = vld [vmem:[%s1 + $0x18] sm:$0xf]
      %v294 = vld [vmem:[%s1 + $0x1c] sm:$0xf]
      %v295 = vld [vmem:[%s1 + $0x20] sm:$0xf]
      %v296 = vld [vmem:[%s1 + $0x24] sm:$0xf]
      %v297 = vld [vmem:[%s1 + $0x28] sm:$0xf]
      %v298 = vld [vmem:[%s1 + $0x2c] sm:$0xf]
      %v299 = vld [vmem:[%s1 + $0x30] sm:$0xf]
      %v300 = vld [vmem:[%s1 + $0x34] sm:$0xf]
      %v301 = vld [vmem:[%s1 + $0x38] sm:$0xf]
      %v302 = vld [vmem:[%s1 + $0x3c] sm:$0xf]
      %v303 = vld [vmem:[%s1 + $0x40] sm:$0xf]
      %v304 = vld [vmem:[%s1 + $0x44] sm:$0xf]
      %v305 = vld [vmem:[%s1 + $0x48] sm:$0xf]
      %v306 = vld [vmem:[%s1 + $0x4c] sm:$0xf]
      %v307 = vld [vmem:[%s1 + $0x50] sm:$0xf]
      %v308 = vld [vmem:[%s1 + $0x54] sm:$0xf]
      %v309 = vld [vmem:[%s1 + $0x58] sm:$0xf]
      %v310 = vld [vmem:[%s1 + $0x5c] sm:$0xf]
      %v311 = vld [vmem:[%s1 + $0x60] sm:$0xf]
      %v312 = vld [vmem:[%s1 + $0x64] sm:$0xf]
      %v313 = vld [vmem:[%s1 + $0x68] sm:$0xf]
      %v314 = vld [vmem:[%s1 + $0x6c] sm:$0xf]
      %v315 = vld [vmem:[%s1 + $0x70] sm:$0xf]
      %v316 = vld [vmem:[%s1 + $0x74] sm:$0xf]
      %v317 = vld [vmem:[%s1 + $0x78] sm:$0xf]
      %v318 = vld [vmem:[%s1 + $0x7c] sm:$0xf]
      %v319 = vld [vmem:[%s1 + $0x80] sm:$0xf]
      %v320 = vld [vmem:[%s1 + $0x84] sm:$0xf]
      %v321 = vld [vmem:[%s1 + $0x88] sm:$0xf]
      %v322 = vld [vmem:[%s1 + $0x8c] sm:$0xf]
      %v323 = vld [vmem:[%s1 + $0x90] sm:$0xf]
      %v324 = vld [vmem:[%s1 + $0x94] sm:$0xf]
      %v325 = vld [vmem:[%s1 + $0x98] sm:$0xf]
      %v326 = vld [vmem:[%s1 + $0x9c] sm:$0xf]
      %v327 = vld [vmem:[%s1 + $0xa0] sm:$0xf]
      %v328 = vld [vmem:[%s1 + $0xa4] sm:$0xf]
      %v329 = vld [vmem:[%s1 + $0xa8] sm:$0xf]
      %v330 = vld [vmem:[%s1 + $0xac] sm:$0xf]
      %v331 = vld [vmem:[%s1 + $0xb0] sm:$0xf]
      %v332 = vld [vmem:[%s1 + $0xb4] sm:$0xf]
      %v333 = vld [vmem:[%s1 + $0xb8] sm:$0xf]
      %v334 = vld [vmem:[%s1 + $0xbc] sm:$0xf]
      %v335 = vld [vmem:[%s1 + $0xc0] sm:$0xf]
      %v336 = vld [vmem:[%s1 + $0xc4] sm:$0xf]
      %v337 = vld [vmem:[%s1 + $0xc8] sm:$0xf]
      %v338 = vld [vmem:[%s1 + $0xcc] sm:$0xf]
      %v339 = vld [vmem:[%s1 + $0xd0] sm:$0xf]
      %v340 = vld [vmem:[%s1 + $0xd4] sm:$0xf]
      %v341 = vld [vmem:[%s1 + $0xd8] sm:$0xf]
      %v342 = vld [vmem:[%s1 + $0xdc] sm:$0xf]
      %v343 = vld [vmem:[%s1 + $0xe0] sm:$0xf]
      %v344 = vld [vmem:[%s1 + $0xe4] sm:$0xf]
      %v345 = vld [vmem:[%s1 + $0xe8] sm:$0xf]
      %v346 = vld [vmem:[%s1 + $0xec] sm:$0xf]
      %v347 = vld [vmem:[%s1 + $0xf0] sm:$0xf]
      %v348 = vld [vmem:[%s1 + $0xf4] sm:$0xf]
      %v349 = vld [vmem:[%s1 + $0xf8] sm:$0xf]
      %v350 = vld [vmem:[%s1 + $0xfc] sm:$0xf]
      %v351 = vld [vmem:[%s1 + $0x100] sm:$0xf]
      %v352 = vld [vmem:[%s1 + $0x104] sm:$0xf]
      %v353 = vld [vmem:[%s1 + $0x108] sm:$0xf]
      %v354 = vld [vmem:[%s1 + $0x10c] sm:$0xf]
      %v355 = vld [vmem:[%s1 + $0x110] sm:$0xf]
      %v356 = vld [vmem:[%s1 + $0x114] sm:$0xf]
      %v357 = vld [vmem:[%s1 + $0x118] sm:$0xf]
      %v358 = vld [vmem:[%s1 + $0x11c] sm:$0xf]
      %v359 = vld [vmem:[%s2] sm:$0x1]
      %v361 = vperm.slane %v359, 0
      %v369 = vunpack.c.l.b16 %v281
      %v370 = vunpack.c.h.b16 %v281
      %v371 = vunpack.c.l.b16 %v282
      %v372 = vunpack.c.h.b16 %v282
      %v373 = vunpack.c.l.b16 %v283
      %v374 = vunpack.c.l.b16 %v284
      %v375 = vunpack.c.h.b16 %v284
      %v376 = vunpack.c.l.b16 %v285
      %v377 = vunpack.c.h.b16 %v285
      %v378 = vunpack.c.l.b16 %v286
      %v379 = vpack.c.b16 %v374, %v369
      %v380 = vpack.c.b16 %v375, %v370
      %v381 = vpack.c.b16 %v376, %v371
      %v382 = vpack.c.b16 %v377, %v372
      %v383 = vpack.c.b16 %v378, %v373
      %v460 = vunpack.c.l.b16 %v287
      %v461 = vunpack.c.l.b16 %v288
      %v462 = vunpack.c.l.b16 %v289
      %v463 = vunpack.c.l.b16 %v290
      %v464 = vunpack.c.l.b16 %v291
      %v465 = vunpack.c.l.b16 %v292
      %v466 = vunpack.c.l.b16 %v293
      %v467 = vunpack.c.l.b16 %v294
      %v468 = vunpack.c.l.b16 %v295
      %v469 = vunpack.c.l.b16 %v296
      %v470 = vunpack.c.l.b16 %v297
      %v471 = vunpack.c.l.b16 %v298
      %v472 = vunpack.c.l.b16 %v299
      %v473 = vunpack.c.l.b16 %v300
      %v474 = vunpack.c.l.b16 %v301
      %v475 = vunpack.c.l.b16 %v302
      %v476 = vunpack.c.l.b16 %v303
      %v477 = vunpack.c.l.b16 %v304
      %v478 = vunpack.c.l.b16 %v305
      %v479 = vunpack.c.l.b16 %v306
      %v480 = vunpack.c.l.b16 %v307
      %v481 = vunpack.c.l.b16 %v308
      %v482 = vunpack.c.l.b16 %v309
      %v483 = vunpack.c.l.b16 %v310
      %v484 = vunpack.c.l.b16 %v311
      %v485 = vunpack.c.l.b16 %v312
      %v486 = vunpack.c.l.b16 %v313
      %v487 = vunpack.c.l.b16 %v314
      %v488 = vunpack.c.l.b16 %v315
      %v489 = vunpack.c.l.b16 %v316
      %v490 = vunpack.c.l.b16 %v317
      %v491 = vunpack.c.l.b16 %v318
      %v492 = vunpack.c.l.b16 %v319
      %v493 = vunpack.c.l.b16 %v320
      %v494 = vunpack.c.l.b16 %v321
      %v495 = vunpack.c.l.b16 %v322
      %v496 = vunpack.c.l.b16 %v323
      %v497 = vunpack.c.l.b16 %v324
      %v498 = vunpack.c.l.b16 %v325
      %v499 = vunpack.c.l.b16 %v326
      %v500 = vunpack.c.l.b16 %v327
      %v501 = vunpack.c.l.b16 %v328
      %v502 = vunpack.c.l.b16 %v329
      %v503 = vunpack.c.l.b16 %v330
      %v504 = vunpack.c.l.b16 %v331
      %v505 = vunpack.c.l.b16 %v332
      %v506 = vunpack.c.l.b16 %v333
      %v507 = vunpack.c.l.b16 %v334
      %v508 = vunpack.c.l.b16 %v335
      %v509 = vunpack.c.l.b16 %v336
      %v510 = vunpack.c.l.b16 %v337
      %v511 = vunpack.c.l.b16 %v338
      %v512 = vunpack.c.l.b16 %v339
      %v513 = vunpack.c.l.b16 %v340
      %v514 = vunpack.c.l.b16 %v341
      %v515 = vunpack.c.l.b16 %v342
      %v516 = vunpack.c.l.b16 %v343
      %v517 = vunpack.c.l.b16 %v344
      %v518 = vunpack.c.l.b16 %v345
      %v519 = vunpack.c.l.b16 %v346
      %v520 = vunpack.c.l.b16 %v347
      %v521 = vunpack.c.l.b16 %v348
      %v522 = vunpack.c.l.b16 %v349
      %v523 = vunpack.c.l.b16 %v350
      %v524 = vunpack.c.l.b16 %v351
      %v525 = vunpack.c.l.b16 %v352
      %v526 = vunpack.c.l.b16 %v353
      %v527 = vunpack.c.l.b16 %v354
      %v528 = vunpack.c.l.b16 %v355
      %v529 = vunpack.c.l.b16 %v356
      %v530 = vunpack.c.l.b16 %v357
      %v531 = vunpack.c.l.b16 %v358
      %v532 = vpack.c.b16 %v461, %v460
      %v533 = vpack.c.b16 %v463, %v462
      %v534 = vpack.c.b16 %v465, %v464
      %v535 = vpack.c.b16 %v467, %v466
      %v536 = vpack.c.b16 %v469, %v468
      %v537 = vpack.c.b16 %v471, %v470
      %v538 = vpack.c.b16 %v473, %v472
      %v539 = vpack.c.b16 %v475, %v474
      %v540 = vpack.c.b16 %v477, %v476
      %v541 = vpack.c.b16 %v479, %v478
      %v542 = vpack.c.b16 %v481, %v480
      %v543 = vpack.c.b16 %v483, %v482
      %v544 = vpack.c.b16 %v485, %v484
      %v545 = vpack.c.b16 %v487, %v486
      %v546 = vpack.c.b16 %v489, %v488
      %v547 = vpack.c.b16 %v491, %v490
      %v548 = vpack.c.b16 %v493, %v492
      %v549 = vpack.c.b16 %v495, %v494
      %v550 = vpack.c.b16 %v497, %v496
      %v551 = vpack.c.b16 %v499, %v498
      %v552 = vpack.c.b16 %v501, %v500
      %v553 = vpack.c.b16 %v503, %v502
      %v554 = vpack.c.b16 %v505, %v504
      %v555 = vpack.c.b16 %v507, %v506
      %v556 = vpack.c.b16 %v509, %v508
      %v557 = vpack.c.b16 %v511, %v510
      %v558 = vpack.c.b16 %v513, %v512
      %v559 = vpack.c.b16 %v515, %v514
      %v560 = vpack.c.b16 %v517, %v516
      %v561 = vpack.c.b16 %v519, %v518
      %v562 = vpack.c.b16 %v521, %v520
      %v563 = vpack.c.b16 %v523, %v522
      %v564 = vpack.c.b16 %v525, %v524
      %v565 = vpack.c.b16 %v527, %v526
      %v566 = vpack.c.b16 %v529, %v528
      %v567 = vpack.c.b16 %v531, %v530
      %vm604 = vcmask 523264
      %v606 = vsel %vm604, %v383, 0
      %608 = vmatpush.bf16.msra.mxu0 %v539
      %609 = vmatpush.bf16.msra.mxu0 %v538
      %610 = vmatpush.bf16.msra.mxu0 %v537
      %611 = vmatpush.bf16.msra.mxu0 %v536
      %612 = vmatpush.bf16.msra.mxu0 %v535
      %613 = vmatpush.bf16.msra.mxu0 %v534
      %614 = vmatpush.bf16.msra.mxu0 %v533
      %615 = vmatpush.bf16.msra.mxu0 %v532
      %616 = vmatmul.bf16.gmra.mxu0 %v379
      %v617 = vpop.f32.mrf.mxu0
      %v618 = vadd.f32 %v361, %v617
      %v619 = vpop.f32.mrf.mxu0
      %v620 = vadd.f32 %v361, %v619
      %621 = vdwg.mxu0
      %622 = vmatpush.bf16.msra.mxu0 %v547
      %623 = vmatpush.bf16.msra.mxu0 %v546
      %624 = vmatpush.bf16.msra.mxu0 %v545
      %625 = vmatpush.bf16.msra.mxu0 %v544
      %626 = vmatpush.bf16.msra.mxu0 %v543
      %627 = vmatpush.bf16.msra.mxu0 %v542
      %628 = vmatpush.bf16.msra.mxu0 %v541
      %629 = vmatpush.bf16.msra.mxu0 %v540
      %630 = vmatmul.bf16.gmra.mxu0 %v380
      %v631 = vpop.f32.mrf.mxu0
      %v632 = vadd.f32 %v618, %v631
      %v633 = vpop.f32.mrf.mxu0
      %v634 = vadd.f32 %v620, %v633
      %635 = vdwg.mxu0
      %636 = vmatpush.bf16.msra.mxu0 %v555
      %637 = vmatpush.bf16.msra.mxu0 %v554
      %638 = vmatpush.bf16.msra.mxu0 %v553
      %639 = vmatpush.bf16.msra.mxu0 %v552
      %640 = vmatpush.bf16.msra.mxu0 %v551
      %641 = vmatpush.bf16.msra.mxu0 %v550
      %642 = vmatpush.bf16.msra.mxu0 %v549
      %643 = vmatpush.bf16.msra.mxu0 %v548
      %644 = vmatmul.bf16.gmra.mxu0 %v381
      %v645 = vpop.f32.mrf.mxu0
      %v646 = vadd.f32 %v632, %v645
      %v647 = vpop.f32.mrf.mxu0
      %v648 = vadd.f32 %v634, %v647
      %649 = vdwg.mxu0
      %650 = vmatpush.bf16.msra.mxu0 %v563
      %651 = vmatpush.bf16.msra.mxu0 %v562
      %652 = vmatpush.bf16.msra.mxu0 %v561
      %653 = vmatpush.bf16.msra.mxu0 %v560
      %654 = vmatpush.bf16.msra.mxu0 %v559
      %655 = vmatpush.bf16.msra.mxu0 %v558
      %656 = vmatpush.bf16.msra.mxu0 %v557
      %657 = vmatpush.bf16.msra.mxu0 %v556
      %658 = vmatmul.bf16.gmra.mxu0 %v382
      %v659 = vpop.f32.mrf.mxu0
      %v660 = vadd.f32 %v646, %v659
      %v661 = vpop.f32.mrf.mxu0
      %v662 = vadd.f32 %v648, %v661
      %663 = vdwg.mxu0
      %664 = vmatpush.bf16.msra.mxu0 0
      %665 = vmatpush.bf16.msra.mxu0 0
      %666 = vmatpush.bf16.msra.mxu0 0
      %667 = vmatpush.bf16.msra.mxu0 0
      %668 = vmatpush.bf16.msra.mxu0 %v567
      %669 = vmatpush.bf16.msra.mxu0 %v566
      %670 = vmatpush.bf16.msra.mxu0 %v565
      %671 = vmatpush.bf16.msra.mxu0 %v564
      %672 = vmatmul.bf16.gmra.mxu0 %v606
      %v673 = vpop.f32.mrf.mxu0
      %v674 = vadd.f32 %v660, %v673
      %v675 = vpop.f32.mrf.mxu0
      %v676 = vadd.f32 %v662, %v675
      %677 = vdwg.mxu0
      %vm678 = vcmp.gt.f32.partialorder %v674, 0.0
      %vm679 = vcmp.gt.f32.partialorder %v676, 0.0
      %v680 = vmin.f32 %v674, 0.0
      %v681 = vmin.f32 %v676, 0.0
      %v682 = vmul.f32 %v680, 1.442695
      %v683 = vpow.pop %v682
      %v684 = vmul.f32 %v681, 1.442695
      %v685 = vpow.pop %v684
      %v686 = vsub.f32 %v683, 1.0
      %v687 = vsub.f32 %v685, 1.0
      %v688 = vsel %vm678, %v674, %v686
      %v689 = vsel %vm679, %v676, %v687
      %v690 = vld [vmem:[%s272] sm:$0xf]
      %v691 = vld [vmem:[%s272 + $0x4] sm:$0xf]
      %v692 = vld [vmem:[%s4] sm:$0xf]
      %v693 = vld [vmem:[%s4 + $0x4] sm:$0xf]
      %v694 = vld [vmem:[%s4 + $0x8] sm:$0xf]
      %v695 = vld [vmem:[%s4 + $0xc] sm:$0xf]
      %v696 = vld [vmem:[%s4 + $0x10] sm:$0xf]
      %v697 = vld [vmem:[%s4 + $0x14] sm:$0xf]
      %v698 = vld [vmem:[%s4 + $0x18] sm:$0xf]
      %v699 = vld [vmem:[%s4 + $0x1c] sm:$0xf]
      %v702 = vunpack.c.l.b16 %v690
      %v703 = vunpack.c.l.b16 %v691
      %v704 = vpack.c.b16 %v703, %v702
      %v713 = vunpack.c.l.b16 %v692
      %v714 = vunpack.c.l.b16 %v693
      %v715 = vunpack.c.l.b16 %v694
      %v716 = vunpack.c.l.b16 %v695
      %v717 = vunpack.c.l.b16 %v696
      %v718 = vunpack.c.l.b16 %v697
      %v719 = vunpack.c.l.b16 %v698
      %v720 = vunpack.c.l.b16 %v699
      %v721 = vpack.c.b16 %v714, %v713
      %v722 = vpack.c.b16 %v716, %v715
      %v723 = vpack.c.b16 %v718, %v717
      %v724 = vpack.c.b16 %v720, %v719
      %v730 = vsel %vm604, %v704, 0
      %732 = vmatpush.bf16.msra.mxu0 0
      %733 = vmatpush.bf16.msra.mxu0 0
      %734 = vmatpush.bf16.msra.mxu0 0
      %735 = vmatpush.bf16.msra.mxu0 0
      %736 = vmatpush.bf16.msra.mxu0 %v724
      %737 = vmatpush.bf16.msra.mxu0 %v723
      %738 = vmatpush.bf16.msra.mxu0 %v722
      %739 = vmatpush.bf16.msra.mxu0 %v721
      %740 = vmatmul.bf16.gmra.mxu0 %v730
      %v741 = vpop.f32.mrf.mxu0
      %v742 = vadd.f32 0.0, %v741
      %v743 = vpop.f32.mrf.mxu0
      %v744 = vadd.f32 0.0, %v743
      %745 = vdwg.mxu0
      %v746 = vadd.f32 %v688, %v742
      %v747 = vadd.f32 %v689, %v744
      %v748 = vld [vmem:[%s5] sm:$0x1]
      %v750 = vperm.slane %v748, 0
      %v752 = vadd.f32 %v746, %v750
      %v753 = vadd.f32 %v747, %v750
      %v754 = vpack.c.bf16 %v752, %v752
      %v755 = vpack.c.bf16 %v753, %v753
      %756 = vst [vmem:[%s278] sm:$0xf] %v754
      %757 = vst [vmem:[%s278 + $0x4] sm:$0xf] %v755
      %s758 = smul.u32 2, %s17
      %p759 = scmp.lt.s32.totalorder %s758, 3
      %s760 = scalar_select %p759, %s758, 3
      %s761 = smul.addr %s760, 4
      %s762 = scalar_lea.vmem %s6, %s761
      // Predicated region
      $region45: #{mpn_forward.10} parent=43 // pred_check
        %p763 = pneg %p171
      $region46: #{mpn_forward.10} parent=43 // pred_check_branch
        %765 = sbr.rel (%p763) target = $region48
      $region47: #{mpn_forward.10} parent=43 // pred_region
        %s766 = smul.u32 2, %s17
      $region48: #{mpn_forward.10} parent=43 // pred_fallthru
        _
    $region44: #{mpn_forward.10} parent=5 // pred_fallthru
      _
    %p767 = scmp.le.s32.totalorder 2, %s12
    // Predicated region
    $region49: #{mpn_forward.10} parent=5 // pred_check
      %p768 = pneg %p767
    $region50: #{mpn_forward.10} parent=5 // pred_check_branch
      %770 = sbr.rel (%p768) target = $region52
    $region51: #{mpn_forward.10} parent=5 // pred_region
      %s771 = ssub.s32 %s12, 2
      // Predicated region
      $region53: #{mpn_forward.10} parent=51 // pred_check
        %p772 = pneg %p177
      $region54: #{mpn_forward.10} parent=51 // pred_check_branch
        %774 = sbr.rel (%p772) target = $region56
      $region55: #{mpn_forward.10} parent=51 // pred_region
        %s775 = smul.u32 2, %s18
        %p776 = scmp.lt.s32.totalorder %s775, 3
        %s777 = scalar_select %p776, %s775, 3
        %s778 = smul.addr %s777, 4
        %s779 = scalar_lea.vmem %s6, %s778
      $region56: #{mpn_forward.10} parent=51 // pred_fallthru
        _
    $region52: #{mpn_forward.10} parent=5 // pred_fallthru
      _
  $region6: #{mpn_forward.10} parent=0 // loop_footer
    %s16 = sadd.s32 1, %s12
  $region7: #{mpn_forward.10} parent=0 // loop_footer_branch
    %11 = sbr.rel target = $region3
  $region8: #{mpn_forward.10} parent=0 // loop_exit
    _

// kernel: mpn_forward.11
$region0: #{mpn_forward.11}
  #allocation0 [shape = 'u32[]', space=smem, size = 0x4, offset = 0x4, fixed_abs, tag = 'smem constant byte address 0x4 - core index']
  #allocation1 [shape = 'u32[72,128]{1,0:T(1,128)}', space=vmem, size = 0x9000, scoped, tag = 'internal scratch']
  %s0 = inlined_call_operand.vmem [shape: bf16[2,8,8,128], index: 0, kind: input, shape index: {}, may-alias: {0,1,2}]
  %s1 = inlined_call_operand.vmem [shape: bf16[2,8,8,128], index: 1, kind: input, shape index: {}, may-alias: {0,1,2}]
  %s2 = inlined_call_operand.vmem [shape: bf16[2,8,8,128], index: 2, kind: input, shape index: {}, may-alias: {0,1,2}]
  %s3 = inlined_call_operand.vmem [shape: bf16[3,3,128,128], index: 3, kind: input, shape index: {}]
  %s4 = inlined_call_operand.vmem [shape: f32[1,128], index: 4, kind: input, shape index: {}]
  %s5 = inlined_call_operand.vmem [shape: bf16[128,128], index: 5, kind: input, shape index: {}]
  %s6 = inlined_call_operand.vmem [shape: f32[1,128], index: 6, kind: input, shape index: {}]
  %s7 = inlined_call_operand.vmem [shape: bf16[2,4,4,128], index: 7, kind: output, shape index: {}]
  %s8 = sld [smem:[#allocation0]]
  $region61: #{mpn_forward.11} parent=0
    _
  %s10 = ssub.s32 1, %s8
  %s11 = scalar_select 0, %s10, %s8
  loop: start=0, step=1, limit=10
  $region2: #{mpn_forward.11} parent=0 // loop_pre_header
    _
  $region3: #{mpn_forward.11} parent=0 // loop_header
    %s13 = sphi 0, %s17
    %p14 = scmp.ge.s32.totalorder %s13, 10
    %s20 = sphi 0, %s32
    %s21 = sphi 0, %s28
    %s22 = sphi 0, %s20
    %s23 = sphi 0, %s21
    %s24 = sphi 0, %s22
    %s25 = sphi 0, %s23
    %s37 = sphi 0, %s39
    %s40 = sphi 0, %s37
    %s41 = sphi 0, %s40
    %s57 = sphi 0, %s41
    %s67 = sphi 0, %s69
    %s70 = sphi 0, %s67
    %s71 = sphi 0, %s70
    %s87 = sphi 0, %s71
    %s97 = sphi 0, %s99
    %s100 = sphi 0, %s97
    %s101 = sphi 0, %s100
    %s117 = sphi 0, %s101
    %s121 = sphi 0, %s121
    %s123 = sphi 0, %s121
    %s124 = sphi 0, %s123
    %s138 = sphi 0, %s124
    %s142 = sphi 0, %s142
    %s144 = sphi 0, %s142
    %s145 = sphi 0, %s144
    %s159 = sphi 0, %s145
    %s163 = sphi 0, %s163
    %s165 = sphi 0, %s163
    %s166 = sphi 0, %s165
    %s180 = sphi 0, %s166
    %s184 = sphi 0, %s184
    %s186 = sphi 0, %s184
    %s187 = sphi 0, %s186
    %s201 = sphi 0, %s187
    %s209 = sphi 0, %s211
    %s212 = sphi 0, %s209
    %s213 = sphi 0, %s212
    %s229 = sphi 0, %s213
  $region4: #{mpn_forward.11} parent=0 // loop_header_branch
    %16 = sbr.rel (%p14) target = $region8
  $region5: #{mpn_forward.11} parent=0 // loop_body
    %s18 = ssub.s32 %s13, 1
    %s19 = ssub.s32 %s13, 2
    %s26 = sadd.s32 1, %s21
    %p27 = scmp.ge.s32.totalorder %s26, 4
    %s28 = scalar_select %p27, 0, %s26
    %s29 = sadd.s32 1, %s20
    %s30 = scalar_select %p27, %s29, %s20
    %p31 = scmp.ge.s32.totalorder %s30, 2
    %s32 = scalar_select %p31, 0, %s30
    %s33 = ssub.s32 %s20, %s32
    %s34 = ssub.s32 %s21, %s28
    %s35 = sor.u32 %s33, %s34
    %p36 = scmp.eq.s32.totalorder %s35, 0
    %s38 = sadd.s32 %s37, 1
    %s39 = scalar_select %p36, %s37, %s38
    %p42 = pneg %p36
    %p43 = scmp.eq.s32.totalorder %s13, 7
    %p44 = por %p42, %p43
    %p45 = scmp.ne.s32.totalorder %s37, %s40
    %p46 = scmp.eq.s32.totalorder %s13, 0
    %p47 = por %p45, %p46
    %p48 = scmp.ne.s32.totalorder %s37, %s40
    %p49 = scmp.eq.s32.totalorder %s18, 7
    %p50 = por %p48, %p49
    %p51 = scmp.ne.s32.totalorder %s40, %s41
    %p52 = scmp.eq.s32.totalorder %s18, 0
    %p53 = por %p51, %p52
    %p54 = scmp.ne.s32.totalorder %s40, %s41
    %p55 = scmp.eq.s32.totalorder %s19, 7
    %p56 = por %p54, %p55
    %p58 = scmp.ne.s32.totalorder %s41, %s57
    %p59 = scmp.eq.s32.totalorder %s19, 0
    %p60 = por %p58, %p59
    %s61 = sadd.s32 %s21, 2
    %s62 = sadd.s32 %s28, 2
    %s63 = ssub.s32 %s20, %s32
    %s64 = ssub.s32 %s61, %s62
    %s65 = sor.u32 %s63, %s64
    %p66 = scmp.eq.s32.totalorder %s65, 0
    %s68 = sadd.s32 %s67, 1
    %s69 = scalar_select %p66, %s67, %s68
    %p72 = pneg %p66
    %p73 = scmp.eq.s32.totalorder %s13, 7
    %p74 = por %p72, %p73
    %p75 = scmp.ne.s32.totalorder %s67, %s70
    %p76 = scmp.eq.s32.totalorder %s13, 0
    %p77 = por %p75, %p76
    %p78 = scmp.ne.s32.totalorder %s67, %s70
    %p79 = scmp.eq.s32.totalorder %s18, 7
    %p80 = por %p78, %p79
    %p81 = scmp.ne.s32.totalorder %s70, %s71
    %p82 = scmp.eq.s32.totalorder %s18, 0
    %p83 = por %p81, %p82
    %p84 = scmp.ne.s32.totalorder %s70, %s71
    %p85 = scmp.eq.s32.totalorder %s19, 7
    %p86 = por %p84, %p85
    %p88 = scmp.ne.s32.totalorder %s71, %s87
    %p89 = scmp.eq.s32.totalorder %s19, 0
    %p90 = por %p88, %p89
    %s91 = sadd.s32 %s21, 4
    %s92 = sadd.s32 %s28, 4
    %s93 = ssub.s32 %s20, %s32
    %s94 = ssub.s32 %s91, %s92
    %s95 = sor.u32 %s93, %s94
    %p96 = scmp.eq.s32.totalorder %s95, 0
    %s98 = sadd.s32 %s97, 1
    %s99 = scalar_select %p96, %s97, %s98
    %p102 = pneg %p96
    %p103 = scmp.eq.s32.totalorder %s13, 7
    %p104 = por %p102, %p103
    %p105 = scmp.ne.s32.totalorder %s97, %s100
    %p106 = scmp.eq.s32.totalorder %s13, 0
    %p107 = por %p105, %p106
    %p108 = scmp.ne.s32.totalorder %s97, %s100
    %p109 = scmp.eq.s32.totalorder %s18, 7
    %p110 = por %p108, %p109
    %p111 = scmp.ne.s32.totalorder %s100, %s101
    %p112 = scmp.eq.s32.totalorder %s18, 0
    %p113 = por %p111, %p112
    %p114 = scmp.ne.s32.totalorder %s100, %s101
    %p115 = scmp.eq.s32.totalorder %s19, 7
    %p116 = por %p114, %p115
    %p118 = scmp.ne.s32.totalorder %s101, %s117
    %p119 = scmp.eq.s32.totalorder %s19, 0
    %p120 = por %p118, %p119
    %s122 = sadd.s32 %s121, 1
    %p125 = scmp.eq.s32.totalorder %s13, 7
    %p126 = scmp.ne.s32.totalorder %s121, %s123
    %p127 = scmp.eq.s32.totalorder %s13, 0
    %p128 = por %p126, %p127
    %p129 = scmp.ne.s32.totalorder %s121, %s123
    %p130 = scmp.eq.s32.totalorder %s18, 7
    %p131 = por %p129, %p130
    %p132 = scmp.ne.s32.totalorder %s123, %s124
    %p133 = scmp.eq.s32.totalorder %s18, 0
    %p134 = por %p132, %p133
    %p135 = scmp.ne.s32.totalorder %s123, %s124
    %p136 = scmp.eq.s32.totalorder %s19, 7
    %p137 = por %p135, %p136
    %p139 = scmp.ne.s32.totalorder %s124, %s138
    %p140 = scmp.eq.s32.totalorder %s19, 0
    %p141 = por %p139, %p140
    %s143 = sadd.s32 %s142, 1
    %p146 = scmp.eq.s32.totalorder %s13, 7
    %p147 = scmp.ne.s32.totalorder %s142, %s144
    %p148 = scmp.eq.s32.totalorder %s13, 0
    %p149 = por %p147, %p148
    %p150 = scmp.ne.s32.totalorder %s142, %s144
    %p151 = scmp.eq.s32.totalorder %s18, 7
    %p152 = por %p150, %p151
    %p153 = scmp.ne.s32.totalorder %s144, %s145
    %p154 = scmp.eq.s32.totalorder %s18, 0
    %p155 = por %p153, %p154
    %p156 = scmp.ne.s32.totalorder %s144, %s145
    %p157 = scmp.eq.s32.totalorder %s19, 7
    %p158 = por %p156, %p157
    %p160 = scmp.ne.s32.totalorder %s145, %s159
    %p161 = scmp.eq.s32.totalorder %s19, 0
    %p162 = por %p160, %p161
    %s164 = sadd.s32 %s163, 1
    %p167 = scmp.eq.s32.totalorder %s13, 7
    %p168 = scmp.ne.s32.totalorder %s163, %s165
    %p169 = scmp.eq.s32.totalorder %s13, 0
    %p170 = por %p168, %p169
    %p171 = scmp.ne.s32.totalorder %s163, %s165
    %p172 = scmp.eq.s32.totalorder %s18, 7
    %p173 = por %p171, %p172
    %p174 = scmp.ne.s32.totalorder %s165, %s166
    %p175 = scmp.eq.s32.totalorder %s18, 0
    %p176 = por %p174, %p175
    %p177 = scmp.ne.s32.totalorder %s165, %s166
    %p178 = scmp.eq.s32.totalorder %s19, 7
    %p179 = por %p177, %p178
    %p181 = scmp.ne.s32.totalorder %s166, %s180
    %p182 = scmp.eq.s32.totalorder %s19, 0
    %p183 = por %p181, %p182
    %s185 = sadd.s32 %s184, 1
    %p188 = scmp.eq.s32.totalorder %s13, 7
    %p189 = scmp.ne.s32.totalorder %s184, %s186
    %p190 = scmp.eq.s32.totalorder %s13, 0
    %p191 = por %p189, %p190
    %p192 = scmp.ne.s32.totalorder %s184, %s186
    %p193 = scmp.eq.s32.totalorder %s18, 7
    %p194 = por %p192, %p193
    %p195 = scmp.ne.s32.totalorder %s186, %s187
    %p196 = scmp.eq.s32.totalorder %s18, 0
    %p197 = por %p195, %p196
    %p198 = scmp.ne.s32.totalorder %s186, %s187
    %p199 = scmp.eq.s32.totalorder %s19, 7
    %p200 = por %p198, %p199
    %p202 = scmp.ne.s32.totalorder %s187, %s201
    %p203 = scmp.eq.s32.totalorder %s19, 0
    %p204 = por %p202, %p203
    %s205 = ssub.s32 %s20, %s32
    %s206 = ssub.s32 %s21, %s28
    %s207 = sor.u32 %s205, %s206
    %p208 = scmp.eq.s32.totalorder %s207, 0
    %s210 = sadd.s32 %s209, 1
    %s211 = scalar_select %p208, %s209, %s210
    %p214 = pneg %p208
    %p215 = scmp.eq.s32.totalorder %s13, 7
    %p216 = por %p214, %p215
    %p217 = scmp.ne.s32.totalorder %s209, %s212
    %p218 = scmp.eq.s32.totalorder %s13, 0
    %p219 = por %p217, %p218
    %p220 = scmp.ne.s32.totalorder %s209, %s212
    %p221 = scmp.eq.s32.totalorder %s18, 7
    %p222 = por %p220, %p221
    %p223 = scmp.ne.s32.totalorder %s212, %s213
    %p224 = scmp.eq.s32.totalorder %s18, 0
    %p225 = por %p223, %p224
    %p226 = scmp.ne.s32.totalorder %s212, %s213
    %p227 = scmp.eq.s32.totalorder %s19, 7
    %p228 = por %p226, %p227
    %p230 = scmp.ne.s32.totalorder %s213, %s229
    %p231 = scmp.eq.s32.totalorder %s19, 0
    %p232 = por %p230, %p231
    %p233 = scmp.le.s32.totalorder 1, %s13
    %p234 = scmp.lt.s32.totalorder %s13, 9
    %p235 = pnand %p233, %p234
    %p236 = pneg %p235
    // Predicated region
    $region9: #{mpn_forward.11} parent=5 // pred_check
      _
    $region10: #{mpn_forward.11} parent=5 // pred_check_branch
      %238 = sbr.rel (%p235) target = $region12
    $region11: #{mpn_forward.11} parent=5 // pred_region
      %s239 = ssub.s32 %s13, 1
      // Predicated region
      $region13: #{mpn_forward.11} parent=11 // pred_check
        %p240 = pneg %p134
      $region14: #{mpn_forward.11} parent=11 // pred_check_branch
        %242 = sbr.rel (%p240) target = $region16
      $region15: #{mpn_forward.11} parent=11 // pred_region
        _
      $region16: #{mpn_forward.11} parent=11 // pred_fallthru
        _
      // Predicated region
      $region17: #{mpn_forward.11} parent=11 // pred_check
        %p243 = pneg %p155
      $region18: #{mpn_forward.11} parent=11 // pred_check_branch
        %245 = sbr.rel (%p243) target = $region20
      $region19: #{mpn_forward.11} parent=11 // pred_region
        _
      $region20: #{mpn_forward.11} parent=11 // pred_fallthru
        _
      // Predicated region
      $region21: #{mpn_forward.11} parent=11 // pred_check
        %p246 = pneg %p176
      $region22: #{mpn_forward.11} parent=11 // pred_check_branch
        %248 = sbr.rel (%p246) target = $region24
      $region23: #{mpn_forward.11} parent=11 // pred_region
        _
      $region24: #{mpn_forward.11} parent=11 // pred_fallthru
        _
      // Predicated region
      $region25: #{mpn_forward.11} parent=11 // pred_check
        %p249 = pneg %p197
      $region26: #{mpn_forward.11} parent=11 // pred_check_branch
        %251 = sbr.rel (%p249) target = $region28
      $region27: #{mpn_forward.11} parent=11 // pred_region
        _
      $region28: #{mpn_forward.11} parent=11 // pred_fallthru
        _
    $region12: #{mpn_forward.11} parent=5 // pred_fallthru
      _
    %p252 = scmp.lt.s32.totalorder %s13, 8
    // Predicated region
    $region29: #{mpn_forward.11} parent=5 // pred_check
      %p253 = pneg %p252
    $region30: #{mpn_forward.11} parent=5 // pred_check_branch
      %255 = sbr.rel (%p253) target = $region32
    $region31: #{mpn_forward.11} parent=5 // pred_region
      // Predicated region
      $region33: #{mpn_forward.11} parent=31 // pred_check
        %p256 = pneg %p47
      $region34: #{mpn_forward.11} parent=31 // pred_check_branch
        %258 = sbr.rel (%p256) target = $region36
      $region35: #{mpn_forward.11} parent=31 // pred_region
        %p259 = scmp.lt.s32.totalorder %s20, 1
        %s260 = scalar_select %p259, %s20, 1
        %p261 = scmp.lt.s32.totalorder %s21, 7
        %s262 = scalar_select %p261, %s21, 7
        %s263 = smul.addr %s260, 8
        %s264 = sadd.s32 %s262, %s263
        %s265 = smul.addr %s264, 4
        %s266 = scalar_lea.vmem %s0, %s265
      $region36: #{mpn_forward.11} parent=31 // pred_fallthru
        _
      // Predicated region
      $region37: #{mpn_forward.11} parent=31 // pred_check
        %p267 = pneg %p77
      $region38: #{mpn_forward.11} parent=31 // pred_check_branch
        %269 = sbr.rel (%p267) target = $region40
      $region39: #{mpn_forward.11} parent=31 // pred_region
        %s270 = sadd.s32 %s21, 2
        %p271 = scmp.lt.s32.totalorder %s20, 1
        %s272 = scalar_select %p271, %s20, 1
        %p273 = scmp.lt.s32.totalorder %s270, 7
        %s274 = scalar_select %p273, %s270, 7
        %s275 = smul.addr %s272, 8
        %s276 = sadd.s32 %s274, %s275
        %s277 = smul.addr %s276, 4
        %s278 = scalar_lea.vmem %s1, %s277
        %s279 = sadd.s32 %s21, 2
      $region40: #{mpn_forward.11} parent=31 // pred_fallthru
        _
      // Predicated region
      $region41: #{mpn_forward.11} parent=31 // pred_check
        %p280 = pneg %p107
      $region42: #{mpn_forward.11} parent=31 // pred_check_branch
        %282 = sbr.rel (%p280) target = $region44
      $region43: #{mpn_forward.11} parent=31 // pred_region
        %s283 = sadd.s32 %s21, 4
        %p284 = scmp.lt.s32.totalorder %s20, 1
        %s285 = scalar_select %p284, %s20, 1
        %p286 = scmp.lt.s32.totalorder %s283, 7
        %s287 = scalar_select %p286, %s283, 7
        %s288 = smul.addr %s285, 8
        %s289 = sadd.s32 %s287, %s288
        %s290 = smul.addr %s289, 4
        %s291 = scalar_lea.vmem %s2, %s290
        %s292 = sadd.s32 %s21, 4
      $region44: #{mpn_forward.11} parent=31 // pred_fallthru
        _
    $region32: #{mpn_forward.11} parent=5 // pred_fallthru
      _
    %p293 = scmp.le.s32.totalorder 1, %s13
    %p294 = scmp.lt.s32.totalorder %s13, 9
    %p295 = pnand %p293, %p294
    %p296 = pneg %p295
    // Predicated region
    $region45: #{mpn_forward.11} parent=5 // pred_check
      _
    $region46: #{mpn_forward.11} parent=5 // pred_check_branch
      %298 = sbr.rel (%p295) target = $region48
    $region47: #{mpn_forward.11} parent=5 // pred_region
      %s299 = ssub.s32 %s13, 1
      %p300 = scmp.lt.s32.totalorder %s22, 1
      %s301 = scalar_select %p300, %s22, 1
      %p302 = scmp.lt.s32.totalorder %s23, 7
      %s303 = scalar_select %p302, %s23, 7
      %s304 = smul.addr %s301, 8
      %s305 = sadd.s32 %s303, %s304
      %s306 = smul.addr %s305, 4
      %s307 = scalar_lea.vmem %s0, %s306
      %p308 = pneg %p53
      %p309 = pneg %p50
      %s310 = sadd.s32 %s23, 2
      %p311 = scmp.lt.s32.totalorder %s22, 1
      %s312 = scalar_select %p311, %s22, 1
      %p313 = scmp.lt.s32.totalorder %s310, 7
      %s314 = scalar_select %p313, %s310, 7
      %s315 = smul.addr %s312, 8
      %s316 = sadd.s32 %s314, %s315
      %s317 = smul.addr %s316, 4
      %s318 = scalar_lea.vmem %s1, %s317
      %p319 = pneg %p83
      %p320 = pneg %p80
      %s321 = sadd.s32 %s23, 4
      %p322 = scmp.lt.s32.totalorder %s22, 1
      %s323 = scalar_select %p322, %s22, 1
      %p324 = scmp.lt.s32.totalorder %s321, 7
      %s325 = scalar_select %p324, %s321, 7
      %s326 = smul.addr %s323, 8
      %s327 = sadd.s32 %s325, %s326
      %s328 = smul.addr %s327, 4
      %s329 = scalar_lea.vmem %s2, %s328
      %p330 = pneg %p113
      %p331 = pneg %p110
      %p332 = pneg %p134
      %p333 = pneg %p131
      %p334 = pneg %p155
      %p335 = pneg %p152
      %p336 = pneg %p176
      %p337 = pneg %p173
      %p338 = pneg %p197
      %p339 = pneg %p194
      %p340 = pneg %p225
      %p341 = pneg %p222
      %p342 = scmp.lt.s32.totalorder %s22, 1
      %s343 = scalar_select %p342, %s22, 1
      %p344 = scmp.lt.s32.totalorder %s23, 3
      %s345 = scalar_select %p344, %s23, 3
      %s346 = smul.addr %s343, 4
      %s347 = sadd.s32 %s345, %s346
      %s348 = smul.addr %s347, 2
      %s349 = scalar_lea.vmem %s7, %s348
      %p350 = scmp.lt.s32.totalorder %s22, 1
      %s351 = scalar_select %p350, %s22, 1
      %p352 = scmp.lt.s32.totalorder %s23, 7
      %s353 = scalar_select %p352, %s23, 7
      %s354 = smul.addr %s351, 8
      %s355 = sadd.s32 %s353, %s354
      %s356 = smul.addr %s355, 4
      %s357 = scalar_lea.vmem %s0, %s356
      %s358 = sadd.s32 %s23, 2
      %p359 = scmp.lt.s32.totalorder %s22, 1
      %s360 = scalar_select %p359, %s22, 1
      %p361 = scmp.lt.s32.totalorder %s358, 7
      %s362 = scalar_select %p361, %s358, 7
      %s363 = smul.addr %s360, 8
      %s364 = sadd.s32 %s362, %s363
      %s365 = smul.addr %s364, 4
      %s366 = scalar_lea.vmem %s1, %s365
      %s367 = sadd.s32 %s23, 2
      %s368 = sadd.s32 %s23, 4
      %p369 = scmp.lt.s32.totalorder %s22, 1
      %s370 = scalar_select %p369, %s22, 1
      %p371 = scmp.lt.s32.totalorder %s368, 7
      %s372 = scalar_select %p371, %s368, 7
      %s373 = smul.addr %s370, 8
      %s374 = sadd.s32 %s372, %s373
      %s375 = smul.addr %s374, 4
      %s376 = scalar_lea.vmem %s2, %s375
      %s377 = sadd.s32 %s23, 4
      %p378 = scmp.lt.s32.totalorder %s22, 1
      %s379 = scalar_select %p378, %s22, 1
      %p380 = scmp.lt.s32.totalorder %s23, 3
      %s381 = scalar_select %p380, %s23, 3
      %s382 = smul.addr %s379, 4
      %s383 = sadd.s32 %s381, %s382
      %s384 = smul.addr %s383, 2
      %s385 = scalar_lea.vmem %s7, %s384
      %v386 = vld [vmem:[%s357] sm:$0xf]
      %v387 = vld [vmem:[%s3] sm:$0xf]
      %v388 = vld [vmem:[%s3 + $0x4] sm:$0xf]
      %v389 = vld [vmem:[%s3 + $0x8] sm:$0xf]
      %v390 = vld [vmem:[%s3 + $0xc] sm:$0xf]
      %v391 = vld [vmem:[%s3 + $0x10] sm:$0xf]
      %v392 = vld [vmem:[%s3 + $0x14] sm:$0xf]
      %v393 = vld [vmem:[%s3 + $0x18] sm:$0xf]
      %v394 = vld [vmem:[%s3 + $0x1c] sm:$0xf]
      %v395 = vld [vmem:[%s3 + $0x20] sm:$0xf]
      %v396 = vld [vmem:[%s3 + $0x24] sm:$0xf]
      %v397 = vld [vmem:[%s3 + $0x28] sm:$0xf]
      %v398 = vld [vmem:[%s3 + $0x2c] sm:$0xf]
      %v399 = vld [vmem:[%s3 + $0x30] sm:$0xf]
      %v400 = vld [vmem:[%s3 + $0x34] sm:$0xf]
      %v401 = vld [vmem:[%s3 + $0x38] sm:$0xf]
      %v402 = vld [vmem:[%s3 + $0x3c] sm:$0xf]
      %s403 = scalar_lea.vmem %s3, 64
      %v404 = vld [vmem:[%s403] sm:$0xf]
      %v405 = vld [vmem:[%s403 + $0x4] sm:$0xf]
      %v406 = vld [vmem:[%s403 + $0x8] sm:$0xf]
      %v407 = vld [vmem:[%s403 + $0xc] sm:$0xf]
      %v408 = vld [vmem:[%s403 + $0x10] sm:$0xf]
      %v409 = vld [vmem:[%s403 + $0x14] sm:$0xf]
      %v410 = vld [vmem:[%s403 + $0x18] sm:$0xf]
      %v411 = vld [vmem:[%s403 + $0x1c] sm:$0xf]
      %v412 = vld [vmem:[%s403 + $0x20] sm:$0xf]
      %v413 = vld [vmem:[%s403 + $0x24] sm:$0xf]
      %v414 = vld [vmem:[%s403 + $0x28] sm:$0xf]
      %v415 = vld [vmem:[%s403 + $0x2c] sm:$0xf]
      %v416 = vld [vmem:[%s403 + $0x30] sm:$0xf]
      %v417 = vld [vmem:[%s403 + $0x34] sm:$0xf]
      %v418 = vld [vmem:[%s403 + $0x38] sm:$0xf]
      %v419 = vld [vmem:[%s403 + $0x3c] sm:$0xf]
      %v421 = vunpack.c.l.b16 %v386
      %v422 = vpack.c.b16 %v421, %v421
      %v423 = vrot.slane %v422, 1
      %v441 = vunpack.c.l.b16 %v404
      %v442 = vunpack.c.l.b16 %v405
      %v443 = vunpack.c.l.b16 %v406
      %v444 = vunpack.c.l.b16 %v407
      %v445 = vunpack.c.l.b16 %v408
      %v446 = vunpack.c.l.b16 %v409
      %v447 = vunpack.c.l.b16 %v410
      %v448 = vunpack.c.l.b16 %v411
      %v449 = vunpack.c.l.b16 %v412
      %v450 = vunpack.c.l.b16 %v413
      %v451 = vunpack.c.l.b16 %v414
      %v452 = vunpack.c.l.b16 %v415
      %v453 = vunpack.c.l.b16 %v416
      %v454 = vunpack.c.l.b16 %v417
      %v455 = vunpack.c.l.b16 %v418
      %v456 = vunpack.c.l.b16 %v419
      %v457 = vpack.c.b16 %v442, %v441
      %v458 = vpack.c.b16 %v444, %v443
      %v459 = vpack.c.b16 %v446, %v445
      %v460 = vpack.c.b16 %v448, %v447
      %v461 = vpack.c.b16 %v450, %v449
      %v462 = vpack.c.b16 %v452, %v451
      %v463 = vpack.c.b16 %v454, %v453
      %v464 = vpack.c.b16 %v456, %v455
      %473 = vmatpush.bf16.msra.mxu0 %v464
      %474 = vmatpush.bf16.msra.mxu0 %v463
      %475 = vmatpush.bf16.msra.mxu0 %v462
      %476 = vmatpush.bf16.msra.mxu0 %v461
      %477 = vmatpush.bf16.msra.mxu0 %v460
      %478 = vmatpush.bf16.msra.mxu0 %v459
      %479 = vmatpush.bf16.msra.mxu0 %v458
      %480 = vmatpush.bf16.msra.mxu0 %v457
      %481 = vmatmul.bf16.gmra.mxu0 %v423
      %v482 = vpop.f32.mrf.mxu0
      %v483 = vadd.f32 0.0, %v482
      %v484 = vpop.f32.mrf.mxu0
      %485 = vdwg.mxu0
      %v502 = vunpack.c.l.b16 %v387
      %v503 = vunpack.c.l.b16 %v388
      %v504 = vunpack.c.l.b16 %v389
      %v505 = vunpack.c.l.b16 %v390
      %v506 = vunpack.c.l.b16 %v391
      %v507 = vunpack.c.l.b16 %v392
      %v508 = vunpack.c.l.b16 %v393
      %v509 = vunpack.c.l.b16 %v394
      %v510 = vunpack.c.l.b16 %v395
      %v511 = vunpack.c.l.b16 %v396
      %v512 = vunpack.c.l.b16 %v397
      %v513 = vunpack.c.l.b16 %v398
      %v514 = vunpack.c.l.b16 %v399
      %v515 = vunpack.c.l.b16 %v400
      %v516 = vunpack.c.l.b16 %v401
      %v517 = vunpack.c.l.b16 %v402
      %v518 = vpack.c.b16 %v503, %v502
      %v519 = vpack.c.b16 %v505, %v504
      %v520 = vpack.c.b16 %v507, %v506
      %v521 = vpack.c.b16 %v509, %v508
      %v522 = vpack.c.b16 %v511, %v510
      %v523 = vpack.c.b16 %v513, %v512
      %v524 = vpack.c.b16 %v515, %v514
      %v525 = vpack.c.b16 %v517, %v516
      %534 = vmatpush.bf16.msra.mxu0 %v525
      %535 = vmatpush.bf16.msra.mxu0 %v524
      %536 = vmatpush.bf16.msra.mxu0 %v523
      %537 = vmatpush.bf16.msra.mxu0 %v522
      %538 = vmatpush.bf16.msra.mxu0 %v521
      %539 = vmatpush.bf16.msra.mxu0 %v520
      %540 = vmatpush.bf16.msra.mxu0 %v519
      %541 = vmatpush.bf16.msra.mxu0 %v518
      %542 = vmatmul.bf16.gmra.mxu0 %v386
      %v543 = vpop.f32.mrf.mxu0
      %v544 = vadd.f32 %v483, %v543
      %v545 = vpop.f32.mrf.mxu0
      %546 = vdwg.mxu0
      %s547 = scalar_lea.vmem %s3, 128
      %v548 = vld [vmem:[%s547] sm:$0xf]
      %v549 = vld [vmem:[%s547 + $0x4] sm:$0xf]
      %v550 = vld [vmem:[%s547 + $0x8] sm:$0xf]
      %v551 = vld [vmem:[%s547 + $0xc] sm:$0xf]
      %v552 = vld [vmem:[%s547 + $0x10] sm:$0xf]
      %v553 = vld [vmem:[%s547 + $0x14] sm:$0xf]
      %v554 = vld [vmem:[%s547 + $0x18] sm:$0xf]
      %v555 = vld [vmem:[%s547 + $0x1c] sm:$0xf]
      %v556 = vld [vmem:[%s547 + $0x20] sm:$0xf]
      %v557 = vld [vmem:[%s547 + $0x24] sm:$0xf]
      %v558 = vld [vmem:[%s547 + $0x28] sm:$0xf]
      %v559 = vld [vmem:[%s547 + $0x2c] sm:$0xf]
      %v560 = vld [vmem:[%s547 + $0x30] sm:$0xf]
      %v561 = vld [vmem:[%s547 + $0x34] sm:$0xf]
      %v562 = vld [vmem:[%s547 + $0x38] sm:$0xf]
      %v563 = vld [vmem:[%s547 + $0x3c] sm:$0xf]
      %v564 = vrot.slane %v422, 2
      %v582 = vunpack.c.l.b16 %v548
      %v583 = vunpack.c.l.b16 %v549
      %v584 = vunpack.c.l.b16 %v550
      %v585 = vunpack.c.l.b16 %v551
      %v586 = vunpack.c.l.b16 %v552
      %v587 = vunpack.c.l.b16 %v553
      %v588 = vunpack.c.l.b16 %v554
      %v589 = vunpack.c.l.b16 %v555
      %v590 = vunpack.c.l.b16 %v556
      %v591 = vunpack.c.l.b16 %v557
      %v592 = vunpack.c.l.b16 %v558
      %v593 = vunpack.c.l.b16 %v559
      %v594 = vunpack.c.l.b16 %v560
      %v595 = vunpack.c.l.b16 %v561
      %v596 = vunpack.c.l.b16 %v562
      %v597 = vunpack.c.l.b16 %v563
      %v598 = vpack.c.b16 %v583, %v582
      %v599 = vpack.c.b16 %v585, %v584
      %v600 = vpack.c.b16 %v587, %v586
      %v601 = vpack.c.b16 %v589, %v588
      %v602 = vpack.c.b16 %v591, %v590
      %v603 = vpack.c.b16 %v593, %v592
      %v604 = vpack.c.b16 %v595, %v594
      %v605 = vpack.c.b16 %v597, %v596
      %614 = vmatpush.bf16.msra.mxu0 %v605
      %615 = vmatpush.bf16.msra.mxu0 %v604
      %616 = vmatpush.bf16.msra.mxu0 %v603
      %617 = vmatpush.bf16.msra.mxu0 %v602
      %618 = vmatpush.bf16.msra.mxu0 %v601
      %619 = vmatpush.bf16.msra.mxu0 %v600
      %620 = vmatpush.bf16.msra.mxu0 %v599
      %621 = vmatpush.bf16.msra.mxu0 %v598
      %622 = vmatmul.bf16.gmra.mxu0 %v564
      %v623 = vpop.f32.mrf.mxu0
      %v624 = vadd.f32 0.0, %v623
      %v625 = vpop.f32.mrf.mxu0
      %626 = vdwg.mxu0
      %v627 = vadd.f32 %v544, %v624
      %v628 = vld [vmem:[%s366] sm:$0xf]
      %s629 = scalar_lea.vmem %s3, 192
      %v630 = vld [vmem:[%s629] sm:$0xf]
      %v631 = vld [vmem:[%s629 + $0x4] sm:$0xf]
      %v632 = vld [vmem:[%s629 + $0x8] sm:$0xf]
      %v633 = vld [vmem:[%s629 + $0xc] sm:$0xf]
      %v634 = vld [vmem:[%s629 + $0x10] sm:$0xf]
      %v635 = vld [vmem:[%s629 + $0x14] sm:$0xf]
      %v636 = vld [vmem:[%s629 + $0x18] sm:$0xf]
      %v637 = vld [vmem:[%s629 + $0x1c] sm:$0xf]
      %v638 = vld [vmem:[%s629 + $0x20] sm:$0xf]
      %v639 = vld [vmem:[%s629 + $0x24] sm:$0xf]
      %v640 = vld [vmem:[%s629 + $0x28] sm:$0xf]
      %v641 = vld [vmem:[%s629 + $0x2c] sm:$0xf]
      %v642 = vld [vmem:[%s629 + $0x30] sm:$0xf]
      %v643 = vld [vmem:[%s629 + $0x34] sm:$0xf]
      %v644 = vld [vmem:[%s629 + $0x38] sm:$0xf]
      %v645 = vld [vmem:[%s629 + $0x3c] sm:$0xf]
      %v662 = vunpack.c.l.b16 %v630
      %v663 = vunpack.c.l.b16 %v631
      %v664 = vunpack.c.l.b16 %v632
      %v665 = vunpack.c.l.b16 %v633
      %v666 = vunpack.c.l.b16 %v634
      %v667 = vunpack.c.l.b16 %v635
      %v668 = vunpack.c.l.b16 %v636
      %v669 = vunpack.c.l.b16 %v637
      %v670 = vunpack.c.l.b16 %v638
      %v671 = vunpack.c.l.b16 %v639
      %v672 = vunpack.c.l.b16 %v640
      %v673 = vunpack.c.l.b16 %v641
      %v674 = vunpack.c.l.b16 %v642
      %v675 = vunpack.c.l.b16 %v643
      %v676 = vunpack.c.l.b16 %v644
      %v677 = vunpack.c.l.b16 %v645
      %v678 = vpack.c.b16 %v663, %v662
      %v679 = vpack.c.b16 %v665, %v664
      %v680 = vpack.c.b16 %v667, %v666
      %v681 = vpack.c.b16 %v669, %v668
      %v682 = vpack.c.b16 %v671, %v670
      %v683 = vpack.c.b16 %v673, %v672
      %v684 = vpack.c.b16 %v675, %v674
      %v685 = vpack.c.b16 %v677, %v676
      %694 = vmatpush.bf16.msra.mxu0 %v685
      %695 = vmatpush.bf16.msra.mxu0 %v684
      %696 = vmatpush.bf16.msra.mxu0 %v683
      %697 = vmatpush.bf16.msra.mxu0 %v682
      %698 = vmatpush.bf16.msra.mxu0 %v681
      %699 = vmatpush.bf16.msra.mxu0 %v680
      %700 = vmatpush.bf16.msra.mxu0 %v679
      %701 = vmatpush.bf16.msra.mxu0 %v678
      %702 = vmatmul.bf16.gmra.mxu0 %v628
      %v703 = vpop.f32.mrf.mxu0
      %v704 = vadd.f32 0.0, %v703
      %v705 = vpop.f32.mrf.mxu0
      %706 = vdwg.mxu0
      %v707 = vadd.f32 %v627, %v704
      %s708 = scalar_lea.vmem %s3, 256
      %v709 = vld [vmem:[%s708] sm:$0xf]
      %v710 = vld [vmem:[%s708 + $0x4] sm:$0xf]
      %v711 = vld [vmem:[%s708 + $0x8] sm:$0xf]
      %v712 = vld [vmem:[%s708 + $0xc] sm:$0xf]
      %v713 = vld [vmem:[%s708 + $0x10] sm:$0xf]
      %v714 = vld [vmem:[%s708 + $0x14] sm:$0xf]
      %v715 = vld [vmem:[%s708 + $0x18] sm:$0xf]
      %v716 = vld [vmem:[%s708 + $0x1c] sm:$0xf]
      %v717 = vld [vmem:[%s708 + $0x20] sm:$0xf]
      %v718 = vld [vmem:[%s708 + $0x24] sm:$0xf]
      %v719 = vld [vmem:[%s708 + $0x28] sm:$0xf]
      %v720 = vld [vmem:[%s708 + $0x2c] sm:$0xf]
      %v721 = vld [vmem:[%s708 + $0x30] sm:$0xf]
      %v722 = vld [vmem:[%s708 + $0x34] sm:$0xf]
      %v723 = vld [vmem:[%s708 + $0x38] sm:$0xf]
      %v724 = vld [vmem:[%s708 + $0x3c] sm:$0xf]
      %v726 = vunpack.c.l.b16 %v628
      %v727 = vpack.c.b16 %v726, %v726
      %v728 = vrot.slane %v727, 1
      %v746 = vunpack.c.l.b16 %v709
      %v747 = vunpack.c.l.b16 %v710
      %v748 = vunpack.c.l.b16 %v711
      %v749 = vunpack.c.l.b16 %v712
      %v750 = vunpack.c.l.b16 %v713
      %v751 = vunpack.c.l.b16 %v714
      %v752 = vunpack.c.l.b16 %v715
      %v753 = vunpack.c.l.b16 %v716
      %v754 = vunpack.c.l.b16 %v717
      %v755 = vunpack.c.l.b16 %v718
      %v756 = vunpack.c.l.b16 %v719
      %v757 = vunpack.c.l.b16 %v720
      %v758 = vunpack.c.l.b16 %v721
      %v759 = vunpack.c.l.b16 %v722
      %v760 = vunpack.c.l.b16 %v723
      %v761 = vunpack.c.l.b16 %v724
      %v762 = vpack.c.b16 %v747, %v746
      %v763 = vpack.c.b16 %v749, %v748
      %v764 = vpack.c.b16 %v751, %v750
      %v765 = vpack.c.b16 %v753, %v752
      %v766 = vpack.c.b16 %v755, %v754
      %v767 = vpack.c.b16 %v757, %v756
      %v768 = vpack.c.b16 %v759, %v758
      %v769 = vpack.c.b16 %v761, %v760
      %778 = vmatpush.bf16.msra.mxu0 %v769
      %779 = vmatpush.bf16.msra.mxu0 %v768
      %780 = vmatpush.bf16.msra.mxu0 %v767
      %781 = vmatpush.bf16.msra.mxu0 %v766
      %782 = vmatpush.bf16.msra.mxu0 %v765
      %783 = vmatpush.bf16.msra.mxu0 %v764
      %784 = vmatpush.bf16.msra.mxu0 %v763
      %785 = vmatpush.bf16.msra.mxu0 %v762
      %786 = vmatmul.bf16.gmra.mxu0 %v728
      %v787 = vpop.f32.mrf.mxu0
      %v788 = vadd.f32 0.0, %v787
      %v789 = vpop.f32.mrf.mxu0
      %790 = vdwg.mxu0
      %v791 = vadd.f32 %v707, %v788
      %s792 = scalar_lea.vmem %s3, 320
      %v793 = vld [vmem:[%s792] sm:$0xf]
      %v794 = vld [vmem:[%s792 + $0x4] sm:$0xf]
      %v795 = vld [vmem:[%s792 + $0x8] sm:$0xf]
      %v796 = vld [vmem:[%s792 + $0xc] sm:$0xf]
      %v797 = vld [vmem:[%s792 + $0x10] sm:$0xf]
      %v798 = vld [vmem:[%s792 + $0x14] sm:$0xf]
      %v799 = vld [vmem:[%s792 + $0x18] sm:$0xf]
      %v800 = vld [vmem:[%s792 + $0x1c] sm:$0xf]
      %v801 = vld [vmem:[%s792 + $0x20] sm:$0xf]
      %v802 = vld [vmem:[%s792 + $0x24] sm:$0xf]
      %v803 = vld [vmem:[%s792 + $0x28] sm:$0xf]
      %v804 = vld [vmem:[%s792 + $0x2c] sm:$0xf]
      %v805 = vld [vmem:[%s792 + $0x30] sm:$0xf]
      %v806 = vld [vmem:[%s792 + $0x34] sm:$0xf]
      %v807 = vld [vmem:[%s792 + $0x38] sm:$0xf]
      %v808 = vld [vmem:[%s792 + $0x3c] sm:$0xf]
      %v809 = vrot.slane %v727, 2
      %v827 = vunpack.c.l.b16 %v793
      %v828 = vunpack.c.l.b16 %v794
      %v829 = vunpack.c.l.b16 %v795
      %v830 = vunpack.c.l.b16 %v796
      %v831 = vunpack.c.l.b16 %v797
      %v832 = vunpack.c.l.b16 %v798
      %v833 = vunpack.c.l.b16 %v799
      %v834 = vunpack.c.l.b16 %v800
      %v835 = vunpack.c.l.b16 %v801
      %v836 = vunpack.c.l.b16 %v802
      %v837 = vunpack.c.l.b16 %v803
      %v838 = vunpack.c.l.b16 %v804
      %v839 = vunpack.c.l.b16 %v805
      %v840 = vunpack.c.l.b16 %v806
      %v841 = vunpack.c.l.b16 %v807
      %v842 = vunpack.c.l.b16 %v808
      %v843 = vpack.c.b16 %v828, %v827
      %v844 = vpack.c.b16 %v830, %v829
      %v845 = vpack.c.b16 %v832, %v831
      %v846 = vpack.c.b16 %v834, %v833
      %v847 = vpack.c.b16 %v836, %v835
      %v848 = vpack.c.b16 %v838, %v837
      %v849 = vpack.c.b16 %v840, %v839
      %v850 = vpack.c.b16 %v842, %v841
      %859 = vmatpush.bf16.msra.mxu0 %v850
      %860 = vmatpush.bf16.msra.mxu0 %v849
      %861 = vmatpush.bf16.msra.mxu0 %v848
      %862 = vmatpush.bf16.msra.mxu0 %v847
      %863 = vmatpush.bf16.msra.mxu0 %v846
      %864 = vmatpush.bf16.msra.mxu0 %v845
      %865 = vmatpush.bf16.msra.mxu0 %v844
      %866 = vmatpush.bf16.msra.mxu0 %v843
      %867 = vmatmul.bf16.gmra.mxu0 %v809
      %v868 = vpop.f32.mrf.mxu0
      %v869 = vadd.f32 0.0, %v868
      %v870 = vpop.f32.mrf.mxu0
      %871 = vdwg.mxu0
      %v872 = vadd.f32 %v791, %v869
      %v873 = vld [vmem:[%s376] sm:$0xf]
      %s874 = scalar_lea.vmem %s3, 384
      %v875 = vld [vmem:[%s874] sm:$0xf]
      %v876 = vld [vmem:[%s874 + $0x4] sm:$0xf]
      %v877 = vld [vmem:[%s874 + $0x8] sm:$0xf]
      %v878 = vld [vmem:[%s874 + $0xc] sm:$0xf]
      %v879 = vld [vmem:[%s874 + $0x10] sm:$0xf]
      %v880 = vld [vmem:[%s874 + $0x14] sm:$0xf]
      %v881 = vld [vmem:[%s874 + $0x18] sm:$0xf]
      %v882 = vld [vmem:[%s874 + $0x1c] sm:$0xf]
      %v883 = vld [vmem:[%s874 + $0x20] sm:$0xf]
      %v884 = vld [vmem:[%s874 + $0x24] sm:$0xf]
      %v885 = vld [vmem:[%s874 + $0x28] sm:$0xf]
      %v886 = vld [vmem:[%s874 + $0x2c] sm:$0xf]
      %v887 = vld [vmem:[%s874 + $0x30] sm:$0xf]
      %v888 = vld [vmem:[%s874 + $0x34] sm:$0xf]
      %v889 = vld [vmem:[%s874 + $0x38] sm:$0xf]
      %v890 = vld [vmem:[%s874 + $0x3c] sm:$0xf]
      %v907 = vunpack.c.l.b16 %v875
      %v908 = vunpack.c.l.b16 %v876
      %v909 = vunpack.c.l.b16 %v877
      %v910 = vunpack.c.l.b16 %v878
      %v911 = vunpack.c.l.b16 %v879
      %v912 = vunpack.c.l.b16 %v880
      %v913 = vunpack.c.l.b16 %v881
      %v914 = vunpack.c.l.b16 %v882
      %v915 = vunpack.c.l.b16 %v883
      %v916 = vunpack.c.l.b16 %v884
      %v917 = vunpack.c.l.b16 %v885
      %v918 = vunpack.c.l.b16 %v886
      %v919 = vunpack.c.l.b16 %v887
      %v920 = vunpack.c.l.b16 %v888
      %v921 = vunpack.c.l.b16 %v889
      %v922 = vunpack.c.l.b16 %v890
      %v923 = vpack.c.b16 %v908, %v907
      %v924 = vpack.c.b16 %v910, %v909
      %v925 = vpack.c.b16 %v912, %v911
      %v926 = vpack.c.b16 %v914, %v913
      %v927 = vpack.c.b16 %v916, %v915
      %v928 = vpack.c.b16 %v918, %v917
      %v929 = vpack.c.b16 %v920, %v919
      %v930 = vpack.c.b16 %v922, %v921
      %939 = vmatpush.bf16.msra.mxu0 %v930
      %940 = vmatpush.bf16.msra.mxu0 %v929
      %941 = vmatpush.bf16.msra.mxu0 %v928
      %942 = vmatpush.bf16.msra.mxu0 %v927
      %943 = vmatpush.bf16.msra.mxu0 %v926
      %944 = vmatpush.bf16.msra.mxu0 %v925
      %945 = vmatpush.bf16.msra.mxu0 %v924
      %946 = vmatpush.bf16.msra.mxu0 %v923
      %947 = vmatmul.bf16.gmra.mxu0 %v873
      %v948 = vpop.f32.mrf.mxu0
      %v949 = vadd.f32 0.0, %v948
      %v950 = vpop.f32.mrf.mxu0
      %951 = vdwg.mxu0
      %v952 = vadd.f32 %v872, %v949
      %s953 = scalar_lea.vmem %s3, 448
      %v954 = vld [vmem:[%s953] sm:$0xf]
      %v955 = vld [vmem:[%s953 + $0x4] sm:$0xf]
      %v956 = vld [vmem:[%s953 + $0x8] sm:$0xf]
      %v957 = vld [vmem:[%s953 + $0xc] sm:$0xf]
      %v958 = vld [vmem:[%s953 + $0x10] sm:$0xf]
      %v959 = vld [vmem:[%s953 + $0x14] sm:$0xf]
      %v960 = vld [vmem:[%s953 + $0x18] sm:$0xf]
      %v961 = vld [vmem:[%s953 + $0x1c] sm:$0xf]
      %v962 = vld [vmem:[%s953 + $0x20] sm:$0xf]
      %v963 = vld [vmem:[%s953 + $0x24] sm:$0xf]
      %v964 = vld [vmem:[%s953 + $0x28] sm:$0xf]
      %v965 = vld [vmem:[%s953 + $0x2c] sm:$0xf]
      %v966 = vld [vmem:[%s953 + $0x30] sm:$0xf]
      %v967 = vld [vmem:[%s953 + $0x34] sm:$0xf]
      %v968 = vld [vmem:[%s953 + $0x38] sm:$0xf]
      %v969 = vld [vmem:[%s953 + $0x3c] sm:$0xf]
      %v971 = vunpack.c.l.b16 %v873
      %v972 = vpack.c.b16 %v971, %v971
      %v973 = vrot.slane %v972, 1
      %v991 = vunpack.c.l.b16 %v954
      %v992 = vunpack.c.l.b16 %v955
      %v993 = vunpack.c.l.b16 %v956
      %v994 = vunpack.c.l.b16 %v957
      %v995 = vunpack.c.l.b16 %v958
      %v996 = vunpack.c.l.b16 %v959
      %v997 = vunpack.c.l.b16 %v960
      %v998 = vunpack.c.l.b16 %v961
      %v999 = vunpack.c.l.b16 %v962
      %v1000 = vunpack.c.l.b16 %v963
      %v1001 = vunpack.c.l.b16 %v964
      %v1002 = vunpack.c.l.b16 %v965
      %v1003 = vunpack.c.l.b16 %v966
      %v1004 = vunpack.c.l.b16 %v967
      %v1005 = vunpack.c.l.b16 %v968
      %v1006 = vunpack.c.l.b16 %v969
      %v1007 = vpack.c.b16 %v992, %v991
      %v1008 = vpack.c.b16 %v994, %v993
      %v1009 = vpack.c.b16 %v996, %v995
      %v1010 = vpack.c.b16 %v998, %v997
      %v1011 = vpack.c.b16 %v1000, %v999
      %v1012 = vpack.c.b16 %v1002, %v1001
      %v1013 = vpack.c.b16 %v1004, %v1003
      %v1014 = vpack.c.b16 %v1006, %v1005
      %1023 = vmatpush.bf16.msra.mxu0 %v1014
      %1024 = vmatpush.bf16.msra.mxu0 %v1013
      %1025 = vmatpush.bf16.msra.mxu0 %v1012
      %1026 = vmatpush.bf16.msra.mxu0 %v1011
      %1027 = vmatpush.bf16.msra.mxu0 %v1010
      %1028 = vmatpush.bf16.msra.mxu0 %v1009
      %1029 = vmatpush.bf16.msra.mxu0 %v1008
      %1030 = vmatpush.bf16.msra.mxu0 %v1007
      %1031 = vmatmul.bf16.gmra.mxu0 %v973
      %v1032 = vpop.f32.mrf.mxu0
      %v1033 = vadd.f32 0.0, %v1032
      %v1034 = vpop.f32.mrf.mxu0
      %1035 = vdwg.mxu0
      %v1036 = vadd.f32 %v952, %v1033
      %s1037 = scalar_lea.vmem %s3, 512
      %v1038 = vld [vmem:[%s1037] sm:$0xf]
      %v1039 = vld [vmem:[%s1037 + $0x4] sm:$0xf]
      %v1040 = vld [vmem:[%s1037 + $0x8] sm:$0xf]
      %v1041 = vld [vmem:[%s1037 + $0xc] sm:$0xf]
      %v1042 = vld [vmem:[%s1037 + $0x10] sm:$0xf]
      %v1043 = vld [vmem:[%s1037 + $0x14] sm:$0xf]
      %v1044 = vld [vmem:[%s1037 + $0x18] sm:$0xf]
      %v1045 = vld [vmem:[%s1037 + $0x1c] sm:$0xf]
      %v1046 = vld [vmem:[%s1037 + $0x20] sm:$0xf]
      %v1047 = vld [vmem:[%s1037 + $0x24] sm:$0xf]
      %v1048 = vld [vmem:[%s1037 + $0x28] sm:$0xf]
      %v1049 = vld [vmem:[%s1037 + $0x2c] sm:$0xf]
      %v1050 = vld [vmem:[%s1037 + $0x30] sm:$0xf]
      %v1051 = vld [vmem:[%s1037 + $0x34] sm:$0xf]
      %v1052 = vld [vmem:[%s1037 + $0x38] sm:$0xf]
      %v1053 = vld [vmem:[%s1037 + $0x3c] sm:$0xf]
      %v1054 = vrot.slane %v972, 2
      %v1072 = vunpack.c.l.b16 %v1038
      %v1073 = vunpack.c.l.b16 %v1039
      %v1074 = vunpack.c.l.b16 %v1040
      %v1075 = vunpack.c.l.b16 %v1041
      %v1076 = vunpack.c.l.b16 %v1042
      %v1077 = vunpack.c.l.b16 %v1043
      %v1078 = vunpack.c.l.b16 %v1044
      %v1079 = vunpack.c.l.b16 %v1045
      %v1080 = vunpack.c.l.b16 %v1046
      %v1081 = vunpack.c.l.b16 %v1047
      %v1082 = vunpack.c.l.b16 %v1048
      %v1083 = vunpack.c.l.b16 %v1049
      %v1084 = vunpack.c.l.b16 %v1050
      %v1085 = vunpack.c.l.b16 %v1051
      %v1086 = vunpack.c.l.b16 %v1052
      %v1087 = vunpack.c.l.b16 %v1053
      %v1088 = vpack.c.b16 %v1073, %v1072
      %v1089 = vpack.c.b16 %v1075, %v1074
      %v1090 = vpack.c.b16 %v1077, %v1076
      %v1091 = vpack.c.b16 %v1079, %v1078
      %v1092 = vpack.c.b16 %v1081, %v1080
      %v1093 = vpack.c.b16 %v1083, %v1082
      %v1094 = vpack.c.b16 %v1085, %v1084
      %v1095 = vpack.c.b16 %v1087, %v1086
      %1104 = vmatpush.bf16.msra.mxu0 %v1095
      %1105 = vmatpush.bf16.msra.mxu0 %v1094
      %1106 = vmatpush.bf16.msra.mxu0 %v1093
      %1107 = vmatpush.bf16.msra.mxu0 %v1092
      %1108 = vmatpush.bf16.msra.mxu0 %v1091
      %1109 = vmatpush.bf16.msra.mxu0 %v1090
      %1110 = vmatpush.bf16.msra.mxu0 %v1089
      %1111 = vmatpush.bf16.msra.mxu0 %v1088
      %1112 = vmatmul.bf16.gmra.mxu0 %v1054
      %v1113 = vpop.f32.mrf.mxu0
      %v1114 = vadd.f32 0.0, %v1113
      %v1115 = vpop.f32.mrf.mxu0
      %1116 = vdwg.mxu0
      %v1117 = vadd.f32 %v1036, %v1114
      %v1118 = vld [vmem:[%s4] sm:$0x1]
      %v1120 = vperm.slane %v1118, 0
      %v1122 = vadd.f32 %v1117, %v1120
      %vm1123 = vcmp.gt.f32.partialorder %v1122, 0.0
      %v1124 = vmin.f32 %v1122, 0.0
      %v1125 = vmul.f32 %v1124, 1.442695
      %v1126 = vpow.pop %v1125
      %v1127 = vsub.f32 %v1126, 1.0
      %v1128 = vsel %vm1123, %v1122, %v1127
      %v1129 = vld [vmem:[%s5] sm:$0xf]
      %v1130 = vld [vmem:[%s5 + $0x4] sm:$0xf]
      %v1131 = vld [vmem:[%s5 + $0x8] sm:$0xf]
      %v1132 = vld [vmem:[%s5 + $0xc] sm:$0xf]
      %v1133 = vld [vmem:[%s5 + $0x10] sm:$0xf]
      %v1134 = vld [vmem:[%s5 + $0x14] sm:$0xf]
      %v1135 = vld [vmem:[%s5 + $0x18] sm:$0xf]
      %v1136 = vld [vmem:[%s5 + $0x1c] sm:$0xf]
      %v1137 = vld [vmem:[%s5 + $0x20] sm:$0xf]
      %v1138 = vld [vmem:[%s5 + $0x24] sm:$0xf]
      %v1139 = vld [vmem:[%s5 + $0x28] sm:$0xf]
      %v1140 = vld [vmem:[%s5 + $0x2c] sm:$0xf]
      %v1141 = vld [vmem:[%s5 + $0x30] sm:$0xf]
      %v1142 = vld [vmem:[%s5 + $0x34] sm:$0xf]
      %v1143 = vld [vmem:[%s5 + $0x38] sm:$0xf]
      %v1144 = vld [vmem:[%s5 + $0x3c] sm:$0xf]
      %v1161 = vunpack.c.l.b16 %v1129
      %v1162 = vunpack.c.l.b16 %v1130
      %v1163 = vunpack.c.l.b16 %v1131
      %v1164 = vunpack.c.l.b16 %v1132
      %v1165 = vunpack.c.l.b16 %v1133
      %v1166 = vunpack.c.l.b16 %v1134
      %v1167 = vunpack.c.l.b16 %v1135
      %v1168 = vunpack.c.l.b16 %v1136
      %v1169 = vunpack.c.l.b16 %v1137
      %v1170 = vunpack.c.l.b16 %v1138
      %v1171 = vunpack.c.l.b16 %v1139
      %v1172 = vunpack.c.l.b16 %v1140
      %v1173 = vunpack.c.l.b16 %v1141
      %v1174 = vunpack.c.l.b16 %v1142
      %v1175 = vunpack.c.l.b16 %v1143
      %v1176 = vunpack.c.l.b16 %v1144
      %v1177 = vpack.c.b16 %v1162, %v1161
      %v1178 = vpack.c.b16 %v1164, %v1163
      %v1179 = vpack.c.b16 %v1166, %v1165
      %v1180 = vpack.c.b16 %v1168, %v1167
      %v1181 = vpack.c.b16 %v1170, %v1169
      %v1182 = vpack.c.b16 %v1172, %v1171
      %v1183 = vpack.c.b16 %v1174, %v1173
      %v1184 = vpack.c.b16 %v1176, %v1175
      %1193 = vmatpush.bf16.msra.mxu0 %v1184
      %1194 = vmatpush.bf16.msra.mxu0 %v1183
      %1195 = vmatpush.bf16.msra.mxu0 %v1182
      %1196 = vmatpush.bf16.msra.mxu0 %v1181
      %1197 = vmatpush.bf16.msra.mxu0 %v1180
      %1198 = vmatpush.bf16.msra.mxu0 %v1179
      %1199 = vmatpush.bf16.msra.mxu0 %v1178
      %1200 = vmatpush.bf16.msra.mxu0 %v1177
      %1201 = vmatmul.bf16.gmra.mxu0 %v728
      %v1202 = vpop.f32.mrf.mxu0
      %v1203 = vadd.f32 0.0, %v1202
      %v1204 = vpop.f32.mrf.mxu0
      %1205 = vdwg.mxu0
      %v1206 = vadd.f32 %v1128, %v1203
      %v1207 = vld [vmem:[%s6] sm:$0x1]
      %v1209 = vperm.slane %v1207, 0
      %v1211 = vadd.f32 %v1206, %v1209
      %v1212 = vpack.c.bf16 %v1211, %v1211
      %1213 = vst [vmem:[%s385] sm:$0x3] %v1212
      %p1214 = scmp.lt.s32.totalorder %s22, 1
      %s1215 = scalar_select %p1214, %s22, 1
      %p1216 = scmp.lt.s32.totalorder %s23, 3
      %s1217 = scalar_select %p1216, %s23, 3
      %s1218 = smul.addr %s1215, 4
      %s1219 = sadd.s32 %s1217, %s1218
      %s1220 = smul.addr %s1219, 2
      %s1221 = scalar_lea.vmem %s7, %s1220
      // Predicated region
      $region49: #{mpn_forward.11} parent=47 // pred_check
        %p1222 = pneg %p222
      $region50: #{mpn_forward.11} parent=47 // pred_check_branch
        %1224 = sbr.rel (%p1222) target = $region52
      $region51: #{mpn_forward.11} parent=47 // pred_region
        _
      $region52: #{mpn_forward.11} parent=47 // pred_fallthru
        _
    $region48: #{mpn_forward.11} parent=5 // pred_fallthru
      _
    %p1225 = scmp.le.s32.totalorder 2, %s13
    // Predicated region
    $region53: #{mpn_forward.11} parent=5 // pred_check
      %p1226 = pneg %p1225
    $region54: #{mpn_forward.11} parent=5 // pred_check_branch
      %1228 = sbr.rel (%p1226) target = $region56
    $region55: #{mpn_forward.11} parent=5 // pred_region
      %s1229 = ssub.s32 %s13, 2
      // Predicated region
      $region57: #{mpn_forward.11} parent=55 // pred_check
        %p1230 = pneg %p228
      $region58: #{mpn_forward.11} parent=55 // pred_check_branch
        %1232 = sbr.rel (%p1230) target = $region60
      $region59: #{mpn_forward.11} parent=55 // pred_region
        %p1233 = scmp.lt.s32.totalorder %s24, 1
        %s1234 = scalar_select %p1233, %s24, 1
        %p1235 = scmp.lt.s32.totalorder %s25, 3
        %s1236 = scalar_select %p1235, %s25, 3
        %s1237 = smul.addr %s1234, 4
        %s1238 = sadd.s32 %s1236, %s1237
        %s1239 = smul.addr %s1238, 2
        %s1240 = scalar_lea.vmem %s7, %s1239
      $region60: #{mpn_forward.11} parent=55 // pred_fallthru
        _
    $region56: #{mpn_forward.11} parent=5 // pred_fallthru
      _
  $region6: #{mpn_forward.11} parent=0 // loop_footer
    %s17 = sadd.s32 1, %s13
  $region7: #{mpn_forward.11} parent=0 // loop_footer_branch
    %12 = sbr.rel target = $region3
  $region8: #{mpn_forward.11} parent=0 // loop_exit
    _

// kernel: mpn_forward.13
$region0: #{mpn_forward.13}
  #allocation0 [shape = 'u32[]', space=smem, size = 0x4, offset = 0x4, fixed_abs, tag = 'smem constant byte address 0x4 - core index']
  #allocation1 [shape = 'u32[72,128]{1,0:T(1,128)}', space=vmem, size = 0x9000, scoped, tag = 'internal scratch']
  %s0 = inlined_call_operand.vmem [shape: bf16[2,6,6,128], index: 0, kind: input, shape index: {}, may-alias: {0,1,2}]
  %s1 = inlined_call_operand.vmem [shape: bf16[2,6,6,128], index: 1, kind: input, shape index: {}, may-alias: {0,1,2}]
  %s2 = inlined_call_operand.vmem [shape: bf16[2,6,6,128], index: 2, kind: input, shape index: {}, may-alias: {0,1,2}]
  %s3 = inlined_call_operand.vmem [shape: bf16[3,3,128,128], index: 3, kind: input, shape index: {}]
  %s4 = inlined_call_operand.vmem [shape: f32[1,128], index: 4, kind: input, shape index: {}]
  %s5 = inlined_call_operand.vmem [shape: bf16[128,128], index: 5, kind: input, shape index: {}]
  %s6 = inlined_call_operand.vmem [shape: f32[1,128], index: 6, kind: input, shape index: {}]
  %s7 = inlined_call_operand.vmem [shape: bf16[2,4,4,128], index: 7, kind: output, shape index: {}]
  %s8 = sld [smem:[#allocation0]]
  $region61: #{mpn_forward.13} parent=0
    _
  %s10 = ssub.s32 1, %s8
  %s11 = scalar_select 0, %s10, %s8
  loop: start=0, step=1, limit=10
  $region2: #{mpn_forward.13} parent=0 // loop_pre_header
    _
  $region3: #{mpn_forward.13} parent=0 // loop_header
    %s13 = sphi 0, %s17
    %p14 = scmp.ge.s32.totalorder %s13, 10
    %s20 = sphi 0, %s32
    %s21 = sphi 0, %s28
    %s22 = sphi 0, %s20
    %s23 = sphi 0, %s21
    %s24 = sphi 0, %s22
    %s25 = sphi 0, %s23
    %s37 = sphi 0, %s39
    %s40 = sphi 0, %s37
    %s41 = sphi 0, %s40
    %s57 = sphi 0, %s41
    %s67 = sphi 0, %s69
    %s70 = sphi 0, %s67
    %s71 = sphi 0, %s70
    %s87 = sphi 0, %s71
    %s97 = sphi 0, %s99
    %s100 = sphi 0, %s97
    %s101 = sphi 0, %s100
    %s117 = sphi 0, %s101
    %s121 = sphi 0, %s121
    %s123 = sphi 0, %s121
    %s124 = sphi 0, %s123
    %s138 = sphi 0, %s124
    %s142 = sphi 0, %s142
    %s144 = sphi 0, %s142
    %s145 = sphi 0, %s144
    %s159 = sphi 0, %s145
    %s163 = sphi 0, %s163
    %s165 = sphi 0, %s163
    %s166 = sphi 0, %s165
    %s180 = sphi 0, %s166
    %s184 = sphi 0, %s184
    %s186 = sphi 0, %s184
    %s187 = sphi 0, %s186
    %s201 = sphi 0, %s187
    %s209 = sphi 0, %s211
    %s212 = sphi 0, %s209
    %s213 = sphi 0, %s212
    %s229 = sphi 0, %s213
  $region4: #{mpn_forward.13} parent=0 // loop_header_branch
    %16 = sbr.rel (%p14) target = $region8
  $region5: #{mpn_forward.13} parent=0 // loop_body
    %s18 = ssub.s32 %s13, 1
    %s19 = ssub.s32 %s13, 2
    %s26 = sadd.s32 1, %s21
    %p27 = scmp.ge.s32.totalorder %s26, 4
    %s28 = scalar_select %p27, 0, %s26
    %s29 = sadd.s32 1, %s20
    %s30 = scalar_select %p27, %s29, %s20
    %p31 = scmp.ge.s32.totalorder %s30, 2
    %s32 = scalar_select %p31, 0, %s30
    %s33 = ssub.s32 %s20, %s32
    %s34 = ssub.s32 %s21, %s28
    %s35 = sor.u32 %s33, %s34
    %p36 = scmp.eq.s32.totalorder %s35, 0
    %s38 = sadd.s32 %s37, 1
    %s39 = scalar_select %p36, %s37, %s38
    %p42 = pneg %p36
    %p43 = scmp.eq.s32.totalorder %s13, 7
    %p44 = por %p42, %p43
    %p45 = scmp.ne.s32.totalorder %s37, %s40
    %p46 = scmp.eq.s32.totalorder %s13, 0
    %p47 = por %p45, %p46
    %p48 = scmp.ne.s32.totalorder %s37, %s40
    %p49 = scmp.eq.s32.totalorder %s18, 7
    %p50 = por %p48, %p49
    %p51 = scmp.ne.s32.totalorder %s40, %s41
    %p52 = scmp.eq.s32.totalorder %s18, 0
    %p53 = por %p51, %p52
    %p54 = scmp.ne.s32.totalorder %s40, %s41
    %p55 = scmp.eq.s32.totalorder %s19, 7
    %p56 = por %p54, %p55
    %p58 = scmp.ne.s32.totalorder %s41, %s57
    %p59 = scmp.eq.s32.totalorder %s19, 0
    %p60 = por %p58, %p59
    %s61 = sadd.s32 %s21, 1
    %s62 = sadd.s32 %s28, 1
    %s63 = ssub.s32 %s20, %s32
    %s64 = ssub.s32 %s61, %s62
    %s65 = sor.u32 %s63, %s64
    %p66 = scmp.eq.s32.totalorder %s65, 0
    %s68 = sadd.s32 %s67, 1
    %s69 = scalar_select %p66, %s67, %s68
    %p72 = pneg %p66
    %p73 = scmp.eq.s32.totalorder %s13, 7
    %p74 = por %p72, %p73
    %p75 = scmp.ne.s32.totalorder %s67, %s70
    %p76 = scmp.eq.s32.totalorder %s13, 0
    %p77 = por %p75, %p76
    %p78 = scmp.ne.s32.totalorder %s67, %s70
    %p79 = scmp.eq.s32.totalorder %s18, 7
    %p80 = por %p78, %p79
    %p81 = scmp.ne.s32.totalorder %s70, %s71
    %p82 = scmp.eq.s32.totalorder %s18, 0
    %p83 = por %p81, %p82
    %p84 = scmp.ne.s32.totalorder %s70, %s71
    %p85 = scmp.eq.s32.totalorder %s19, 7
    %p86 = por %p84, %p85
    %p88 = scmp.ne.s32.totalorder %s71, %s87
    %p89 = scmp.eq.s32.totalorder %s19, 0
    %p90 = por %p88, %p89
    %s91 = sadd.s32 %s21, 2
    %s92 = sadd.s32 %s28, 2
    %s93 = ssub.s32 %s20, %s32
    %s94 = ssub.s32 %s91, %s92
    %s95 = sor.u32 %s93, %s94
    %p96 = scmp.eq.s32.totalorder %s95, 0
    %s98 = sadd.s32 %s97, 1
    %s99 = scalar_select %p96, %s97, %s98
    %p102 = pneg %p96
    %p103 = scmp.eq.s32.totalorder %s13, 7
    %p104 = por %p102, %p103
    %p105 = scmp.ne.s32.totalorder %s97, %s100
    %p106 = scmp.eq.s32.totalorder %s13, 0
    %p107 = por %p105, %p106
    %p108 = scmp.ne.s32.totalorder %s97, %s100
    %p109 = scmp.eq.s32.totalorder %s18, 7
    %p110 = por %p108, %p109
    %p111 = scmp.ne.s32.totalorder %s100, %s101
    %p112 = scmp.eq.s32.totalorder %s18, 0
    %p113 = por %p111, %p112
    %p114 = scmp.ne.s32.totalorder %s100, %s101
    %p115 = scmp.eq.s32.totalorder %s19, 7
    %p116 = por %p114, %p115
    %p118 = scmp.ne.s32.totalorder %s101, %s117
    %p119 = scmp.eq.s32.totalorder %s19, 0
    %p120 = por %p118, %p119
    %s122 = sadd.s32 %s121, 1
    %p125 = scmp.eq.s32.totalorder %s13, 7
    %p126 = scmp.ne.s32.totalorder %s121, %s123
    %p127 = scmp.eq.s32.totalorder %s13, 0
    %p128 = por %p126, %p127
    %p129 = scmp.ne.s32.totalorder %s121, %s123
    %p130 = scmp.eq.s32.totalorder %s18, 7
    %p131 = por %p129, %p130
    %p132 = scmp.ne.s32.totalorder %s123, %s124
    %p133 = scmp.eq.s32.totalorder %s18, 0
    %p134 = por %p132, %p133
    %p135 = scmp.ne.s32.totalorder %s123, %s124
    %p136 = scmp.eq.s32.totalorder %s19, 7
    %p137 = por %p135, %p136
    %p139 = scmp.ne.s32.totalorder %s124, %s138
    %p140 = scmp.eq.s32.totalorder %s19, 0
    %p141 = por %p139, %p140
    %s143 = sadd.s32 %s142, 1
    %p146 = scmp.eq.s32.totalorder %s13, 7
    %p147 = scmp.ne.s32.totalorder %s142, %s144
    %p148 = scmp.eq.s32.totalorder %s13, 0
    %p149 = por %p147, %p148
    %p150 = scmp.ne.s32.totalorder %s142, %s144
    %p151 = scmp.eq.s32.totalorder %s18, 7
    %p152 = por %p150, %p151
    %p153 = scmp.ne.s32.totalorder %s144, %s145
    %p154 = scmp.eq.s32.totalorder %s18, 0
    %p155 = por %p153, %p154
    %p156 = scmp.ne.s32.totalorder %s144, %s145
    %p157 = scmp.eq.s32.totalorder %s19, 7
    %p158 = por %p156, %p157
    %p160 = scmp.ne.s32.totalorder %s145, %s159
    %p161 = scmp.eq.s32.totalorder %s19, 0
    %p162 = por %p160, %p161
    %s164 = sadd.s32 %s163, 1
    %p167 = scmp.eq.s32.totalorder %s13, 7
    %p168 = scmp.ne.s32.totalorder %s163, %s165
    %p169 = scmp.eq.s32.totalorder %s13, 0
    %p170 = por %p168, %p169
    %p171 = scmp.ne.s32.totalorder %s163, %s165
    %p172 = scmp.eq.s32.totalorder %s18, 7
    %p173 = por %p171, %p172
    %p174 = scmp.ne.s32.totalorder %s165, %s166
    %p175 = scmp.eq.s32.totalorder %s18, 0
    %p176 = por %p174, %p175
    %p177 = scmp.ne.s32.totalorder %s165, %s166
    %p178 = scmp.eq.s32.totalorder %s19, 7
    %p179 = por %p177, %p178
    %p181 = scmp.ne.s32.totalorder %s166, %s180
    %p182 = scmp.eq.s32.totalorder %s19, 0
    %p183 = por %p181, %p182
    %s185 = sadd.s32 %s184, 1
    %p188 = scmp.eq.s32.totalorder %s13, 7
    %p189 = scmp.ne.s32.totalorder %s184, %s186
    %p190 = scmp.eq.s32.totalorder %s13, 0
    %p191 = por %p189, %p190
    %p192 = scmp.ne.s32.totalorder %s184, %s186
    %p193 = scmp.eq.s32.totalorder %s18, 7
    %p194 = por %p192, %p193
    %p195 = scmp.ne.s32.totalorder %s186, %s187
    %p196 = scmp.eq.s32.totalorder %s18, 0
    %p197 = por %p195, %p196
    %p198 = scmp.ne.s32.totalorder %s186, %s187
    %p199 = scmp.eq.s32.totalorder %s19, 7
    %p200 = por %p198, %p199
    %p202 = scmp.ne.s32.totalorder %s187, %s201
    %p203 = scmp.eq.s32.totalorder %s19, 0
    %p204 = por %p202, %p203
    %s205 = ssub.s32 %s20, %s32
    %s206 = ssub.s32 %s21, %s28
    %s207 = sor.u32 %s205, %s206
    %p208 = scmp.eq.s32.totalorder %s207, 0
    %s210 = sadd.s32 %s209, 1
    %s211 = scalar_select %p208, %s209, %s210
    %p214 = pneg %p208
    %p215 = scmp.eq.s32.totalorder %s13, 7
    %p216 = por %p214, %p215
    %p217 = scmp.ne.s32.totalorder %s209, %s212
    %p218 = scmp.eq.s32.totalorder %s13, 0
    %p219 = por %p217, %p218
    %p220 = scmp.ne.s32.totalorder %s209, %s212
    %p221 = scmp.eq.s32.totalorder %s18, 7
    %p222 = por %p220, %p221
    %p223 = scmp.ne.s32.totalorder %s212, %s213
    %p224 = scmp.eq.s32.totalorder %s18, 0
    %p225 = por %p223, %p224
    %p226 = scmp.ne.s32.totalorder %s212, %s213
    %p227 = scmp.eq.s32.totalorder %s19, 7
    %p228 = por %p226, %p227
    %p230 = scmp.ne.s32.totalorder %s213, %s229
    %p231 = scmp.eq.s32.totalorder %s19, 0
    %p232 = por %p230, %p231
    %p233 = scmp.le.s32.totalorder 1, %s13
    %p234 = scmp.lt.s32.totalorder %s13, 9
    %p235 = pnand %p233, %p234
    %p236 = pneg %p235
    // Predicated region
    $region9: #{mpn_forward.13} parent=5 // pred_check
      _
    $region10: #{mpn_forward.13} parent=5 // pred_check_branch
      %238 = sbr.rel (%p235) target = $region12
    $region11: #{mpn_forward.13} parent=5 // pred_region
      %s239 = ssub.s32 %s13, 1
      // Predicated region
      $region13: #{mpn_forward.13} parent=11 // pred_check
        %p240 = pneg %p134
      $region14: #{mpn_forward.13} parent=11 // pred_check_branch
        %242 = sbr.rel (%p240) target = $region16
      $region15: #{mpn_forward.13} parent=11 // pred_region
        _
      $region16: #{mpn_forward.13} parent=11 // pred_fallthru
        _
      // Predicated region
      $region17: #{mpn_forward.13} parent=11 // pred_check
        %p243 = pneg %p155
      $region18: #{mpn_forward.13} parent=11 // pred_check_branch
        %245 = sbr.rel (%p243) target = $region20
      $region19: #{mpn_forward.13} parent=11 // pred_region
        _
      $region20: #{mpn_forward.13} parent=11 // pred_fallthru
        _
      // Predicated region
      $region21: #{mpn_forward.13} parent=11 // pred_check
        %p246 = pneg %p176
      $region22: #{mpn_forward.13} parent=11 // pred_check_branch
        %248 = sbr.rel (%p246) target = $region24
      $region23: #{mpn_forward.13} parent=11 // pred_region
        _
      $region24: #{mpn_forward.13} parent=11 // pred_fallthru
        _
      // Predicated region
      $region25: #{mpn_forward.13} parent=11 // pred_check
        %p249 = pneg %p197
      $region26: #{mpn_forward.13} parent=11 // pred_check_branch
        %251 = sbr.rel (%p249) target = $region28
      $region27: #{mpn_forward.13} parent=11 // pred_region
        _
      $region28: #{mpn_forward.13} parent=11 // pred_fallthru
        _
    $region12: #{mpn_forward.13} parent=5 // pred_fallthru
      _
    %p252 = scmp.lt.s32.totalorder %s13, 8
    // Predicated region
    $region29: #{mpn_forward.13} parent=5 // pred_check
      %p253 = pneg %p252
    $region30: #{mpn_forward.13} parent=5 // pred_check_branch
      %255 = sbr.rel (%p253) target = $region32
    $region31: #{mpn_forward.13} parent=5 // pred_region
      // Predicated region
      $region33: #{mpn_forward.13} parent=31 // pred_check
        %p256 = pneg %p47
      $region34: #{mpn_forward.13} parent=31 // pred_check_branch
        %258 = sbr.rel (%p256) target = $region36
      $region35: #{mpn_forward.13} parent=31 // pred_region
        %p259 = scmp.lt.s32.totalorder %s20, 1
        %s260 = scalar_select %p259, %s20, 1
        %p261 = scmp.lt.s32.totalorder %s21, 5
        %s262 = scalar_select %p261, %s21, 5
        %s263 = smul.addr %s260, 6
        %s264 = sadd.s32 %s262, %s263
        %s265 = smul.addr %s264, 4
        %s266 = scalar_lea.vmem %s0, %s265
      $region36: #{mpn_forward.13} parent=31 // pred_fallthru
        _
      // Predicated region
      $region37: #{mpn_forward.13} parent=31 // pred_check
        %p267 = pneg %p77
      $region38: #{mpn_forward.13} parent=31 // pred_check_branch
        %269 = sbr.rel (%p267) target = $region40
      $region39: #{mpn_forward.13} parent=31 // pred_region
        %s270 = sadd.s32 %s21, 1
        %p271 = scmp.lt.s32.totalorder %s20, 1
        %s272 = scalar_select %p271, %s20, 1
        %p273 = scmp.lt.s32.totalorder %s270, 5
        %s274 = scalar_select %p273, %s270, 5
        %s275 = smul.addr %s272, 6
        %s276 = sadd.s32 %s274, %s275
        %s277 = smul.addr %s276, 4
        %s278 = scalar_lea.vmem %s1, %s277
        %s279 = sadd.s32 %s21, 1
      $region40: #{mpn_forward.13} parent=31 // pred_fallthru
        _
      // Predicated region
      $region41: #{mpn_forward.13} parent=31 // pred_check
        %p280 = pneg %p107
      $region42: #{mpn_forward.13} parent=31 // pred_check_branch
        %282 = sbr.rel (%p280) target = $region44
      $region43: #{mpn_forward.13} parent=31 // pred_region
        %s283 = sadd.s32 %s21, 2
        %p284 = scmp.lt.s32.totalorder %s20, 1
        %s285 = scalar_select %p284, %s20, 1
        %p286 = scmp.lt.s32.totalorder %s283, 5
        %s287 = scalar_select %p286, %s283, 5
        %s288 = smul.addr %s285, 6
        %s289 = sadd.s32 %s287, %s288
        %s290 = smul.addr %s289, 4
        %s291 = scalar_lea.vmem %s2, %s290
        %s292 = sadd.s32 %s21, 2
      $region44: #{mpn_forward.13} parent=31 // pred_fallthru
        _
    $region32: #{mpn_forward.13} parent=5 // pred_fallthru
      _
    %p293 = scmp.le.s32.totalorder 1, %s13
    %p294 = scmp.lt.s32.totalorder %s13, 9
    %p295 = pnand %p293, %p294
    %p296 = pneg %p295
    // Predicated region
    $region45: #{mpn_forward.13} parent=5 // pred_check
      _
    $region46: #{mpn_forward.13} parent=5 // pred_check_branch
      %298 = sbr.rel (%p295) target = $region48
    $region47: #{mpn_forward.13} parent=5 // pred_region
      %s299 = ssub.s32 %s13, 1
      %p300 = scmp.lt.s32.totalorder %s22, 1
      %s301 = scalar_select %p300, %s22, 1
      %p302 = scmp.lt.s32.totalorder %s23, 5
      %s303 = scalar_select %p302, %s23, 5
      %s304 = smul.addr %s301, 6
      %s305 = sadd.s32 %s303, %s304
      %s306 = smul.addr %s305, 4
      %s307 = scalar_lea.vmem %s0, %s306
      %p308 = pneg %p53
      %p309 = pneg %p50
      %s310 = sadd.s32 %s23, 1
      %p311 = scmp.lt.s32.totalorder %s22, 1
      %s312 = scalar_select %p311, %s22, 1
      %p313 = scmp.lt.s32.totalorder %s310, 5
      %s314 = scalar_select %p313, %s310, 5
      %s315 = smul.addr %s312, 6
      %s316 = sadd.s32 %s314, %s315
      %s317 = smul.addr %s316, 4
      %s318 = scalar_lea.vmem %s1, %s317
      %p319 = pneg %p83
      %p320 = pneg %p80
      %s321 = sadd.s32 %s23, 2
      %p322 = scmp.lt.s32.totalorder %s22, 1
      %s323 = scalar_select %p322, %s22, 1
      %p324 = scmp.lt.s32.totalorder %s321, 5
      %s325 = scalar_select %p324, %s321, 5
      %s326 = smul.addr %s323, 6
      %s327 = sadd.s32 %s325, %s326
      %s328 = smul.addr %s327, 4
      %s329 = scalar_lea.vmem %s2, %s328
      %p330 = pneg %p113
      %p331 = pneg %p110
      %p332 = pneg %p134
      %p333 = pneg %p131
      %p334 = pneg %p155
      %p335 = pneg %p152
      %p336 = pneg %p176
      %p337 = pneg %p173
      %p338 = pneg %p197
      %p339 = pneg %p194
      %p340 = pneg %p225
      %p341 = pneg %p222
      %p342 = scmp.lt.s32.totalorder %s22, 1
      %s343 = scalar_select %p342, %s22, 1
      %p344 = scmp.lt.s32.totalorder %s23, 3
      %s345 = scalar_select %p344, %s23, 3
      %s346 = smul.addr %s343, 4
      %s347 = sadd.s32 %s345, %s346
      %s348 = smul.addr %s347, 2
      %s349 = scalar_lea.vmem %s7, %s348
      %p350 = scmp.lt.s32.totalorder %s22, 1
      %s351 = scalar_select %p350, %s22, 1
      %p352 = scmp.lt.s32.totalorder %s23, 5
      %s353 = scalar_select %p352, %s23, 5
      %s354 = smul.addr %s351, 6
      %s355 = sadd.s32 %s353, %s354
      %s356 = smul.addr %s355, 4
      %s357 = scalar_lea.vmem %s0, %s356
      %s358 = sadd.s32 %s23, 1
      %p359 = scmp.lt.s32.totalorder %s22, 1
      %s360 = scalar_select %p359, %s22, 1
      %p361 = scmp.lt.s32.totalorder %s358, 5
      %s362 = scalar_select %p361, %s358, 5
      %s363 = smul.addr %s360, 6
      %s364 = sadd.s32 %s362, %s363
      %s365 = smul.addr %s364, 4
      %s366 = scalar_lea.vmem %s1, %s365
      %s367 = sadd.s32 %s23, 1
      %s368 = sadd.s32 %s23, 2
      %p369 = scmp.lt.s32.totalorder %s22, 1
      %s370 = scalar_select %p369, %s22, 1
      %p371 = scmp.lt.s32.totalorder %s368, 5
      %s372 = scalar_select %p371, %s368, 5
      %s373 = smul.addr %s370, 6
      %s374 = sadd.s32 %s372, %s373
      %s375 = smul.addr %s374, 4
      %s376 = scalar_lea.vmem %s2, %s375
      %s377 = sadd.s32 %s23, 2
      %p378 = scmp.lt.s32.totalorder %s22, 1
      %s379 = scalar_select %p378, %s22, 1
      %p380 = scmp.lt.s32.totalorder %s23, 3
      %s381 = scalar_select %p380, %s23, 3
      %s382 = smul.addr %s379, 4
      %s383 = sadd.s32 %s381, %s382
      %s384 = smul.addr %s383, 2
      %s385 = scalar_lea.vmem %s7, %s384
      %v386 = vld [vmem:[%s357] sm:$0x7]
      %v387 = vld [vmem:[%s3] sm:$0xf]
      %v388 = vld [vmem:[%s3 + $0x4] sm:$0xf]
      %v389 = vld [vmem:[%s3 + $0x8] sm:$0xf]
      %v390 = vld [vmem:[%s3 + $0xc] sm:$0xf]
      %v391 = vld [vmem:[%s3 + $0x10] sm:$0xf]
      %v392 = vld [vmem:[%s3 + $0x14] sm:$0xf]
      %v393 = vld [vmem:[%s3 + $0x18] sm:$0xf]
      %v394 = vld [vmem:[%s3 + $0x1c] sm:$0xf]
      %v395 = vld [vmem:[%s3 + $0x20] sm:$0xf]
      %v396 = vld [vmem:[%s3 + $0x24] sm:$0xf]
      %v397 = vld [vmem:[%s3 + $0x28] sm:$0xf]
      %v398 = vld [vmem:[%s3 + $0x2c] sm:$0xf]
      %v399 = vld [vmem:[%s3 + $0x30] sm:$0xf]
      %v400 = vld [vmem:[%s3 + $0x34] sm:$0xf]
      %v401 = vld [vmem:[%s3 + $0x38] sm:$0xf]
      %v402 = vld [vmem:[%s3 + $0x3c] sm:$0xf]
      %s403 = scalar_lea.vmem %s3, 64
      %v404 = vld [vmem:[%s403] sm:$0xf]
      %v405 = vld [vmem:[%s403 + $0x4] sm:$0xf]
      %v406 = vld [vmem:[%s403 + $0x8] sm:$0xf]
      %v407 = vld [vmem:[%s403 + $0xc] sm:$0xf]
      %v408 = vld [vmem:[%s403 + $0x10] sm:$0xf]
      %v409 = vld [vmem:[%s403 + $0x14] sm:$0xf]
      %v410 = vld [vmem:[%s403 + $0x18] sm:$0xf]
      %v411 = vld [vmem:[%s403 + $0x1c] sm:$0xf]
      %v412 = vld [vmem:[%s403 + $0x20] sm:$0xf]
      %v413 = vld [vmem:[%s403 + $0x24] sm:$0xf]
      %v414 = vld [vmem:[%s403 + $0x28] sm:$0xf]
      %v415 = vld [vmem:[%s403 + $0x2c] sm:$0xf]
      %v416 = vld [vmem:[%s403 + $0x30] sm:$0xf]
      %v417 = vld [vmem:[%s403 + $0x34] sm:$0xf]
      %v418 = vld [vmem:[%s403 + $0x38] sm:$0xf]
      %v419 = vld [vmem:[%s403 + $0x3c] sm:$0xf]
      %v421 = vunpack.c.l.b16 %v386
      %v422 = vpack.c.b16 %v421, %v421
      %v424 = vshrl.u32 %v422, 16
      %v426 = vshll.u32 %v422, 16
      %v428 = vrot.slane %v426, 1
      %v429 = vor.u32 %v424, %v428
      %v447 = vunpack.c.l.b16 %v404
      %v448 = vunpack.c.l.b16 %v405
      %v449 = vunpack.c.l.b16 %v406
      %v450 = vunpack.c.l.b16 %v407
      %v451 = vunpack.c.l.b16 %v408
      %v452 = vunpack.c.l.b16 %v409
      %v453 = vunpack.c.l.b16 %v410
      %v454 = vunpack.c.l.b16 %v411
      %v455 = vunpack.c.l.b16 %v412
      %v456 = vunpack.c.l.b16 %v413
      %v457 = vunpack.c.l.b16 %v414
      %v458 = vunpack.c.l.b16 %v415
      %v459 = vunpack.c.l.b16 %v416
      %v460 = vunpack.c.l.b16 %v417
      %v461 = vunpack.c.l.b16 %v418
      %v462 = vunpack.c.l.b16 %v419
      %v463 = vpack.c.b16 %v448, %v447
      %v464 = vpack.c.b16 %v450, %v449
      %v465 = vpack.c.b16 %v452, %v451
      %v466 = vpack.c.b16 %v454, %v453
      %v467 = vpack.c.b16 %v456, %v455
      %v468 = vpack.c.b16 %v458, %v457
      %v469 = vpack.c.b16 %v460, %v459
      %v470 = vpack.c.b16 %v462, %v461
      %479 = vmatpush.bf16.msra.mxu0 %v470
      %480 = vmatpush.bf16.msra.mxu0 %v469
      %481 = vmatpush.bf16.msra.mxu0 %v468
      %482 = vmatpush.bf16.msra.mxu0 %v467
      %483 = vmatpush.bf16.msra.mxu0 %v466
      %484 = vmatpush.bf16.msra.mxu0 %v465
      %485 = vmatpush.bf16.msra.mxu0 %v464
      %486 = vmatpush.bf16.msra.mxu0 %v463
      %487 = vmatmul.bf16.gmra.mxu0 %v429
      %v488 = vpop.f32.mrf.mxu0
      %v489 = vadd.f32 0.0, %v488
      %v490 = vpop.f32.mrf.mxu0
      %491 = vdwg.mxu0
      %v508 = vunpack.c.l.b16 %v387
      %v509 = vunpack.c.l.b16 %v388
      %v510 = vunpack.c.l.b16 %v389
      %v511 = vunpack.c.l.b16 %v390
      %v512 = vunpack.c.l.b16 %v391
      %v513 = vunpack.c.l.b16 %v392
      %v514 = vunpack.c.l.b16 %v393
      %v515 = vunpack.c.l.b16 %v394
      %v516 = vunpack.c.l.b16 %v395
      %v517 = vunpack.c.l.b16 %v396
      %v518 = vunpack.c.l.b16 %v397
      %v519 = vunpack.c.l.b16 %v398
      %v520 = vunpack.c.l.b16 %v399
      %v521 = vunpack.c.l.b16 %v400
      %v522 = vunpack.c.l.b16 %v401
      %v523 = vunpack.c.l.b16 %v402
      %v524 = vpack.c.b16 %v509, %v508
      %v525 = vpack.c.b16 %v511, %v510
      %v526 = vpack.c.b16 %v513, %v512
      %v527 = vpack.c.b16 %v515, %v514
      %v528 = vpack.c.b16 %v517, %v516
      %v529 = vpack.c.b16 %v519, %v518
      %v530 = vpack.c.b16 %v521, %v520
      %v531 = vpack.c.b16 %v523, %v522
      %540 = vmatpush.bf16.msra.mxu0 %v531
      %541 = vmatpush.bf16.msra.mxu0 %v530
      %542 = vmatpush.bf16.msra.mxu0 %v529
      %543 = vmatpush.bf16.msra.mxu0 %v528
      %544 = vmatpush.bf16.msra.mxu0 %v527
      %545 = vmatpush.bf16.msra.mxu0 %v526
      %546 = vmatpush.bf16.msra.mxu0 %v525
      %547 = vmatpush.bf16.msra.mxu0 %v524
      %548 = vmatmul.bf16.gmra.mxu0 %v386
      %v549 = vpop.f32.mrf.mxu0
      %v550 = vadd.f32 %v489, %v549
      %v551 = vpop.f32.mrf.mxu0
      %552 = vdwg.mxu0
      %s553 = scalar_lea.vmem %s3, 128
      %v554 = vld [vmem:[%s553] sm:$0xf]
      %v555 = vld [vmem:[%s553 + $0x4] sm:$0xf]
      %v556 = vld [vmem:[%s553 + $0x8] sm:$0xf]
      %v557 = vld [vmem:[%s553 + $0xc] sm:$0xf]
      %v558 = vld [vmem:[%s553 + $0x10] sm:$0xf]
      %v559 = vld [vmem:[%s553 + $0x14] sm:$0xf]
      %v560 = vld [vmem:[%s553 + $0x18] sm:$0xf]
      %v561 = vld [vmem:[%s553 + $0x1c] sm:$0xf]
      %v562 = vld [vmem:[%s553 + $0x20] sm:$0xf]
      %v563 = vld [vmem:[%s553 + $0x24] sm:$0xf]
      %v564 = vld [vmem:[%s553 + $0x28] sm:$0xf]
      %v565 = vld [vmem:[%s553 + $0x2c] sm:$0xf]
      %v566 = vld [vmem:[%s553 + $0x30] sm:$0xf]
      %v567 = vld [vmem:[%s553 + $0x34] sm:$0xf]
      %v568 = vld [vmem:[%s553 + $0x38] sm:$0xf]
      %v569 = vld [vmem:[%s553 + $0x3c] sm:$0xf]
      %v570 = vrot.slane %v422, 1
      %v588 = vunpack.c.l.b16 %v554
      %v589 = vunpack.c.l.b16 %v555
      %v590 = vunpack.c.l.b16 %v556
      %v591 = vunpack.c.l.b16 %v557
      %v592 = vunpack.c.l.b16 %v558
      %v593 = vunpack.c.l.b16 %v559
      %v594 = vunpack.c.l.b16 %v560
      %v595 = vunpack.c.l.b16 %v561
      %v596 = vunpack.c.l.b16 %v562
      %v597 = vunpack.c.l.b16 %v563
      %v598 = vunpack.c.l.b16 %v564
      %v599 = vunpack.c.l.b16 %v565
      %v600 = vunpack.c.l.b16 %v566
      %v601 = vunpack.c.l.b16 %v567
      %v602 = vunpack.c.l.b16 %v568
      %v603 = vunpack.c.l.b16 %v569
      %v604 = vpack.c.b16 %v589, %v588
      %v605 = vpack.c.b16 %v591, %v590
      %v606 = vpack.c.b16 %v593, %v592
      %v607 = vpack.c.b16 %v595, %v594
      %v608 = vpack.c.b16 %v597, %v596
      %v609 = vpack.c.b16 %v599, %v598
      %v610 = vpack.c.b16 %v601, %v600
      %v611 = vpack.c.b16 %v603, %v602
      %620 = vmatpush.bf16.msra.mxu0 %v611
      %621 = vmatpush.bf16.msra.mxu0 %v610
      %622 = vmatpush.bf16.msra.mxu0 %v609
      %623 = vmatpush.bf16.msra.mxu0 %v608
      %624 = vmatpush.bf16.msra.mxu0 %v607
      %625 = vmatpush.bf16.msra.mxu0 %v606
      %626 = vmatpush.bf16.msra.mxu0 %v605
      %627 = vmatpush.bf16.msra.mxu0 %v604
      %628 = vmatmul.bf16.gmra.mxu0 %v570
      %v629 = vpop.f32.mrf.mxu0
      %v630 = vadd.f32 0.0, %v629
      %v631 = vpop.f32.mrf.mxu0
      %632 = vdwg.mxu0
      %v633 = vadd.f32 %v550, %v630
      %v634 = vld [vmem:[%s366] sm:$0x7]
      %s635 = scalar_lea.vmem %s3, 192
      %v636 = vld [vmem:[%s635] sm:$0xf]
      %v637 = vld [vmem:[%s635 + $0x4] sm:$0xf]
      %v638 = vld [vmem:[%s635 + $0x8] sm:$0xf]
      %v639 = vld [vmem:[%s635 + $0xc] sm:$0xf]
      %v640 = vld [vmem:[%s635 + $0x10] sm:$0xf]
      %v641 = vld [vmem:[%s635 + $0x14] sm:$0xf]
      %v642 = vld [vmem:[%s635 + $0x18] sm:$0xf]
      %v643 = vld [vmem:[%s635 + $0x1c] sm:$0xf]
      %v644 = vld [vmem:[%s635 + $0x20] sm:$0xf]
      %v645 = vld [vmem:[%s635 + $0x24] sm:$0xf]
      %v646 = vld [vmem:[%s635 + $0x28] sm:$0xf]
      %v647 = vld [vmem:[%s635 + $0x2c] sm:$0xf]
      %v648 = vld [vmem:[%s635 + $0x30] sm:$0xf]
      %v649 = vld [vmem:[%s635 + $0x34] sm:$0xf]
      %v650 = vld [vmem:[%s635 + $0x38] sm:$0xf]
      %v651 = vld [vmem:[%s635 + $0x3c] sm:$0xf]
      %v668 = vunpack.c.l.b16 %v636
      %v669 = vunpack.c.l.b16 %v637
      %v670 = vunpack.c.l.b16 %v638
      %v671 = vunpack.c.l.b16 %v639
      %v672 = vunpack.c.l.b16 %v640
      %v673 = vunpack.c.l.b16 %v641
      %v674 = vunpack.c.l.b16 %v642
      %v675 = vunpack.c.l.b16 %v643
      %v676 = vunpack.c.l.b16 %v644
      %v677 = vunpack.c.l.b16 %v645
      %v678 = vunpack.c.l.b16 %v646
      %v679 = vunpack.c.l.b16 %v647
      %v680 = vunpack.c.l.b16 %v648
      %v681 = vunpack.c.l.b16 %v649
      %v682 = vunpack.c.l.b16 %v650
      %v683 = vunpack.c.l.b16 %v651
      %v684 = vpack.c.b16 %v669, %v668
      %v685 = vpack.c.b16 %v671, %v670
      %v686 = vpack.c.b16 %v673, %v672
      %v687 = vpack.c.b16 %v675, %v674
      %v688 = vpack.c.b16 %v677, %v676
      %v689 = vpack.c.b16 %v679, %v678
      %v690 = vpack.c.b16 %v681, %v680
      %v691 = vpack.c.b16 %v683, %v682
      %700 = vmatpush.bf16.msra.mxu0 %v691
      %701 = vmatpush.bf16.msra.mxu0 %v690
      %702 = vmatpush.bf16.msra.mxu0 %v689
      %703 = vmatpush.bf16.msra.mxu0 %v688
      %704 = vmatpush.bf16.msra.mxu0 %v687
      %705 = vmatpush.bf16.msra.mxu0 %v686
      %706 = vmatpush.bf16.msra.mxu0 %v685
      %707 = vmatpush.bf16.msra.mxu0 %v684
      %708 = vmatmul.bf16.gmra.mxu0 %v634
      %v709 = vpop.f32.mrf.mxu0
      %v710 = vadd.f32 0.0, %v709
      %v711 = vpop.f32.mrf.mxu0
      %712 = vdwg.mxu0
      %v713 = vadd.f32 %v633, %v710
      %s714 = scalar_lea.vmem %s3, 256
      %v715 = vld [vmem:[%s714] sm:$0xf]
      %v716 = vld [vmem:[%s714 + $0x4] sm:$0xf]
      %v717 = vld [vmem:[%s714 + $0x8] sm:$0xf]
      %v718 = vld [vmem:[%s714 + $0xc] sm:$0xf]
      %v719 = vld [vmem:[%s714 + $0x10] sm:$0xf]
      %v720 = vld [vmem:[%s714 + $0x14] sm:$0xf]
      %v721 = vld [vmem:[%s714 + $0x18] sm:$0xf]
      %v722 = vld [vmem:[%s714 + $0x1c] sm:$0xf]
      %v723 = vld [vmem:[%s714 + $0x20] sm:$0xf]
      %v724 = vld [vmem:[%s714 + $0x24] sm:$0xf]
      %v725 = vld [vmem:[%s714 + $0x28] sm:$0xf]
      %v726 = vld [vmem:[%s714 + $0x2c] sm:$0xf]
      %v727 = vld [vmem:[%s714 + $0x30] sm:$0xf]
      %v728 = vld [vmem:[%s714 + $0x34] sm:$0xf]
      %v729 = vld [vmem:[%s714 + $0x38] sm:$0xf]
      %v730 = vld [vmem:[%s714 + $0x3c] sm:$0xf]
      %v732 = vunpack.c.l.b16 %v634
      %v733 = vpack.c.b16 %v732, %v732
      %v735 = vshrl.u32 %v733, 16
      %v737 = vshll.u32 %v733, 16
      %v739 = vrot.slane %v737, 1
      %v740 = vor.u32 %v735, %v739
      %v758 = vunpack.c.l.b16 %v715
      %v759 = vunpack.c.l.b16 %v716
      %v760 = vunpack.c.l.b16 %v717
      %v761 = vunpack.c.l.b16 %v718
      %v762 = vunpack.c.l.b16 %v719
      %v763 = vunpack.c.l.b16 %v720
      %v764 = vunpack.c.l.b16 %v721
      %v765 = vunpack.c.l.b16 %v722
      %v766 = vunpack.c.l.b16 %v723
      %v767 = vunpack.c.l.b16 %v724
      %v768 = vunpack.c.l.b16 %v725
      %v769 = vunpack.c.l.b16 %v726
      %v770 = vunpack.c.l.b16 %v727
      %v771 = vunpack.c.l.b16 %v728
      %v772 = vunpack.c.l.b16 %v729
      %v773 = vunpack.c.l.b16 %v730
      %v774 = vpack.c.b16 %v759, %v758
      %v775 = vpack.c.b16 %v761, %v760
      %v776 = vpack.c.b16 %v763, %v762
      %v777 = vpack.c.b16 %v765, %v764
      %v778 = vpack.c.b16 %v767, %v766
      %v779 = vpack.c.b16 %v769, %v768
      %v780 = vpack.c.b16 %v771, %v770
      %v781 = vpack.c.b16 %v773, %v772
      %790 = vmatpush.bf16.msra.mxu0 %v781
      %791 = vmatpush.bf16.msra.mxu0 %v780
      %792 = vmatpush.bf16.msra.mxu0 %v779
      %793 = vmatpush.bf16.msra.mxu0 %v778
      %794 = vmatpush.bf16.msra.mxu0 %v777
      %795 = vmatpush.bf16.msra.mxu0 %v776
      %796 = vmatpush.bf16.msra.mxu0 %v775
      %797 = vmatpush.bf16.msra.mxu0 %v774
      %798 = vmatmul.bf16.gmra.mxu0 %v740
      %v799 = vpop.f32.mrf.mxu0
      %v800 = vadd.f32 0.0, %v799
      %v801 = vpop.f32.mrf.mxu0
      %802 = vdwg.mxu0
      %v803 = vadd.f32 %v713, %v800
      %s804 = scalar_lea.vmem %s3, 320
      %v805 = vld [vmem:[%s804] sm:$0xf]
      %v806 = vld [vmem:[%s804 + $0x4] sm:$0xf]
      %v807 = vld [vmem:[%s804 + $0x8] sm:$0xf]
      %v808 = vld [vmem:[%s804 + $0xc] sm:$0xf]
      %v809 = vld [vmem:[%s804 + $0x10] sm:$0xf]
      %v810 = vld [vmem:[%s804 + $0x14] sm:$0xf]
      %v811 = vld [vmem:[%s804 + $0x18] sm:$0xf]
      %v812 = vld [vmem:[%s804 + $0x1c] sm:$0xf]
      %v813 = vld [vmem:[%s804 + $0x20] sm:$0xf]
      %v814 = vld [vmem:[%s804 + $0x24] sm:$0xf]
      %v815 = vld [vmem:[%s804 + $0x28] sm:$0xf]
      %v816 = vld [vmem:[%s804 + $0x2c] sm:$0xf]
      %v817 = vld [vmem:[%s804 + $0x30] sm:$0xf]
      %v818 = vld [vmem:[%s804 + $0x34] sm:$0xf]
      %v819 = vld [vmem:[%s804 + $0x38] sm:$0xf]
      %v820 = vld [vmem:[%s804 + $0x3c] sm:$0xf]
      %v821 = vrot.slane %v733, 1
      %v839 = vunpack.c.l.b16 %v805
      %v840 = vunpack.c.l.b16 %v806
      %v841 = vunpack.c.l.b16 %v807
      %v842 = vunpack.c.l.b16 %v808
      %v843 = vunpack.c.l.b16 %v809
      %v844 = vunpack.c.l.b16 %v810
      %v845 = vunpack.c.l.b16 %v811
      %v846 = vunpack.c.l.b16 %v812
      %v847 = vunpack.c.l.b16 %v813
      %v848 = vunpack.c.l.b16 %v814
      %v849 = vunpack.c.l.b16 %v815
      %v850 = vunpack.c.l.b16 %v816
      %v851 = vunpack.c.l.b16 %v817
      %v852 = vunpack.c.l.b16 %v818
      %v853 = vunpack.c.l.b16 %v819
      %v854 = vunpack.c.l.b16 %v820
      %v855 = vpack.c.b16 %v840, %v839
      %v856 = vpack.c.b16 %v842, %v841
      %v857 = vpack.c.b16 %v844, %v843
      %v858 = vpack.c.b16 %v846, %v845
      %v859 = vpack.c.b16 %v848, %v847
      %v860 = vpack.c.b16 %v850, %v849
      %v861 = vpack.c.b16 %v852, %v851
      %v862 = vpack.c.b16 %v854, %v853
      %871 = vmatpush.bf16.msra.mxu0 %v862
      %872 = vmatpush.bf16.msra.mxu0 %v861
      %873 = vmatpush.bf16.msra.mxu0 %v860
      %874 = vmatpush.bf16.msra.mxu0 %v859
      %875 = vmatpush.bf16.msra.mxu0 %v858
      %876 = vmatpush.bf16.msra.mxu0 %v857
      %877 = vmatpush.bf16.msra.mxu0 %v856
      %878 = vmatpush.bf16.msra.mxu0 %v855
      %879 = vmatmul.bf16.gmra.mxu0 %v821
      %v880 = vpop.f32.mrf.mxu0
      %v881 = vadd.f32 0.0, %v880
      %v882 = vpop.f32.mrf.mxu0
      %883 = vdwg.mxu0
      %v884 = vadd.f32 %v803, %v881
      %v885 = vld [vmem:[%s376] sm:$0x7]
      %s886 = scalar_lea.vmem %s3, 384
      %v887 = vld [vmem:[%s886] sm:$0xf]
      %v888 = vld [vmem:[%s886 + $0x4] sm:$0xf]
      %v889 = vld [vmem:[%s886 + $0x8] sm:$0xf]
      %v890 = vld [vmem:[%s886 + $0xc] sm:$0xf]
      %v891 = vld [vmem:[%s886 + $0x10] sm:$0xf]
      %v892 = vld [vmem:[%s886 + $0x14] sm:$0xf]
      %v893 = vld [vmem:[%s886 + $0x18] sm:$0xf]
      %v894 = vld [vmem:[%s886 + $0x1c] sm:$0xf]
      %v895 = vld [vmem:[%s886 + $0x20] sm:$0xf]
      %v896 = vld [vmem:[%s886 + $0x24] sm:$0xf]
      %v897 = vld [vmem:[%s886 + $0x28] sm:$0xf]
      %v898 = vld [vmem:[%s886 + $0x2c] sm:$0xf]
      %v899 = vld [vmem:[%s886 + $0x30] sm:$0xf]
      %v900 = vld [vmem:[%s886 + $0x34] sm:$0xf]
      %v901 = vld [vmem:[%s886 + $0x38] sm:$0xf]
      %v902 = vld [vmem:[%s886 + $0x3c] sm:$0xf]
      %v919 = vunpack.c.l.b16 %v887
      %v920 = vunpack.c.l.b16 %v888
      %v921 = vunpack.c.l.b16 %v889
      %v922 = vunpack.c.l.b16 %v890
      %v923 = vunpack.c.l.b16 %v891
      %v924 = vunpack.c.l.b16 %v892
      %v925 = vunpack.c.l.b16 %v893
      %v926 = vunpack.c.l.b16 %v894
      %v927 = vunpack.c.l.b16 %v895
      %v928 = vunpack.c.l.b16 %v896
      %v929 = vunpack.c.l.b16 %v897
      %v930 = vunpack.c.l.b16 %v898
      %v931 = vunpack.c.l.b16 %v899
      %v932 = vunpack.c.l.b16 %v900
      %v933 = vunpack.c.l.b16 %v901
      %v934 = vunpack.c.l.b16 %v902
      %v935 = vpack.c.b16 %v920, %v919
      %v936 = vpack.c.b16 %v922, %v921
      %v937 = vpack.c.b16 %v924, %v923
      %v938 = vpack.c.b16 %v926, %v925
      %v939 = vpack.c.b16 %v928, %v927
      %v940 = vpack.c.b16 %v930, %v929
      %v941 = vpack.c.b16 %v932, %v931
      %v942 = vpack.c.b16 %v934, %v933
      %951 = vmatpush.bf16.msra.mxu0 %v942
      %952 = vmatpush.bf16.msra.mxu0 %v941
      %953 = vmatpush.bf16.msra.mxu0 %v940
      %954 = vmatpush.bf16.msra.mxu0 %v939
      %955 = vmatpush.bf16.msra.mxu0 %v938
      %956 = vmatpush.bf16.msra.mxu0 %v937
      %957 = vmatpush.bf16.msra.mxu0 %v936
      %958 = vmatpush.bf16.msra.mxu0 %v935
      %959 = vmatmul.bf16.gmra.mxu0 %v885
      %v960 = vpop.f32.mrf.mxu0
      %v961 = vadd.f32 0.0, %v960
      %v962 = vpop.f32.mrf.mxu0
      %963 = vdwg.mxu0
      %v964 = vadd.f32 %v884, %v961
      %s965 = scalar_lea.vmem %s3, 448
      %v966 = vld [vmem:[%s965] sm:$0xf]
      %v967 = vld [vmem:[%s965 + $0x4] sm:$0xf]
      %v968 = vld [vmem:[%s965 + $0x8] sm:$0xf]
      %v969 = vld [vmem:[%s965 + $0xc] sm:$0xf]
      %v970 = vld [vmem:[%s965 + $0x10] sm:$0xf]
      %v971 = vld [vmem:[%s965 + $0x14] sm:$0xf]
      %v972 = vld [vmem:[%s965 + $0x18] sm:$0xf]
      %v973 = vld [vmem:[%s965 + $0x1c] sm:$0xf]
      %v974 = vld [vmem:[%s965 + $0x20] sm:$0xf]
      %v975 = vld [vmem:[%s965 + $0x24] sm:$0xf]
      %v976 = vld [vmem:[%s965 + $0x28] sm:$0xf]
      %v977 = vld [vmem:[%s965 + $0x2c] sm:$0xf]
      %v978 = vld [vmem:[%s965 + $0x30] sm:$0xf]
      %v979 = vld [vmem:[%s965 + $0x34] sm:$0xf]
      %v980 = vld [vmem:[%s965 + $0x38] sm:$0xf]
      %v981 = vld [vmem:[%s965 + $0x3c] sm:$0xf]
      %v983 = vunpack.c.l.b16 %v885
      %v984 = vpack.c.b16 %v983, %v983
      %v986 = vshrl.u32 %v984, 16
      %v988 = vshll.u32 %v984, 16
      %v990 = vrot.slane %v988, 1
      %v991 = vor.u32 %v986, %v990
      %v1009 = vunpack.c.l.b16 %v966
      %v1010 = vunpack.c.l.b16 %v967
      %v1011 = vunpack.c.l.b16 %v968
      %v1012 = vunpack.c.l.b16 %v969
      %v1013 = vunpack.c.l.b16 %v970
      %v1014 = vunpack.c.l.b16 %v971
      %v1015 = vunpack.c.l.b16 %v972
      %v1016 = vunpack.c.l.b16 %v973
      %v1017 = vunpack.c.l.b16 %v974
      %v1018 = vunpack.c.l.b16 %v975
      %v1019 = vunpack.c.l.b16 %v976
      %v1020 = vunpack.c.l.b16 %v977
      %v1021 = vunpack.c.l.b16 %v978
      %v1022 = vunpack.c.l.b16 %v979
      %v1023 = vunpack.c.l.b16 %v980
      %v1024 = vunpack.c.l.b16 %v981
      %v1025 = vpack.c.b16 %v1010, %v1009
      %v1026 = vpack.c.b16 %v1012, %v1011
      %v1027 = vpack.c.b16 %v1014, %v1013
      %v1028 = vpack.c.b16 %v1016, %v1015
      %v1029 = vpack.c.b16 %v1018, %v1017
      %v1030 = vpack.c.b16 %v1020, %v1019
      %v1031 = vpack.c.b16 %v1022, %v1021
      %v1032 = vpack.c.b16 %v1024, %v1023
      %1041 = vmatpush.bf16.msra.mxu0 %v1032
      %1042 = vmatpush.bf16.msra.mxu0 %v1031
      %1043 = vmatpush.bf16.msra.mxu0 %v1030
      %1044 = vmatpush.bf16.msra.mxu0 %v1029
      %1045 = vmatpush.bf16.msra.mxu0 %v1028
      %1046 = vmatpush.bf16.msra.mxu0 %v1027
      %1047 = vmatpush.bf16.msra.mxu0 %v1026
      %1048 = vmatpush.bf16.msra.mxu0 %v1025
      %1049 = vmatmul.bf16.gmra.mxu0 %v991
      %v1050 = vpop.f32.mrf.mxu0
      %v1051 = vadd.f32 0.0, %v1050
      %v1052 = vpop.f32.mrf.mxu0
      %1053 = vdwg.mxu0
      %v1054 = vadd.f32 %v964, %v1051
      %s1055 = scalar_lea.vmem %s3, 512
      %v1056 = vld [vmem:[%s1055] sm:$0xf]
      %v1057 = vld [vmem:[%s1055 + $0x4] sm:$0xf]
      %v1058 = vld [vmem:[%s1055 + $0x8] sm:$0xf]
      %v1059 = vld [vmem:[%s1055 + $0xc] sm:$0xf]
      %v1060 = vld [vmem:[%s1055 + $0x10] sm:$0xf]
      %v1061 = vld [vmem:[%s1055 + $0x14] sm:$0xf]
      %v1062 = vld [vmem:[%s1055 + $0x18] sm:$0xf]
      %v1063 = vld [vmem:[%s1055 + $0x1c] sm:$0xf]
      %v1064 = vld [vmem:[%s1055 + $0x20] sm:$0xf]
      %v1065 = vld [vmem:[%s1055 + $0x24] sm:$0xf]
      %v1066 = vld [vmem:[%s1055 + $0x28] sm:$0xf]
      %v1067 = vld [vmem:[%s1055 + $0x2c] sm:$0xf]
      %v1068 = vld [vmem:[%s1055 + $0x30] sm:$0xf]
      %v1069 = vld [vmem:[%s1055 + $0x34] sm:$0xf]
      %v1070 = vld [vmem:[%s1055 + $0x38] sm:$0xf]
      %v1071 = vld [vmem:[%s1055 + $0x3c] sm:$0xf]
      %v1072 = vrot.slane %v984, 1
      %v1090 = vunpack.c.l.b16 %v1056
      %v1091 = vunpack.c.l.b16 %v1057
      %v1092 = vunpack.c.l.b16 %v1058
      %v1093 = vunpack.c.l.b16 %v1059
      %v1094 = vunpack.c.l.b16 %v1060
      %v1095 = vunpack.c.l.b16 %v1061
      %v1096 = vunpack.c.l.b16 %v1062
      %v1097 = vunpack.c.l.b16 %v1063
      %v1098 = vunpack.c.l.b16 %v1064
      %v1099 = vunpack.c.l.b16 %v1065
      %v1100 = vunpack.c.l.b16 %v1066
      %v1101 = vunpack.c.l.b16 %v1067
      %v1102 = vunpack.c.l.b16 %v1068
      %v1103 = vunpack.c.l.b16 %v1069
      %v1104 = vunpack.c.l.b16 %v1070
      %v1105 = vunpack.c.l.b16 %v1071
      %v1106 = vpack.c.b16 %v1091, %v1090
      %v1107 = vpack.c.b16 %v1093, %v1092
      %v1108 = vpack.c.b16 %v1095, %v1094
      %v1109 = vpack.c.b16 %v1097, %v1096
      %v1110 = vpack.c.b16 %v1099, %v1098
      %v1111 = vpack.c.b16 %v1101, %v1100
      %v1112 = vpack.c.b16 %v1103, %v1102
      %v1113 = vpack.c.b16 %v1105, %v1104
      %1122 = vmatpush.bf16.msra.mxu0 %v1113
      %1123 = vmatpush.bf16.msra.mxu0 %v1112
      %1124 = vmatpush.bf16.msra.mxu0 %v1111
      %1125 = vmatpush.bf16.msra.mxu0 %v1110
      %1126 = vmatpush.bf16.msra.mxu0 %v1109
      %1127 = vmatpush.bf16.msra.mxu0 %v1108
      %1128 = vmatpush.bf16.msra.mxu0 %v1107
      %1129 = vmatpush.bf16.msra.mxu0 %v1106
      %1130 = vmatmul.bf16.gmra.mxu0 %v1072
      %v1131 = vpop.f32.mrf.mxu0
      %v1132 = vadd.f32 0.0, %v1131
      %v1133 = vpop.f32.mrf.mxu0
      %1134 = vdwg.mxu0
      %v1135 = vadd.f32 %v1054, %v1132
      %v1136 = vld [vmem:[%s4] sm:$0x1]
      %v1138 = vperm.slane %v1136, 0
      %v1140 = vadd.f32 %v1135, %v1138
      %vm1141 = vcmp.gt.f32.partialorder %v1140, 0.0
      %v1142 = vmin.f32 %v1140, 0.0
      %v1143 = vmul.f32 %v1142, 1.442695
      %v1144 = vpow.pop %v1143
      %v1145 = vsub.f32 %v1144, 1.0
      %v1146 = vsel %vm1141, %v1140, %v1145
      %v1147 = vld [vmem:[%s5] sm:$0xf]
      %v1148 = vld [vmem:[%s5 + $0x4] sm:$0xf]
      %v1149 = vld [vmem:[%s5 + $0x8] sm:$0xf]
      %v1150 = vld [vmem:[%s5 + $0xc] sm:$0xf]
      %v1151 = vld [vmem:[%s5 + $0x10] sm:$0xf]
      %v1152 = vld [vmem:[%s5 + $0x14] sm:$0xf]
      %v1153 = vld [vmem:[%s5 + $0x18] sm:$0xf]
      %v1154 = vld [vmem:[%s5 + $0x1c] sm:$0xf]
      %v1155 = vld [vmem:[%s5 + $0x20] sm:$0xf]
      %v1156 = vld [vmem:[%s5 + $0x24] sm:$0xf]
      %v1157 = vld [vmem:[%s5 + $0x28] sm:$0xf]
      %v1158 = vld [vmem:[%s5 + $0x2c] sm:$0xf]
      %v1159 = vld [vmem:[%s5 + $0x30] sm:$0xf]
      %v1160 = vld [vmem:[%s5 + $0x34] sm:$0xf]
      %v1161 = vld [vmem:[%s5 + $0x38] sm:$0xf]
      %v1162 = vld [vmem:[%s5 + $0x3c] sm:$0xf]
      %v1179 = vunpack.c.l.b16 %v1147
      %v1180 = vunpack.c.l.b16 %v1148
      %v1181 = vunpack.c.l.b16 %v1149
      %v1182 = vunpack.c.l.b16 %v1150
      %v1183 = vunpack.c.l.b16 %v1151
      %v1184 = vunpack.c.l.b16 %v1152
      %v1185 = vunpack.c.l.b16 %v1153
      %v1186 = vunpack.c.l.b16 %v1154
      %v1187 = vunpack.c.l.b16 %v1155
      %v1188 = vunpack.c.l.b16 %v1156
      %v1189 = vunpack.c.l.b16 %v1157
      %v1190 = vunpack.c.l.b16 %v1158
      %v1191 = vunpack.c.l.b16 %v1159
      %v1192 = vunpack.c.l.b16 %v1160
      %v1193 = vunpack.c.l.b16 %v1161
      %v1194 = vunpack.c.l.b16 %v1162
      %v1195 = vpack.c.b16 %v1180, %v1179
      %v1196 = vpack.c.b16 %v1182, %v1181
      %v1197 = vpack.c.b16 %v1184, %v1183
      %v1198 = vpack.c.b16 %v1186, %v1185
      %v1199 = vpack.c.b16 %v1188, %v1187
      %v1200 = vpack.c.b16 %v1190, %v1189
      %v1201 = vpack.c.b16 %v1192, %v1191
      %v1202 = vpack.c.b16 %v1194, %v1193
      %1211 = vmatpush.bf16.msra.mxu0 %v1202
      %1212 = vmatpush.bf16.msra.mxu0 %v1201
      %1213 = vmatpush.bf16.msra.mxu0 %v1200
      %1214 = vmatpush.bf16.msra.mxu0 %v1199
      %1215 = vmatpush.bf16.msra.mxu0 %v1198
      %1216 = vmatpush.bf16.msra.mxu0 %v1197
      %1217 = vmatpush.bf16.msra.mxu0 %v1196
      %1218 = vmatpush.bf16.msra.mxu0 %v1195
      %1219 = vmatmul.bf16.gmra.mxu0 %v740
      %v1220 = vpop.f32.mrf.mxu0
      %v1221 = vadd.f32 0.0, %v1220
      %v1222 = vpop.f32.mrf.mxu0
      %1223 = vdwg.mxu0
      %v1224 = vadd.f32 %v1146, %v1221
      %v1225 = vld [vmem:[%s6] sm:$0x1]
      %v1227 = vperm.slane %v1225, 0
      %v1229 = vadd.f32 %v1224, %v1227
      %v1230 = vpack.c.bf16 %v1229, %v1229
      %1231 = vst [vmem:[%s385] sm:$0x3] %v1230
      %p1232 = scmp.lt.s32.totalorder %s22, 1
      %s1233 = scalar_select %p1232, %s22, 1
      %p1234 = scmp.lt.s32.totalorder %s23, 3
      %s1235 = scalar_select %p1234, %s23, 3
      %s1236 = smul.addr %s1233, 4
      %s1237 = sadd.s32 %s1235, %s1236
      %s1238 = smul.addr %s1237, 2
      %s1239 = scalar_lea.vmem %s7, %s1238
      // Predicated region
      $region49: #{mpn_forward.13} parent=47 // pred_check
        %p1240 = pneg %p222
      $region50: #{mpn_forward.13} parent=47 // pred_check_branch
        %1242 = sbr.rel (%p1240) target = $region52
      $region51: #{mpn_forward.13} parent=47 // pred_region
        _
      $region52: #{mpn_forward.13} parent=47 // pred_fallthru
        _
    $region48: #{mpn_forward.13} parent=5 // pred_fallthru
      _
    %p1243 = scmp.le.s32.totalorder 2, %s13
    // Predicated region
    $region53: #{mpn_forward.13} parent=5 // pred_check
      %p1244 = pneg %p1243
    $region54: #{mpn_forward.13} parent=5 // pred_check_branch
      %1246 = sbr.rel (%p1244) target = $region56
    $region55: #{mpn_forward.13} parent=5 // pred_region
      %s1247 = ssub.s32 %s13, 2
      // Predicated region
      $region57: #{mpn_forward.13} parent=55 // pred_check
        %p1248 = pneg %p228
      $region58: #{mpn_forward.13} parent=55 // pred_check_branch
        %1250 = sbr.rel (%p1248) target = $region60
      $region59: #{mpn_forward.13} parent=55 // pred_region
        %p1251 = scmp.lt.s32.totalorder %s24, 1
        %s1252 = scalar_select %p1251, %s24, 1
        %p1253 = scmp.lt.s32.totalorder %s25, 3
        %s1254 = scalar_select %p1253, %s25, 3
        %s1255 = smul.addr %s1252, 4
        %s1256 = sadd.s32 %s1254, %s1255
        %s1257 = smul.addr %s1256, 2
        %s1258 = scalar_lea.vmem %s7, %s1257
      $region60: #{mpn_forward.13} parent=55 // pred_fallthru
        _
    $region56: #{mpn_forward.13} parent=5 // pred_fallthru
      _
  $region6: #{mpn_forward.13} parent=0 // loop_footer
    %s17 = sadd.s32 1, %s13
  $region7: #{mpn_forward.13} parent=0 // loop_footer_branch
    %12 = sbr.rel target = $region3
  $region8: #{mpn_forward.13} parent=0 // loop_exit
    _

// kernel: mpn_forward.12
$region0: #{mpn_forward.12}
  #allocation0 [shape = 'u32[]', space=smem, size = 0x4, offset = 0x4, fixed_abs, tag = 'smem constant byte address 0x4 - core index']
  #allocation1 [shape = 'u32[72,128]{1,0:T(1,128)}', space=vmem, size = 0x9000, scoped, tag = 'internal scratch']
  %s0 = inlined_call_operand.vmem [shape: bf16[2,12,12,128], index: 0, kind: input, shape index: {}, may-alias: {0,1,2}]
  %s1 = inlined_call_operand.vmem [shape: bf16[2,12,12,128], index: 1, kind: input, shape index: {}, may-alias: {0,1,2}]
  %s2 = inlined_call_operand.vmem [shape: bf16[2,12,12,128], index: 2, kind: input, shape index: {}, may-alias: {0,1,2}]
  %s3 = inlined_call_operand.vmem [shape: bf16[3,3,128,128], index: 3, kind: input, shape index: {}]
  %s4 = inlined_call_operand.vmem [shape: f32[1,128], index: 4, kind: input, shape index: {}]
  %s5 = inlined_call_operand.vmem [shape: bf16[128,128], index: 5, kind: input, shape index: {}]
  %s6 = inlined_call_operand.vmem [shape: f32[1,128], index: 6, kind: input, shape index: {}]
  %s7 = inlined_call_operand.vmem [shape: bf16[2,4,4,128], index: 7, kind: output, shape index: {}]
  %s8 = sld [smem:[#allocation0]]
  $region61: #{mpn_forward.12} parent=0
    _
  %s10 = ssub.s32 1, %s8
  %s11 = scalar_select 0, %s10, %s8
  loop: start=0, step=1, limit=10
  $region2: #{mpn_forward.12} parent=0 // loop_pre_header
    _
  $region3: #{mpn_forward.12} parent=0 // loop_header
    %s13 = sphi 0, %s17
    %p14 = scmp.ge.s32.totalorder %s13, 10
    %s20 = sphi 0, %s32
    %s21 = sphi 0, %s28
    %s22 = sphi 0, %s20
    %s23 = sphi 0, %s21
    %s24 = sphi 0, %s22
    %s25 = sphi 0, %s23
    %s37 = sphi 0, %s39
    %s40 = sphi 0, %s37
    %s41 = sphi 0, %s40
    %s57 = sphi 0, %s41
    %s67 = sphi 0, %s69
    %s70 = sphi 0, %s67
    %s71 = sphi 0, %s70
    %s87 = sphi 0, %s71
    %s97 = sphi 0, %s99
    %s100 = sphi 0, %s97
    %s101 = sphi 0, %s100
    %s117 = sphi 0, %s101
    %s121 = sphi 0, %s121
    %s123 = sphi 0, %s121
    %s124 = sphi 0, %s123
    %s138 = sphi 0, %s124
    %s142 = sphi 0, %s142
    %s144 = sphi 0, %s142
    %s145 = sphi 0, %s144
    %s159 = sphi 0, %s145
    %s163 = sphi 0, %s163
    %s165 = sphi 0, %s163
    %s166 = sphi 0, %s165
    %s180 = sphi 0, %s166
    %s184 = sphi 0, %s184
    %s186 = sphi 0, %s184
    %s187 = sphi 0, %s186
    %s201 = sphi 0, %s187
    %s209 = sphi 0, %s211
    %s212 = sphi 0, %s209
    %s213 = sphi 0, %s212
    %s229 = sphi 0, %s213
  $region4: #{mpn_forward.12} parent=0 // loop_header_branch
    %16 = sbr.rel (%p14) target = $region8
  $region5: #{mpn_forward.12} parent=0 // loop_body
    %s18 = ssub.s32 %s13, 1
    %s19 = ssub.s32 %s13, 2
    %s26 = sadd.s32 1, %s21
    %p27 = scmp.ge.s32.totalorder %s26, 4
    %s28 = scalar_select %p27, 0, %s26
    %s29 = sadd.s32 1, %s20
    %s30 = scalar_select %p27, %s29, %s20
    %p31 = scmp.ge.s32.totalorder %s30, 2
    %s32 = scalar_select %p31, 0, %s30
    %s33 = ssub.s32 %s20, %s32
    %s34 = ssub.s32 %s21, %s28
    %s35 = sor.u32 %s33, %s34
    %p36 = scmp.eq.s32.totalorder %s35, 0
    %s38 = sadd.s32 %s37, 1
    %s39 = scalar_select %p36, %s37, %s38
    %p42 = pneg %p36
    %p43 = scmp.eq.s32.totalorder %s13, 7
    %p44 = por %p42, %p43
    %p45 = scmp.ne.s32.totalorder %s37, %s40
    %p46 = scmp.eq.s32.totalorder %s13, 0
    %p47 = por %p45, %p46
    %p48 = scmp.ne.s32.totalorder %s37, %s40
    %p49 = scmp.eq.s32.totalorder %s18, 7
    %p50 = por %p48, %p49
    %p51 = scmp.ne.s32.totalorder %s40, %s41
    %p52 = scmp.eq.s32.totalorder %s18, 0
    %p53 = por %p51, %p52
    %p54 = scmp.ne.s32.totalorder %s40, %s41
    %p55 = scmp.eq.s32.totalorder %s19, 7
    %p56 = por %p54, %p55
    %p58 = scmp.ne.s32.totalorder %s41, %s57
    %p59 = scmp.eq.s32.totalorder %s19, 0
    %p60 = por %p58, %p59
    %s61 = sadd.s32 %s21, 4
    %s62 = sadd.s32 %s28, 4
    %s63 = ssub.s32 %s20, %s32
    %s64 = ssub.s32 %s61, %s62
    %s65 = sor.u32 %s63, %s64
    %p66 = scmp.eq.s32.totalorder %s65, 0
    %s68 = sadd.s32 %s67, 1
    %s69 = scalar_select %p66, %s67, %s68
    %p72 = pneg %p66
    %p73 = scmp.eq.s32.totalorder %s13, 7
    %p74 = por %p72, %p73
    %p75 = scmp.ne.s32.totalorder %s67, %s70
    %p76 = scmp.eq.s32.totalorder %s13, 0
    %p77 = por %p75, %p76
    %p78 = scmp.ne.s32.totalorder %s67, %s70
    %p79 = scmp.eq.s32.totalorder %s18, 7
    %p80 = por %p78, %p79
    %p81 = scmp.ne.s32.totalorder %s70, %s71
    %p82 = scmp.eq.s32.totalorder %s18, 0
    %p83 = por %p81, %p82
    %p84 = scmp.ne.s32.totalorder %s70, %s71
    %p85 = scmp.eq.s32.totalorder %s19, 7
    %p86 = por %p84, %p85
    %p88 = scmp.ne.s32.totalorder %s71, %s87
    %p89 = scmp.eq.s32.totalorder %s19, 0
    %p90 = por %p88, %p89
    %s91 = sadd.s32 %s21, 8
    %s92 = sadd.s32 %s28, 8
    %s93 = ssub.s32 %s20, %s32
    %s94 = ssub.s32 %s91, %s92
    %s95 = sor.u32 %s93, %s94
    %p96 = scmp.eq.s32.totalorder %s95, 0
    %s98 = sadd.s32 %s97, 1
    %s99 = scalar_select %p96, %s97, %s98
    %p102 = pneg %p96
    %p103 = scmp.eq.s32.totalorder %s13, 7
    %p104 = por %p102, %p103
    %p105 = scmp.ne.s32.totalorder %s97, %s100
    %p106 = scmp.eq.s32.totalorder %s13, 0
    %p107 = por %p105, %p106
    %p108 = scmp.ne.s32.totalorder %s97, %s100
    %p109 = scmp.eq.s32.totalorder %s18, 7
    %p110 = por %p108, %p109
    %p111 = scmp.ne.s32.totalorder %s100, %s101
    %p112 = scmp.eq.s32.totalorder %s18, 0
    %p113 = por %p111, %p112
    %p114 = scmp.ne.s32.totalorder %s100, %s101
    %p115 = scmp.eq.s32.totalorder %s19, 7
    %p116 = por %p114, %p115
    %p118 = scmp.ne.s32.totalorder %s101, %s117
    %p119 = scmp.eq.s32.totalorder %s19, 0
    %p120 = por %p118, %p119
    %s122 = sadd.s32 %s121, 1
    %p125 = scmp.eq.s32.totalorder %s13, 7
    %p126 = scmp.ne.s32.totalorder %s121, %s123
    %p127 = scmp.eq.s32.totalorder %s13, 0
    %p128 = por %p126, %p127
    %p129 = scmp.ne.s32.totalorder %s121, %s123
    %p130 = scmp.eq.s32.totalorder %s18, 7
    %p131 = por %p129, %p130
    %p132 = scmp.ne.s32.totalorder %s123, %s124
    %p133 = scmp.eq.s32.totalorder %s18, 0
    %p134 = por %p132, %p133
    %p135 = scmp.ne.s32.totalorder %s123, %s124
    %p136 = scmp.eq.s32.totalorder %s19, 7
    %p137 = por %p135, %p136
    %p139 = scmp.ne.s32.totalorder %s124, %s138
    %p140 = scmp.eq.s32.totalorder %s19, 0
    %p141 = por %p139, %p140
    %s143 = sadd.s32 %s142, 1
    %p146 = scmp.eq.s32.totalorder %s13, 7
    %p147 = scmp.ne.s32.totalorder %s142, %s144
    %p148 = scmp.eq.s32.totalorder %s13, 0
    %p149 = por %p147, %p148
    %p150 = scmp.ne.s32.totalorder %s142, %s144
    %p151 = scmp.eq.s32.totalorder %s18, 7
    %p152 = por %p150, %p151
    %p153 = scmp.ne.s32.totalorder %s144, %s145
    %p154 = scmp.eq.s32.totalorder %s18, 0
    %p155 = por %p153, %p154
    %p156 = scmp.ne.s32.totalorder %s144, %s145
    %p157 = scmp.eq.s32.totalorder %s19, 7
    %p158 = por %p156, %p157
    %p160 = scmp.ne.s32.totalorder %s145, %s159
    %p161 = scmp.eq.s32.totalorder %s19, 0
    %p162 = por %p160, %p161
    %s164 = sadd.s32 %s163, 1
    %p167 = scmp.eq.s32.totalorder %s13, 7
    %p168 = scmp.ne.s32.totalorder %s163, %s165
    %p169 = scmp.eq.s32.totalorder %s13, 0
    %p170 = por %p168, %p169
    %p171 = scmp.ne.s32.totalorder %s163, %s165
    %p172 = scmp.eq.s32.totalorder %s18, 7
    %p173 = por %p171, %p172
    %p174 = scmp.ne.s32.totalorder %s165, %s166
    %p175 = scmp.eq.s32.totalorder %s18, 0
    %p176 = por %p174, %p175
    %p177 = scmp.ne.s32.totalorder %s165, %s166
    %p178 = scmp.eq.s32.totalorder %s19, 7
    %p179 = por %p177, %p178
    %p181 = scmp.ne.s32.totalorder %s166, %s180
    %p182 = scmp.eq.s32.totalorder %s19, 0
    %p183 = por %p181, %p182
    %s185 = sadd.s32 %s184, 1
    %p188 = scmp.eq.s32.totalorder %s13, 7
    %p189 = scmp.ne.s32.totalorder %s184, %s186
    %p190 = scmp.eq.s32.totalorder %s13, 0
    %p191 = por %p189, %p190
    %p192 = scmp.ne.s32.totalorder %s184, %s186
    %p193 = scmp.eq.s32.totalorder %s18, 7
    %p194 = por %p192, %p193
    %p195 = scmp.ne.s32.totalorder %s186, %s187
    %p196 = scmp.eq.s32.totalorder %s18, 0
    %p197 = por %p195, %p196
    %p198 = scmp.ne.s32.totalorder %s186, %s187
    %p199 = scmp.eq.s32.totalorder %s19, 7
    %p200 = por %p198, %p199
    %p202 = scmp.ne.s32.totalorder %s187, %s201
    %p203 = scmp.eq.s32.totalorder %s19, 0
    %p204 = por %p202, %p203
    %s205 = ssub.s32 %s20, %s32
    %s206 = ssub.s32 %s21, %s28
    %s207 = sor.u32 %s205, %s206
    %p208 = scmp.eq.s32.totalorder %s207, 0
    %s210 = sadd.s32 %s209, 1
    %s211 = scalar_select %p208, %s209, %s210
    %p214 = pneg %p208
    %p215 = scmp.eq.s32.totalorder %s13, 7
    %p216 = por %p214, %p215
    %p217 = scmp.ne.s32.totalorder %s209, %s212
    %p218 = scmp.eq.s32.totalorder %s13, 0
    %p219 = por %p217, %p218
    %p220 = scmp.ne.s32.totalorder %s209, %s212
    %p221 = scmp.eq.s32.totalorder %s18, 7
    %p222 = por %p220, %p221
    %p223 = scmp.ne.s32.totalorder %s212, %s213
    %p224 = scmp.eq.s32.totalorder %s18, 0
    %p225 = por %p223, %p224
    %p226 = scmp.ne.s32.totalorder %s212, %s213
    %p227 = scmp.eq.s32.totalorder %s19, 7
    %p228 = por %p226, %p227
    %p230 = scmp.ne.s32.totalorder %s213, %s229
    %p231 = scmp.eq.s32.totalorder %s19, 0
    %p232 = por %p230, %p231
    %p233 = scmp.le.s32.totalorder 1, %s13
    %p234 = scmp.lt.s32.totalorder %s13, 9
    %p235 = pnand %p233, %p234
    %p236 = pneg %p235
    // Predicated region
    $region9: #{mpn_forward.12} parent=5 // pred_check
      _
    $region10: #{mpn_forward.12} parent=5 // pred_check_branch
      %238 = sbr.rel (%p235) target = $region12
    $region11: #{mpn_forward.12} parent=5 // pred_region
      %s239 = ssub.s32 %s13, 1
      // Predicated region
      $region13: #{mpn_forward.12} parent=11 // pred_check
        %p240 = pneg %p134
      $region14: #{mpn_forward.12} parent=11 // pred_check_branch
        %242 = sbr.rel (%p240) target = $region16
      $region15: #{mpn_forward.12} parent=11 // pred_region
        _
      $region16: #{mpn_forward.12} parent=11 // pred_fallthru
        _
      // Predicated region
      $region17: #{mpn_forward.12} parent=11 // pred_check
        %p243 = pneg %p155
      $region18: #{mpn_forward.12} parent=11 // pred_check_branch
        %245 = sbr.rel (%p243) target = $region20
      $region19: #{mpn_forward.12} parent=11 // pred_region
        _
      $region20: #{mpn_forward.12} parent=11 // pred_fallthru
        _
      // Predicated region
      $region21: #{mpn_forward.12} parent=11 // pred_check
        %p246 = pneg %p176
      $region22: #{mpn_forward.12} parent=11 // pred_check_branch
        %248 = sbr.rel (%p246) target = $region24
      $region23: #{mpn_forward.12} parent=11 // pred_region
        _
      $region24: #{mpn_forward.12} parent=11 // pred_fallthru
        _
      // Predicated region
      $region25: #{mpn_forward.12} parent=11 // pred_check
        %p249 = pneg %p197
      $region26: #{mpn_forward.12} parent=11 // pred_check_branch
        %251 = sbr.rel (%p249) target = $region28
      $region27: #{mpn_forward.12} parent=11 // pred_region
        _
      $region28: #{mpn_forward.12} parent=11 // pred_fallthru
        _
    $region12: #{mpn_forward.12} parent=5 // pred_fallthru
      _
    %p252 = scmp.lt.s32.totalorder %s13, 8
    // Predicated region
    $region29: #{mpn_forward.12} parent=5 // pred_check
      %p253 = pneg %p252
    $region30: #{mpn_forward.12} parent=5 // pred_check_branch
      %255 = sbr.rel (%p253) target = $region32
    $region31: #{mpn_forward.12} parent=5 // pred_region
      // Predicated region
      $region33: #{mpn_forward.12} parent=31 // pred_check
        %p256 = pneg %p47
      $region34: #{mpn_forward.12} parent=31 // pred_check_branch
        %258 = sbr.rel (%p256) target = $region36
      $region35: #{mpn_forward.12} parent=31 // pred_region
        %p259 = scmp.lt.s32.totalorder %s20, 1
        %s260 = scalar_select %p259, %s20, 1
        %p261 = scmp.lt.s32.totalorder %s21, 11
        %s262 = scalar_select %p261, %s21, 11
        %s263 = smul.addr %s262, 2
        %s264 = smul.addr %s260, 24
        %s265 = sadd.s32 %s263, %s264
        %s266 = smul.addr %s265, 4
        %s267 = scalar_lea.vmem %s0, %s266
      $region36: #{mpn_forward.12} parent=31 // pred_fallthru
        _
      // Predicated region
      $region37: #{mpn_forward.12} parent=31 // pred_check
        %p268 = pneg %p77
      $region38: #{mpn_forward.12} parent=31 // pred_check_branch
        %270 = sbr.rel (%p268) target = $region40
      $region39: #{mpn_forward.12} parent=31 // pred_region
        %s271 = sadd.s32 %s21, 4
        %p272 = scmp.lt.s32.totalorder %s20, 1
        %s273 = scalar_select %p272, %s20, 1
        %p274 = scmp.lt.s32.totalorder %s271, 11
        %s275 = scalar_select %p274, %s271, 11
        %s276 = smul.addr %s275, 2
        %s277 = smul.addr %s273, 24
        %s278 = sadd.s32 %s276, %s277
        %s279 = smul.addr %s278, 4
        %s280 = scalar_lea.vmem %s1, %s279
        %s281 = sadd.s32 %s21, 4
      $region40: #{mpn_forward.12} parent=31 // pred_fallthru
        _
      // Predicated region
      $region41: #{mpn_forward.12} parent=31 // pred_check
        %p282 = pneg %p107
      $region42: #{mpn_forward.12} parent=31 // pred_check_branch
        %284 = sbr.rel (%p282) target = $region44
      $region43: #{mpn_forward.12} parent=31 // pred_region
        %s285 = sadd.s32 %s21, 8
        %p286 = scmp.lt.s32.totalorder %s20, 1
        %s287 = scalar_select %p286, %s20, 1
        %p288 = scmp.lt.s32.totalorder %s285, 11
        %s289 = scalar_select %p288, %s285, 11
        %s290 = smul.addr %s289, 2
        %s291 = smul.addr %s287, 24
        %s292 = sadd.s32 %s290, %s291
        %s293 = smul.addr %s292, 4
        %s294 = scalar_lea.vmem %s2, %s293
        %s295 = sadd.s32 %s21, 8
      $region44: #{mpn_forward.12} parent=31 // pred_fallthru
        _
    $region32: #{mpn_forward.12} parent=5 // pred_fallthru
      _
    %p296 = scmp.le.s32.totalorder 1, %s13
    %p297 = scmp.lt.s32.totalorder %s13, 9
    %p298 = pnand %p296, %p297
    %p299 = pneg %p298
    // Predicated region
    $region45: #{mpn_forward.12} parent=5 // pred_check
      _
    $region46: #{mpn_forward.12} parent=5 // pred_check_branch
      %301 = sbr.rel (%p298) target = $region48
    $region47: #{mpn_forward.12} parent=5 // pred_region
      %s302 = ssub.s32 %s13, 1
      %p303 = scmp.lt.s32.totalorder %s22, 1
      %s304 = scalar_select %p303, %s22, 1
      %p305 = scmp.lt.s32.totalorder %s23, 11
      %s306 = scalar_select %p305, %s23, 11
      %s307 = smul.addr %s306, 2
      %s308 = smul.addr %s304, 24
      %s309 = sadd.s32 %s307, %s308
      %s310 = smul.addr %s309, 4
      %s311 = scalar_lea.vmem %s0, %s310
      %p312 = pneg %p53
      %p313 = pneg %p50
      %s314 = sadd.s32 %s23, 4
      %p315 = scmp.lt.s32.totalorder %s22, 1
      %s316 = scalar_select %p315, %s22, 1
      %p317 = scmp.lt.s32.totalorder %s314, 11
      %s318 = scalar_select %p317, %s314, 11
      %s319 = smul.addr %s318, 2
      %s320 = smul.addr %s316, 24
      %s321 = sadd.s32 %s319, %s320
      %s322 = smul.addr %s321, 4
      %s323 = scalar_lea.vmem %s1, %s322
      %p324 = pneg %p83
      %p325 = pneg %p80
      %s326 = sadd.s32 %s23, 8
      %p327 = scmp.lt.s32.totalorder %s22, 1
      %s328 = scalar_select %p327, %s22, 1
      %p329 = scmp.lt.s32.totalorder %s326, 11
      %s330 = scalar_select %p329, %s326, 11
      %s331 = smul.addr %s330, 2
      %s332 = smul.addr %s328, 24
      %s333 = sadd.s32 %s331, %s332
      %s334 = smul.addr %s333, 4
      %s335 = scalar_lea.vmem %s2, %s334
      %p336 = pneg %p113
      %p337 = pneg %p110
      %p338 = pneg %p134
      %p339 = pneg %p131
      %p340 = pneg %p155
      %p341 = pneg %p152
      %p342 = pneg %p176
      %p343 = pneg %p173
      %p344 = pneg %p197
      %p345 = pneg %p194
      %p346 = pneg %p225
      %p347 = pneg %p222
      %p348 = scmp.lt.s32.totalorder %s22, 1
      %s349 = scalar_select %p348, %s22, 1
      %p350 = scmp.lt.s32.totalorder %s23, 3
      %s351 = scalar_select %p350, %s23, 3
      %s352 = smul.addr %s349, 4
      %s353 = sadd.s32 %s351, %s352
      %s354 = smul.addr %s353, 2
      %s355 = scalar_lea.vmem %s7, %s354
      %p356 = scmp.lt.s32.totalorder %s22, 1
      %s357 = scalar_select %p356, %s22, 1
      %p358 = scmp.lt.s32.totalorder %s23, 11
      %s359 = scalar_select %p358, %s23, 11
      %s360 = smul.addr %s359, 2
      %s361 = smul.addr %s357, 24
      %s362 = sadd.s32 %s360, %s361
      %s363 = smul.addr %s362, 4
      %s364 = scalar_lea.vmem %s0, %s363
      %s365 = sadd.s32 %s23, 4
      %p366 = scmp.lt.s32.totalorder %s22, 1
      %s367 = scalar_select %p366, %s22, 1
      %p368 = scmp.lt.s32.totalorder %s365, 11
      %s369 = scalar_select %p368, %s365, 11
      %s370 = smul.addr %s369, 2
      %s371 = smul.addr %s367, 24
      %s372 = sadd.s32 %s370, %s371
      %s373 = smul.addr %s372, 4
      %s374 = scalar_lea.vmem %s1, %s373
      %s375 = sadd.s32 %s23, 4
      %s376 = sadd.s32 %s23, 8
      %p377 = scmp.lt.s32.totalorder %s22, 1
      %s378 = scalar_select %p377, %s22, 1
      %p379 = scmp.lt.s32.totalorder %s376, 11
      %s380 = scalar_select %p379, %s376, 11
      %s381 = smul.addr %s380, 2
      %s382 = smul.addr %s378, 24
      %s383 = sadd.s32 %s381, %s382
      %s384 = smul.addr %s383, 4
      %s385 = scalar_lea.vmem %s2, %s384
      %s386 = sadd.s32 %s23, 8
      %p387 = scmp.lt.s32.totalorder %s22, 1
      %s388 = scalar_select %p387, %s22, 1
      %p389 = scmp.lt.s32.totalorder %s23, 3
      %s390 = scalar_select %p389, %s23, 3
      %s391 = smul.addr %s388, 4
      %s392 = sadd.s32 %s390, %s391
      %s393 = smul.addr %s392, 2
      %s394 = scalar_lea.vmem %s7, %s393
      %v395 = vld [vmem:[%s364] sm:$0xf]
      %v396 = vld [vmem:[%s364 + $0x4] sm:$0x3]
      %v397 = vld [vmem:[%s3] sm:$0xf]
      %v398 = vld [vmem:[%s3 + $0x4] sm:$0xf]
      %v399 = vld [vmem:[%s3 + $0x8] sm:$0xf]
      %v400 = vld [vmem:[%s3 + $0xc] sm:$0xf]
      %v401 = vld [vmem:[%s3 + $0x10] sm:$0xf]
      %v402 = vld [vmem:[%s3 + $0x14] sm:$0xf]
      %v403 = vld [vmem:[%s3 + $0x18] sm:$0xf]
      %v404 = vld [vmem:[%s3 + $0x1c] sm:$0xf]
      %v405 = vld [vmem:[%s3 + $0x20] sm:$0xf]
      %v406 = vld [vmem:[%s3 + $0x24] sm:$0xf]
      %v407 = vld [vmem:[%s3 + $0x28] sm:$0xf]
      %v408 = vld [vmem:[%s3 + $0x2c] sm:$0xf]
      %v409 = vld [vmem:[%s3 + $0x30] sm:$0xf]
      %v410 = vld [vmem:[%s3 + $0x34] sm:$0xf]
      %v411 = vld [vmem:[%s3 + $0x38] sm:$0xf]
      %v412 = vld [vmem:[%s3 + $0x3c] sm:$0xf]
      %s413 = scalar_lea.vmem %s3, 64
      %v414 = vld [vmem:[%s413] sm:$0xf]
      %v415 = vld [vmem:[%s413 + $0x4] sm:$0xf]
      %v416 = vld [vmem:[%s413 + $0x8] sm:$0xf]
      %v417 = vld [vmem:[%s413 + $0xc] sm:$0xf]
      %v418 = vld [vmem:[%s413 + $0x10] sm:$0xf]
      %v419 = vld [vmem:[%s413 + $0x14] sm:$0xf]
      %v420 = vld [vmem:[%s413 + $0x18] sm:$0xf]
      %v421 = vld [vmem:[%s413 + $0x1c] sm:$0xf]
      %v422 = vld [vmem:[%s413 + $0x20] sm:$0xf]
      %v423 = vld [vmem:[%s413 + $0x24] sm:$0xf]
      %v424 = vld [vmem:[%s413 + $0x28] sm:$0xf]
      %v425 = vld [vmem:[%s413 + $0x2c] sm:$0xf]
      %v426 = vld [vmem:[%s413 + $0x30] sm:$0xf]
      %v427 = vld [vmem:[%s413 + $0x34] sm:$0xf]
      %v428 = vld [vmem:[%s413 + $0x38] sm:$0xf]
      %v429 = vld [vmem:[%s413 + $0x3c] sm:$0xf]
      %v431 = vunpack.c.l.b16 %v395
      %v432 = vpack.c.b16 %v431, %v431
      %v433 = vrot.slane %v432, 2
      %v451 = vunpack.c.l.b16 %v414
      %v452 = vunpack.c.l.b16 %v415
      %v453 = vunpack.c.l.b16 %v416
      %v454 = vunpack.c.l.b16 %v417
      %v455 = vunpack.c.l.b16 %v418
      %v456 = vunpack.c.l.b16 %v419
      %v457 = vunpack.c.l.b16 %v420
      %v458 = vunpack.c.l.b16 %v421
      %v459 = vunpack.c.l.b16 %v422
      %v460 = vunpack.c.l.b16 %v423
      %v461 = vunpack.c.l.b16 %v424
      %v462 = vunpack.c.l.b16 %v425
      %v463 = vunpack.c.l.b16 %v426
      %v464 = vunpack.c.l.b16 %v427
      %v465 = vunpack.c.l.b16 %v428
      %v466 = vunpack.c.l.b16 %v429
      %v467 = vpack.c.b16 %v452, %v451
      %v468 = vpack.c.b16 %v454, %v453
      %v469 = vpack.c.b16 %v456, %v455
      %v470 = vpack.c.b16 %v458, %v457
      %v471 = vpack.c.b16 %v460, %v459
      %v472 = vpack.c.b16 %v462, %v461
      %v473 = vpack.c.b16 %v464, %v463
      %v474 = vpack.c.b16 %v466, %v465
      %483 = vmatpush.bf16.msra.mxu0 %v474
      %484 = vmatpush.bf16.msra.mxu0 %v473
      %485 = vmatpush.bf16.msra.mxu0 %v472
      %486 = vmatpush.bf16.msra.mxu0 %v471
      %487 = vmatpush.bf16.msra.mxu0 %v470
      %488 = vmatpush.bf16.msra.mxu0 %v469
      %489 = vmatpush.bf16.msra.mxu0 %v468
      %490 = vmatpush.bf16.msra.mxu0 %v467
      %491 = vmatmul.bf16.gmra.mxu0 %v433
      %v492 = vpop.f32.mrf.mxu0
      %v493 = vadd.f32 0.0, %v492
      %v494 = vpop.f32.mrf.mxu0
      %495 = vdwg.mxu0
      %v512 = vunpack.c.l.b16 %v397
      %v513 = vunpack.c.l.b16 %v398
      %v514 = vunpack.c.l.b16 %v399
      %v515 = vunpack.c.l.b16 %v400
      %v516 = vunpack.c.l.b16 %v401
      %v517 = vunpack.c.l.b16 %v402
      %v518 = vunpack.c.l.b16 %v403
      %v519 = vunpack.c.l.b16 %v404
      %v520 = vunpack.c.l.b16 %v405
      %v521 = vunpack.c.l.b16 %v406
      %v522 = vunpack.c.l.b16 %v407
      %v523 = vunpack.c.l.b16 %v408
      %v524 = vunpack.c.l.b16 %v409
      %v525 = vunpack.c.l.b16 %v410
      %v526 = vunpack.c.l.b16 %v411
      %v527 = vunpack.c.l.b16 %v412
      %v528 = vpack.c.b16 %v513, %v512
      %v529 = vpack.c.b16 %v515, %v514
      %v530 = vpack.c.b16 %v517, %v516
      %v531 = vpack.c.b16 %v519, %v518
      %v532 = vpack.c.b16 %v521, %v520
      %v533 = vpack.c.b16 %v523, %v522
      %v534 = vpack.c.b16 %v525, %v524
      %v535 = vpack.c.b16 %v527, %v526
      %544 = vmatpush.bf16.msra.mxu0 %v535
      %545 = vmatpush.bf16.msra.mxu0 %v534
      %546 = vmatpush.bf16.msra.mxu0 %v533
      %547 = vmatpush.bf16.msra.mxu0 %v532
      %548 = vmatpush.bf16.msra.mxu0 %v531
      %549 = vmatpush.bf16.msra.mxu0 %v530
      %550 = vmatpush.bf16.msra.mxu0 %v529
      %551 = vmatpush.bf16.msra.mxu0 %v528
      %552 = vmatmul.bf16.gmra.mxu0 %v395
      %v553 = vpop.f32.mrf.mxu0
      %v554 = vadd.f32 %v493, %v553
      %v555 = vpop.f32.mrf.mxu0
      %556 = vdwg.mxu0
      %s557 = scalar_lea.vmem %s3, 128
      %v558 = vld [vmem:[%s557] sm:$0xf]
      %v559 = vld [vmem:[%s557 + $0x4] sm:$0xf]
      %v560 = vld [vmem:[%s557 + $0x8] sm:$0xf]
      %v561 = vld [vmem:[%s557 + $0xc] sm:$0xf]
      %v562 = vld [vmem:[%s557 + $0x10] sm:$0xf]
      %v563 = vld [vmem:[%s557 + $0x14] sm:$0xf]
      %v564 = vld [vmem:[%s557 + $0x18] sm:$0xf]
      %v565 = vld [vmem:[%s557 + $0x1c] sm:$0xf]
      %v566 = vld [vmem:[%s557 + $0x20] sm:$0xf]
      %v567 = vld [vmem:[%s557 + $0x24] sm:$0xf]
      %v568 = vld [vmem:[%s557 + $0x28] sm:$0xf]
      %v569 = vld [vmem:[%s557 + $0x2c] sm:$0xf]
      %v570 = vld [vmem:[%s557 + $0x30] sm:$0xf]
      %v571 = vld [vmem:[%s557 + $0x34] sm:$0xf]
      %v572 = vld [vmem:[%s557 + $0x38] sm:$0xf]
      %v573 = vld [vmem:[%s557 + $0x3c] sm:$0xf]
      %v590 = vunpack.c.l.b16 %v558
      %v591 = vunpack.c.l.b16 %v559
      %v592 = vunpack.c.l.b16 %v560
      %v593 = vunpack.c.l.b16 %v561
      %v594 = vunpack.c.l.b16 %v562
      %v595 = vunpack.c.l.b16 %v563
      %v596 = vunpack.c.l.b16 %v564
      %v597 = vunpack.c.l.b16 %v565
      %v598 = vunpack.c.l.b16 %v566
      %v599 = vunpack.c.l.b16 %v567
      %v600 = vunpack.c.l.b16 %v568
      %v601 = vunpack.c.l.b16 %v569
      %v602 = vunpack.c.l.b16 %v570
      %v603 = vunpack.c.l.b16 %v571
      %v604 = vunpack.c.l.b16 %v572
      %v605 = vunpack.c.l.b16 %v573
      %v606 = vpack.c.b16 %v591, %v590
      %v607 = vpack.c.b16 %v593, %v592
      %v608 = vpack.c.b16 %v595, %v594
      %v609 = vpack.c.b16 %v597, %v596
      %v610 = vpack.c.b16 %v599, %v598
      %v611 = vpack.c.b16 %v601, %v600
      %v612 = vpack.c.b16 %v603, %v602
      %v613 = vpack.c.b16 %v605, %v604
      %622 = vmatpush.bf16.msra.mxu0 %v613
      %623 = vmatpush.bf16.msra.mxu0 %v612
      %624 = vmatpush.bf16.msra.mxu0 %v611
      %625 = vmatpush.bf16.msra.mxu0 %v610
      %626 = vmatpush.bf16.msra.mxu0 %v609
      %627 = vmatpush.bf16.msra.mxu0 %v608
      %628 = vmatpush.bf16.msra.mxu0 %v607
      %629 = vmatpush.bf16.msra.mxu0 %v606
      %630 = vmatmul.bf16.gmra.mxu0 %v396
      %v631 = vpop.f32.mrf.mxu0
      %v632 = vadd.f32 0.0, %v631
      %v633 = vpop.f32.mrf.mxu0
      %634 = vdwg.mxu0
      %v635 = vadd.f32 %v554, %v632
      %v636 = vld [vmem:[%s374] sm:$0xf]
      %v637 = vld [vmem:[%s374 + $0x4] sm:$0x3]
      %s638 = scalar_lea.vmem %s3, 192
      %v639 = vld [vmem:[%s638] sm:$0xf]
      %v640 = vld [vmem:[%s638 + $0x4] sm:$0xf]
      %v641 = vld [vmem:[%s638 + $0x8] sm:$0xf]
      %v642 = vld [vmem:[%s638 + $0xc] sm:$0xf]
      %v643 = vld [vmem:[%s638 + $0x10] sm:$0xf]
      %v644 = vld [vmem:[%s638 + $0x14] sm:$0xf]
      %v645 = vld [vmem:[%s638 + $0x18] sm:$0xf]
      %v646 = vld [vmem:[%s638 + $0x1c] sm:$0xf]
      %v647 = vld [vmem:[%s638 + $0x20] sm:$0xf]
      %v648 = vld [vmem:[%s638 + $0x24] sm:$0xf]
      %v649 = vld [vmem:[%s638 + $0x28] sm:$0xf]
      %v650 = vld [vmem:[%s638 + $0x2c] sm:$0xf]
      %v651 = vld [vmem:[%s638 + $0x30] sm:$0xf]
      %v652 = vld [vmem:[%s638 + $0x34] sm:$0xf]
      %v653 = vld [vmem:[%s638 + $0x38] sm:$0xf]
      %v654 = vld [vmem:[%s638 + $0x3c] sm:$0xf]
      %v671 = vunpack.c.l.b16 %v639
      %v672 = vunpack.c.l.b16 %v640
      %v673 = vunpack.c.l.b16 %v641
      %v674 = vunpack.c.l.b16 %v642
      %v675 = vunpack.c.l.b16 %v643
      %v676 = vunpack.c.l.b16 %v644
      %v677 = vunpack.c.l.b16 %v645
      %v678 = vunpack.c.l.b16 %v646
      %v679 = vunpack.c.l.b16 %v647
      %v680 = vunpack.c.l.b16 %v648
      %v681 = vunpack.c.l.b16 %v649
      %v682 = vunpack.c.l.b16 %v650
      %v683 = vunpack.c.l.b16 %v651
      %v684 = vunpack.c.l.b16 %v652
      %v685 = vunpack.c.l.b16 %v653
      %v686 = vunpack.c.l.b16 %v654
      %v687 = vpack.c.b16 %v672, %v671
      %v688 = vpack.c.b16 %v674, %v673
      %v689 = vpack.c.b16 %v676, %v675
      %v690 = vpack.c.b16 %v678, %v677
      %v691 = vpack.c.b16 %v680, %v679
      %v692 = vpack.c.b16 %v682, %v681
      %v693 = vpack.c.b16 %v684, %v683
      %v694 = vpack.c.b16 %v686, %v685
      %703 = vmatpush.bf16.msra.mxu0 %v694
      %704 = vmatpush.bf16.msra.mxu0 %v693
      %705 = vmatpush.bf16.msra.mxu0 %v692
      %706 = vmatpush.bf16.msra.mxu0 %v691
      %707 = vmatpush.bf16.msra.mxu0 %v690
      %708 = vmatpush.bf16.msra.mxu0 %v689
      %709 = vmatpush.bf16.msra.mxu0 %v688
      %710 = vmatpush.bf16.msra.mxu0 %v687
      %711 = vmatmul.bf16.gmra.mxu0 %v636
      %v712 = vpop.f32.mrf.mxu0
      %v713 = vadd.f32 0.0, %v712
      %v714 = vpop.f32.mrf.mxu0
      %715 = vdwg.mxu0
      %v716 = vadd.f32 %v635, %v713
      %s717 = scalar_lea.vmem %s3, 256
      %v718 = vld [vmem:[%s717] sm:$0xf]
      %v719 = vld [vmem:[%s717 + $0x4] sm:$0xf]
      %v720 = vld [vmem:[%s717 + $0x8] sm:$0xf]
      %v721 = vld [vmem:[%s717 + $0xc] sm:$0xf]
      %v722 = vld [vmem:[%s717 + $0x10] sm:$0xf]
      %v723 = vld [vmem:[%s717 + $0x14] sm:$0xf]
      %v724 = vld [vmem:[%s717 + $0x18] sm:$0xf]
      %v725 = vld [vmem:[%s717 + $0x1c] sm:$0xf]
      %v726 = vld [vmem:[%s717 + $0x20] sm:$0xf]
      %v727 = vld [vmem:[%s717 + $0x24] sm:$0xf]
      %v728 = vld [vmem:[%s717 + $0x28] sm:$0xf]
      %v729 = vld [vmem:[%s717 + $0x2c] sm:$0xf]
      %v730 = vld [vmem:[%s717 + $0x30] sm:$0xf]
      %v731 = vld [vmem:[%s717 + $0x34] sm:$0xf]
      %v732 = vld [vmem:[%s717 + $0x38] sm:$0xf]
      %v733 = vld [vmem:[%s717 + $0x3c] sm:$0xf]
      %v735 = vunpack.c.l.b16 %v636
      %v736 = vpack.c.b16 %v735, %v735
      %v737 = vrot.slane %v736, 2
      %v755 = vunpack.c.l.b16 %v718
      %v756 = vunpack.c.l.b16 %v719
      %v757 = vunpack.c.l.b16 %v720
      %v758 = vunpack.c.l.b16 %v721
      %v759 = vunpack.c.l.b16 %v722
      %v760 = vunpack.c.l.b16 %v723
      %v761 = vunpack.c.l.b16 %v724
      %v762 = vunpack.c.l.b16 %v725
      %v763 = vunpack.c.l.b16 %v726
      %v764 = vunpack.c.l.b16 %v727
      %v765 = vunpack.c.l.b16 %v728
      %v766 = vunpack.c.l.b16 %v729
      %v767 = vunpack.c.l.b16 %v730
      %v768 = vunpack.c.l.b16 %v731
      %v769 = vunpack.c.l.b16 %v732
      %v770 = vunpack.c.l.b16 %v733
      %v771 = vpack.c.b16 %v756, %v755
      %v772 = vpack.c.b16 %v758, %v757
      %v773 = vpack.c.b16 %v760, %v759
      %v774 = vpack.c.b16 %v762, %v761
      %v775 = vpack.c.b16 %v764, %v763
      %v776 = vpack.c.b16 %v766, %v765
      %v777 = vpack.c.b16 %v768, %v767
      %v778 = vpack.c.b16 %v770, %v769
      %787 = vmatpush.bf16.msra.mxu0 %v778
      %788 = vmatpush.bf16.msra.mxu0 %v777
      %789 = vmatpush.bf16.msra.mxu0 %v776
      %790 = vmatpush.bf16.msra.mxu0 %v775
      %791 = vmatpush.bf16.msra.mxu0 %v774
      %792 = vmatpush.bf16.msra.mxu0 %v773
      %793 = vmatpush.bf16.msra.mxu0 %v772
      %794 = vmatpush.bf16.msra.mxu0 %v771
      %795 = vmatmul.bf16.gmra.mxu0 %v737
      %v796 = vpop.f32.mrf.mxu0
      %v797 = vadd.f32 0.0, %v796
      %v798 = vpop.f32.mrf.mxu0
      %799 = vdwg.mxu0
      %v800 = vadd.f32 %v716, %v797
      %s801 = scalar_lea.vmem %s3, 320
      %v802 = vld [vmem:[%s801] sm:$0xf]
      %v803 = vld [vmem:[%s801 + $0x4] sm:$0xf]
      %v804 = vld [vmem:[%s801 + $0x8] sm:$0xf]
      %v805 = vld [vmem:[%s801 + $0xc] sm:$0xf]
      %v806 = vld [vmem:[%s801 + $0x10] sm:$0xf]
      %v807 = vld [vmem:[%s801 + $0x14] sm:$0xf]
      %v808 = vld [vmem:[%s801 + $0x18] sm:$0xf]
      %v809 = vld [vmem:[%s801 + $0x1c] sm:$0xf]
      %v810 = vld [vmem:[%s801 + $0x20] sm:$0xf]
      %v811 = vld [vmem:[%s801 + $0x24] sm:$0xf]
      %v812 = vld [vmem:[%s801 + $0x28] sm:$0xf]
      %v813 = vld [vmem:[%s801 + $0x2c] sm:$0xf]
      %v814 = vld [vmem:[%s801 + $0x30] sm:$0xf]
      %v815 = vld [vmem:[%s801 + $0x34] sm:$0xf]
      %v816 = vld [vmem:[%s801 + $0x38] sm:$0xf]
      %v817 = vld [vmem:[%s801 + $0x3c] sm:$0xf]
      %v834 = vunpack.c.l.b16 %v802
      %v835 = vunpack.c.l.b16 %v803
      %v836 = vunpack.c.l.b16 %v804
      %v837 = vunpack.c.l.b16 %v805
      %v838 = vunpack.c.l.b16 %v806
      %v839 = vunpack.c.l.b16 %v807
      %v840 = vunpack.c.l.b16 %v808
      %v841 = vunpack.c.l.b16 %v809
      %v842 = vunpack.c.l.b16 %v810
      %v843 = vunpack.c.l.b16 %v811
      %v844 = vunpack.c.l.b16 %v812
      %v845 = vunpack.c.l.b16 %v813
      %v846 = vunpack.c.l.b16 %v814
      %v847 = vunpack.c.l.b16 %v815
      %v848 = vunpack.c.l.b16 %v816
      %v849 = vunpack.c.l.b16 %v817
      %v850 = vpack.c.b16 %v835, %v834
      %v851 = vpack.c.b16 %v837, %v836
      %v852 = vpack.c.b16 %v839, %v838
      %v853 = vpack.c.b16 %v841, %v840
      %v854 = vpack.c.b16 %v843, %v842
      %v855 = vpack.c.b16 %v845, %v844
      %v856 = vpack.c.b16 %v847, %v846
      %v857 = vpack.c.b16 %v849, %v848
      %866 = vmatpush.bf16.msra.mxu0 %v857
      %867 = vmatpush.bf16.msra.mxu0 %v856
      %868 = vmatpush.bf16.msra.mxu0 %v855
      %869 = vmatpush.bf16.msra.mxu0 %v854
      %870 = vmatpush.bf16.msra.mxu0 %v853
      %871 = vmatpush.bf16.msra.mxu0 %v852
      %872 = vmatpush.bf16.msra.mxu0 %v851
      %873 = vmatpush.bf16.msra.mxu0 %v850
      %874 = vmatmul.bf16.gmra.mxu0 %v637
      %v875 = vpop.f32.mrf.mxu0
      %v876 = vadd.f32 0.0, %v875
      %v877 = vpop.f32.mrf.mxu0
      %878 = vdwg.mxu0
      %v879 = vadd.f32 %v800, %v876
      %v880 = vld [vmem:[%s385] sm:$0xf]
      %v881 = vld [vmem:[%s385 + $0x4] sm:$0x3]
      %s882 = scalar_lea.vmem %s3, 384
      %v883 = vld [vmem:[%s882] sm:$0xf]
      %v884 = vld [vmem:[%s882 + $0x4] sm:$0xf]
      %v885 = vld [vmem:[%s882 + $0x8] sm:$0xf]
      %v886 = vld [vmem:[%s882 + $0xc] sm:$0xf]
      %v887 = vld [vmem:[%s882 + $0x10] sm:$0xf]
      %v888 = vld [vmem:[%s882 + $0x14] sm:$0xf]
      %v889 = vld [vmem:[%s882 + $0x18] sm:$0xf]
      %v890 = vld [vmem:[%s882 + $0x1c] sm:$0xf]
      %v891 = vld [vmem:[%s882 + $0x20] sm:$0xf]
      %v892 = vld [vmem:[%s882 + $0x24] sm:$0xf]
      %v893 = vld [vmem:[%s882 + $0x28] sm:$0xf]
      %v894 = vld [vmem:[%s882 + $0x2c] sm:$0xf]
      %v895 = vld [vmem:[%s882 + $0x30] sm:$0xf]
      %v896 = vld [vmem:[%s882 + $0x34] sm:$0xf]
      %v897 = vld [vmem:[%s882 + $0x38] sm:$0xf]
      %v898 = vld [vmem:[%s882 + $0x3c] sm:$0xf]
      %v915 = vunpack.c.l.b16 %v883
      %v916 = vunpack.c.l.b16 %v884
      %v917 = vunpack.c.l.b16 %v885
      %v918 = vunpack.c.l.b16 %v886
      %v919 = vunpack.c.l.b16 %v887
      %v920 = vunpack.c.l.b16 %v888
      %v921 = vunpack.c.l.b16 %v889
      %v922 = vunpack.c.l.b16 %v890
      %v923 = vunpack.c.l.b16 %v891
      %v924 = vunpack.c.l.b16 %v892
      %v925 = vunpack.c.l.b16 %v893
      %v926 = vunpack.c.l.b16 %v894
      %v927 = vunpack.c.l.b16 %v895
      %v928 = vunpack.c.l.b16 %v896
      %v929 = vunpack.c.l.b16 %v897
      %v930 = vunpack.c.l.b16 %v898
      %v931 = vpack.c.b16 %v916, %v915
      %v932 = vpack.c.b16 %v918, %v917
      %v933 = vpack.c.b16 %v920, %v919
      %v934 = vpack.c.b16 %v922, %v921
      %v935 = vpack.c.b16 %v924, %v923
      %v936 = vpack.c.b16 %v926, %v925
      %v937 = vpack.c.b16 %v928, %v927
      %v938 = vpack.c.b16 %v930, %v929
      %947 = vmatpush.bf16.msra.mxu0 %v938
      %948 = vmatpush.bf16.msra.mxu0 %v937
      %949 = vmatpush.bf16.msra.mxu0 %v936
      %950 = vmatpush.bf16.msra.mxu0 %v935
      %951 = vmatpush.bf16.msra.mxu0 %v934
      %952 = vmatpush.bf16.msra.mxu0 %v933
      %953 = vmatpush.bf16.msra.mxu0 %v932
      %954 = vmatpush.bf16.msra.mxu0 %v931
      %955 = vmatmul.bf16.gmra.mxu0 %v880
      %v956 = vpop.f32.mrf.mxu0
      %v957 = vadd.f32 0.0, %v956
      %v958 = vpop.f32.mrf.mxu0
      %959 = vdwg.mxu0
      %v960 = vadd.f32 %v879, %v957
      %s961 = scalar_lea.vmem %s3, 448
      %v962 = vld [vmem:[%s961] sm:$0xf]
      %v963 = vld [vmem:[%s961 + $0x4] sm:$0xf]
      %v964 = vld [vmem:[%s961 + $0x8] sm:$0xf]
      %v965 = vld [vmem:[%s961 + $0xc] sm:$0xf]
      %v966 = vld [vmem:[%s961 + $0x10] sm:$0xf]
      %v967 = vld [vmem:[%s961 + $0x14] sm:$0xf]
      %v968 = vld [vmem:[%s961 + $0x18] sm:$0xf]
      %v969 = vld [vmem:[%s961 + $0x1c] sm:$0xf]
      %v970 = vld [vmem:[%s961 + $0x20] sm:$0xf]
      %v971 = vld [vmem:[%s961 + $0x24] sm:$0xf]
      %v972 = vld [vmem:[%s961 + $0x28] sm:$0xf]
      %v973 = vld [vmem:[%s961 + $0x2c] sm:$0xf]
      %v974 = vld [vmem:[%s961 + $0x30] sm:$0xf]
      %v975 = vld [vmem:[%s961 + $0x34] sm:$0xf]
      %v976 = vld [vmem:[%s961 + $0x38] sm:$0xf]
      %v977 = vld [vmem:[%s961 + $0x3c] sm:$0xf]
      %v979 = vunpack.c.l.b16 %v880
      %v980 = vpack.c.b16 %v979, %v979
      %v981 = vrot.slane %v980, 2
      %v999 = vunpack.c.l.b16 %v962
      %v1000 = vunpack.c.l.b16 %v963
      %v1001 = vunpack.c.l.b16 %v964
      %v1002 = vunpack.c.l.b16 %v965
      %v1003 = vunpack.c.l.b16 %v966
      %v1004 = vunpack.c.l.b16 %v967
      %v1005 = vunpack.c.l.b16 %v968
      %v1006 = vunpack.c.l.b16 %v969
      %v1007 = vunpack.c.l.b16 %v970
      %v1008 = vunpack.c.l.b16 %v971
      %v1009 = vunpack.c.l.b16 %v972
      %v1010 = vunpack.c.l.b16 %v973
      %v1011 = vunpack.c.l.b16 %v974
      %v1012 = vunpack.c.l.b16 %v975
      %v1013 = vunpack.c.l.b16 %v976
      %v1014 = vunpack.c.l.b16 %v977
      %v1015 = vpack.c.b16 %v1000, %v999
      %v1016 = vpack.c.b16 %v1002, %v1001
      %v1017 = vpack.c.b16 %v1004, %v1003
      %v1018 = vpack.c.b16 %v1006, %v1005
      %v1019 = vpack.c.b16 %v1008, %v1007
      %v1020 = vpack.c.b16 %v1010, %v1009
      %v1021 = vpack.c.b16 %v1012, %v1011
      %v1022 = vpack.c.b16 %v1014, %v1013
      %1031 = vmatpush.bf16.msra.mxu0 %v1022
      %1032 = vmatpush.bf16.msra.mxu0 %v1021
      %1033 = vmatpush.bf16.msra.mxu0 %v1020
      %1034 = vmatpush.bf16.msra.mxu0 %v1019
      %1035 = vmatpush.bf16.msra.mxu0 %v1018
      %1036 = vmatpush.bf16.msra.mxu0 %v1017
      %1037 = vmatpush.bf16.msra.mxu0 %v1016
      %1038 = vmatpush.bf16.msra.mxu0 %v1015
      %1039 = vmatmul.bf16.gmra.mxu0 %v981
      %v1040 = vpop.f32.mrf.mxu0
      %v1041 = vadd.f32 0.0, %v1040
      %v1042 = vpop.f32.mrf.mxu0
      %1043 = vdwg.mxu0
      %v1044 = vadd.f32 %v960, %v1041
      %s1045 = scalar_lea.vmem %s3, 512
      %v1046 = vld [vmem:[%s1045] sm:$0xf]
      %v1047 = vld [vmem:[%s1045 + $0x4] sm:$0xf]
      %v1048 = vld [vmem:[%s1045 + $0x8] sm:$0xf]
      %v1049 = vld [vmem:[%s1045 + $0xc] sm:$0xf]
      %v1050 = vld [vmem:[%s1045 + $0x10] sm:$0xf]
      %v1051 = vld [vmem:[%s1045 + $0x14] sm:$0xf]
      %v1052 = vld [vmem:[%s1045 + $0x18] sm:$0xf]
      %v1053 = vld [vmem:[%s1045 + $0x1c] sm:$0xf]
      %v1054 = vld [vmem:[%s1045 + $0x20] sm:$0xf]
      %v1055 = vld [vmem:[%s1045 + $0x24] sm:$0xf]
      %v1056 = vld [vmem:[%s1045 + $0x28] sm:$0xf]
      %v1057 = vld [vmem:[%s1045 + $0x2c] sm:$0xf]
      %v1058 = vld [vmem:[%s1045 + $0x30] sm:$0xf]
      %v1059 = vld [vmem:[%s1045 + $0x34] sm:$0xf]
      %v1060 = vld [vmem:[%s1045 + $0x38] sm:$0xf]
      %v1061 = vld [vmem:[%s1045 + $0x3c] sm:$0xf]
      %v1078 = vunpack.c.l.b16 %v1046
      %v1079 = vunpack.c.l.b16 %v1047
      %v1080 = vunpack.c.l.b16 %v1048
      %v1081 = vunpack.c.l.b16 %v1049
      %v1082 = vunpack.c.l.b16 %v1050
      %v1083 = vunpack.c.l.b16 %v1051
      %v1084 = vunpack.c.l.b16 %v1052
      %v1085 = vunpack.c.l.b16 %v1053
      %v1086 = vunpack.c.l.b16 %v1054
      %v1087 = vunpack.c.l.b16 %v1055
      %v1088 = vunpack.c.l.b16 %v1056
      %v1089 = vunpack.c.l.b16 %v1057
      %v1090 = vunpack.c.l.b16 %v1058
      %v1091 = vunpack.c.l.b16 %v1059
      %v1092 = vunpack.c.l.b16 %v1060
      %v1093 = vunpack.c.l.b16 %v1061
      %v1094 = vpack.c.b16 %v1079, %v1078
      %v1095 = vpack.c.b16 %v1081, %v1080
      %v1096 = vpack.c.b16 %v1083, %v1082
      %v1097 = vpack.c.b16 %v1085, %v1084
      %v1098 = vpack.c.b16 %v1087, %v1086
      %v1099 = vpack.c.b16 %v1089, %v1088
      %v1100 = vpack.c.b16 %v1091, %v1090
      %v1101 = vpack.c.b16 %v1093, %v1092
      %1110 = vmatpush.bf16.msra.mxu0 %v1101
      %1111 = vmatpush.bf16.msra.mxu0 %v1100
      %1112 = vmatpush.bf16.msra.mxu0 %v1099
      %1113 = vmatpush.bf16.msra.mxu0 %v1098
      %1114 = vmatpush.bf16.msra.mxu0 %v1097
      %1115 = vmatpush.bf16.msra.mxu0 %v1096
      %1116 = vmatpush.bf16.msra.mxu0 %v1095
      %1117 = vmatpush.bf16.msra.mxu0 %v1094
      %1118 = vmatmul.bf16.gmra.mxu0 %v881
      %v1119 = vpop.f32.mrf.mxu0
      %v1120 = vadd.f32 0.0, %v1119
      %v1121 = vpop.f32.mrf.mxu0
      %1122 = vdwg.mxu0
      %v1123 = vadd.f32 %v1044, %v1120
      %v1124 = vld [vmem:[%s4] sm:$0x1]
      %v1126 = vperm.slane %v1124, 0
      %v1128 = vadd.f32 %v1123, %v1126
      %vm1129 = vcmp.gt.f32.partialorder %v1128, 0.0
      %v1130 = vmin.f32 %v1128, 0.0
      %v1131 = vmul.f32 %v1130, 1.442695
      %v1132 = vpow.pop %v1131
      %v1133 = vsub.f32 %v1132, 1.0
      %v1134 = vsel %vm1129, %v1128, %v1133
      %v1135 = vld [vmem:[%s5] sm:$0xf]
      %v1136 = vld [vmem:[%s5 + $0x4] sm:$0xf]
      %v1137 = vld [vmem:[%s5 + $0x8] sm:$0xf]
      %v1138 = vld [vmem:[%s5 + $0xc] sm:$0xf]
      %v1139 = vld [vmem:[%s5 + $0x10] sm:$0xf]
      %v1140 = vld [vmem:[%s5 + $0x14] sm:$0xf]
      %v1141 = vld [vmem:[%s5 + $0x18] sm:$0xf]
      %v1142 = vld [vmem:[%s5 + $0x1c] sm:$0xf]
      %v1143 = vld [vmem:[%s5 + $0x20] sm:$0xf]
      %v1144 = vld [vmem:[%s5 + $0x24] sm:$0xf]
      %v1145 = vld [vmem:[%s5 + $0x28] sm:$0xf]
      %v1146 = vld [vmem:[%s5 + $0x2c] sm:$0xf]
      %v1147 = vld [vmem:[%s5 + $0x30] sm:$0xf]
      %v1148 = vld [vmem:[%s5 + $0x34] sm:$0xf]
      %v1149 = vld [vmem:[%s5 + $0x38] sm:$0xf]
      %v1150 = vld [vmem:[%s5 + $0x3c] sm:$0xf]
      %v1167 = vunpack.c.l.b16 %v1135
      %v1168 = vunpack.c.l.b16 %v1136
      %v1169 = vunpack.c.l.b16 %v1137
      %v1170 = vunpack.c.l.b16 %v1138
      %v1171 = vunpack.c.l.b16 %v1139
      %v1172 = vunpack.c.l.b16 %v1140
      %v1173 = vunpack.c.l.b16 %v1141
      %v1174 = vunpack.c.l.b16 %v1142
      %v1175 = vunpack.c.l.b16 %v1143
      %v1176 = vunpack.c.l.b16 %v1144
      %v1177 = vunpack.c.l.b16 %v1145
      %v1178 = vunpack.c.l.b16 %v1146
      %v1179 = vunpack.c.l.b16 %v1147
      %v1180 = vunpack.c.l.b16 %v1148
      %v1181 = vunpack.c.l.b16 %v1149
      %v1182 = vunpack.c.l.b16 %v1150
      %v1183 = vpack.c.b16 %v1168, %v1167
      %v1184 = vpack.c.b16 %v1170, %v1169
      %v1185 = vpack.c.b16 %v1172, %v1171
      %v1186 = vpack.c.b16 %v1174, %v1173
      %v1187 = vpack.c.b16 %v1176, %v1175
      %v1188 = vpack.c.b16 %v1178, %v1177
      %v1189 = vpack.c.b16 %v1180, %v1179
      %v1190 = vpack.c.b16 %v1182, %v1181
      %1199 = vmatpush.bf16.msra.mxu0 %v1190
      %1200 = vmatpush.bf16.msra.mxu0 %v1189
      %1201 = vmatpush.bf16.msra.mxu0 %v1188
      %1202 = vmatpush.bf16.msra.mxu0 %v1187
      %1203 = vmatpush.bf16.msra.mxu0 %v1186
      %1204 = vmatpush.bf16.msra.mxu0 %v1185
      %1205 = vmatpush.bf16.msra.mxu0 %v1184
      %1206 = vmatpush.bf16.msra.mxu0 %v1183
      %1207 = vmatmul.bf16.gmra.mxu0 %v737
      %v1208 = vpop.f32.mrf.mxu0
      %v1209 = vadd.f32 0.0, %v1208
      %v1210 = vpop.f32.mrf.mxu0
      %1211 = vdwg.mxu0
      %v1212 = vadd.f32 %v1134, %v1209
      %v1213 = vld [vmem:[%s6] sm:$0x1]
      %v1215 = vperm.slane %v1213, 0
      %v1217 = vadd.f32 %v1212, %v1215
      %v1218 = vpack.c.bf16 %v1217, %v1217
      %1219 = vst [vmem:[%s394] sm:$0x3] %v1218
      %p1220 = scmp.lt.s32.totalorder %s22, 1
      %s1221 = scalar_select %p1220, %s22, 1
      %p1222 = scmp.lt.s32.totalorder %s23, 3
      %s1223 = scalar_select %p1222, %s23, 3
      %s1224 = smul.addr %s1221, 4
      %s1225 = sadd.s32 %s1223, %s1224
      %s1226 = smul.addr %s1225, 2
      %s1227 = scalar_lea.vmem %s7, %s1226
      // Predicated region
      $region49: #{mpn_forward.12} parent=47 // pred_check
        %p1228 = pneg %p222
      $region50: #{mpn_forward.12} parent=47 // pred_check_branch
        %1230 = sbr.rel (%p1228) target = $region52
      $region51: #{mpn_forward.12} parent=47 // pred_region
        _
      $region52: #{mpn_forward.12} parent=47 // pred_fallthru
        _
    $region48: #{mpn_forward.12} parent=5 // pred_fallthru
      _
    %p1231 = scmp.le.s32.totalorder 2, %s13
    // Predicated region
    $region53: #{mpn_forward.12} parent=5 // pred_check
      %p1232 = pneg %p1231
    $region54: #{mpn_forward.12} parent=5 // pred_check_branch
      %1234 = sbr.rel (%p1232) target = $region56
    $region55: #{mpn_forward.12} parent=5 // pred_region
      %s1235 = ssub.s32 %s13, 2
      // Predicated region
      $region57: #{mpn_forward.12} parent=55 // pred_check
        %p1236 = pneg %p228
      $region58: #{mpn_forward.12} parent=55 // pred_check_branch
        %1238 = sbr.rel (%p1236) target = $region60
      $region59: #{mpn_forward.12} parent=55 // pred_region
        %p1239 = scmp.lt.s32.totalorder %s24, 1
        %s1240 = scalar_select %p1239, %s24, 1
        %p1241 = scmp.lt.s32.totalorder %s25, 3
        %s1242 = scalar_select %p1241, %s25, 3
        %s1243 = smul.addr %s1240, 4
        %s1244 = sadd.s32 %s1242, %s1243
        %s1245 = smul.addr %s1244, 2
        %s1246 = scalar_lea.vmem %s7, %s1245
      $region60: #{mpn_forward.12} parent=55 // pred_fallthru
        _
    $region56: #{mpn_forward.12} parent=5 // pred_fallthru
      _
  $region6: #{mpn_forward.12} parent=0 // loop_footer
    %s17 = sadd.s32 1, %s13
  $region7: #{mpn_forward.12} parent=0 // loop_footer_branch
    %12 = sbr.rel target = $region3
  $region8: #{mpn_forward.12} parent=0 // loop_exit
    _

// kernel: mpn_forward.14
$region0: #{mpn_forward.14}
  #allocation0 [shape = 'u32[]', space=smem, size = 0x4, offset = 0x4, fixed_abs, tag = 'smem constant byte address 0x4 - core index']
  #allocation1 [shape = 'u32[72,128]{1,0:T(1,128)}', space=vmem, size = 0x9000, scoped, tag = 'internal scratch']
  %s0 = inlined_call_operand.vmem [shape: bf16[2,10,10,128], index: 0, kind: input, shape index: {}, may-alias: {0,1,2}]
  %s1 = inlined_call_operand.vmem [shape: bf16[2,10,10,128], index: 1, kind: input, shape index: {}, may-alias: {0,1,2}]
  %s2 = inlined_call_operand.vmem [shape: bf16[2,10,10,128], index: 2, kind: input, shape index: {}, may-alias: {0,1,2}]
  %s3 = inlined_call_operand.vmem [shape: bf16[3,3,128,64], index: 3, kind: input, shape index: {}]
  %s4 = inlined_call_operand.vmem [shape: f32[1,64], index: 4, kind: input, shape index: {}]
  %s5 = inlined_call_operand.vmem [shape: bf16[128,64], index: 5, kind: input, shape index: {}]
  %s6 = inlined_call_operand.vmem [shape: f32[1,64], index: 6, kind: input, shape index: {}]
  %s7 = inlined_call_operand.vmem [shape: bf16[2,8,8,64], index: 7, kind: output, shape index: {}]
  %s8 = sld [smem:[#allocation0]]
  $region61: #{mpn_forward.14} parent=0
    _
  %s10 = ssub.s32 1, %s8
  %s11 = scalar_select 0, %s10, %s8
  loop: start=0, step=1, limit=18
  $region2: #{mpn_forward.14} parent=0 // loop_pre_header
    _
  $region3: #{mpn_forward.14} parent=0 // loop_header
    %s13 = sphi 0, %s17
    %p14 = scmp.ge.s32.totalorder %s13, 18
    %s20 = sphi 0, %s32
    %s21 = sphi 0, %s28
    %s22 = sphi 0, %s20
    %s23 = sphi 0, %s21
    %s24 = sphi 0, %s22
    %s25 = sphi 0, %s23
    %s37 = sphi 0, %s39
    %s40 = sphi 0, %s37
    %s41 = sphi 0, %s40
    %s57 = sphi 0, %s41
    %s67 = sphi 0, %s69
    %s70 = sphi 0, %s67
    %s71 = sphi 0, %s70
    %s87 = sphi 0, %s71
    %s97 = sphi 0, %s99
    %s100 = sphi 0, %s97
    %s101 = sphi 0, %s100
    %s117 = sphi 0, %s101
    %s121 = sphi 0, %s121
    %s123 = sphi 0, %s121
    %s124 = sphi 0, %s123
    %s138 = sphi 0, %s124
    %s142 = sphi 0, %s142
    %s144 = sphi 0, %s142
    %s145 = sphi 0, %s144
    %s159 = sphi 0, %s145
    %s163 = sphi 0, %s163
    %s165 = sphi 0, %s163
    %s166 = sphi 0, %s165
    %s180 = sphi 0, %s166
    %s184 = sphi 0, %s184
    %s186 = sphi 0, %s184
    %s187 = sphi 0, %s186
    %s201 = sphi 0, %s187
    %s209 = sphi 0, %s211
    %s212 = sphi 0, %s209
    %s213 = sphi 0, %s212
    %s229 = sphi 0, %s213
  $region4: #{mpn_forward.14} parent=0 // loop_header_branch
    %16 = sbr.rel (%p14) target = $region8
  $region5: #{mpn_forward.14} parent=0 // loop_body
    %s18 = ssub.s32 %s13, 1
    %s19 = ssub.s32 %s13, 2
    %s26 = sadd.s32 1, %s21
    %p27 = scmp.ge.s32.totalorder %s26, 8
    %s28 = scalar_select %p27, 0, %s26
    %s29 = sadd.s32 1, %s20
    %s30 = scalar_select %p27, %s29, %s20
    %p31 = scmp.ge.s32.totalorder %s30, 2
    %s32 = scalar_select %p31, 0, %s30
    %s33 = ssub.s32 %s20, %s32
    %s34 = ssub.s32 %s21, %s28
    %s35 = sor.u32 %s33, %s34
    %p36 = scmp.eq.s32.totalorder %s35, 0
    %s38 = sadd.s32 %s37, 1
    %s39 = scalar_select %p36, %s37, %s38
    %p42 = pneg %p36
    %p43 = scmp.eq.s32.totalorder %s13, 15
    %p44 = por %p42, %p43
    %p45 = scmp.ne.s32.totalorder %s37, %s40
    %p46 = scmp.eq.s32.totalorder %s13, 0
    %p47 = por %p45, %p46
    %p48 = scmp.ne.s32.totalorder %s37, %s40
    %p49 = scmp.eq.s32.totalorder %s18, 15
    %p50 = por %p48, %p49
    %p51 = scmp.ne.s32.totalorder %s40, %s41
    %p52 = scmp.eq.s32.totalorder %s18, 0
    %p53 = por %p51, %p52
    %p54 = scmp.ne.s32.totalorder %s40, %s41
    %p55 = scmp.eq.s32.totalorder %s19, 15
    %p56 = por %p54, %p55
    %p58 = scmp.ne.s32.totalorder %s41, %s57
    %p59 = scmp.eq.s32.totalorder %s19, 0
    %p60 = por %p58, %p59
    %s61 = sadd.s32 %s21, 1
    %s62 = sadd.s32 %s28, 1
    %s63 = ssub.s32 %s20, %s32
    %s64 = ssub.s32 %s61, %s62
    %s65 = sor.u32 %s63, %s64
    %p66 = scmp.eq.s32.totalorder %s65, 0
    %s68 = sadd.s32 %s67, 1
    %s69 = scalar_select %p66, %s67, %s68
    %p72 = pneg %p66
    %p73 = scmp.eq.s32.totalorder %s13, 15
    %p74 = por %p72, %p73
    %p75 = scmp.ne.s32.totalorder %s67, %s70
    %p76 = scmp.eq.s32.totalorder %s13, 0
    %p77 = por %p75, %p76
    %p78 = scmp.ne.s32.totalorder %s67, %s70
    %p79 = scmp.eq.s32.totalorder %s18, 15
    %p80 = por %p78, %p79
    %p81 = scmp.ne.s32.totalorder %s70, %s71
    %p82 = scmp.eq.s32.totalorder %s18, 0
    %p83 = por %p81, %p82
    %p84 = scmp.ne.s32.totalorder %s70, %s71
    %p85 = scmp.eq.s32.totalorder %s19, 15
    %p86 = por %p84, %p85
    %p88 = scmp.ne.s32.totalorder %s71, %s87
    %p89 = scmp.eq.s32.totalorder %s19, 0
    %p90 = por %p88, %p89
    %s91 = sadd.s32 %s21, 2
    %s92 = sadd.s32 %s28, 2
    %s93 = ssub.s32 %s20, %s32
    %s94 = ssub.s32 %s91, %s92
    %s95 = sor.u32 %s93, %s94
    %p96 = scmp.eq.s32.totalorder %s95, 0
    %s98 = sadd.s32 %s97, 1
    %s99 = scalar_select %p96, %s97, %s98
    %p102 = pneg %p96
    %p103 = scmp.eq.s32.totalorder %s13, 15
    %p104 = por %p102, %p103
    %p105 = scmp.ne.s32.totalorder %s97, %s100
    %p106 = scmp.eq.s32.totalorder %s13, 0
    %p107 = por %p105, %p106
    %p108 = scmp.ne.s32.totalorder %s97, %s100
    %p109 = scmp.eq.s32.totalorder %s18, 15
    %p110 = por %p108, %p109
    %p111 = scmp.ne.s32.totalorder %s100, %s101
    %p112 = scmp.eq.s32.totalorder %s18, 0
    %p113 = por %p111, %p112
    %p114 = scmp.ne.s32.totalorder %s100, %s101
    %p115 = scmp.eq.s32.totalorder %s19, 15
    %p116 = por %p114, %p115
    %p118 = scmp.ne.s32.totalorder %s101, %s117
    %p119 = scmp.eq.s32.totalorder %s19, 0
    %p120 = por %p118, %p119
    %s122 = sadd.s32 %s121, 1
    %p125 = scmp.eq.s32.totalorder %s13, 15
    %p126 = scmp.ne.s32.totalorder %s121, %s123
    %p127 = scmp.eq.s32.totalorder %s13, 0
    %p128 = por %p126, %p127
    %p129 = scmp.ne.s32.totalorder %s121, %s123
    %p130 = scmp.eq.s32.totalorder %s18, 15
    %p131 = por %p129, %p130
    %p132 = scmp.ne.s32.totalorder %s123, %s124
    %p133 = scmp.eq.s32.totalorder %s18, 0
    %p134 = por %p132, %p133
    %p135 = scmp.ne.s32.totalorder %s123, %s124
    %p136 = scmp.eq.s32.totalorder %s19, 15
    %p137 = por %p135, %p136
    %p139 = scmp.ne.s32.totalorder %s124, %s138
    %p140 = scmp.eq.s32.totalorder %s19, 0
    %p141 = por %p139, %p140
    %s143 = sadd.s32 %s142, 1
    %p146 = scmp.eq.s32.totalorder %s13, 15
    %p147 = scmp.ne.s32.totalorder %s142, %s144
    %p148 = scmp.eq.s32.totalorder %s13, 0
    %p149 = por %p147, %p148
    %p150 = scmp.ne.s32.totalorder %s142, %s144
    %p151 = scmp.eq.s32.totalorder %s18, 15
    %p152 = por %p150, %p151
    %p153 = scmp.ne.s32.totalorder %s144, %s145
    %p154 = scmp.eq.s32.totalorder %s18, 0
    %p155 = por %p153, %p154
    %p156 = scmp.ne.s32.totalorder %s144, %s145
    %p157 = scmp.eq.s32.totalorder %s19, 15
    %p158 = por %p156, %p157
    %p160 = scmp.ne.s32.totalorder %s145, %s159
    %p161 = scmp.eq.s32.totalorder %s19, 0
    %p162 = por %p160, %p161
    %s164 = sadd.s32 %s163, 1
    %p167 = scmp.eq.s32.totalorder %s13, 15
    %p168 = scmp.ne.s32.totalorder %s163, %s165
    %p169 = scmp.eq.s32.totalorder %s13, 0
    %p170 = por %p168, %p169
    %p171 = scmp.ne.s32.totalorder %s163, %s165
    %p172 = scmp.eq.s32.totalorder %s18, 15
    %p173 = por %p171, %p172
    %p174 = scmp.ne.s32.totalorder %s165, %s166
    %p175 = scmp.eq.s32.totalorder %s18, 0
    %p176 = por %p174, %p175
    %p177 = scmp.ne.s32.totalorder %s165, %s166
    %p178 = scmp.eq.s32.totalorder %s19, 15
    %p179 = por %p177, %p178
    %p181 = scmp.ne.s32.totalorder %s166, %s180
    %p182 = scmp.eq.s32.totalorder %s19, 0
    %p183 = por %p181, %p182
    %s185 = sadd.s32 %s184, 1
    %p188 = scmp.eq.s32.totalorder %s13, 15
    %p189 = scmp.ne.s32.totalorder %s184, %s186
    %p190 = scmp.eq.s32.totalorder %s13, 0
    %p191 = por %p189, %p190
    %p192 = scmp.ne.s32.totalorder %s184, %s186
    %p193 = scmp.eq.s32.totalorder %s18, 15
    %p194 = por %p192, %p193
    %p195 = scmp.ne.s32.totalorder %s186, %s187
    %p196 = scmp.eq.s32.totalorder %s18, 0
    %p197 = por %p195, %p196
    %p198 = scmp.ne.s32.totalorder %s186, %s187
    %p199 = scmp.eq.s32.totalorder %s19, 15
    %p200 = por %p198, %p199
    %p202 = scmp.ne.s32.totalorder %s187, %s201
    %p203 = scmp.eq.s32.totalorder %s19, 0
    %p204 = por %p202, %p203
    %s205 = ssub.s32 %s20, %s32
    %s206 = ssub.s32 %s21, %s28
    %s207 = sor.u32 %s205, %s206
    %p208 = scmp.eq.s32.totalorder %s207, 0
    %s210 = sadd.s32 %s209, 1
    %s211 = scalar_select %p208, %s209, %s210
    %p214 = pneg %p208
    %p215 = scmp.eq.s32.totalorder %s13, 15
    %p216 = por %p214, %p215
    %p217 = scmp.ne.s32.totalorder %s209, %s212
    %p218 = scmp.eq.s32.totalorder %s13, 0
    %p219 = por %p217, %p218
    %p220 = scmp.ne.s32.totalorder %s209, %s212
    %p221 = scmp.eq.s32.totalorder %s18, 15
    %p222 = por %p220, %p221
    %p223 = scmp.ne.s32.totalorder %s212, %s213
    %p224 = scmp.eq.s32.totalorder %s18, 0
    %p225 = por %p223, %p224
    %p226 = scmp.ne.s32.totalorder %s212, %s213
    %p227 = scmp.eq.s32.totalorder %s19, 15
    %p228 = por %p226, %p227
    %p230 = scmp.ne.s32.totalorder %s213, %s229
    %p231 = scmp.eq.s32.totalorder %s19, 0
    %p232 = por %p230, %p231
    %p233 = scmp.le.s32.totalorder 1, %s13
    %p234 = scmp.lt.s32.totalorder %s13, 17
    %p235 = pnand %p233, %p234
    %p236 = pneg %p235
    // Predicated region
    $region9: #{mpn_forward.14} parent=5 // pred_check
      _
    $region10: #{mpn_forward.14} parent=5 // pred_check_branch
      %238 = sbr.rel (%p235) target = $region12
    $region11: #{mpn_forward.14} parent=5 // pred_region
      %s239 = ssub.s32 %s13, 1
      // Predicated region
      $region13: #{mpn_forward.14} parent=11 // pred_check
        %p240 = pneg %p134
      $region14: #{mpn_forward.14} parent=11 // pred_check_branch
        %242 = sbr.rel (%p240) target = $region16
      $region15: #{mpn_forward.14} parent=11 // pred_region
        _
      $region16: #{mpn_forward.14} parent=11 // pred_fallthru
        _
      // Predicated region
      $region17: #{mpn_forward.14} parent=11 // pred_check
        %p243 = pneg %p155
      $region18: #{mpn_forward.14} parent=11 // pred_check_branch
        %245 = sbr.rel (%p243) target = $region20
      $region19: #{mpn_forward.14} parent=11 // pred_region
        _
      $region20: #{mpn_forward.14} parent=11 // pred_fallthru
        _
      // Predicated region
      $region21: #{mpn_forward.14} parent=11 // pred_check
        %p246 = pneg %p176
      $region22: #{mpn_forward.14} parent=11 // pred_check_branch
        %248 = sbr.rel (%p246) target = $region24
      $region23: #{mpn_forward.14} parent=11 // pred_region
        _
      $region24: #{mpn_forward.14} parent=11 // pred_fallthru
        _
      // Predicated region
      $region25: #{mpn_forward.14} parent=11 // pred_check
        %p249 = pneg %p197
      $region26: #{mpn_forward.14} parent=11 // pred_check_branch
        %251 = sbr.rel (%p249) target = $region28
      $region27: #{mpn_forward.14} parent=11 // pred_region
        _
      $region28: #{mpn_forward.14} parent=11 // pred_fallthru
        _
    $region12: #{mpn_forward.14} parent=5 // pred_fallthru
      _
    %p252 = scmp.lt.s32.totalorder %s13, 16
    // Predicated region
    $region29: #{mpn_forward.14} parent=5 // pred_check
      %p253 = pneg %p252
    $region30: #{mpn_forward.14} parent=5 // pred_check_branch
      %255 = sbr.rel (%p253) target = $region32
    $region31: #{mpn_forward.14} parent=5 // pred_region
      // Predicated region
      $region33: #{mpn_forward.14} parent=31 // pred_check
        %p256 = pneg %p47
      $region34: #{mpn_forward.14} parent=31 // pred_check_branch
        %258 = sbr.rel (%p256) target = $region36
      $region35: #{mpn_forward.14} parent=31 // pred_region
        %p259 = scmp.lt.s32.totalorder %s20, 1
        %s260 = scalar_select %p259, %s20, 1
        %p261 = scmp.lt.s32.totalorder %s21, 9
        %s262 = scalar_select %p261, %s21, 9
        %s263 = smul.addr %s262, 2
        %s264 = smul.addr %s260, 20
        %s265 = sadd.s32 %s263, %s264
        %s266 = smul.addr %s265, 4
        %s267 = scalar_lea.vmem %s0, %s266
      $region36: #{mpn_forward.14} parent=31 // pred_fallthru
        _
      // Predicated region
      $region37: #{mpn_forward.14} parent=31 // pred_check
        %p268 = pneg %p77
      $region38: #{mpn_forward.14} parent=31 // pred_check_branch
        %270 = sbr.rel (%p268) target = $region40
      $region39: #{mpn_forward.14} parent=31 // pred_region
        %s271 = sadd.s32 %s21, 1
        %p272 = scmp.lt.s32.totalorder %s20, 1
        %s273 = scalar_select %p272, %s20, 1
        %p274 = scmp.lt.s32.totalorder %s271, 9
        %s275 = scalar_select %p274, %s271, 9
        %s276 = smul.addr %s275, 2
        %s277 = smul.addr %s273, 20
        %s278 = sadd.s32 %s276, %s277
        %s279 = smul.addr %s278, 4
        %s280 = scalar_lea.vmem %s1, %s279
        %s281 = sadd.s32 %s21, 1
      $region40: #{mpn_forward.14} parent=31 // pred_fallthru
        _
      // Predicated region
      $region41: #{mpn_forward.14} parent=31 // pred_check
        %p282 = pneg %p107
      $region42: #{mpn_forward.14} parent=31 // pred_check_branch
        %284 = sbr.rel (%p282) target = $region44
      $region43: #{mpn_forward.14} parent=31 // pred_region
        %s285 = sadd.s32 %s21, 2
        %p286 = scmp.lt.s32.totalorder %s20, 1
        %s287 = scalar_select %p286, %s20, 1
        %p288 = scmp.lt.s32.totalorder %s285, 9
        %s289 = scalar_select %p288, %s285, 9
        %s290 = smul.addr %s289, 2
        %s291 = smul.addr %s287, 20
        %s292 = sadd.s32 %s290, %s291
        %s293 = smul.addr %s292, 4
        %s294 = scalar_lea.vmem %s2, %s293
        %s295 = sadd.s32 %s21, 2
      $region44: #{mpn_forward.14} parent=31 // pred_fallthru
        _
    $region32: #{mpn_forward.14} parent=5 // pred_fallthru
      _
    %p296 = scmp.le.s32.totalorder 1, %s13
    %p297 = scmp.lt.s32.totalorder %s13, 17
    %p298 = pnand %p296, %p297
    %p299 = pneg %p298
    // Predicated region
    $region45: #{mpn_forward.14} parent=5 // pred_check
      _
    $region46: #{mpn_forward.14} parent=5 // pred_check_branch
      %301 = sbr.rel (%p298) target = $region48
    $region47: #{mpn_forward.14} parent=5 // pred_region
      %s302 = ssub.s32 %s13, 1
      %p303 = scmp.lt.s32.totalorder %s22, 1
      %s304 = scalar_select %p303, %s22, 1
      %p305 = scmp.lt.s32.totalorder %s23, 9
      %s306 = scalar_select %p305, %s23, 9
      %s307 = smul.addr %s306, 2
      %s308 = smul.addr %s304, 20
      %s309 = sadd.s32 %s307, %s308
      %s310 = smul.addr %s309, 4
      %s311 = scalar_lea.vmem %s0, %s310
      %p312 = pneg %p53
      %p313 = pneg %p50
      %s314 = sadd.s32 %s23, 1
      %p315 = scmp.lt.s32.totalorder %s22, 1
      %s316 = scalar_select %p315, %s22, 1
      %p317 = scmp.lt.s32.totalorder %s314, 9
      %s318 = scalar_select %p317, %s314, 9
      %s319 = smul.addr %s318, 2
      %s320 = smul.addr %s316, 20
      %s321 = sadd.s32 %s319, %s320
      %s322 = smul.addr %s321, 4
      %s323 = scalar_lea.vmem %s1, %s322
      %p324 = pneg %p83
      %p325 = pneg %p80
      %s326 = sadd.s32 %s23, 2
      %p327 = scmp.lt.s32.totalorder %s22, 1
      %s328 = scalar_select %p327, %s22, 1
      %p329 = scmp.lt.s32.totalorder %s326, 9
      %s330 = scalar_select %p329, %s326, 9
      %s331 = smul.addr %s330, 2
      %s332 = smul.addr %s328, 20
      %s333 = sadd.s32 %s331, %s332
      %s334 = smul.addr %s333, 4
      %s335 = scalar_lea.vmem %s2, %s334
      %p336 = pneg %p113
      %p337 = pneg %p110
      %p338 = pneg %p134
      %p339 = pneg %p131
      %p340 = pneg %p155
      %p341 = pneg %p152
      %p342 = pneg %p176
      %p343 = pneg %p173
      %p344 = pneg %p197
      %p345 = pneg %p194
      %p346 = pneg %p225
      %p347 = pneg %p222
      %p348 = scmp.lt.s32.totalorder %s22, 1
      %s349 = scalar_select %p348, %s22, 1
      %p350 = scmp.lt.s32.totalorder %s23, 7
      %s351 = scalar_select %p350, %s23, 7
      %s352 = smul.addr %s349, 8
      %s353 = sadd.s32 %s351, %s352
      %s354 = smul.addr %s353, 4
      %s355 = scalar_lea.vmem %s7, %s354
      %p356 = scmp.lt.s32.totalorder %s22, 1
      %s357 = scalar_select %p356, %s22, 1
      %p358 = scmp.lt.s32.totalorder %s23, 9
      %s359 = scalar_select %p358, %s23, 9
      %s360 = smul.addr %s359, 2
      %s361 = smul.addr %s357, 20
      %s362 = sadd.s32 %s360, %s361
      %s363 = smul.addr %s362, 4
      %s364 = scalar_lea.vmem %s0, %s363
      %s365 = sadd.s32 %s23, 1
      %p366 = scmp.lt.s32.totalorder %s22, 1
      %s367 = scalar_select %p366, %s22, 1
      %p368 = scmp.lt.s32.totalorder %s365, 9
      %s369 = scalar_select %p368, %s365, 9
      %s370 = smul.addr %s369, 2
      %s371 = smul.addr %s367, 20
      %s372 = sadd.s32 %s370, %s371
      %s373 = smul.addr %s372, 4
      %s374 = scalar_lea.vmem %s1, %s373
      %s375 = sadd.s32 %s23, 1
      %s376 = sadd.s32 %s23, 2
      %p377 = scmp.lt.s32.totalorder %s22, 1
      %s378 = scalar_select %p377, %s22, 1
      %p379 = scmp.lt.s32.totalorder %s376, 9
      %s380 = scalar_select %p379, %s376, 9
      %s381 = smul.addr %s380, 2
      %s382 = smul.addr %s378, 20
      %s383 = sadd.s32 %s381, %s382
      %s384 = smul.addr %s383, 4
      %s385 = scalar_lea.vmem %s2, %s384
      %s386 = sadd.s32 %s23, 2
      %p387 = scmp.lt.s32.totalorder %s22, 1
      %s388 = scalar_select %p387, %s22, 1
      %p389 = scmp.lt.s32.totalorder %s23, 7
      %s390 = scalar_select %p389, %s23, 7
      %s391 = smul.addr %s388, 8
      %s392 = sadd.s32 %s390, %s391
      %s393 = smul.addr %s392, 4
      %s394 = scalar_lea.vmem %s7, %s393
      %v395 = vld [vmem:[%s364] sm:$0xf]
      %v396 = vld [vmem:[%s364 + $0x4] sm:$0x1]
      %v397 = vld [vmem:[%s3] sm:$0xf]
      %v398 = vld [vmem:[%s3 + $0x4] sm:$0xf]
      %v399 = vld [vmem:[%s3 + $0x8] sm:$0xf]
      %v400 = vld [vmem:[%s3 + $0xc] sm:$0xf]
      %v401 = vld [vmem:[%s3 + $0x10] sm:$0xf]
      %v402 = vld [vmem:[%s3 + $0x14] sm:$0xf]
      %v403 = vld [vmem:[%s3 + $0x18] sm:$0xf]
      %v404 = vld [vmem:[%s3 + $0x1c] sm:$0xf]
      %v405 = vld [vmem:[%s3 + $0x20] sm:$0xf]
      %v406 = vld [vmem:[%s3 + $0x24] sm:$0xf]
      %v407 = vld [vmem:[%s3 + $0x28] sm:$0xf]
      %v408 = vld [vmem:[%s3 + $0x2c] sm:$0xf]
      %v409 = vld [vmem:[%s3 + $0x30] sm:$0xf]
      %v410 = vld [vmem:[%s3 + $0x34] sm:$0xf]
      %v411 = vld [vmem:[%s3 + $0x38] sm:$0xf]
      %v412 = vld [vmem:[%s3 + $0x3c] sm:$0xf]
      %s413 = scalar_lea.vmem %s3, 64
      %v414 = vld [vmem:[%s413] sm:$0xf]
      %v415 = vld [vmem:[%s413 + $0x4] sm:$0xf]
      %v416 = vld [vmem:[%s413 + $0x8] sm:$0xf]
      %v417 = vld [vmem:[%s413 + $0xc] sm:$0xf]
      %v418 = vld [vmem:[%s413 + $0x10] sm:$0xf]
      %v419 = vld [vmem:[%s413 + $0x14] sm:$0xf]
      %v420 = vld [vmem:[%s413 + $0x18] sm:$0xf]
      %v421 = vld [vmem:[%s413 + $0x1c] sm:$0xf]
      %v422 = vld [vmem:[%s413 + $0x20] sm:$0xf]
      %v423 = vld [vmem:[%s413 + $0x24] sm:$0xf]
      %v424 = vld [vmem:[%s413 + $0x28] sm:$0xf]
      %v425 = vld [vmem:[%s413 + $0x2c] sm:$0xf]
      %v426 = vld [vmem:[%s413 + $0x30] sm:$0xf]
      %v427 = vld [vmem:[%s413 + $0x34] sm:$0xf]
      %v428 = vld [vmem:[%s413 + $0x38] sm:$0xf]
      %v429 = vld [vmem:[%s413 + $0x3c] sm:$0xf]
      %v432 = vunpack.c.l.b16 %v395
      %v433 = vunpack.c.l.b16 %v396
      %v434 = vpack.c.b16 %v433, %v432
      %v436 = vshrl.u32 %v434, 16
      %v438 = vshll.u32 %v434, 16
      %v440 = vrot.slane %v438, 1
      %v441 = vor.u32 %v436, %v440
      %v459 = vunpack.c.l.b16 %v414
      %v460 = vunpack.c.l.b16 %v415
      %v461 = vunpack.c.l.b16 %v416
      %v462 = vunpack.c.l.b16 %v417
      %v463 = vunpack.c.l.b16 %v418
      %v464 = vunpack.c.l.b16 %v419
      %v465 = vunpack.c.l.b16 %v420
      %v466 = vunpack.c.l.b16 %v421
      %v467 = vunpack.c.l.b16 %v422
      %v468 = vunpack.c.l.b16 %v423
      %v469 = vunpack.c.l.b16 %v424
      %v470 = vunpack.c.l.b16 %v425
      %v471 = vunpack.c.l.b16 %v426
      %v472 = vunpack.c.l.b16 %v427
      %v473 = vunpack.c.l.b16 %v428
      %v474 = vunpack.c.l.b16 %v429
      %v475 = vpack.c.b16 %v460, %v459
      %v476 = vpack.c.b16 %v462, %v461
      %v477 = vpack.c.b16 %v464, %v463
      %v478 = vpack.c.b16 %v466, %v465
      %v479 = vpack.c.b16 %v468, %v467
      %v480 = vpack.c.b16 %v470, %v469
      %v481 = vpack.c.b16 %v472, %v471
      %v482 = vpack.c.b16 %v474, %v473
      %491 = vmatpush.bf16.msra.mxu0 %v482
      %492 = vmatpush.bf16.msra.mxu0 %v481
      %493 = vmatpush.bf16.msra.mxu0 %v480
      %494 = vmatpush.bf16.msra.mxu0 %v479
      %495 = vmatpush.bf16.msra.mxu0 %v478
      %496 = vmatpush.bf16.msra.mxu0 %v477
      %497 = vmatpush.bf16.msra.mxu0 %v476
      %498 = vmatpush.bf16.msra.mxu0 %v475
      %499 = vmatmul.bf16.gmra.mxu0 %v441
      %v500 = vpop.f32.mrf.mxu0
      %v501 = vadd.f32 0.0, %v500
      %v502 = vpop.f32.mrf.mxu0
      %503 = vdwg.mxu0
      %v520 = vunpack.c.l.b16 %v397
      %v521 = vunpack.c.l.b16 %v398
      %v522 = vunpack.c.l.b16 %v399
      %v523 = vunpack.c.l.b16 %v400
      %v524 = vunpack.c.l.b16 %v401
      %v525 = vunpack.c.l.b16 %v402
      %v526 = vunpack.c.l.b16 %v403
      %v527 = vunpack.c.l.b16 %v404
      %v528 = vunpack.c.l.b16 %v405
      %v529 = vunpack.c.l.b16 %v406
      %v530 = vunpack.c.l.b16 %v407
      %v531 = vunpack.c.l.b16 %v408
      %v532 = vunpack.c.l.b16 %v409
      %v533 = vunpack.c.l.b16 %v410
      %v534 = vunpack.c.l.b16 %v411
      %v535 = vunpack.c.l.b16 %v412
      %v536 = vpack.c.b16 %v521, %v520
      %v537 = vpack.c.b16 %v523, %v522
      %v538 = vpack.c.b16 %v525, %v524
      %v539 = vpack.c.b16 %v527, %v526
      %v540 = vpack.c.b16 %v529, %v528
      %v541 = vpack.c.b16 %v531, %v530
      %v542 = vpack.c.b16 %v533, %v532
      %v543 = vpack.c.b16 %v535, %v534
      %552 = vmatpush.bf16.msra.mxu0 %v543
      %553 = vmatpush.bf16.msra.mxu0 %v542
      %554 = vmatpush.bf16.msra.mxu0 %v541
      %555 = vmatpush.bf16.msra.mxu0 %v540
      %556 = vmatpush.bf16.msra.mxu0 %v539
      %557 = vmatpush.bf16.msra.mxu0 %v538
      %558 = vmatpush.bf16.msra.mxu0 %v537
      %559 = vmatpush.bf16.msra.mxu0 %v536
      %560 = vmatmul.bf16.gmra.mxu0 %v395
      %v561 = vpop.f32.mrf.mxu0
      %v562 = vadd.f32 %v501, %v561
      %v563 = vpop.f32.mrf.mxu0
      %564 = vdwg.mxu0
      %s565 = scalar_lea.vmem %s3, 128
      %v566 = vld [vmem:[%s565] sm:$0xf]
      %v567 = vld [vmem:[%s565 + $0x4] sm:$0xf]
      %v568 = vld [vmem:[%s565 + $0x8] sm:$0xf]
      %v569 = vld [vmem:[%s565 + $0xc] sm:$0xf]
      %v570 = vld [vmem:[%s565 + $0x10] sm:$0xf]
      %v571 = vld [vmem:[%s565 + $0x14] sm:$0xf]
      %v572 = vld [vmem:[%s565 + $0x18] sm:$0xf]
      %v573 = vld [vmem:[%s565 + $0x1c] sm:$0xf]
      %v574 = vld [vmem:[%s565 + $0x20] sm:$0xf]
      %v575 = vld [vmem:[%s565 + $0x24] sm:$0xf]
      %v576 = vld [vmem:[%s565 + $0x28] sm:$0xf]
      %v577 = vld [vmem:[%s565 + $0x2c] sm:$0xf]
      %v578 = vld [vmem:[%s565 + $0x30] sm:$0xf]
      %v579 = vld [vmem:[%s565 + $0x34] sm:$0xf]
      %v580 = vld [vmem:[%s565 + $0x38] sm:$0xf]
      %v581 = vld [vmem:[%s565 + $0x3c] sm:$0xf]
      %v582 = vrot.slane %v434, 1
      %v600 = vunpack.c.l.b16 %v566
      %v601 = vunpack.c.l.b16 %v567
      %v602 = vunpack.c.l.b16 %v568
      %v603 = vunpack.c.l.b16 %v569
      %v604 = vunpack.c.l.b16 %v570
      %v605 = vunpack.c.l.b16 %v571
      %v606 = vunpack.c.l.b16 %v572
      %v607 = vunpack.c.l.b16 %v573
      %v608 = vunpack.c.l.b16 %v574
      %v609 = vunpack.c.l.b16 %v575
      %v610 = vunpack.c.l.b16 %v576
      %v611 = vunpack.c.l.b16 %v577
      %v612 = vunpack.c.l.b16 %v578
      %v613 = vunpack.c.l.b16 %v579
      %v614 = vunpack.c.l.b16 %v580
      %v615 = vunpack.c.l.b16 %v581
      %v616 = vpack.c.b16 %v601, %v600
      %v617 = vpack.c.b16 %v603, %v602
      %v618 = vpack.c.b16 %v605, %v604
      %v619 = vpack.c.b16 %v607, %v606
      %v620 = vpack.c.b16 %v609, %v608
      %v621 = vpack.c.b16 %v611, %v610
      %v622 = vpack.c.b16 %v613, %v612
      %v623 = vpack.c.b16 %v615, %v614
      %632 = vmatpush.bf16.msra.mxu0 %v623
      %633 = vmatpush.bf16.msra.mxu0 %v622
      %634 = vmatpush.bf16.msra.mxu0 %v621
      %635 = vmatpush.bf16.msra.mxu0 %v620
      %636 = vmatpush.bf16.msra.mxu0 %v619
      %637 = vmatpush.bf16.msra.mxu0 %v618
      %638 = vmatpush.bf16.msra.mxu0 %v617
      %639 = vmatpush.bf16.msra.mxu0 %v616
      %640 = vmatmul.bf16.gmra.mxu0 %v582
      %v641 = vpop.f32.mrf.mxu0
      %v642 = vadd.f32 0.0, %v641
      %v643 = vpop.f32.mrf.mxu0
      %644 = vdwg.mxu0
      %v645 = vadd.f32 %v562, %v642
      %v646 = vld [vmem:[%s374] sm:$0xf]
      %v647 = vld [vmem:[%s374 + $0x4] sm:$0x1]
      %s648 = scalar_lea.vmem %s3, 192
      %v649 = vld [vmem:[%s648] sm:$0xf]
      %v650 = vld [vmem:[%s648 + $0x4] sm:$0xf]
      %v651 = vld [vmem:[%s648 + $0x8] sm:$0xf]
      %v652 = vld [vmem:[%s648 + $0xc] sm:$0xf]
      %v653 = vld [vmem:[%s648 + $0x10] sm:$0xf]
      %v654 = vld [vmem:[%s648 + $0x14] sm:$0xf]
      %v655 = vld [vmem:[%s648 + $0x18] sm:$0xf]
      %v656 = vld [vmem:[%s648 + $0x1c] sm:$0xf]
      %v657 = vld [vmem:[%s648 + $0x20] sm:$0xf]
      %v658 = vld [vmem:[%s648 + $0x24] sm:$0xf]
      %v659 = vld [vmem:[%s648 + $0x28] sm:$0xf]
      %v660 = vld [vmem:[%s648 + $0x2c] sm:$0xf]
      %v661 = vld [vmem:[%s648 + $0x30] sm:$0xf]
      %v662 = vld [vmem:[%s648 + $0x34] sm:$0xf]
      %v663 = vld [vmem:[%s648 + $0x38] sm:$0xf]
      %v664 = vld [vmem:[%s648 + $0x3c] sm:$0xf]
      %v681 = vunpack.c.l.b16 %v649
      %v682 = vunpack.c.l.b16 %v650
      %v683 = vunpack.c.l.b16 %v651
      %v684 = vunpack.c.l.b16 %v652
      %v685 = vunpack.c.l.b16 %v653
      %v686 = vunpack.c.l.b16 %v654
      %v687 = vunpack.c.l.b16 %v655
      %v688 = vunpack.c.l.b16 %v656
      %v689 = vunpack.c.l.b16 %v657
      %v690 = vunpack.c.l.b16 %v658
      %v691 = vunpack.c.l.b16 %v659
      %v692 = vunpack.c.l.b16 %v660
      %v693 = vunpack.c.l.b16 %v661
      %v694 = vunpack.c.l.b16 %v662
      %v695 = vunpack.c.l.b16 %v663
      %v696 = vunpack.c.l.b16 %v664
      %v697 = vpack.c.b16 %v682, %v681
      %v698 = vpack.c.b16 %v684, %v683
      %v699 = vpack.c.b16 %v686, %v685
      %v700 = vpack.c.b16 %v688, %v687
      %v701 = vpack.c.b16 %v690, %v689
      %v702 = vpack.c.b16 %v692, %v691
      %v703 = vpack.c.b16 %v694, %v693
      %v704 = vpack.c.b16 %v696, %v695
      %713 = vmatpush.bf16.msra.mxu0 %v704
      %714 = vmatpush.bf16.msra.mxu0 %v703
      %715 = vmatpush.bf16.msra.mxu0 %v702
      %716 = vmatpush.bf16.msra.mxu0 %v701
      %717 = vmatpush.bf16.msra.mxu0 %v700
      %718 = vmatpush.bf16.msra.mxu0 %v699
      %719 = vmatpush.bf16.msra.mxu0 %v698
      %720 = vmatpush.bf16.msra.mxu0 %v697
      %721 = vmatmul.bf16.gmra.mxu0 %v646
      %v722 = vpop.f32.mrf.mxu0
      %v723 = vadd.f32 0.0, %v722
      %v724 = vpop.f32.mrf.mxu0
      %725 = vdwg.mxu0
      %v726 = vadd.f32 %v645, %v723
      %s727 = scalar_lea.vmem %s3, 256
      %v728 = vld [vmem:[%s727] sm:$0xf]
      %v729 = vld [vmem:[%s727 + $0x4] sm:$0xf]
      %v730 = vld [vmem:[%s727 + $0x8] sm:$0xf]
      %v731 = vld [vmem:[%s727 + $0xc] sm:$0xf]
      %v732 = vld [vmem:[%s727 + $0x10] sm:$0xf]
      %v733 = vld [vmem:[%s727 + $0x14] sm:$0xf]
      %v734 = vld [vmem:[%s727 + $0x18] sm:$0xf]
      %v735 = vld [vmem:[%s727 + $0x1c] sm:$0xf]
      %v736 = vld [vmem:[%s727 + $0x20] sm:$0xf]
      %v737 = vld [vmem:[%s727 + $0x24] sm:$0xf]
      %v738 = vld [vmem:[%s727 + $0x28] sm:$0xf]
      %v739 = vld [vmem:[%s727 + $0x2c] sm:$0xf]
      %v740 = vld [vmem:[%s727 + $0x30] sm:$0xf]
      %v741 = vld [vmem:[%s727 + $0x34] sm:$0xf]
      %v742 = vld [vmem:[%s727 + $0x38] sm:$0xf]
      %v743 = vld [vmem:[%s727 + $0x3c] sm:$0xf]
      %v746 = vunpack.c.l.b16 %v646
      %v747 = vunpack.c.l.b16 %v647
      %v748 = vpack.c.b16 %v747, %v746
      %v750 = vshrl.u32 %v748, 16
      %v752 = vshll.u32 %v748, 16
      %v754 = vrot.slane %v752, 1
      %v755 = vor.u32 %v750, %v754
      %v773 = vunpack.c.l.b16 %v728
      %v774 = vunpack.c.l.b16 %v729
      %v775 = vunpack.c.l.b16 %v730
      %v776 = vunpack.c.l.b16 %v731
      %v777 = vunpack.c.l.b16 %v732
      %v778 = vunpack.c.l.b16 %v733
      %v779 = vunpack.c.l.b16 %v734
      %v780 = vunpack.c.l.b16 %v735
      %v781 = vunpack.c.l.b16 %v736
      %v782 = vunpack.c.l.b16 %v737
      %v783 = vunpack.c.l.b16 %v738
      %v784 = vunpack.c.l.b16 %v739
      %v785 = vunpack.c.l.b16 %v740
      %v786 = vunpack.c.l.b16 %v741
      %v787 = vunpack.c.l.b16 %v742
      %v788 = vunpack.c.l.b16 %v743
      %v789 = vpack.c.b16 %v774, %v773
      %v790 = vpack.c.b16 %v776, %v775
      %v791 = vpack.c.b16 %v778, %v777
      %v792 = vpack.c.b16 %v780, %v779
      %v793 = vpack.c.b16 %v782, %v781
      %v794 = vpack.c.b16 %v784, %v783
      %v795 = vpack.c.b16 %v786, %v785
      %v796 = vpack.c.b16 %v788, %v787
      %805 = vmatpush.bf16.msra.mxu0 %v796
      %806 = vmatpush.bf16.msra.mxu0 %v795
      %807 = vmatpush.bf16.msra.mxu0 %v794
      %808 = vmatpush.bf16.msra.mxu0 %v793
      %809 = vmatpush.bf16.msra.mxu0 %v792
      %810 = vmatpush.bf16.msra.mxu0 %v791
      %811 = vmatpush.bf16.msra.mxu0 %v790
      %812 = vmatpush.bf16.msra.mxu0 %v789
      %813 = vmatmul.bf16.gmra.mxu0 %v755
      %v814 = vpop.f32.mrf.mxu0
      %v815 = vadd.f32 0.0, %v814
      %v816 = vpop.f32.mrf.mxu0
      %817 = vdwg.mxu0
      %v818 = vadd.f32 %v726, %v815
      %s819 = scalar_lea.vmem %s3, 320
      %v820 = vld [vmem:[%s819] sm:$0xf]
      %v821 = vld [vmem:[%s819 + $0x4] sm:$0xf]
      %v822 = vld [vmem:[%s819 + $0x8] sm:$0xf]
      %v823 = vld [vmem:[%s819 + $0xc] sm:$0xf]
      %v824 = vld [vmem:[%s819 + $0x10] sm:$0xf]
      %v825 = vld [vmem:[%s819 + $0x14] sm:$0xf]
      %v826 = vld [vmem:[%s819 + $0x18] sm:$0xf]
      %v827 = vld [vmem:[%s819 + $0x1c] sm:$0xf]
      %v828 = vld [vmem:[%s819 + $0x20] sm:$0xf]
      %v829 = vld [vmem:[%s819 + $0x24] sm:$0xf]
      %v830 = vld [vmem:[%s819 + $0x28] sm:$0xf]
      %v831 = vld [vmem:[%s819 + $0x2c] sm:$0xf]
      %v832 = vld [vmem:[%s819 + $0x30] sm:$0xf]
      %v833 = vld [vmem:[%s819 + $0x34] sm:$0xf]
      %v834 = vld [vmem:[%s819 + $0x38] sm:$0xf]
      %v835 = vld [vmem:[%s819 + $0x3c] sm:$0xf]
      %v836 = vrot.slane %v748, 1
      %v854 = vunpack.c.l.b16 %v820
      %v855 = vunpack.c.l.b16 %v821
      %v856 = vunpack.c.l.b16 %v822
      %v857 = vunpack.c.l.b16 %v823
      %v858 = vunpack.c.l.b16 %v824
      %v859 = vunpack.c.l.b16 %v825
      %v860 = vunpack.c.l.b16 %v826
      %v861 = vunpack.c.l.b16 %v827
      %v862 = vunpack.c.l.b16 %v828
      %v863 = vunpack.c.l.b16 %v829
      %v864 = vunpack.c.l.b16 %v830
      %v865 = vunpack.c.l.b16 %v831
      %v866 = vunpack.c.l.b16 %v832
      %v867 = vunpack.c.l.b16 %v833
      %v868 = vunpack.c.l.b16 %v834
      %v869 = vunpack.c.l.b16 %v835
      %v870 = vpack.c.b16 %v855, %v854
      %v871 = vpack.c.b16 %v857, %v856
      %v872 = vpack.c.b16 %v859, %v858
      %v873 = vpack.c.b16 %v861, %v860
      %v874 = vpack.c.b16 %v863, %v862
      %v875 = vpack.c.b16 %v865, %v864
      %v876 = vpack.c.b16 %v867, %v866
      %v877 = vpack.c.b16 %v869, %v868
      %886 = vmatpush.bf16.msra.mxu0 %v877
      %887 = vmatpush.bf16.msra.mxu0 %v876
      %888 = vmatpush.bf16.msra.mxu0 %v875
      %889 = vmatpush.bf16.msra.mxu0 %v874
      %890 = vmatpush.bf16.msra.mxu0 %v873
      %891 = vmatpush.bf16.msra.mxu0 %v872
      %892 = vmatpush.bf16.msra.mxu0 %v871
      %893 = vmatpush.bf16.msra.mxu0 %v870
      %894 = vmatmul.bf16.gmra.mxu0 %v836
      %v895 = vpop.f32.mrf.mxu0
      %v896 = vadd.f32 0.0, %v895
      %v897 = vpop.f32.mrf.mxu0
      %898 = vdwg.mxu0
      %v899 = vadd.f32 %v818, %v896
      %v900 = vld [vmem:[%s385] sm:$0xf]
      %v901 = vld [vmem:[%s385 + $0x4] sm:$0x1]
      %s902 = scalar_lea.vmem %s3, 384
      %v903 = vld [vmem:[%s902] sm:$0xf]
      %v904 = vld [vmem:[%s902 + $0x4] sm:$0xf]
      %v905 = vld [vmem:[%s902 + $0x8] sm:$0xf]
      %v906 = vld [vmem:[%s902 + $0xc] sm:$0xf]
      %v907 = vld [vmem:[%s902 + $0x10] sm:$0xf]
      %v908 = vld [vmem:[%s902 + $0x14] sm:$0xf]
      %v909 = vld [vmem:[%s902 + $0x18] sm:$0xf]
      %v910 = vld [vmem:[%s902 + $0x1c] sm:$0xf]
      %v911 = vld [vmem:[%s902 + $0x20] sm:$0xf]
      %v912 = vld [vmem:[%s902 + $0x24] sm:$0xf]
      %v913 = vld [vmem:[%s902 + $0x28] sm:$0xf]
      %v914 = vld [vmem:[%s902 + $0x2c] sm:$0xf]
      %v915 = vld [vmem:[%s902 + $0x30] sm:$0xf]
      %v916 = vld [vmem:[%s902 + $0x34] sm:$0xf]
      %v917 = vld [vmem:[%s902 + $0x38] sm:$0xf]
      %v918 = vld [vmem:[%s902 + $0x3c] sm:$0xf]
      %v935 = vunpack.c.l.b16 %v903
      %v936 = vunpack.c.l.b16 %v904
      %v937 = vunpack.c.l.b16 %v905
      %v938 = vunpack.c.l.b16 %v906
      %v939 = vunpack.c.l.b16 %v907
      %v940 = vunpack.c.l.b16 %v908
      %v941 = vunpack.c.l.b16 %v909
      %v942 = vunpack.c.l.b16 %v910
      %v943 = vunpack.c.l.b16 %v911
      %v944 = vunpack.c.l.b16 %v912
      %v945 = vunpack.c.l.b16 %v913
      %v946 = vunpack.c.l.b16 %v914
      %v947 = vunpack.c.l.b16 %v915
      %v948 = vunpack.c.l.b16 %v916
      %v949 = vunpack.c.l.b16 %v917
      %v950 = vunpack.c.l.b16 %v918
      %v951 = vpack.c.b16 %v936, %v935
      %v952 = vpack.c.b16 %v938, %v937
      %v953 = vpack.c.b16 %v940, %v939
      %v954 = vpack.c.b16 %v942, %v941
      %v955 = vpack.c.b16 %v944, %v943
      %v956 = vpack.c.b16 %v946, %v945
      %v957 = vpack.c.b16 %v948, %v947
      %v958 = vpack.c.b16 %v950, %v949
      %967 = vmatpush.bf16.msra.mxu0 %v958
      %968 = vmatpush.bf16.msra.mxu0 %v957
      %969 = vmatpush.bf16.msra.mxu0 %v956
      %970 = vmatpush.bf16.msra.mxu0 %v955
      %971 = vmatpush.bf16.msra.mxu0 %v954
      %972 = vmatpush.bf16.msra.mxu0 %v953
      %973 = vmatpush.bf16.msra.mxu0 %v952
      %974 = vmatpush.bf16.msra.mxu0 %v951
      %975 = vmatmul.bf16.gmra.mxu0 %v900
      %v976 = vpop.f32.mrf.mxu0
      %v977 = vadd.f32 0.0, %v976
      %v978 = vpop.f32.mrf.mxu0
      %979 = vdwg.mxu0
      %v980 = vadd.f32 %v899, %v977
      %s981 = scalar_lea.vmem %s3, 448
      %v982 = vld [vmem:[%s981] sm:$0xf]
      %v983 = vld [vmem:[%s981 + $0x4] sm:$0xf]
      %v984 = vld [vmem:[%s981 + $0x8] sm:$0xf]
      %v985 = vld [vmem:[%s981 + $0xc] sm:$0xf]
      %v986 = vld [vmem:[%s981 + $0x10] sm:$0xf]
      %v987 = vld [vmem:[%s981 + $0x14] sm:$0xf]
      %v988 = vld [vmem:[%s981 + $0x18] sm:$0xf]
      %v989 = vld [vmem:[%s981 + $0x1c] sm:$0xf]
      %v990 = vld [vmem:[%s981 + $0x20] sm:$0xf]
      %v991 = vld [vmem:[%s981 + $0x24] sm:$0xf]
      %v992 = vld [vmem:[%s981 + $0x28] sm:$0xf]
      %v993 = vld [vmem:[%s981 + $0x2c] sm:$0xf]
      %v994 = vld [vmem:[%s981 + $0x30] sm:$0xf]
      %v995 = vld [vmem:[%s981 + $0x34] sm:$0xf]
      %v996 = vld [vmem:[%s981 + $0x38] sm:$0xf]
      %v997 = vld [vmem:[%s981 + $0x3c] sm:$0xf]
      %v1000 = vunpack.c.l.b16 %v900
      %v1001 = vunpack.c.l.b16 %v901
      %v1002 = vpack.c.b16 %v1001, %v1000
      %v1004 = vshrl.u32 %v1002, 16
      %v1006 = vshll.u32 %v1002, 16
      %v1008 = vrot.slane %v1006, 1
      %v1009 = vor.u32 %v1004, %v1008
      %v1027 = vunpack.c.l.b16 %v982
      %v1028 = vunpack.c.l.b16 %v983
      %v1029 = vunpack.c.l.b16 %v984
      %v1030 = vunpack.c.l.b16 %v985
      %v1031 = vunpack.c.l.b16 %v986
      %v1032 = vunpack.c.l.b16 %v987
      %v1033 = vunpack.c.l.b16 %v988
      %v1034 = vunpack.c.l.b16 %v989
      %v1035 = vunpack.c.l.b16 %v990
      %v1036 = vunpack.c.l.b16 %v991
      %v1037 = vunpack.c.l.b16 %v992
      %v1038 = vunpack.c.l.b16 %v993
      %v1039 = vunpack.c.l.b16 %v994
      %v1040 = vunpack.c.l.b16 %v995
      %v1041 = vunpack.c.l.b16 %v996
      %v1042 = vunpack.c.l.b16 %v997
      %v1043 = vpack.c.b16 %v1028, %v1027
      %v1044 = vpack.c.b16 %v1030, %v1029
      %v1045 = vpack.c.b16 %v1032, %v1031
      %v1046 = vpack.c.b16 %v1034, %v1033
      %v1047 = vpack.c.b16 %v1036, %v1035
      %v1048 = vpack.c.b16 %v1038, %v1037
      %v1049 = vpack.c.b16 %v1040, %v1039
      %v1050 = vpack.c.b16 %v1042, %v1041
      %1059 = vmatpush.bf16.msra.mxu0 %v1050
      %1060 = vmatpush.bf16.msra.mxu0 %v1049
      %1061 = vmatpush.bf16.msra.mxu0 %v1048
      %1062 = vmatpush.bf16.msra.mxu0 %v1047
      %1063 = vmatpush.bf16.msra.mxu0 %v1046
      %1064 = vmatpush.bf16.msra.mxu0 %v1045
      %1065 = vmatpush.bf16.msra.mxu0 %v1044
      %1066 = vmatpush.bf16.msra.mxu0 %v1043
      %1067 = vmatmul.bf16.gmra.mxu0 %v1009
      %v1068 = vpop.f32.mrf.mxu0
      %v1069 = vadd.f32 0.0, %v1068
      %v1070 = vpop.f32.mrf.mxu0
      %1071 = vdwg.mxu0
      %v1072 = vadd.f32 %v980, %v1069
      %s1073 = scalar_lea.vmem %s3, 512
      %v1074 = vld [vmem:[%s1073] sm:$0xf]
      %v1075 = vld [vmem:[%s1073 + $0x4] sm:$0xf]
      %v1076 = vld [vmem:[%s1073 + $0x8] sm:$0xf]
      %v1077 = vld [vmem:[%s1073 + $0xc] sm:$0xf]
      %v1078 = vld [vmem:[%s1073 + $0x10] sm:$0xf]
      %v1079 = vld [vmem:[%s1073 + $0x14] sm:$0xf]
      %v1080 = vld [vmem:[%s1073 + $0x18] sm:$0xf]
      %v1081 = vld [vmem:[%s1073 + $0x1c] sm:$0xf]
      %v1082 = vld [vmem:[%s1073 + $0x20] sm:$0xf]
      %v1083 = vld [vmem:[%s1073 + $0x24] sm:$0xf]
      %v1084 = vld [vmem:[%s1073 + $0x28] sm:$0xf]
      %v1085 = vld [vmem:[%s1073 + $0x2c] sm:$0xf]
      %v1086 = vld [vmem:[%s1073 + $0x30] sm:$0xf]
      %v1087 = vld [vmem:[%s1073 + $0x34] sm:$0xf]
      %v1088 = vld [vmem:[%s1073 + $0x38] sm:$0xf]
      %v1089 = vld [vmem:[%s1073 + $0x3c] sm:$0xf]
      %v1090 = vrot.slane %v1002, 1
      %v1108 = vunpack.c.l.b16 %v1074
      %v1109 = vunpack.c.l.b16 %v1075
      %v1110 = vunpack.c.l.b16 %v1076
      %v1111 = vunpack.c.l.b16 %v1077
      %v1112 = vunpack.c.l.b16 %v1078
      %v1113 = vunpack.c.l.b16 %v1079
      %v1114 = vunpack.c.l.b16 %v1080
      %v1115 = vunpack.c.l.b16 %v1081
      %v1116 = vunpack.c.l.b16 %v1082
      %v1117 = vunpack.c.l.b16 %v1083
      %v1118 = vunpack.c.l.b16 %v1084
      %v1119 = vunpack.c.l.b16 %v1085
      %v1120 = vunpack.c.l.b16 %v1086
      %v1121 = vunpack.c.l.b16 %v1087
      %v1122 = vunpack.c.l.b16 %v1088
      %v1123 = vunpack.c.l.b16 %v1089
      %v1124 = vpack.c.b16 %v1109, %v1108
      %v1125 = vpack.c.b16 %v1111, %v1110
      %v1126 = vpack.c.b16 %v1113, %v1112
      %v1127 = vpack.c.b16 %v1115, %v1114
      %v1128 = vpack.c.b16 %v1117, %v1116
      %v1129 = vpack.c.b16 %v1119, %v1118
      %v1130 = vpack.c.b16 %v1121, %v1120
      %v1131 = vpack.c.b16 %v1123, %v1122
      %1140 = vmatpush.bf16.msra.mxu0 %v1131
      %1141 = vmatpush.bf16.msra.mxu0 %v1130
      %1142 = vmatpush.bf16.msra.mxu0 %v1129
      %1143 = vmatpush.bf16.msra.mxu0 %v1128
      %1144 = vmatpush.bf16.msra.mxu0 %v1127
      %1145 = vmatpush.bf16.msra.mxu0 %v1126
      %1146 = vmatpush.bf16.msra.mxu0 %v1125
      %1147 = vmatpush.bf16.msra.mxu0 %v1124
      %1148 = vmatmul.bf16.gmra.mxu0 %v1090
      %v1149 = vpop.f32.mrf.mxu0
      %v1150 = vadd.f32 0.0, %v1149
      %v1151 = vpop.f32.mrf.mxu0
      %1152 = vdwg.mxu0
      %v1153 = vadd.f32 %v1072, %v1150
      %v1154 = vld [vmem:[%s4] sm:$0x1]
      %v1156 = vperm.slane %v1154, 0
      %v1158 = vadd.f32 %v1153, %v1156
      %vm1159 = vcmp.gt.f32.partialorder %v1158, 0.0
      %v1160 = vmin.f32 %v1158, 0.0
      %v1161 = vmul.f32 %v1160, 1.442695
      %v1162 = vpow.pop %v1161
      %v1163 = vsub.f32 %v1162, 1.0
      %v1164 = vsel %vm1159, %v1158, %v1163
      %v1165 = vld [vmem:[%s5] sm:$0xf]
      %v1166 = vld [vmem:[%s5 + $0x4] sm:$0xf]
      %v1167 = vld [vmem:[%s5 + $0x8] sm:$0xf]
      %v1168 = vld [vmem:[%s5 + $0xc] sm:$0xf]
      %v1169 = vld [vmem:[%s5 + $0x10] sm:$0xf]
      %v1170 = vld [vmem:[%s5 + $0x14] sm:$0xf]
      %v1171 = vld [vmem:[%s5 + $0x18] sm:$0xf]
      %v1172 = vld [vmem:[%s5 + $0x1c] sm:$0xf]
      %v1173 = vld [vmem:[%s5 + $0x20] sm:$0xf]
      %v1174 = vld [vmem:[%s5 + $0x24] sm:$0xf]
      %v1175 = vld [vmem:[%s5 + $0x28] sm:$0xf]
      %v1176 = vld [vmem:[%s5 + $0x2c] sm:$0xf]
      %v1177 = vld [vmem:[%s5 + $0x30] sm:$0xf]
      %v1178 = vld [vmem:[%s5 + $0x34] sm:$0xf]
      %v1179 = vld [vmem:[%s5 + $0x38] sm:$0xf]
      %v1180 = vld [vmem:[%s5 + $0x3c] sm:$0xf]
      %v1197 = vunpack.c.l.b16 %v1165
      %v1198 = vunpack.c.l.b16 %v1166
      %v1199 = vunpack.c.l.b16 %v1167
      %v1200 = vunpack.c.l.b16 %v1168
      %v1201 = vunpack.c.l.b16 %v1169
      %v1202 = vunpack.c.l.b16 %v1170
      %v1203 = vunpack.c.l.b16 %v1171
      %v1204 = vunpack.c.l.b16 %v1172
      %v1205 = vunpack.c.l.b16 %v1173
      %v1206 = vunpack.c.l.b16 %v1174
      %v1207 = vunpack.c.l.b16 %v1175
      %v1208 = vunpack.c.l.b16 %v1176
      %v1209 = vunpack.c.l.b16 %v1177
      %v1210 = vunpack.c.l.b16 %v1178
      %v1211 = vunpack.c.l.b16 %v1179
      %v1212 = vunpack.c.l.b16 %v1180
      %v1213 = vpack.c.b16 %v1198, %v1197
      %v1214 = vpack.c.b16 %v1200, %v1199
      %v1215 = vpack.c.b16 %v1202, %v1201
      %v1216 = vpack.c.b16 %v1204, %v1203
      %v1217 = vpack.c.b16 %v1206, %v1205
      %v1218 = vpack.c.b16 %v1208, %v1207
      %v1219 = vpack.c.b16 %v1210, %v1209
      %v1220 = vpack.c.b16 %v1212, %v1211
      %1229 = vmatpush.bf16.msra.mxu0 %v1220
      %1230 = vmatpush.bf16.msra.mxu0 %v1219
      %1231 = vmatpush.bf16.msra.mxu0 %v1218
      %1232 = vmatpush.bf16.msra.mxu0 %v1217
      %1233 = vmatpush.bf16.msra.mxu0 %v1216
      %1234 = vmatpush.bf16.msra.mxu0 %v1215
      %1235 = vmatpush.bf16.msra.mxu0 %v1214
      %1236 = vmatpush.bf16.msra.mxu0 %v1213
      %1237 = vmatmul.bf16.gmra.mxu0 %v755
      %v1238 = vpop.f32.mrf.mxu0
      %v1239 = vadd.f32 0.0, %v1238
      %v1240 = vpop.f32.mrf.mxu0
      %1241 = vdwg.mxu0
      %v1242 = vadd.f32 %v1164, %v1239
      %v1243 = vld [vmem:[%s6] sm:$0x1]
      %v1245 = vperm.slane %v1243, 0
      %v1247 = vadd.f32 %v1242, %v1245
      %v1248 = vpack.c.bf16 %v1247, %v1247
      %vm1249 = vcmask 519168
      %1250 = vst.msk [vmem:[%s394] sm:$0xf] %vm1249, %v1248
      %p1251 = scmp.lt.s32.totalorder %s22, 1
      %s1252 = scalar_select %p1251, %s22, 1
      %p1253 = scmp.lt.s32.totalorder %s23, 7
      %s1254 = scalar_select %p1253, %s23, 7
      %s1255 = smul.addr %s1252, 8
      %s1256 = sadd.s32 %s1254, %s1255
      %s1257 = smul.addr %s1256, 4
      %s1258 = scalar_lea.vmem %s7, %s1257
      // Predicated region
      $region49: #{mpn_forward.14} parent=47 // pred_check
        %p1259 = pneg %p222
      $region50: #{mpn_forward.14} parent=47 // pred_check_branch
        %1261 = sbr.rel (%p1259) target = $region52
      $region51: #{mpn_forward.14} parent=47 // pred_region
        _
      $region52: #{mpn_forward.14} parent=47 // pred_fallthru
        _
    $region48: #{mpn_forward.14} parent=5 // pred_fallthru
      _
    %p1262 = scmp.le.s32.totalorder 2, %s13
    // Predicated region
    $region53: #{mpn_forward.14} parent=5 // pred_check
      %p1263 = pneg %p1262
    $region54: #{mpn_forward.14} parent=5 // pred_check_branch
      %1265 = sbr.rel (%p1263) target = $region56
    $region55: #{mpn_forward.14} parent=5 // pred_region
      %s1266 = ssub.s32 %s13, 2
      // Predicated region
      $region57: #{mpn_forward.14} parent=55 // pred_check
        %p1267 = pneg %p228
      $region58: #{mpn_forward.14} parent=55 // pred_check_branch
        %1269 = sbr.rel (%p1267) target = $region60
      $region59: #{mpn_forward.14} parent=55 // pred_region
        %p1270 = scmp.lt.s32.totalorder %s24, 1
        %s1271 = scalar_select %p1270, %s24, 1
        %p1272 = scmp.lt.s32.totalorder %s25, 7
        %s1273 = scalar_select %p1272, %s25, 7
        %s1274 = smul.addr %s1271, 8
        %s1275 = sadd.s32 %s1273, %s1274
        %s1276 = smul.addr %s1275, 4
        %s1277 = scalar_lea.vmem %s7, %s1276
      $region60: #{mpn_forward.14} parent=55 // pred_fallthru
        _
    $region56: #{mpn_forward.14} parent=5 // pred_fallthru
      _
  $region6: #{mpn_forward.14} parent=0 // loop_footer
    %s17 = sadd.s32 1, %s13
  $region7: #{mpn_forward.14} parent=0 // loop_footer_branch
    %12 = sbr.rel target = $region3
  $region8: #{mpn_forward.14} parent=0 // loop_exit
    _

// kernel: mpn_forward.16
$region0: #{mpn_forward.16}
  #allocation0 [shape = 'u32[]', space=smem, size = 0x4, offset = 0x4, fixed_abs, tag = 'smem constant byte address 0x4 - core index']
  #allocation1 [shape = 'u32[72,128]{1,0:T(1,128)}', space=vmem, size = 0x9000, scoped, tag = 'internal scratch']
  %s0 = inlined_call_operand.vmem [shape: bf16[2,18,18,32], index: 0, kind: input, shape index: {}, may-alias: {0,1,2}]
  %s1 = inlined_call_operand.vmem [shape: bf16[2,18,18,32], index: 1, kind: input, shape index: {}, may-alias: {0,1,2}]
  %s2 = inlined_call_operand.vmem [shape: bf16[2,18,18,32], index: 2, kind: input, shape index: {}, may-alias: {0,1,2}]
  %s3 = inlined_call_operand.vmem [shape: bf16[3,3,32,16], index: 3, kind: input, shape index: {}]
  %s4 = inlined_call_operand.vmem [shape: f32[1,16], index: 4, kind: input, shape index: {}]
  %s5 = inlined_call_operand.vmem [shape: bf16[2,16,16,16], index: 5, kind: output, shape index: {}]
  %s6 = sld [smem:[#allocation0]]
  $region53: #{mpn_forward.16} parent=0
    _
  %s8 = ssub.s32 1, %s6
  %s9 = scalar_select 0, %s8, %s6
  loop: start=0, step=1, limit=34
  $region2: #{mpn_forward.16} parent=0 // loop_pre_header
    _
  $region3: #{mpn_forward.16} parent=0 // loop_header
    %s11 = sphi 0, %s15
    %p12 = scmp.ge.s32.totalorder %s11, 34
    %s18 = sphi 0, %s30
    %s19 = sphi 0, %s26
    %s20 = sphi 0, %s18
    %s21 = sphi 0, %s19
    %s22 = sphi 0, %s20
    %s23 = sphi 0, %s21
    %s35 = sphi 0, %s37
    %s38 = sphi 0, %s35
    %s39 = sphi 0, %s38
    %s55 = sphi 0, %s39
    %s65 = sphi 0, %s67
    %s68 = sphi 0, %s65
    %s69 = sphi 0, %s68
    %s85 = sphi 0, %s69
    %s95 = sphi 0, %s97
    %s98 = sphi 0, %s95
    %s99 = sphi 0, %s98
    %s115 = sphi 0, %s99
    %s119 = sphi 0, %s119
    %s121 = sphi 0, %s119
    %s122 = sphi 0, %s121
    %s136 = sphi 0, %s122
    %s140 = sphi 0, %s140
    %s142 = sphi 0, %s140
    %s143 = sphi 0, %s142
    %s157 = sphi 0, %s143
    %s165 = sphi 0, %s167
    %s168 = sphi 0, %s165
    %s169 = sphi 0, %s168
    %s185 = sphi 0, %s169
  $region4: #{mpn_forward.16} parent=0 // loop_header_branch
    %14 = sbr.rel (%p12) target = $region8
  $region5: #{mpn_forward.16} parent=0 // loop_body
    %s16 = ssub.s32 %s11, 1
    %s17 = ssub.s32 %s11, 2
    %s24 = sadd.s32 1, %s19
    %p25 = scmp.ge.s32.totalorder %s24, 16
    %s26 = scalar_select %p25, 0, %s24
    %s27 = sadd.s32 1, %s18
    %s28 = scalar_select %p25, %s27, %s18
    %p29 = scmp.ge.s32.totalorder %s28, 2
    %s30 = scalar_select %p29, 0, %s28
    %s31 = ssub.s32 %s18, %s30
    %s32 = ssub.s32 %s19, %s26
    %s33 = sor.u32 %s31, %s32
    %p34 = scmp.eq.s32.totalorder %s33, 0
    %s36 = sadd.s32 %s35, 1
    %s37 = scalar_select %p34, %s35, %s36
    %p40 = pneg %p34
    %p41 = scmp.eq.s32.totalorder %s11, 31
    %p42 = por %p40, %p41
    %p43 = scmp.ne.s32.totalorder %s35, %s38
    %p44 = scmp.eq.s32.totalorder %s11, 0
    %p45 = por %p43, %p44
    %p46 = scmp.ne.s32.totalorder %s35, %s38
    %p47 = scmp.eq.s32.totalorder %s16, 31
    %p48 = por %p46, %p47
    %p49 = scmp.ne.s32.totalorder %s38, %s39
    %p50 = scmp.eq.s32.totalorder %s16, 0
    %p51 = por %p49, %p50
    %p52 = scmp.ne.s32.totalorder %s38, %s39
    %p53 = scmp.eq.s32.totalorder %s17, 31
    %p54 = por %p52, %p53
    %p56 = scmp.ne.s32.totalorder %s39, %s55
    %p57 = scmp.eq.s32.totalorder %s17, 0
    %p58 = por %p56, %p57
    %s59 = sadd.s32 %s19, 1
    %s60 = sadd.s32 %s26, 1
    %s61 = ssub.s32 %s18, %s30
    %s62 = ssub.s32 %s59, %s60
    %s63 = sor.u32 %s61, %s62
    %p64 = scmp.eq.s32.totalorder %s63, 0
    %s66 = sadd.s32 %s65, 1
    %s67 = scalar_select %p64, %s65, %s66
    %p70 = pneg %p64
    %p71 = scmp.eq.s32.totalorder %s11, 31
    %p72 = por %p70, %p71
    %p73 = scmp.ne.s32.totalorder %s65, %s68
    %p74 = scmp.eq.s32.totalorder %s11, 0
    %p75 = por %p73, %p74
    %p76 = scmp.ne.s32.totalorder %s65, %s68
    %p77 = scmp.eq.s32.totalorder %s16, 31
    %p78 = por %p76, %p77
    %p79 = scmp.ne.s32.totalorder %s68, %s69
    %p80 = scmp.eq.s32.totalorder %s16, 0
    %p81 = por %p79, %p80
    %p82 = scmp.ne.s32.totalorder %s68, %s69
    %p83 = scmp.eq.s32.totalorder %s17, 31
    %p84 = por %p82, %p83
    %p86 = scmp.ne.s32.totalorder %s69, %s85
    %p87 = scmp.eq.s32.totalorder %s17, 0
    %p88 = por %p86, %p87
    %s89 = sadd.s32 %s19, 2
    %s90 = sadd.s32 %s26, 2
    %s91 = ssub.s32 %s18, %s30
    %s92 = ssub.s32 %s89, %s90
    %s93 = sor.u32 %s91, %s92
    %p94 = scmp.eq.s32.totalorder %s93, 0
    %s96 = sadd.s32 %s95, 1
    %s97 = scalar_select %p94, %s95, %s96
    %p100 = pneg %p94
    %p101 = scmp.eq.s32.totalorder %s11, 31
    %p102 = por %p100, %p101
    %p103 = scmp.ne.s32.totalorder %s95, %s98
    %p104 = scmp.eq.s32.totalorder %s11, 0
    %p105 = por %p103, %p104
    %p106 = scmp.ne.s32.totalorder %s95, %s98
    %p107 = scmp.eq.s32.totalorder %s16, 31
    %p108 = por %p106, %p107
    %p109 = scmp.ne.s32.totalorder %s98, %s99
    %p110 = scmp.eq.s32.totalorder %s16, 0
    %p111 = por %p109, %p110
    %p112 = scmp.ne.s32.totalorder %s98, %s99
    %p113 = scmp.eq.s32.totalorder %s17, 31
    %p114 = por %p112, %p113
    %p116 = scmp.ne.s32.totalorder %s99, %s115
    %p117 = scmp.eq.s32.totalorder %s17, 0
    %p118 = por %p116, %p117
    %s120 = sadd.s32 %s119, 1
    %p123 = scmp.eq.s32.totalorder %s11, 31
    %p124 = scmp.ne.s32.totalorder %s119, %s121
    %p125 = scmp.eq.s32.totalorder %s11, 0
    %p126 = por %p124, %p125
    %p127 = scmp.ne.s32.totalorder %s119, %s121
    %p128 = scmp.eq.s32.totalorder %s16, 31
    %p129 = por %p127, %p128
    %p130 = scmp.ne.s32.totalorder %s121, %s122
    %p131 = scmp.eq.s32.totalorder %s16, 0
    %p132 = por %p130, %p131
    %p133 = scmp.ne.s32.totalorder %s121, %s122
    %p134 = scmp.eq.s32.totalorder %s17, 31
    %p135 = por %p133, %p134
    %p137 = scmp.ne.s32.totalorder %s122, %s136
    %p138 = scmp.eq.s32.totalorder %s17, 0
    %p139 = por %p137, %p138
    %s141 = sadd.s32 %s140, 1
    %p144 = scmp.eq.s32.totalorder %s11, 31
    %p145 = scmp.ne.s32.totalorder %s140, %s142
    %p146 = scmp.eq.s32.totalorder %s11, 0
    %p147 = por %p145, %p146
    %p148 = scmp.ne.s32.totalorder %s140, %s142
    %p149 = scmp.eq.s32.totalorder %s16, 31
    %p150 = por %p148, %p149
    %p151 = scmp.ne.s32.totalorder %s142, %s143
    %p152 = scmp.eq.s32.totalorder %s16, 0
    %p153 = por %p151, %p152
    %p154 = scmp.ne.s32.totalorder %s142, %s143
    %p155 = scmp.eq.s32.totalorder %s17, 31
    %p156 = por %p154, %p155
    %p158 = scmp.ne.s32.totalorder %s143, %s157
    %p159 = scmp.eq.s32.totalorder %s17, 0
    %p160 = por %p158, %p159
    %s161 = ssub.s32 %s18, %s30
    %s162 = ssub.s32 %s19, %s26
    %s163 = sor.u32 %s161, %s162
    %p164 = scmp.eq.s32.totalorder %s163, 0
    %s166 = sadd.s32 %s165, 1
    %s167 = scalar_select %p164, %s165, %s166
    %p170 = pneg %p164
    %p171 = scmp.eq.s32.totalorder %s11, 31
    %p172 = por %p170, %p171
    %p173 = scmp.ne.s32.totalorder %s165, %s168
    %p174 = scmp.eq.s32.totalorder %s11, 0
    %p175 = por %p173, %p174
    %p176 = scmp.ne.s32.totalorder %s165, %s168
    %p177 = scmp.eq.s32.totalorder %s16, 31
    %p178 = por %p176, %p177
    %p179 = scmp.ne.s32.totalorder %s168, %s169
    %p180 = scmp.eq.s32.totalorder %s16, 0
    %p181 = por %p179, %p180
    %p182 = scmp.ne.s32.totalorder %s168, %s169
    %p183 = scmp.eq.s32.totalorder %s17, 31
    %p184 = por %p182, %p183
    %p186 = scmp.ne.s32.totalorder %s169, %s185
    %p187 = scmp.eq.s32.totalorder %s17, 0
    %p188 = por %p186, %p187
    %p189 = scmp.le.s32.totalorder 1, %s11
    %p190 = scmp.lt.s32.totalorder %s11, 33
    %p191 = pnand %p189, %p190
    %p192 = pneg %p191
    // Predicated region
    $region9: #{mpn_forward.16} parent=5 // pred_check
      _
    $region10: #{mpn_forward.16} parent=5 // pred_check_branch
      %194 = sbr.rel (%p191) target = $region12
    $region11: #{mpn_forward.16} parent=5 // pred_region
      %s195 = ssub.s32 %s11, 1
      // Predicated region
      $region13: #{mpn_forward.16} parent=11 // pred_check
        %p196 = pneg %p132
      $region14: #{mpn_forward.16} parent=11 // pred_check_branch
        %198 = sbr.rel (%p196) target = $region16
      $region15: #{mpn_forward.16} parent=11 // pred_region
        _
      $region16: #{mpn_forward.16} parent=11 // pred_fallthru
        _
      // Predicated region
      $region17: #{mpn_forward.16} parent=11 // pred_check
        %p199 = pneg %p153
      $region18: #{mpn_forward.16} parent=11 // pred_check_branch
        %201 = sbr.rel (%p199) target = $region20
      $region19: #{mpn_forward.16} parent=11 // pred_region
        _
      $region20: #{mpn_forward.16} parent=11 // pred_fallthru
        _
    $region12: #{mpn_forward.16} parent=5 // pred_fallthru
      _
    %p202 = scmp.lt.s32.totalorder %s11, 32
    // Predicated region
    $region21: #{mpn_forward.16} parent=5 // pred_check
      %p203 = pneg %p202
    $region22: #{mpn_forward.16} parent=5 // pred_check_branch
      %205 = sbr.rel (%p203) target = $region24
    $region23: #{mpn_forward.16} parent=5 // pred_region
      // Predicated region
      $region25: #{mpn_forward.16} parent=23 // pred_check
        %p206 = pneg %p45
      $region26: #{mpn_forward.16} parent=23 // pred_check_branch
        %208 = sbr.rel (%p206) target = $region28
      $region27: #{mpn_forward.16} parent=23 // pred_region
        %p209 = scmp.lt.s32.totalorder %s18, 1
        %s210 = scalar_select %p209, %s18, 1
        %p211 = scmp.lt.s32.totalorder %s19, 17
        %s212 = scalar_select %p211, %s19, 17
        %s213 = smul.addr %s212, 3
        %s214 = smul.addr %s210, 54
        %s215 = sadd.s32 %s213, %s214
        %s216 = smul.addr %s215, 4
        %s217 = scalar_lea.vmem %s0, %s216
      $region28: #{mpn_forward.16} parent=23 // pred_fallthru
        _
      // Predicated region
      $region29: #{mpn_forward.16} parent=23 // pred_check
        %p218 = pneg %p75
      $region30: #{mpn_forward.16} parent=23 // pred_check_branch
        %220 = sbr.rel (%p218) target = $region32
      $region31: #{mpn_forward.16} parent=23 // pred_region
        %s221 = sadd.s32 %s19, 1
        %p222 = scmp.lt.s32.totalorder %s18, 1
        %s223 = scalar_select %p222, %s18, 1
        %p224 = scmp.lt.s32.totalorder %s221, 17
        %s225 = scalar_select %p224, %s221, 17
        %s226 = smul.addr %s225, 3
        %s227 = smul.addr %s223, 54
        %s228 = sadd.s32 %s226, %s227
        %s229 = smul.addr %s228, 4
        %s230 = scalar_lea.vmem %s1, %s229
        %s231 = sadd.s32 %s19, 1
      $region32: #{mpn_forward.16} parent=23 // pred_fallthru
        _
      // Predicated region
      $region33: #{mpn_forward.16} parent=23 // pred_check
        %p232 = pneg %p105
      $region34: #{mpn_forward.16} parent=23 // pred_check_branch
        %234 = sbr.rel (%p232) target = $region36
      $region35: #{mpn_forward.16} parent=23 // pred_region
        %s235 = sadd.s32 %s19, 2
        %p236 = scmp.lt.s32.totalorder %s18, 1
        %s237 = scalar_select %p236, %s18, 1
        %p238 = scmp.lt.s32.totalorder %s235, 17
        %s239 = scalar_select %p238, %s235, 17
        %s240 = smul.addr %s239, 3
        %s241 = smul.addr %s237, 54
        %s242 = sadd.s32 %s240, %s241
        %s243 = smul.addr %s242, 4
        %s244 = scalar_lea.vmem %s2, %s243
        %s245 = sadd.s32 %s19, 2
      $region36: #{mpn_forward.16} parent=23 // pred_fallthru
        _
    $region24: #{mpn_forward.16} parent=5 // pred_fallthru
      _
    %p246 = scmp.le.s32.totalorder 1, %s11
    %p247 = scmp.lt.s32.totalorder %s11, 33
    %p248 = pnand %p246, %p247
    %p249 = pneg %p248
    // Predicated region
    $region37: #{mpn_forward.16} parent=5 // pred_check
      _
    $region38: #{mpn_forward.16} parent=5 // pred_check_branch
      %251 = sbr.rel (%p248) target = $region40
    $region39: #{mpn_forward.16} parent=5 // pred_region
      %s252 = ssub.s32 %s11, 1
      %p253 = scmp.lt.s32.totalorder %s20, 1
      %s254 = scalar_select %p253, %s20, 1
      %p255 = scmp.lt.s32.totalorder %s21, 17
      %s256 = scalar_select %p255, %s21, 17
      %s257 = smul.addr %s256, 3
      %s258 = smul.addr %s254, 54
      %s259 = sadd.s32 %s257, %s258
      %s260 = smul.addr %s259, 4
      %s261 = scalar_lea.vmem %s0, %s260
      %p262 = pneg %p51
      %p263 = pneg %p48
      %s264 = sadd.s32 %s21, 1
      %p265 = scmp.lt.s32.totalorder %s20, 1
      %s266 = scalar_select %p265, %s20, 1
      %p267 = scmp.lt.s32.totalorder %s264, 17
      %s268 = scalar_select %p267, %s264, 17
      %s269 = smul.addr %s268, 3
      %s270 = smul.addr %s266, 54
      %s271 = sadd.s32 %s269, %s270
      %s272 = smul.addr %s271, 4
      %s273 = scalar_lea.vmem %s1, %s272
      %p274 = pneg %p81
      %p275 = pneg %p78
      %s276 = sadd.s32 %s21, 2
      %p277 = scmp.lt.s32.totalorder %s20, 1
      %s278 = scalar_select %p277, %s20, 1
      %p279 = scmp.lt.s32.totalorder %s276, 17
      %s280 = scalar_select %p279, %s276, 17
      %s281 = smul.addr %s280, 3
      %s282 = smul.addr %s278, 54
      %s283 = sadd.s32 %s281, %s282
      %s284 = smul.addr %s283, 4
      %s285 = scalar_lea.vmem %s2, %s284
      %p286 = pneg %p111
      %p287 = pneg %p108
      %p288 = pneg %p132
      %p289 = pneg %p129
      %p290 = pneg %p153
      %p291 = pneg %p150
      %p292 = pneg %p181
      %p293 = pneg %p178
      %p294 = scmp.lt.s32.totalorder %s20, 1
      %s295 = scalar_select %p294, %s20, 1
      %p296 = scmp.lt.s32.totalorder %s21, 15
      %s297 = scalar_select %p296, %s21, 15
      %s298 = smul.addr %s297, 2
      %s299 = smul.addr %s295, 32
      %s300 = sadd.s32 %s298, %s299
      %s301 = smul.addr %s300, 4
      %s302 = scalar_lea.vmem %s5, %s301
      %p303 = scmp.lt.s32.totalorder %s20, 1
      %s304 = scalar_select %p303, %s20, 1
      %p305 = scmp.lt.s32.totalorder %s21, 17
      %s306 = scalar_select %p305, %s21, 17
      %s307 = smul.addr %s306, 3
      %s308 = smul.addr %s304, 54
      %s309 = sadd.s32 %s307, %s308
      %s310 = smul.addr %s309, 4
      %s311 = scalar_lea.vmem %s0, %s310
      %s312 = sadd.s32 %s21, 1
      %p313 = scmp.lt.s32.totalorder %s20, 1
      %s314 = scalar_select %p313, %s20, 1
      %p315 = scmp.lt.s32.totalorder %s312, 17
      %s316 = scalar_select %p315, %s312, 17
      %s317 = smul.addr %s316, 3
      %s318 = smul.addr %s314, 54
      %s319 = sadd.s32 %s317, %s318
      %s320 = smul.addr %s319, 4
      %s321 = scalar_lea.vmem %s1, %s320
      %s322 = sadd.s32 %s21, 1
      %s323 = sadd.s32 %s21, 2
      %p324 = scmp.lt.s32.totalorder %s20, 1
      %s325 = scalar_select %p324, %s20, 1
      %p326 = scmp.lt.s32.totalorder %s323, 17
      %s327 = scalar_select %p326, %s323, 17
      %s328 = smul.addr %s327, 3
      %s329 = smul.addr %s325, 54
      %s330 = sadd.s32 %s328, %s329
      %s331 = smul.addr %s330, 4
      %s332 = scalar_lea.vmem %s2, %s331
      %s333 = sadd.s32 %s21, 2
      %p334 = scmp.lt.s32.totalorder %s20, 1
      %s335 = scalar_select %p334, %s20, 1
      %p336 = scmp.lt.s32.totalorder %s21, 15
      %s337 = scalar_select %p336, %s21, 15
      %s338 = smul.addr %s337, 2
      %s339 = smul.addr %s335, 32
      %s340 = sadd.s32 %s338, %s339
      %s341 = smul.addr %s340, 4
      %s342 = scalar_lea.vmem %s5, %s341
      %v344 = vld [vmem:[%s311] sm:$0xf]
      %v345 = vld [vmem:[%s311 + $0x4] sm:$0xf]
      %v346 = vld [vmem:[%s311 + $0x8] sm:$0x1]
      %v347 = vld [vmem:[%s3] sm:$0xf]
      %v348 = vld [vmem:[%s3 + $0x4] sm:$0xf]
      %v349 = vld [vmem:[%s3 + $0x8] sm:$0xf]
      %v350 = vld [vmem:[%s3 + $0xc] sm:$0xf]
      %s351 = scalar_lea.vmem %s3, 16
      %v352 = vld [vmem:[%s351] sm:$0xf]
      %v353 = vld [vmem:[%s351 + $0x4] sm:$0xf]
      %v354 = vld [vmem:[%s351 + $0x8] sm:$0xf]
      %v355 = vld [vmem:[%s351 + $0xc] sm:$0xf]
      %v359 = vunpack.c.l.b16 %v344
      %v360 = vunpack.c.l.b16 %v345
      %v361 = vunpack.c.l.b16 %v346
      %v362 = vpack.c.b16 %v360, %v359
      %v363 = vpack.c.b16 %v361, %v361
      %vm364 = vsmask.f32 7424
      %v366 = vshrl.u32 %v362, 16
      %v368 = vshll.u32 %v362, 16
      %v370 = vrot.slane %v368, 1
      %v371 = vor.u32 %v366, %v370
      %v373 = vshll.u32 %v363, 16
      %v375 = vrot.slane %v373, 1
      %v376 = vsel %vm364, %v371, %v375
      %v381 = vunpack.c.l.b16 %v352
      %v382 = vunpack.c.l.b16 %v353
      %v383 = vunpack.c.l.b16 %v354
      %v384 = vunpack.c.l.b16 %v355
      %v385 = vpack.c.b16 %v382, %v381
      %v386 = vpack.c.b16 %v384, %v383
      %vm389 = vcmask 261120
      %v391 = vsel %vm389, %v376, 0
      %393 = vmatpush.bf16.msra.mxu0 0
      %394 = vmatpush.bf16.msra.mxu0 0
      %395 = vmatpush.bf16.msra.mxu0 0
      %396 = vmatpush.bf16.msra.mxu0 0
      %397 = vmatpush.bf16.msra.mxu0 0
      %398 = vmatpush.bf16.msra.mxu0 0
      %399 = vmatpush.bf16.msra.mxu0 %v386
      %400 = vmatpush.bf16.msra.mxu0 %v385
      %401 = vmatmul.bf16.gmra.mxu0 %v391
      %v402 = vpop.f32.mrf.mxu0
      %v403 = vadd.f32 0.0, %v402
      %v404 = vpop.f32.mrf.mxu0
      %v405 = vadd.f32 0.0, %v404
      %406 = vdwg.mxu0
      %v411 = vunpack.c.l.b16 %v347
      %v412 = vunpack.c.l.b16 %v348
      %v413 = vunpack.c.l.b16 %v349
      %v414 = vunpack.c.l.b16 %v350
      %v415 = vpack.c.b16 %v412, %v411
      %v416 = vpack.c.b16 %v414, %v413
      %v419 = vsel %vm389, %v362, 0
      %421 = vmatpush.bf16.msra.mxu0 0
      %422 = vmatpush.bf16.msra.mxu0 0
      %423 = vmatpush.bf16.msra.mxu0 0
      %424 = vmatpush.bf16.msra.mxu0 0
      %425 = vmatpush.bf16.msra.mxu0 0
      %426 = vmatpush.bf16.msra.mxu0 0
      %427 = vmatpush.bf16.msra.mxu0 %v416
      %428 = vmatpush.bf16.msra.mxu0 %v415
      %429 = vmatmul.bf16.gmra.mxu0 %v419
      %v430 = vpop.f32.mrf.mxu0
      %v431 = vadd.f32 %v403, %v430
      %v432 = vpop.f32.mrf.mxu0
      %v433 = vadd.f32 %v405, %v432
      %434 = vdwg.mxu0
      %s435 = scalar_lea.vmem %s3, 32
      %v436 = vld [vmem:[%s435] sm:$0xf]
      %v437 = vld [vmem:[%s435 + $0x4] sm:$0xf]
      %v438 = vld [vmem:[%s435 + $0x8] sm:$0xf]
      %v439 = vld [vmem:[%s435 + $0xc] sm:$0xf]
      %vm440 = vcmask 1046528
      %v441 = vrot.slane %v362, 1
      %v442 = vrot.slane %v363, 1
      %v443 = vsel %vm440, %v441, %v442
      %v448 = vunpack.c.l.b16 %v436
      %v449 = vunpack.c.l.b16 %v437
      %v450 = vunpack.c.l.b16 %v438
      %v451 = vunpack.c.l.b16 %v439
      %v452 = vpack.c.b16 %v449, %v448
      %v453 = vpack.c.b16 %v451, %v450
      %v457 = vsel %vm389, %v443, 0
      %459 = vmatpush.bf16.msra.mxu0 0
      %460 = vmatpush.bf16.msra.mxu0 0
      %461 = vmatpush.bf16.msra.mxu0 0
      %462 = vmatpush.bf16.msra.mxu0 0
      %463 = vmatpush.bf16.msra.mxu0 0
      %464 = vmatpush.bf16.msra.mxu0 0
      %465 = vmatpush.bf16.msra.mxu0 %v453
      %466 = vmatpush.bf16.msra.mxu0 %v452
      %467 = vmatmul.bf16.gmra.mxu0 %v457
      %v468 = vpop.f32.mrf.mxu0
      %v469 = vadd.f32 0.0, %v468
      %v470 = vpop.f32.mrf.mxu0
      %v471 = vadd.f32 0.0, %v470
      %472 = vdwg.mxu0
      %v473 = vadd.f32 %v431, %v469
      %v474 = vadd.f32 %v433, %v471
      %v475 = vld [vmem:[%s321] sm:$0xf]
      %v476 = vld [vmem:[%s321 + $0x4] sm:$0xf]
      %v477 = vld [vmem:[%s321 + $0x8] sm:$0x1]
      %s478 = scalar_lea.vmem %s3, 48
      %v479 = vld [vmem:[%s478] sm:$0xf]
      %v480 = vld [vmem:[%s478 + $0x4] sm:$0xf]
      %v481 = vld [vmem:[%s478 + $0x8] sm:$0xf]
      %v482 = vld [vmem:[%s478 + $0xc] sm:$0xf]
      %v485 = vunpack.c.l.b16 %v475
      %v486 = vunpack.c.l.b16 %v476
      %v487 = vpack.c.b16 %v486, %v485
      %v492 = vunpack.c.l.b16 %v479
      %v493 = vunpack.c.l.b16 %v480
      %v494 = vunpack.c.l.b16 %v481
      %v495 = vunpack.c.l.b16 %v482
      %v496 = vpack.c.b16 %v493, %v492
      %v497 = vpack.c.b16 %v495, %v494
      %v501 = vsel %vm389, %v487, 0
      %503 = vmatpush.bf16.msra.mxu0 0
      %504 = vmatpush.bf16.msra.mxu0 0
      %505 = vmatpush.bf16.msra.mxu0 0
      %506 = vmatpush.bf16.msra.mxu0 0
      %507 = vmatpush.bf16.msra.mxu0 0
      %508 = vmatpush.bf16.msra.mxu0 0
      %509 = vmatpush.bf16.msra.mxu0 %v497
      %510 = vmatpush.bf16.msra.mxu0 %v496
      %511 = vmatmul.bf16.gmra.mxu0 %v501
      %v512 = vpop.f32.mrf.mxu0
      %v513 = vadd.f32 0.0, %v512
      %v514 = vpop.f32.mrf.mxu0
      %v515 = vadd.f32 0.0, %v514
      %516 = vdwg.mxu0
      %v517 = vadd.f32 %v473, %v513
      %v518 = vadd.f32 %v474, %v515
      %s519 = scalar_lea.vmem %s3, 64
      %v520 = vld [vmem:[%s519] sm:$0xf]
      %v521 = vld [vmem:[%s519 + $0x4] sm:$0xf]
      %v522 = vld [vmem:[%s519 + $0x8] sm:$0xf]
      %v523 = vld [vmem:[%s519 + $0xc] sm:$0xf]
      %v525 = vunpack.c.l.b16 %v477
      %v526 = vpack.c.b16 %v525, %v525
      %v527 = vshrl.u32 %v487, 16
      %v529 = vshll.u32 %v487, 16
      %v531 = vrot.slane %v529, 1
      %v532 = vor.u32 %v527, %v531
      %v534 = vshll.u32 %v526, 16
      %v536 = vrot.slane %v534, 1
      %v537 = vsel %vm364, %v532, %v536
      %v542 = vunpack.c.l.b16 %v520
      %v543 = vunpack.c.l.b16 %v521
      %v544 = vunpack.c.l.b16 %v522
      %v545 = vunpack.c.l.b16 %v523
      %v546 = vpack.c.b16 %v543, %v542
      %v547 = vpack.c.b16 %v545, %v544
      %v551 = vsel %vm389, %v537, 0
      %553 = vmatpush.bf16.msra.mxu0 0
      %554 = vmatpush.bf16.msra.mxu0 0
      %555 = vmatpush.bf16.msra.mxu0 0
      %556 = vmatpush.bf16.msra.mxu0 0
      %557 = vmatpush.bf16.msra.mxu0 0
      %558 = vmatpush.bf16.msra.mxu0 0
      %559 = vmatpush.bf16.msra.mxu0 %v547
      %560 = vmatpush.bf16.msra.mxu0 %v546
      %561 = vmatmul.bf16.gmra.mxu0 %v551
      %v562 = vpop.f32.mrf.mxu0
      %v563 = vadd.f32 0.0, %v562
      %v564 = vpop.f32.mrf.mxu0
      %v565 = vadd.f32 0.0, %v564
      %566 = vdwg.mxu0
      %v567 = vadd.f32 %v517, %v563
      %v568 = vadd.f32 %v518, %v565
      %s569 = scalar_lea.vmem %s3, 80
      %v570 = vld [vmem:[%s569] sm:$0xf]
      %v571 = vld [vmem:[%s569 + $0x4] sm:$0xf]
      %v572 = vld [vmem:[%s569 + $0x8] sm:$0xf]
      %v573 = vld [vmem:[%s569 + $0xc] sm:$0xf]
      %v574 = vrot.slane %v487, 1
      %v575 = vrot.slane %v526, 1
      %v576 = vsel %vm440, %v574, %v575
      %v581 = vunpack.c.l.b16 %v570
      %v582 = vunpack.c.l.b16 %v571
      %v583 = vunpack.c.l.b16 %v572
      %v584 = vunpack.c.l.b16 %v573
      %v585 = vpack.c.b16 %v582, %v581
      %v586 = vpack.c.b16 %v584, %v583
      %v590 = vsel %vm389, %v576, 0
      %592 = vmatpush.bf16.msra.mxu0 0
      %593 = vmatpush.bf16.msra.mxu0 0
      %594 = vmatpush.bf16.msra.mxu0 0
      %595 = vmatpush.bf16.msra.mxu0 0
      %596 = vmatpush.bf16.msra.mxu0 0
      %597 = vmatpush.bf16.msra.mxu0 0
      %598 = vmatpush.bf16.msra.mxu0 %v586
      %599 = vmatpush.bf16.msra.mxu0 %v585
      %600 = vmatmul.bf16.gmra.mxu0 %v590
      %v601 = vpop.f32.mrf.mxu0
      %v602 = vadd.f32 0.0, %v601
      %v603 = vpop.f32.mrf.mxu0
      %v604 = vadd.f32 0.0, %v603
      %605 = vdwg.mxu0
      %v606 = vadd.f32 %v567, %v602
      %v607 = vadd.f32 %v568, %v604
      %v608 = vld [vmem:[%s332] sm:$0xf]
      %v609 = vld [vmem:[%s332 + $0x4] sm:$0xf]
      %v610 = vld [vmem:[%s332 + $0x8] sm:$0x1]
      %s611 = scalar_lea.vmem %s3, 96
      %v612 = vld [vmem:[%s611] sm:$0xf]
      %v613 = vld [vmem:[%s611 + $0x4] sm:$0xf]
      %v614 = vld [vmem:[%s611 + $0x8] sm:$0xf]
      %v615 = vld [vmem:[%s611 + $0xc] sm:$0xf]
      %v618 = vunpack.c.l.b16 %v608
      %v619 = vunpack.c.l.b16 %v609
      %v620 = vpack.c.b16 %v619, %v618
      %v625 = vunpack.c.l.b16 %v612
      %v626 = vunpack.c.l.b16 %v613
      %v627 = vunpack.c.l.b16 %v614
      %v628 = vunpack.c.l.b16 %v615
      %v629 = vpack.c.b16 %v626, %v625
      %v630 = vpack.c.b16 %v628, %v627
      %v634 = vsel %vm389, %v620, 0
      %636 = vmatpush.bf16.msra.mxu0 0
      %637 = vmatpush.bf16.msra.mxu0 0
      %638 = vmatpush.bf16.msra.mxu0 0
      %639 = vmatpush.bf16.msra.mxu0 0
      %640 = vmatpush.bf16.msra.mxu0 0
      %641 = vmatpush.bf16.msra.mxu0 0
      %642 = vmatpush.bf16.msra.mxu0 %v630
      %643 = vmatpush.bf16.msra.mxu0 %v629
      %644 = vmatmul.bf16.gmra.mxu0 %v634
      %v645 = vpop.f32.mrf.mxu0
      %v646 = vadd.f32 0.0, %v645
      %v647 = vpop.f32.mrf.mxu0
      %v648 = vadd.f32 0.0, %v647
      %649 = vdwg.mxu0
      %v650 = vadd.f32 %v606, %v646
      %v651 = vadd.f32 %v607, %v648
      %s652 = scalar_lea.vmem %s3, 112
      %v653 = vld [vmem:[%s652] sm:$0xf]
      %v654 = vld [vmem:[%s652 + $0x4] sm:$0xf]
      %v655 = vld [vmem:[%s652 + $0x8] sm:$0xf]
      %v656 = vld [vmem:[%s652 + $0xc] sm:$0xf]
      %v658 = vunpack.c.l.b16 %v610
      %v659 = vpack.c.b16 %v658, %v658
      %v660 = vshrl.u32 %v620, 16
      %v662 = vshll.u32 %v620, 16
      %v664 = vrot.slane %v662, 1
      %v665 = vor.u32 %v660, %v664
      %v667 = vshll.u32 %v659, 16
      %v669 = vrot.slane %v667, 1
      %v670 = vsel %vm364, %v665, %v669
      %v675 = vunpack.c.l.b16 %v653
      %v676 = vunpack.c.l.b16 %v654
      %v677 = vunpack.c.l.b16 %v655
      %v678 = vunpack.c.l.b16 %v656
      %v679 = vpack.c.b16 %v676, %v675
      %v680 = vpack.c.b16 %v678, %v677
      %v684 = vsel %vm389, %v670, 0
      %686 = vmatpush.bf16.msra.mxu0 0
      %687 = vmatpush.bf16.msra.mxu0 0
      %688 = vmatpush.bf16.msra.mxu0 0
      %689 = vmatpush.bf16.msra.mxu0 0
      %690 = vmatpush.bf16.msra.mxu0 0
      %691 = vmatpush.bf16.msra.mxu0 0
      %692 = vmatpush.bf16.msra.mxu0 %v680
      %693 = vmatpush.bf16.msra.mxu0 %v679
      %694 = vmatmul.bf16.gmra.mxu0 %v684
      %v695 = vpop.f32.mrf.mxu0
      %v696 = vadd.f32 0.0, %v695
      %v697 = vpop.f32.mrf.mxu0
      %v698 = vadd.f32 0.0, %v697
      %699 = vdwg.mxu0
      %v700 = vadd.f32 %v650, %v696
      %v701 = vadd.f32 %v651, %v698
      %s702 = scalar_lea.vmem %s3, 128
      %v703 = vld [vmem:[%s702] sm:$0xf]
      %v704 = vld [vmem:[%s702 + $0x4] sm:$0xf]
      %v705 = vld [vmem:[%s702 + $0x8] sm:$0xf]
      %v706 = vld [vmem:[%s702 + $0xc] sm:$0xf]
      %v707 = vrot.slane %v620, 1
      %v708 = vrot.slane %v659, 1
      %v709 = vsel %vm440, %v707, %v708
      %v714 = vunpack.c.l.b16 %v703
      %v715 = vunpack.c.l.b16 %v704
      %v716 = vunpack.c.l.b16 %v705
      %v717 = vunpack.c.l.b16 %v706
      %v718 = vpack.c.b16 %v715, %v714
      %v719 = vpack.c.b16 %v717, %v716
      %v723 = vsel %vm389, %v709, 0
      %725 = vmatpush.bf16.msra.mxu0 0
      %726 = vmatpush.bf16.msra.mxu0 0
      %727 = vmatpush.bf16.msra.mxu0 0
      %728 = vmatpush.bf16.msra.mxu0 0
      %729 = vmatpush.bf16.msra.mxu0 0
      %730 = vmatpush.bf16.msra.mxu0 0
      %731 = vmatpush.bf16.msra.mxu0 %v719
      %732 = vmatpush.bf16.msra.mxu0 %v718
      %733 = vmatmul.bf16.gmra.mxu0 %v723
      %v734 = vpop.f32.mrf.mxu0
      %v735 = vadd.f32 0.0, %v734
      %v736 = vpop.f32.mrf.mxu0
      %v737 = vadd.f32 0.0, %v736
      %738 = vdwg.mxu0
      %v739 = vadd.f32 %v700, %v735
      %v740 = vadd.f32 %v701, %v737
      %v741 = vld [vmem:[%s4] sm:$0x1]
      %v743 = vperm.slane %v741, 0
      %v745 = vadd.f32 %v739, %v743
      %v746 = vadd.f32 %v740, %v743
      %vm747 = vcmp.gt.f32.partialorder %v745, 0.0
      %vm748 = vcmp.gt.f32.partialorder %v746, 0.0
      %v749 = vmin.f32 %v745, 0.0
      %v750 = vmin.f32 %v746, 0.0
      %v751 = vmul.f32 %v749, 1.442695
      %v752 = vpow.pop %v751
      %v753 = vmul.f32 %v750, 1.442695
      %v754 = vpow.pop %v753
      %v755 = vsub.f32 %v752, 1.0
      %v756 = vsub.f32 %v754, 1.0
      %v757 = vsel %vm747, %v745, %v755
      %v758 = vsel %vm748, %v746, %v756
      %v759 = vpack.c.bf16 %v757, %v757
      %v760 = vpack.c.bf16 %v758, %v758
      %vm761 = vcmask 125952
      %762 = vst.msk [vmem:[%s342] sm:$0xf] %vm761, %v759
      %763 = vst.msk [vmem:[%s342 + $0x4] sm:$0xf] %vm761, %v760
      %p764 = scmp.lt.s32.totalorder %s20, 1
      %s765 = scalar_select %p764, %s20, 1
      %p766 = scmp.lt.s32.totalorder %s21, 15
      %s767 = scalar_select %p766, %s21, 15
      %s768 = smul.addr %s767, 2
      %s769 = smul.addr %s765, 32
      %s770 = sadd.s32 %s768, %s769
      %s771 = smul.addr %s770, 4
      %s772 = scalar_lea.vmem %s5, %s771
      // Predicated region
      $region41: #{mpn_forward.16} parent=39 // pred_check
        %p773 = pneg %p178
      $region42: #{mpn_forward.16} parent=39 // pred_check_branch
        %775 = sbr.rel (%p773) target = $region44
      $region43: #{mpn_forward.16} parent=39 // pred_region
        _
      $region44: #{mpn_forward.16} parent=39 // pred_fallthru
        _
    $region40: #{mpn_forward.16} parent=5 // pred_fallthru
      _
    %p776 = scmp.le.s32.totalorder 2, %s11
    // Predicated region
    $region45: #{mpn_forward.16} parent=5 // pred_check
      %p777 = pneg %p776
    $region46: #{mpn_forward.16} parent=5 // pred_check_branch
      %779 = sbr.rel (%p777) target = $region48
    $region47: #{mpn_forward.16} parent=5 // pred_region
      %s780 = ssub.s32 %s11, 2
      // Predicated region
      $region49: #{mpn_forward.16} parent=47 // pred_check
        %p781 = pneg %p184
      $region50: #{mpn_forward.16} parent=47 // pred_check_branch
        %783 = sbr.rel (%p781) target = $region52
      $region51: #{mpn_forward.16} parent=47 // pred_region
        %p784 = scmp.lt.s32.totalorder %s22, 1
        %s785 = scalar_select %p784, %s22, 1
        %p786 = scmp.lt.s32.totalorder %s23, 15
        %s787 = scalar_select %p786, %s23, 15
        %s788 = smul.addr %s787, 2
        %s789 = smul.addr %s785, 32
        %s790 = sadd.s32 %s788, %s789
        %s791 = smul.addr %s790, 4
        %s792 = scalar_lea.vmem %s5, %s791
      $region52: #{mpn_forward.16} parent=47 // pred_fallthru
        _
    $region48: #{mpn_forward.16} parent=5 // pred_fallthru
      _
  $region6: #{mpn_forward.16} parent=0 // loop_footer
    %s15 = sadd.s32 1, %s11
  $region7: #{mpn_forward.16} parent=0 // loop_footer_branch
    %10 = sbr.rel target = $region3
  $region8: #{mpn_forward.16} parent=0 // loop_exit
    _

// kernel: mpn_forward.15
$region0: #{mpn_forward.15}
  #allocation0 [shape = 'u32[]', space=smem, size = 0x4, offset = 0x4, fixed_abs, tag = 'smem constant byte address 0x4 - core index']
  #allocation1 [shape = 'u32[72,128]{1,0:T(1,128)}', space=vmem, size = 0x9000, scoped, tag = 'internal scratch']
  %s0 = inlined_call_operand.vmem [shape: bf16[2,18,18,64], index: 0, kind: input, shape index: {}, may-alias: {0,1,2}]
  %s1 = inlined_call_operand.vmem [shape: bf16[2,18,18,64], index: 1, kind: input, shape index: {}, may-alias: {0,1,2}]
  %s2 = inlined_call_operand.vmem [shape: bf16[2,18,18,64], index: 2, kind: input, shape index: {}, may-alias: {0,1,2}]
  %s3 = inlined_call_operand.vmem [shape: bf16[3,3,64,32], index: 3, kind: input, shape index: {}]
  %s4 = inlined_call_operand.vmem [shape: f32[1,32], index: 4, kind: input, shape index: {}]
  %s5 = inlined_call_operand.vmem [shape: bf16[64,32], index: 5, kind: input, shape index: {}]
  %s6 = inlined_call_operand.vmem [shape: f32[1,32], index: 6, kind: input, shape index: {}]
  %s7 = inlined_call_operand.vmem [shape: bf16[2,16,16,32], index: 7, kind: output, shape index: {}]
  %s8 = sld [smem:[#allocation0]]
  $region61: #{mpn_forward.15} parent=0
    _
  %s10 = ssub.s32 1, %s8
  %s11 = scalar_select 0, %s10, %s8
  loop: start=0, step=1, limit=34
  $region2: #{mpn_forward.15} parent=0 // loop_pre_header
    _
  $region3: #{mpn_forward.15} parent=0 // loop_header
    %s13 = sphi 0, %s17
    %p14 = scmp.ge.s32.totalorder %s13, 34
    %s20 = sphi 0, %s32
    %s21 = sphi 0, %s28
    %s22 = sphi 0, %s20
    %s23 = sphi 0, %s21
    %s24 = sphi 0, %s22
    %s25 = sphi 0, %s23
    %s37 = sphi 0, %s39
    %s40 = sphi 0, %s37
    %s41 = sphi 0, %s40
    %s57 = sphi 0, %s41
    %s67 = sphi 0, %s69
    %s70 = sphi 0, %s67
    %s71 = sphi 0, %s70
    %s87 = sphi 0, %s71
    %s97 = sphi 0, %s99
    %s100 = sphi 0, %s97
    %s101 = sphi 0, %s100
    %s117 = sphi 0, %s101
    %s121 = sphi 0, %s121
    %s123 = sphi 0, %s121
    %s124 = sphi 0, %s123
    %s138 = sphi 0, %s124
    %s142 = sphi 0, %s142
    %s144 = sphi 0, %s142
    %s145 = sphi 0, %s144
    %s159 = sphi 0, %s145
    %s163 = sphi 0, %s163
    %s165 = sphi 0, %s163
    %s166 = sphi 0, %s165
    %s180 = sphi 0, %s166
    %s184 = sphi 0, %s184
    %s186 = sphi 0, %s184
    %s187 = sphi 0, %s186
    %s201 = sphi 0, %s187
    %s209 = sphi 0, %s211
    %s212 = sphi 0, %s209
    %s213 = sphi 0, %s212
    %s229 = sphi 0, %s213
  $region4: #{mpn_forward.15} parent=0 // loop_header_branch
    %16 = sbr.rel (%p14) target = $region8
  $region5: #{mpn_forward.15} parent=0 // loop_body
    %s18 = ssub.s32 %s13, 1
    %s19 = ssub.s32 %s13, 2
    %s26 = sadd.s32 1, %s21
    %p27 = scmp.ge.s32.totalorder %s26, 16
    %s28 = scalar_select %p27, 0, %s26
    %s29 = sadd.s32 1, %s20
    %s30 = scalar_select %p27, %s29, %s20
    %p31 = scmp.ge.s32.totalorder %s30, 2
    %s32 = scalar_select %p31, 0, %s30
    %s33 = ssub.s32 %s20, %s32
    %s34 = ssub.s32 %s21, %s28
    %s35 = sor.u32 %s33, %s34
    %p36 = scmp.eq.s32.totalorder %s35, 0
    %s38 = sadd.s32 %s37, 1
    %s39 = scalar_select %p36, %s37, %s38
    %p42 = pneg %p36
    %p43 = scmp.eq.s32.totalorder %s13, 31
    %p44 = por %p42, %p43
    %p45 = scmp.ne.s32.totalorder %s37, %s40
    %p46 = scmp.eq.s32.totalorder %s13, 0
    %p47 = por %p45, %p46
    %p48 = scmp.ne.s32.totalorder %s37, %s40
    %p49 = scmp.eq.s32.totalorder %s18, 31
    %p50 = por %p48, %p49
    %p51 = scmp.ne.s32.totalorder %s40, %s41
    %p52 = scmp.eq.s32.totalorder %s18, 0
    %p53 = por %p51, %p52
    %p54 = scmp.ne.s32.totalorder %s40, %s41
    %p55 = scmp.eq.s32.totalorder %s19, 31
    %p56 = por %p54, %p55
    %p58 = scmp.ne.s32.totalorder %s41, %s57
    %p59 = scmp.eq.s32.totalorder %s19, 0
    %p60 = por %p58, %p59
    %s61 = sadd.s32 %s21, 1
    %s62 = sadd.s32 %s28, 1
    %s63 = ssub.s32 %s20, %s32
    %s64 = ssub.s32 %s61, %s62
    %s65 = sor.u32 %s63, %s64
    %p66 = scmp.eq.s32.totalorder %s65, 0
    %s68 = sadd.s32 %s67, 1
    %s69 = scalar_select %p66, %s67, %s68
    %p72 = pneg %p66
    %p73 = scmp.eq.s32.totalorder %s13, 31
    %p74 = por %p72, %p73
    %p75 = scmp.ne.s32.totalorder %s67, %s70
    %p76 = scmp.eq.s32.totalorder %s13, 0
    %p77 = por %p75, %p76
    %p78 = scmp.ne.s32.totalorder %s67, %s70
    %p79 = scmp.eq.s32.totalorder %s18, 31
    %p80 = por %p78, %p79
    %p81 = scmp.ne.s32.totalorder %s70, %s71
    %p82 = scmp.eq.s32.totalorder %s18, 0
    %p83 = por %p81, %p82
    %p84 = scmp.ne.s32.totalorder %s70, %s71
    %p85 = scmp.eq.s32.totalorder %s19, 31
    %p86 = por %p84, %p85
    %p88 = scmp.ne.s32.totalorder %s71, %s87
    %p89 = scmp.eq.s32.totalorder %s19, 0
    %p90 = por %p88, %p89
    %s91 = sadd.s32 %s21, 2
    %s92 = sadd.s32 %s28, 2
    %s93 = ssub.s32 %s20, %s32
    %s94 = ssub.s32 %s91, %s92
    %s95 = sor.u32 %s93, %s94
    %p96 = scmp.eq.s32.totalorder %s95, 0
    %s98 = sadd.s32 %s97, 1
    %s99 = scalar_select %p96, %s97, %s98
    %p102 = pneg %p96
    %p103 = scmp.eq.s32.totalorder %s13, 31
    %p104 = por %p102, %p103
    %p105 = scmp.ne.s32.totalorder %s97, %s100
    %p106 = scmp.eq.s32.totalorder %s13, 0
    %p107 = por %p105, %p106
    %p108 = scmp.ne.s32.totalorder %s97, %s100
    %p109 = scmp.eq.s32.totalorder %s18, 31
    %p110 = por %p108, %p109
    %p111 = scmp.ne.s32.totalorder %s100, %s101
    %p112 = scmp.eq.s32.totalorder %s18, 0
    %p113 = por %p111, %p112
    %p114 = scmp.ne.s32.totalorder %s100, %s101
    %p115 = scmp.eq.s32.totalorder %s19, 31
    %p116 = por %p114, %p115
    %p118 = scmp.ne.s32.totalorder %s101, %s117
    %p119 = scmp.eq.s32.totalorder %s19, 0
    %p120 = por %p118, %p119
    %s122 = sadd.s32 %s121, 1
    %p125 = scmp.eq.s32.totalorder %s13, 31
    %p126 = scmp.ne.s32.totalorder %s121, %s123
    %p127 = scmp.eq.s32.totalorder %s13, 0
    %p128 = por %p126, %p127
    %p129 = scmp.ne.s32.totalorder %s121, %s123
    %p130 = scmp.eq.s32.totalorder %s18, 31
    %p131 = por %p129, %p130
    %p132 = scmp.ne.s32.totalorder %s123, %s124
    %p133 = scmp.eq.s32.totalorder %s18, 0
    %p134 = por %p132, %p133
    %p135 = scmp.ne.s32.totalorder %s123, %s124
    %p136 = scmp.eq.s32.totalorder %s19, 31
    %p137 = por %p135, %p136
    %p139 = scmp.ne.s32.totalorder %s124, %s138
    %p140 = scmp.eq.s32.totalorder %s19, 0
    %p141 = por %p139, %p140
    %s143 = sadd.s32 %s142, 1
    %p146 = scmp.eq.s32.totalorder %s13, 31
    %p147 = scmp.ne.s32.totalorder %s142, %s144
    %p148 = scmp.eq.s32.totalorder %s13, 0
    %p149 = por %p147, %p148
    %p150 = scmp.ne.s32.totalorder %s142, %s144
    %p151 = scmp.eq.s32.totalorder %s18, 31
    %p152 = por %p150, %p151
    %p153 = scmp.ne.s32.totalorder %s144, %s145
    %p154 = scmp.eq.s32.totalorder %s18, 0
    %p155 = por %p153, %p154
    %p156 = scmp.ne.s32.totalorder %s144, %s145
    %p157 = scmp.eq.s32.totalorder %s19, 31
    %p158 = por %p156, %p157
    %p160 = scmp.ne.s32.totalorder %s145, %s159
    %p161 = scmp.eq.s32.totalorder %s19, 0
    %p162 = por %p160, %p161
    %s164 = sadd.s32 %s163, 1
    %p167 = scmp.eq.s32.totalorder %s13, 31
    %p168 = scmp.ne.s32.totalorder %s163, %s165
    %p169 = scmp.eq.s32.totalorder %s13, 0
    %p170 = por %p168, %p169
    %p171 = scmp.ne.s32.totalorder %s163, %s165
    %p172 = scmp.eq.s32.totalorder %s18, 31
    %p173 = por %p171, %p172
    %p174 = scmp.ne.s32.totalorder %s165, %s166
    %p175 = scmp.eq.s32.totalorder %s18, 0
    %p176 = por %p174, %p175
    %p177 = scmp.ne.s32.totalorder %s165, %s166
    %p178 = scmp.eq.s32.totalorder %s19, 31
    %p179 = por %p177, %p178
    %p181 = scmp.ne.s32.totalorder %s166, %s180
    %p182 = scmp.eq.s32.totalorder %s19, 0
    %p183 = por %p181, %p182
    %s185 = sadd.s32 %s184, 1
    %p188 = scmp.eq.s32.totalorder %s13, 31
    %p189 = scmp.ne.s32.totalorder %s184, %s186
    %p190 = scmp.eq.s32.totalorder %s13, 0
    %p191 = por %p189, %p190
    %p192 = scmp.ne.s32.totalorder %s184, %s186
    %p193 = scmp.eq.s32.totalorder %s18, 31
    %p194 = por %p192, %p193
    %p195 = scmp.ne.s32.totalorder %s186, %s187
    %p196 = scmp.eq.s32.totalorder %s18, 0
    %p197 = por %p195, %p196
    %p198 = scmp.ne.s32.totalorder %s186, %s187
    %p199 = scmp.eq.s32.totalorder %s19, 31
    %p200 = por %p198, %p199
    %p202 = scmp.ne.s32.totalorder %s187, %s201
    %p203 = scmp.eq.s32.totalorder %s19, 0
    %p204 = por %p202, %p203
    %s205 = ssub.s32 %s20, %s32
    %s206 = ssub.s32 %s21, %s28
    %s207 = sor.u32 %s205, %s206
    %p208 = scmp.eq.s32.totalorder %s207, 0
    %s210 = sadd.s32 %s209, 1
    %s211 = scalar_select %p208, %s209, %s210
    %p214 = pneg %p208
    %p215 = scmp.eq.s32.totalorder %s13, 31
    %p216 = por %p214, %p215
    %p217 = scmp.ne.s32.totalorder %s209, %s212
    %p218 = scmp.eq.s32.totalorder %s13, 0
    %p219 = por %p217, %p218
    %p220 = scmp.ne.s32.totalorder %s209, %s212
    %p221 = scmp.eq.s32.totalorder %s18, 31
    %p222 = por %p220, %p221
    %p223 = scmp.ne.s32.totalorder %s212, %s213
    %p224 = scmp.eq.s32.totalorder %s18, 0
    %p225 = por %p223, %p224
    %p226 = scmp.ne.s32.totalorder %s212, %s213
    %p227 = scmp.eq.s32.totalorder %s19, 31
    %p228 = por %p226, %p227
    %p230 = scmp.ne.s32.totalorder %s213, %s229
    %p231 = scmp.eq.s32.totalorder %s19, 0
    %p232 = por %p230, %p231
    %p233 = scmp.le.s32.totalorder 1, %s13
    %p234 = scmp.lt.s32.totalorder %s13, 33
    %p235 = pnand %p233, %p234
    %p236 = pneg %p235
    // Predicated region
    $region9: #{mpn_forward.15} parent=5 // pred_check
      _
    $region10: #{mpn_forward.15} parent=5 // pred_check_branch
      %238 = sbr.rel (%p235) target = $region12
    $region11: #{mpn_forward.15} parent=5 // pred_region
      %s239 = ssub.s32 %s13, 1
      // Predicated region
      $region13: #{mpn_forward.15} parent=11 // pred_check
        %p240 = pneg %p134
      $region14: #{mpn_forward.15} parent=11 // pred_check_branch
        %242 = sbr.rel (%p240) target = $region16
      $region15: #{mpn_forward.15} parent=11 // pred_region
        _
      $region16: #{mpn_forward.15} parent=11 // pred_fallthru
        _
      // Predicated region
      $region17: #{mpn_forward.15} parent=11 // pred_check
        %p243 = pneg %p155
      $region18: #{mpn_forward.15} parent=11 // pred_check_branch
        %245 = sbr.rel (%p243) target = $region20
      $region19: #{mpn_forward.15} parent=11 // pred_region
        _
      $region20: #{mpn_forward.15} parent=11 // pred_fallthru
        _
      // Predicated region
      $region21: #{mpn_forward.15} parent=11 // pred_check
        %p246 = pneg %p176
      $region22: #{mpn_forward.15} parent=11 // pred_check_branch
        %248 = sbr.rel (%p246) target = $region24
      $region23: #{mpn_forward.15} parent=11 // pred_region
        _
      $region24: #{mpn_forward.15} parent=11 // pred_fallthru
        _
      // Predicated region
      $region25: #{mpn_forward.15} parent=11 // pred_check
        %p249 = pneg %p197
      $region26: #{mpn_forward.15} parent=11 // pred_check_branch
        %251 = sbr.rel (%p249) target = $region28
      $region27: #{mpn_forward.15} parent=11 // pred_region
        _
      $region28: #{mpn_forward.15} parent=11 // pred_fallthru
        _
    $region12: #{mpn_forward.15} parent=5 // pred_fallthru
      _
    %p252 = scmp.lt.s32.totalorder %s13, 32
    // Predicated region
    $region29: #{mpn_forward.15} parent=5 // pred_check
      %p253 = pneg %p252
    $region30: #{mpn_forward.15} parent=5 // pred_check_branch
      %255 = sbr.rel (%p253) target = $region32
    $region31: #{mpn_forward.15} parent=5 // pred_region
      // Predicated region
      $region33: #{mpn_forward.15} parent=31 // pred_check
        %p256 = pneg %p47
      $region34: #{mpn_forward.15} parent=31 // pred_check_branch
        %258 = sbr.rel (%p256) target = $region36
      $region35: #{mpn_forward.15} parent=31 // pred_region
        %p259 = scmp.lt.s32.totalorder %s20, 1
        %s260 = scalar_select %p259, %s20, 1
        %p261 = scmp.lt.s32.totalorder %s21, 17
        %s262 = scalar_select %p261, %s21, 17
        %s263 = smul.addr %s262, 3
        %s264 = smul.addr %s260, 54
        %s265 = sadd.s32 %s263, %s264
        %s266 = smul.addr %s265, 4
        %s267 = scalar_lea.vmem %s0, %s266
      $region36: #{mpn_forward.15} parent=31 // pred_fallthru
        _
      // Predicated region
      $region37: #{mpn_forward.15} parent=31 // pred_check
        %p268 = pneg %p77
      $region38: #{mpn_forward.15} parent=31 // pred_check_branch
        %270 = sbr.rel (%p268) target = $region40
      $region39: #{mpn_forward.15} parent=31 // pred_region
        %s271 = sadd.s32 %s21, 1
        %p272 = scmp.lt.s32.totalorder %s20, 1
        %s273 = scalar_select %p272, %s20, 1
        %p274 = scmp.lt.s32.totalorder %s271, 17
        %s275 = scalar_select %p274, %s271, 17
        %s276 = smul.addr %s275, 3
        %s277 = smul.addr %s273, 54
        %s278 = sadd.s32 %s276, %s277
        %s279 = smul.addr %s278, 4
        %s280 = scalar_lea.vmem %s1, %s279
        %s281 = sadd.s32 %s21, 1
      $region40: #{mpn_forward.15} parent=31 // pred_fallthru
        _
      // Predicated region
      $region41: #{mpn_forward.15} parent=31 // pred_check
        %p282 = pneg %p107
      $region42: #{mpn_forward.15} parent=31 // pred_check_branch
        %284 = sbr.rel (%p282) target = $region44
      $region43: #{mpn_forward.15} parent=31 // pred_region
        %s285 = sadd.s32 %s21, 2
        %p286 = scmp.lt.s32.totalorder %s20, 1
        %s287 = scalar_select %p286, %s20, 1
        %p288 = scmp.lt.s32.totalorder %s285, 17
        %s289 = scalar_select %p288, %s285, 17
        %s290 = smul.addr %s289, 3
        %s291 = smul.addr %s287, 54
        %s292 = sadd.s32 %s290, %s291
        %s293 = smul.addr %s292, 4
        %s294 = scalar_lea.vmem %s2, %s293
        %s295 = sadd.s32 %s21, 2
      $region44: #{mpn_forward.15} parent=31 // pred_fallthru
        _
    $region32: #{mpn_forward.15} parent=5 // pred_fallthru
      _
    %p296 = scmp.le.s32.totalorder 1, %s13
    %p297 = scmp.lt.s32.totalorder %s13, 33
    %p298 = pnand %p296, %p297
    %p299 = pneg %p298
    // Predicated region
    $region45: #{mpn_forward.15} parent=5 // pred_check
      _
    $region46: #{mpn_forward.15} parent=5 // pred_check_branch
      %301 = sbr.rel (%p298) target = $region48
    $region47: #{mpn_forward.15} parent=5 // pred_region
      %s302 = ssub.s32 %s13, 1
      %p303 = scmp.lt.s32.totalorder %s22, 1
      %s304 = scalar_select %p303, %s22, 1
      %p305 = scmp.lt.s32.totalorder %s23, 17
      %s306 = scalar_select %p305, %s23, 17
      %s307 = smul.addr %s306, 3
      %s308 = smul.addr %s304, 54
      %s309 = sadd.s32 %s307, %s308
      %s310 = smul.addr %s309, 4
      %s311 = scalar_lea.vmem %s0, %s310
      %p312 = pneg %p53
      %p313 = pneg %p50
      %s314 = sadd.s32 %s23, 1
      %p315 = scmp.lt.s32.totalorder %s22, 1
      %s316 = scalar_select %p315, %s22, 1
      %p317 = scmp.lt.s32.totalorder %s314, 17
      %s318 = scalar_select %p317, %s314, 17
      %s319 = smul.addr %s318, 3
      %s320 = smul.addr %s316, 54
      %s321 = sadd.s32 %s319, %s320
      %s322 = smul.addr %s321, 4
      %s323 = scalar_lea.vmem %s1, %s322
      %p324 = pneg %p83
      %p325 = pneg %p80
      %s326 = sadd.s32 %s23, 2
      %p327 = scmp.lt.s32.totalorder %s22, 1
      %s328 = scalar_select %p327, %s22, 1
      %p329 = scmp.lt.s32.totalorder %s326, 17
      %s330 = scalar_select %p329, %s326, 17
      %s331 = smul.addr %s330, 3
      %s332 = smul.addr %s328, 54
      %s333 = sadd.s32 %s331, %s332
      %s334 = smul.addr %s333, 4
      %s335 = scalar_lea.vmem %s2, %s334
      %p336 = pneg %p113
      %p337 = pneg %p110
      %p338 = pneg %p134
      %p339 = pneg %p131
      %p340 = pneg %p155
      %p341 = pneg %p152
      %p342 = pneg %p176
      %p343 = pneg %p173
      %p344 = pneg %p197
      %p345 = pneg %p194
      %p346 = pneg %p225
      %p347 = pneg %p222
      %p348 = scmp.lt.s32.totalorder %s22, 1
      %s349 = scalar_select %p348, %s22, 1
      %p350 = scmp.lt.s32.totalorder %s23, 15
      %s351 = scalar_select %p350, %s23, 15
      %s352 = smul.addr %s351, 2
      %s353 = smul.addr %s349, 32
      %s354 = sadd.s32 %s352, %s353
      %s355 = smul.addr %s354, 4
      %s356 = scalar_lea.vmem %s7, %s355
      %p357 = scmp.lt.s32.totalorder %s22, 1
      %s358 = scalar_select %p357, %s22, 1
      %p359 = scmp.lt.s32.totalorder %s23, 17
      %s360 = scalar_select %p359, %s23, 17
      %s361 = smul.addr %s360, 3
      %s362 = smul.addr %s358, 54
      %s363 = sadd.s32 %s361, %s362
      %s364 = smul.addr %s363, 4
      %s365 = scalar_lea.vmem %s0, %s364
      %s366 = sadd.s32 %s23, 1
      %p367 = scmp.lt.s32.totalorder %s22, 1
      %s368 = scalar_select %p367, %s22, 1
      %p369 = scmp.lt.s32.totalorder %s366, 17
      %s370 = scalar_select %p369, %s366, 17
      %s371 = smul.addr %s370, 3
      %s372 = smul.addr %s368, 54
      %s373 = sadd.s32 %s371, %s372
      %s374 = smul.addr %s373, 4
      %s375 = scalar_lea.vmem %s1, %s374
      %s376 = sadd.s32 %s23, 1
      %s377 = sadd.s32 %s23, 2
      %p378 = scmp.lt.s32.totalorder %s22, 1
      %s379 = scalar_select %p378, %s22, 1
      %p380 = scmp.lt.s32.totalorder %s377, 17
      %s381 = scalar_select %p380, %s377, 17
      %s382 = smul.addr %s381, 3
      %s383 = smul.addr %s379, 54
      %s384 = sadd.s32 %s382, %s383
      %s385 = smul.addr %s384, 4
      %s386 = scalar_lea.vmem %s2, %s385
      %s387 = sadd.s32 %s23, 2
      %p388 = scmp.lt.s32.totalorder %s22, 1
      %s389 = scalar_select %p388, %s22, 1
      %p390 = scmp.lt.s32.totalorder %s23, 15
      %s391 = scalar_select %p390, %s23, 15
      %s392 = smul.addr %s391, 2
      %s393 = smul.addr %s389, 32
      %s394 = sadd.s32 %s392, %s393
      %s395 = smul.addr %s394, 4
      %s396 = scalar_lea.vmem %s7, %s395
      %v398 = vld [vmem:[%s365] sm:$0xf]
      %v399 = vld [vmem:[%s365 + $0x4] sm:$0xf]
      %v400 = vld [vmem:[%s365 + $0x8] sm:$0x1]
      %v401 = vld [vmem:[%s3] sm:$0xf]
      %v402 = vld [vmem:[%s3 + $0x4] sm:$0xf]
      %v403 = vld [vmem:[%s3 + $0x8] sm:$0xf]
      %v404 = vld [vmem:[%s3 + $0xc] sm:$0xf]
      %v405 = vld [vmem:[%s3 + $0x10] sm:$0xf]
      %v406 = vld [vmem:[%s3 + $0x14] sm:$0xf]
      %v407 = vld [vmem:[%s3 + $0x18] sm:$0xf]
      %v408 = vld [vmem:[%s3 + $0x1c] sm:$0xf]
      %s409 = scalar_lea.vmem %s3, 32
      %v410 = vld [vmem:[%s409] sm:$0xf]
      %v411 = vld [vmem:[%s409 + $0x4] sm:$0xf]
      %v412 = vld [vmem:[%s409 + $0x8] sm:$0xf]
      %v413 = vld [vmem:[%s409 + $0xc] sm:$0xf]
      %v414 = vld [vmem:[%s409 + $0x10] sm:$0xf]
      %v415 = vld [vmem:[%s409 + $0x14] sm:$0xf]
      %v416 = vld [vmem:[%s409 + $0x18] sm:$0xf]
      %v417 = vld [vmem:[%s409 + $0x1c] sm:$0xf]
      %v421 = vunpack.c.l.b16 %v398
      %v422 = vunpack.c.l.b16 %v399
      %v423 = vunpack.c.l.b16 %v400
      %v424 = vpack.c.b16 %v422, %v421
      %v425 = vpack.c.b16 %v423, %v423
      %vm426 = vsmask.f32 7424
      %v428 = vshrl.u32 %v424, 16
      %v430 = vshll.u32 %v424, 16
      %v432 = vrot.slane %v430, 1
      %v433 = vor.u32 %v428, %v432
      %v435 = vshll.u32 %v425, 16
      %v437 = vrot.slane %v435, 1
      %v438 = vsel %vm426, %v433, %v437
      %v447 = vunpack.c.l.b16 %v410
      %v448 = vunpack.c.l.b16 %v411
      %v449 = vunpack.c.l.b16 %v412
      %v450 = vunpack.c.l.b16 %v413
      %v451 = vunpack.c.l.b16 %v414
      %v452 = vunpack.c.l.b16 %v415
      %v453 = vunpack.c.l.b16 %v416
      %v454 = vunpack.c.l.b16 %v417
      %v455 = vpack.c.b16 %v448, %v447
      %v456 = vpack.c.b16 %v450, %v449
      %v457 = vpack.c.b16 %v452, %v451
      %v458 = vpack.c.b16 %v454, %v453
      %vm463 = vcmask 523264
      %v465 = vsel %vm463, %v438, 0
      %467 = vmatpush.bf16.msra.mxu0 0
      %468 = vmatpush.bf16.msra.mxu0 0
      %469 = vmatpush.bf16.msra.mxu0 0
      %470 = vmatpush.bf16.msra.mxu0 0
      %471 = vmatpush.bf16.msra.mxu0 %v458
      %472 = vmatpush.bf16.msra.mxu0 %v457
      %473 = vmatpush.bf16.msra.mxu0 %v456
      %474 = vmatpush.bf16.msra.mxu0 %v455
      %475 = vmatmul.bf16.gmra.mxu0 %v465
      %v476 = vpop.f32.mrf.mxu0
      %v477 = vadd.f32 0.0, %v476
      %v478 = vpop.f32.mrf.mxu0
      %v479 = vadd.f32 0.0, %v478
      %480 = vdwg.mxu0
      %v489 = vunpack.c.l.b16 %v401
      %v490 = vunpack.c.l.b16 %v402
      %v491 = vunpack.c.l.b16 %v403
      %v492 = vunpack.c.l.b16 %v404
      %v493 = vunpack.c.l.b16 %v405
      %v494 = vunpack.c.l.b16 %v406
      %v495 = vunpack.c.l.b16 %v407
      %v496 = vunpack.c.l.b16 %v408
      %v497 = vpack.c.b16 %v490, %v489
      %v498 = vpack.c.b16 %v492, %v491
      %v499 = vpack.c.b16 %v494, %v493
      %v500 = vpack.c.b16 %v496, %v495
      %v505 = vsel %vm463, %v424, 0
      %507 = vmatpush.bf16.msra.mxu0 0
      %508 = vmatpush.bf16.msra.mxu0 0
      %509 = vmatpush.bf16.msra.mxu0 0
      %510 = vmatpush.bf16.msra.mxu0 0
      %511 = vmatpush.bf16.msra.mxu0 %v500
      %512 = vmatpush.bf16.msra.mxu0 %v499
      %513 = vmatpush.bf16.msra.mxu0 %v498
      %514 = vmatpush.bf16.msra.mxu0 %v497
      %515 = vmatmul.bf16.gmra.mxu0 %v505
      %v516 = vpop.f32.mrf.mxu0
      %v517 = vadd.f32 %v477, %v516
      %v518 = vpop.f32.mrf.mxu0
      %v519 = vadd.f32 %v479, %v518
      %520 = vdwg.mxu0
      %s521 = scalar_lea.vmem %s3, 64
      %v522 = vld [vmem:[%s521] sm:$0xf]
      %v523 = vld [vmem:[%s521 + $0x4] sm:$0xf]
      %v524 = vld [vmem:[%s521 + $0x8] sm:$0xf]
      %v525 = vld [vmem:[%s521 + $0xc] sm:$0xf]
      %v526 = vld [vmem:[%s521 + $0x10] sm:$0xf]
      %v527 = vld [vmem:[%s521 + $0x14] sm:$0xf]
      %v528 = vld [vmem:[%s521 + $0x18] sm:$0xf]
      %v529 = vld [vmem:[%s521 + $0x1c] sm:$0xf]
      %vm530 = vcmask 1046528
      %v531 = vrot.slane %v424, 1
      %v532 = vrot.slane %v425, 1
      %v533 = vsel %vm530, %v531, %v532
      %v542 = vunpack.c.l.b16 %v522
      %v543 = vunpack.c.l.b16 %v523
      %v544 = vunpack.c.l.b16 %v524
      %v545 = vunpack.c.l.b16 %v525
      %v546 = vunpack.c.l.b16 %v526
      %v547 = vunpack.c.l.b16 %v527
      %v548 = vunpack.c.l.b16 %v528
      %v549 = vunpack.c.l.b16 %v529
      %v550 = vpack.c.b16 %v543, %v542
      %v551 = vpack.c.b16 %v545, %v544
      %v552 = vpack.c.b16 %v547, %v546
      %v553 = vpack.c.b16 %v549, %v548
      %v559 = vsel %vm463, %v533, 0
      %561 = vmatpush.bf16.msra.mxu0 0
      %562 = vmatpush.bf16.msra.mxu0 0
      %563 = vmatpush.bf16.msra.mxu0 0
      %564 = vmatpush.bf16.msra.mxu0 0
      %565 = vmatpush.bf16.msra.mxu0 %v553
      %566 = vmatpush.bf16.msra.mxu0 %v552
      %567 = vmatpush.bf16.msra.mxu0 %v551
      %568 = vmatpush.bf16.msra.mxu0 %v550
      %569 = vmatmul.bf16.gmra.mxu0 %v559
      %v570 = vpop.f32.mrf.mxu0
      %v571 = vadd.f32 0.0, %v570
      %v572 = vpop.f32.mrf.mxu0
      %v573 = vadd.f32 0.0, %v572
      %574 = vdwg.mxu0
      %v575 = vadd.f32 %v517, %v571
      %v576 = vadd.f32 %v519, %v573
      %v577 = vld [vmem:[%s375] sm:$0xf]
      %v578 = vld [vmem:[%s375 + $0x4] sm:$0xf]
      %v579 = vld [vmem:[%s375 + $0x8] sm:$0x1]
      %s580 = scalar_lea.vmem %s3, 96
      %v581 = vld [vmem:[%s580] sm:$0xf]
      %v582 = vld [vmem:[%s580 + $0x4] sm:$0xf]
      %v583 = vld [vmem:[%s580 + $0x8] sm:$0xf]
      %v584 = vld [vmem:[%s580 + $0xc] sm:$0xf]
      %v585 = vld [vmem:[%s580 + $0x10] sm:$0xf]
      %v586 = vld [vmem:[%s580 + $0x14] sm:$0xf]
      %v587 = vld [vmem:[%s580 + $0x18] sm:$0xf]
      %v588 = vld [vmem:[%s580 + $0x1c] sm:$0xf]
      %v591 = vunpack.c.l.b16 %v577
      %v592 = vunpack.c.l.b16 %v578
      %v593 = vpack.c.b16 %v592, %v591
      %v602 = vunpack.c.l.b16 %v581
      %v603 = vunpack.c.l.b16 %v582
      %v604 = vunpack.c.l.b16 %v583
      %v605 = vunpack.c.l.b16 %v584
      %v606 = vunpack.c.l.b16 %v585
      %v607 = vunpack.c.l.b16 %v586
      %v608 = vunpack.c.l.b16 %v587
      %v609 = vunpack.c.l.b16 %v588
      %v610 = vpack.c.b16 %v603, %v602
      %v611 = vpack.c.b16 %v605, %v604
      %v612 = vpack.c.b16 %v607, %v606
      %v613 = vpack.c.b16 %v609, %v608
      %v619 = vsel %vm463, %v593, 0
      %621 = vmatpush.bf16.msra.mxu0 0
      %622 = vmatpush.bf16.msra.mxu0 0
      %623 = vmatpush.bf16.msra.mxu0 0
      %624 = vmatpush.bf16.msra.mxu0 0
      %625 = vmatpush.bf16.msra.mxu0 %v613
      %626 = vmatpush.bf16.msra.mxu0 %v612
      %627 = vmatpush.bf16.msra.mxu0 %v611
      %628 = vmatpush.bf16.msra.mxu0 %v610
      %629 = vmatmul.bf16.gmra.mxu0 %v619
      %v630 = vpop.f32.mrf.mxu0
      %v631 = vadd.f32 0.0, %v630
      %v632 = vpop.f32.mrf.mxu0
      %v633 = vadd.f32 0.0, %v632
      %634 = vdwg.mxu0
      %v635 = vadd.f32 %v575, %v631
      %v636 = vadd.f32 %v576, %v633
      %s637 = scalar_lea.vmem %s3, 128
      %v638 = vld [vmem:[%s637] sm:$0xf]
      %v639 = vld [vmem:[%s637 + $0x4] sm:$0xf]
      %v640 = vld [vmem:[%s637 + $0x8] sm:$0xf]
      %v641 = vld [vmem:[%s637 + $0xc] sm:$0xf]
      %v642 = vld [vmem:[%s637 + $0x10] sm:$0xf]
      %v643 = vld [vmem:[%s637 + $0x14] sm:$0xf]
      %v644 = vld [vmem:[%s637 + $0x18] sm:$0xf]
      %v645 = vld [vmem:[%s637 + $0x1c] sm:$0xf]
      %v647 = vunpack.c.l.b16 %v579
      %v648 = vpack.c.b16 %v647, %v647
      %v649 = vshrl.u32 %v593, 16
      %v651 = vshll.u32 %v593, 16
      %v653 = vrot.slane %v651, 1
      %v654 = vor.u32 %v649, %v653
      %v656 = vshll.u32 %v648, 16
      %v658 = vrot.slane %v656, 1
      %v659 = vsel %vm426, %v654, %v658
      %v668 = vunpack.c.l.b16 %v638
      %v669 = vunpack.c.l.b16 %v639
      %v670 = vunpack.c.l.b16 %v640
      %v671 = vunpack.c.l.b16 %v641
      %v672 = vunpack.c.l.b16 %v642
      %v673 = vunpack.c.l.b16 %v643
      %v674 = vunpack.c.l.b16 %v644
      %v675 = vunpack.c.l.b16 %v645
      %v676 = vpack.c.b16 %v669, %v668
      %v677 = vpack.c.b16 %v671, %v670
      %v678 = vpack.c.b16 %v673, %v672
      %v679 = vpack.c.b16 %v675, %v674
      %v685 = vsel %vm463, %v659, 0
      %687 = vmatpush.bf16.msra.mxu0 0
      %688 = vmatpush.bf16.msra.mxu0 0
      %689 = vmatpush.bf16.msra.mxu0 0
      %690 = vmatpush.bf16.msra.mxu0 0
      %691 = vmatpush.bf16.msra.mxu0 %v679
      %692 = vmatpush.bf16.msra.mxu0 %v678
      %693 = vmatpush.bf16.msra.mxu0 %v677
      %694 = vmatpush.bf16.msra.mxu0 %v676
      %695 = vmatmul.bf16.gmra.mxu0 %v685
      %v696 = vpop.f32.mrf.mxu0
      %v697 = vadd.f32 0.0, %v696
      %v698 = vpop.f32.mrf.mxu0
      %v699 = vadd.f32 0.0, %v698
      %700 = vdwg.mxu0
      %v701 = vadd.f32 %v635, %v697
      %v702 = vadd.f32 %v636, %v699
      %s703 = scalar_lea.vmem %s3, 160
      %v704 = vld [vmem:[%s703] sm:$0xf]
      %v705 = vld [vmem:[%s703 + $0x4] sm:$0xf]
      %v706 = vld [vmem:[%s703 + $0x8] sm:$0xf]
      %v707 = vld [vmem:[%s703 + $0xc] sm:$0xf]
      %v708 = vld [vmem:[%s703 + $0x10] sm:$0xf]
      %v709 = vld [vmem:[%s703 + $0x14] sm:$0xf]
      %v710 = vld [vmem:[%s703 + $0x18] sm:$0xf]
      %v711 = vld [vmem:[%s703 + $0x1c] sm:$0xf]
      %v712 = vrot.slane %v593, 1
      %v713 = vrot.slane %v648, 1
      %v714 = vsel %vm530, %v712, %v713
      %v723 = vunpack.c.l.b16 %v704
      %v724 = vunpack.c.l.b16 %v705
      %v725 = vunpack.c.l.b16 %v706
      %v726 = vunpack.c.l.b16 %v707
      %v727 = vunpack.c.l.b16 %v708
      %v728 = vunpack.c.l.b16 %v709
      %v729 = vunpack.c.l.b16 %v710
      %v730 = vunpack.c.l.b16 %v711
      %v731 = vpack.c.b16 %v724, %v723
      %v732 = vpack.c.b16 %v726, %v725
      %v733 = vpack.c.b16 %v728, %v727
      %v734 = vpack.c.b16 %v730, %v729
      %v740 = vsel %vm463, %v714, 0
      %742 = vmatpush.bf16.msra.mxu0 0
      %743 = vmatpush.bf16.msra.mxu0 0
      %744 = vmatpush.bf16.msra.mxu0 0
      %745 = vmatpush.bf16.msra.mxu0 0
      %746 = vmatpush.bf16.msra.mxu0 %v734
      %747 = vmatpush.bf16.msra.mxu0 %v733
      %748 = vmatpush.bf16.msra.mxu0 %v732
      %749 = vmatpush.bf16.msra.mxu0 %v731
      %750 = vmatmul.bf16.gmra.mxu0 %v740
      %v751 = vpop.f32.mrf.mxu0
      %v752 = vadd.f32 0.0, %v751
      %v753 = vpop.f32.mrf.mxu0
      %v754 = vadd.f32 0.0, %v753
      %755 = vdwg.mxu0
      %v756 = vadd.f32 %v701, %v752
      %v757 = vadd.f32 %v702, %v754
      %v758 = vld [vmem:[%s386] sm:$0xf]
      %v759 = vld [vmem:[%s386 + $0x4] sm:$0xf]
      %v760 = vld [vmem:[%s386 + $0x8] sm:$0x1]
      %s761 = scalar_lea.vmem %s3, 192
      %v762 = vld [vmem:[%s761] sm:$0xf]
      %v763 = vld [vmem:[%s761 + $0x4] sm:$0xf]
      %v764 = vld [vmem:[%s761 + $0x8] sm:$0xf]
      %v765 = vld [vmem:[%s761 + $0xc] sm:$0xf]
      %v766 = vld [vmem:[%s761 + $0x10] sm:$0xf]
      %v767 = vld [vmem:[%s761 + $0x14] sm:$0xf]
      %v768 = vld [vmem:[%s761 + $0x18] sm:$0xf]
      %v769 = vld [vmem:[%s761 + $0x1c] sm:$0xf]
      %v772 = vunpack.c.l.b16 %v758
      %v773 = vunpack.c.l.b16 %v759
      %v774 = vpack.c.b16 %v773, %v772
      %v783 = vunpack.c.l.b16 %v762
      %v784 = vunpack.c.l.b16 %v763
      %v785 = vunpack.c.l.b16 %v764
      %v786 = vunpack.c.l.b16 %v765
      %v787 = vunpack.c.l.b16 %v766
      %v788 = vunpack.c.l.b16 %v767
      %v789 = vunpack.c.l.b16 %v768
      %v790 = vunpack.c.l.b16 %v769
      %v791 = vpack.c.b16 %v784, %v783
      %v792 = vpack.c.b16 %v786, %v785
      %v793 = vpack.c.b16 %v788, %v787
      %v794 = vpack.c.b16 %v790, %v789
      %v800 = vsel %vm463, %v774, 0
      %802 = vmatpush.bf16.msra.mxu0 0
      %803 = vmatpush.bf16.msra.mxu0 0
      %804 = vmatpush.bf16.msra.mxu0 0
      %805 = vmatpush.bf16.msra.mxu0 0
      %806 = vmatpush.bf16.msra.mxu0 %v794
      %807 = vmatpush.bf16.msra.mxu0 %v793
      %808 = vmatpush.bf16.msra.mxu0 %v792
      %809 = vmatpush.bf16.msra.mxu0 %v791
      %810 = vmatmul.bf16.gmra.mxu0 %v800
      %v811 = vpop.f32.mrf.mxu0
      %v812 = vadd.f32 0.0, %v811
      %v813 = vpop.f32.mrf.mxu0
      %v814 = vadd.f32 0.0, %v813
      %815 = vdwg.mxu0
      %v816 = vadd.f32 %v756, %v812
      %v817 = vadd.f32 %v757, %v814
      %s818 = scalar_lea.vmem %s3, 224
      %v819 = vld [vmem:[%s818] sm:$0xf]
      %v820 = vld [vmem:[%s818 + $0x4] sm:$0xf]
      %v821 = vld [vmem:[%s818 + $0x8] sm:$0xf]
      %v822 = vld [vmem:[%s818 + $0xc] sm:$0xf]
      %v823 = vld [vmem:[%s818 + $0x10] sm:$0xf]
      %v824 = vld [vmem:[%s818 + $0x14] sm:$0xf]
      %v825 = vld [vmem:[%s818 + $0x18] sm:$0xf]
      %v826 = vld [vmem:[%s818 + $0x1c] sm:$0xf]
      %v828 = vunpack.c.l.b16 %v760
      %v829 = vpack.c.b16 %v828, %v828
      %v830 = vshrl.u32 %v774, 16
      %v832 = vshll.u32 %v774, 16
      %v834 = vrot.slane %v832, 1
      %v835 = vor.u32 %v830, %v834
      %v837 = vshll.u32 %v829, 16
      %v839 = vrot.slane %v837, 1
      %v840 = vsel %vm426, %v835, %v839
      %v849 = vunpack.c.l.b16 %v819
      %v850 = vunpack.c.l.b16 %v820
      %v851 = vunpack.c.l.b16 %v821
      %v852 = vunpack.c.l.b16 %v822
      %v853 = vunpack.c.l.b16 %v823
      %v854 = vunpack.c.l.b16 %v824
      %v855 = vunpack.c.l.b16 %v825
      %v856 = vunpack.c.l.b16 %v826
      %v857 = vpack.c.b16 %v850, %v849
      %v858 = vpack.c.b16 %v852, %v851
      %v859 = vpack.c.b16 %v854, %v853
      %v860 = vpack.c.b16 %v856, %v855
      %v866 = vsel %vm463, %v840, 0
      %868 = vmatpush.bf16.msra.mxu0 0
      %869 = vmatpush.bf16.msra.mxu0 0
      %870 = vmatpush.bf16.msra.mxu0 0
      %871 = vmatpush.bf16.msra.mxu0 0
      %872 = vmatpush.bf16.msra.mxu0 %v860
      %873 = vmatpush.bf16.msra.mxu0 %v859
      %874 = vmatpush.bf16.msra.mxu0 %v858
      %875 = vmatpush.bf16.msra.mxu0 %v857
      %876 = vmatmul.bf16.gmra.mxu0 %v866
      %v877 = vpop.f32.mrf.mxu0
      %v878 = vadd.f32 0.0, %v877
      %v879 = vpop.f32.mrf.mxu0
      %v880 = vadd.f32 0.0, %v879
      %881 = vdwg.mxu0
      %v882 = vadd.f32 %v816, %v878
      %v883 = vadd.f32 %v817, %v880
      %s884 = scalar_lea.vmem %s3, 256
      %v885 = vld [vmem:[%s884] sm:$0xf]
      %v886 = vld [vmem:[%s884 + $0x4] sm:$0xf]
      %v887 = vld [vmem:[%s884 + $0x8] sm:$0xf]
      %v888 = vld [vmem:[%s884 + $0xc] sm:$0xf]
      %v889 = vld [vmem:[%s884 + $0x10] sm:$0xf]
      %v890 = vld [vmem:[%s884 + $0x14] sm:$0xf]
      %v891 = vld [vmem:[%s884 + $0x18] sm:$0xf]
      %v892 = vld [vmem:[%s884 + $0x1c] sm:$0xf]
      %v893 = vrot.slane %v774, 1
      %v894 = vrot.slane %v829, 1
      %v895 = vsel %vm530, %v893, %v894
      %v904 = vunpack.c.l.b16 %v885
      %v905 = vunpack.c.l.b16 %v886
      %v906 = vunpack.c.l.b16 %v887
      %v907 = vunpack.c.l.b16 %v888
      %v908 = vunpack.c.l.b16 %v889
      %v909 = vunpack.c.l.b16 %v890
      %v910 = vunpack.c.l.b16 %v891
      %v911 = vunpack.c.l.b16 %v892
      %v912 = vpack.c.b16 %v905, %v904
      %v913 = vpack.c.b16 %v907, %v906
      %v914 = vpack.c.b16 %v909, %v908
      %v915 = vpack.c.b16 %v911, %v910
      %v921 = vsel %vm463, %v895, 0
      %923 = vmatpush.bf16.msra.mxu0 0
      %924 = vmatpush.bf16.msra.mxu0 0
      %925 = vmatpush.bf16.msra.mxu0 0
      %926 = vmatpush.bf16.msra.mxu0 0
      %927 = vmatpush.bf16.msra.mxu0 %v915
      %928 = vmatpush.bf16.msra.mxu0 %v914
      %929 = vmatpush.bf16.msra.mxu0 %v913
      %930 = vmatpush.bf16.msra.mxu0 %v912
      %931 = vmatmul.bf16.gmra.mxu0 %v921
      %v932 = vpop.f32.mrf.mxu0
      %v933 = vadd.f32 0.0, %v932
      %v934 = vpop.f32.mrf.mxu0
      %v935 = vadd.f32 0.0, %v934
      %936 = vdwg.mxu0
      %v937 = vadd.f32 %v882, %v933
      %v938 = vadd.f32 %v883, %v935
      %v939 = vld [vmem:[%s4] sm:$0x1]
      %v941 = vperm.slane %v939, 0
      %v943 = vadd.f32 %v937, %v941
      %v944 = vadd.f32 %v938, %v941
      %vm945 = vcmp.gt.f32.partialorder %v943, 0.0
      %vm946 = vcmp.gt.f32.partialorder %v944, 0.0
      %v947 = vmin.f32 %v943, 0.0
      %v948 = vmin.f32 %v944, 0.0
      %v949 = vmul.f32 %v947, 1.442695
      %v950 = vpow.pop %v949
      %v951 = vmul.f32 %v948, 1.442695
      %v952 = vpow.pop %v951
      %v953 = vsub.f32 %v950, 1.0
      %v954 = vsub.f32 %v952, 1.0
      %v955 = vsel %vm945, %v943, %v953
      %v956 = vsel %vm946, %v944, %v954
      %v957 = vld [vmem:[%s5] sm:$0xf]
      %v958 = vld [vmem:[%s5 + $0x4] sm:$0xf]
      %v959 = vld [vmem:[%s5 + $0x8] sm:$0xf]
      %v960 = vld [vmem:[%s5 + $0xc] sm:$0xf]
      %v961 = vld [vmem:[%s5 + $0x10] sm:$0xf]
      %v962 = vld [vmem:[%s5 + $0x14] sm:$0xf]
      %v963 = vld [vmem:[%s5 + $0x18] sm:$0xf]
      %v964 = vld [vmem:[%s5 + $0x1c] sm:$0xf]
      %v973 = vunpack.c.l.b16 %v957
      %v974 = vunpack.c.l.b16 %v958
      %v975 = vunpack.c.l.b16 %v959
      %v976 = vunpack.c.l.b16 %v960
      %v977 = vunpack.c.l.b16 %v961
      %v978 = vunpack.c.l.b16 %v962
      %v979 = vunpack.c.l.b16 %v963
      %v980 = vunpack.c.l.b16 %v964
      %v981 = vpack.c.b16 %v974, %v973
      %v982 = vpack.c.b16 %v976, %v975
      %v983 = vpack.c.b16 %v978, %v977
      %v984 = vpack.c.b16 %v980, %v979
      %989 = vmatpush.bf16.msra.mxu0 0
      %990 = vmatpush.bf16.msra.mxu0 0
      %991 = vmatpush.bf16.msra.mxu0 0
      %992 = vmatpush.bf16.msra.mxu0 0
      %993 = vmatpush.bf16.msra.mxu0 %v984
      %994 = vmatpush.bf16.msra.mxu0 %v983
      %995 = vmatpush.bf16.msra.mxu0 %v982
      %996 = vmatpush.bf16.msra.mxu0 %v981
      %997 = vmatmul.bf16.gmra.mxu0 %v685
      %v998 = vpop.f32.mrf.mxu0
      %v999 = vadd.f32 0.0, %v998
      %v1000 = vpop.f32.mrf.mxu0
      %v1001 = vadd.f32 0.0, %v1000
      %1002 = vdwg.mxu0
      %v1003 = vadd.f32 %v955, %v999
      %v1004 = vadd.f32 %v956, %v1001
      %v1005 = vld [vmem:[%s6] sm:$0x1]
      %v1007 = vperm.slane %v1005, 0
      %v1009 = vadd.f32 %v1003, %v1007
      %v1010 = vadd.f32 %v1004, %v1007
      %v1011 = vpack.c.bf16 %v1009, %v1009
      %v1012 = vpack.c.bf16 %v1010, %v1010
      %vm1013 = vcmask 257024
      %1014 = vst.msk [vmem:[%s396] sm:$0xf] %vm1013, %v1011
      %1015 = vst.msk [vmem:[%s396 + $0x4] sm:$0xf] %vm1013, %v1012
      %p1016 = scmp.lt.s32.totalorder %s22, 1
      %s1017 = scalar_select %p1016, %s22, 1
      %p1018 = scmp.lt.s32.totalorder %s23, 15
      %s1019 = scalar_select %p1018, %s23, 15
      %s1020 = smul.addr %s1019, 2
      %s1021 = smul.addr %s1017, 32
      %s1022 = sadd.s32 %s1020, %s1021
      %s1023 = smul.addr %s1022, 4
      %s1024 = scalar_lea.vmem %s7, %s1023
      // Predicated region
      $region49: #{mpn_forward.15} parent=47 // pred_check
        %p1025 = pneg %p222
      $region50: #{mpn_forward.15} parent=47 // pred_check_branch
        %1027 = sbr.rel (%p1025) target = $region52
      $region51: #{mpn_forward.15} parent=47 // pred_region
        _
      $region52: #{mpn_forward.15} parent=47 // pred_fallthru
        _
    $region48: #{mpn_forward.15} parent=5 // pred_fallthru
      _
    %p1028 = scmp.le.s32.totalorder 2, %s13
    // Predicated region
    $region53: #{mpn_forward.15} parent=5 // pred_check
      %p1029 = pneg %p1028
    $region54: #{mpn_forward.15} parent=5 // pred_check_branch
      %1031 = sbr.rel (%p1029) target = $region56
    $region55: #{mpn_forward.15} parent=5 // pred_region
      %s1032 = ssub.s32 %s13, 2
      // Predicated region
      $region57: #{mpn_forward.15} parent=55 // pred_check
        %p1033 = pneg %p228
      $region58: #{mpn_forward.15} parent=55 // pred_check_branch
        %1035 = sbr.rel (%p1033) target = $region60
      $region59: #{mpn_forward.15} parent=55 // pred_region
        %p1036 = scmp.lt.s32.totalorder %s24, 1
        %s1037 = scalar_select %p1036, %s24, 1
        %p1038 = scmp.lt.s32.totalorder %s25, 15
        %s1039 = scalar_select %p1038, %s25, 15
        %s1040 = smul.addr %s1039, 2
        %s1041 = smul.addr %s1037, 32
        %s1042 = sadd.s32 %s1040, %s1041
        %s1043 = smul.addr %s1042, 4
        %s1044 = scalar_lea.vmem %s7, %s1043
      $region60: #{mpn_forward.15} parent=55 // pred_fallthru
        _
    $region56: #{mpn_forward.15} parent=5 // pred_fallthru
      _
  $region6: #{mpn_forward.15} parent=0 // loop_footer
    %s17 = sadd.s32 1, %s13
  $region7: #{mpn_forward.15} parent=0 // loop_footer_branch
    %12 = sbr.rel target = $region3
  $region8: #{mpn_forward.15} parent=0 // loop_exit
    _

// kernel: mpn_forward.17
$region0: #{mpn_forward.17}
  #allocation0 [shape = 'u32[]', space=smem, size = 0x4, offset = 0x4, fixed_abs, tag = 'smem constant byte address 0x4 - core index']
  #allocation1 [shape = 'u32[72,128]{1,0:T(1,128)}', space=vmem, size = 0x9000, scoped, tag = 'internal scratch']
  #allocation2 [shape = 'f32[1,1]{1,0:T(1,128)S(1)}', space=vmem, size = 0x200, scoped, tag = 'scoped memory for mpn_forward.17']
  %s0 = inlined_call_operand.vmem [shape: bf16[2,18,18,16], index: 0, kind: input, shape index: {}, may-alias: {0,1,2}]
  %s1 = inlined_call_operand.vmem [shape: bf16[2,18,18,16], index: 1, kind: input, shape index: {}, may-alias: {0,1,2}]
  %s2 = inlined_call_operand.vmem [shape: bf16[2,18,18,16], index: 2, kind: input, shape index: {}, may-alias: {0,1,2}]
  %s3 = inlined_call_operand.vmem [shape: bf16[3,3,16,1], index: 3, kind: input, shape index: {}]
  %s4 = inlined_call_operand.<no memory space> [shape: f32[1,1], index: 4, kind: input, shape index: {}]
  %s5 = inlined_call_operand.vmem [shape: bf16[2,16,16,1], index: 5, kind: output, shape index: {}]
  %s6 = sld [smem:[#allocation0]]
  $region53: #{mpn_forward.17} parent=0
    _
  %s8 = ssub.s32 1, %s6
  %s9 = scalar_select 0, %s8, %s6
  %v10 = vstv %s4
  %11 = vst [vmem:[#allocation2] sm:$0x1] %v10
  loop: start=0, step=1, limit=34
  $region2: #{mpn_forward.17} parent=0 // loop_pre_header
    _
  $region3: #{mpn_forward.17} parent=0 // loop_header
    %s13 = sphi 0, %s17
    %p14 = scmp.ge.s32.totalorder %s13, 34
    %s20 = sphi 0, %s32
    %s21 = sphi 0, %s28
    %s22 = sphi 0, %s20
    %s23 = sphi 0, %s21
    %s24 = sphi 0, %s22
    %s25 = sphi 0, %s23
    %s37 = sphi 0, %s39
    %s40 = sphi 0, %s37
    %s41 = sphi 0, %s40
    %s57 = sphi 0, %s41
    %s67 = sphi 0, %s69
    %s70 = sphi 0, %s67
    %s71 = sphi 0, %s70
    %s87 = sphi 0, %s71
    %s97 = sphi 0, %s99
    %s100 = sphi 0, %s97
    %s101 = sphi 0, %s100
    %s117 = sphi 0, %s101
    %s121 = sphi 0, %s121
    %s123 = sphi 0, %s121
    %s124 = sphi 0, %s123
    %s138 = sphi 0, %s124
    %s142 = sphi 0, %s142
    %s144 = sphi 0, %s142
    %s145 = sphi 0, %s144
    %s159 = sphi 0, %s145
    %s167 = sphi 0, %s169
    %s170 = sphi 0, %s167
    %s171 = sphi 0, %s170
    %s187 = sphi 0, %s171
  $region4: #{mpn_forward.17} parent=0 // loop_header_branch
    %16 = sbr.rel (%p14) target = $region8
  $region5: #{mpn_forward.17} parent=0 // loop_body
    %s18 = ssub.s32 %s13, 1
    %s19 = ssub.s32 %s13, 2
    %s26 = sadd.s32 1, %s21
    %p27 = scmp.ge.s32.totalorder %s26, 16
    %s28 = scalar_select %p27, 0, %s26
    %s29 = sadd.s32 1, %s20
    %s30 = scalar_select %p27, %s29, %s20
    %p31 = scmp.ge.s32.totalorder %s30, 2
    %s32 = scalar_select %p31, 0, %s30
    %s33 = ssub.s32 %s20, %s32
    %s34 = ssub.s32 %s21, %s28
    %s35 = sor.u32 %s33, %s34
    %p36 = scmp.eq.s32.totalorder %s35, 0
    %s38 = sadd.s32 %s37, 1
    %s39 = scalar_select %p36, %s37, %s38
    %p42 = pneg %p36
    %p43 = scmp.eq.s32.totalorder %s13, 31
    %p44 = por %p42, %p43
    %p45 = scmp.ne.s32.totalorder %s37, %s40
    %p46 = scmp.eq.s32.totalorder %s13, 0
    %p47 = por %p45, %p46
    %p48 = scmp.ne.s32.totalorder %s37, %s40
    %p49 = scmp.eq.s32.totalorder %s18, 31
    %p50 = por %p48, %p49
    %p51 = scmp.ne.s32.totalorder %s40, %s41
    %p52 = scmp.eq.s32.totalorder %s18, 0
    %p53 = por %p51, %p52
    %p54 = scmp.ne.s32.totalorder %s40, %s41
    %p55 = scmp.eq.s32.totalorder %s19, 31
    %p56 = por %p54, %p55
    %p58 = scmp.ne.s32.totalorder %s41, %s57
    %p59 = scmp.eq.s32.totalorder %s19, 0
    %p60 = por %p58, %p59
    %s61 = sadd.s32 %s21, 1
    %s62 = sadd.s32 %s28, 1
    %s63 = ssub.s32 %s20, %s32
    %s64 = ssub.s32 %s61, %s62
    %s65 = sor.u32 %s63, %s64
    %p66 = scmp.eq.s32.totalorder %s65, 0
    %s68 = sadd.s32 %s67, 1
    %s69 = scalar_select %p66, %s67, %s68
    %p72 = pneg %p66
    %p73 = scmp.eq.s32.totalorder %s13, 31
    %p74 = por %p72, %p73
    %p75 = scmp.ne.s32.totalorder %s67, %s70
    %p76 = scmp.eq.s32.totalorder %s13, 0
    %p77 = por %p75, %p76
    %p78 = scmp.ne.s32.totalorder %s67, %s70
    %p79 = scmp.eq.s32.totalorder %s18, 31
    %p80 = por %p78, %p79
    %p81 = scmp.ne.s32.totalorder %s70, %s71
    %p82 = scmp.eq.s32.totalorder %s18, 0
    %p83 = por %p81, %p82
    %p84 = scmp.ne.s32.totalorder %s70, %s71
    %p85 = scmp.eq.s32.totalorder %s19, 31
    %p86 = por %p84, %p85
    %p88 = scmp.ne.s32.totalorder %s71, %s87
    %p89 = scmp.eq.s32.totalorder %s19, 0
    %p90 = por %p88, %p89
    %s91 = sadd.s32 %s21, 2
    %s92 = sadd.s32 %s28, 2
    %s93 = ssub.s32 %s20, %s32
    %s94 = ssub.s32 %s91, %s92
    %s95 = sor.u32 %s93, %s94
    %p96 = scmp.eq.s32.totalorder %s95, 0
    %s98 = sadd.s32 %s97, 1
    %s99 = scalar_select %p96, %s97, %s98
    %p102 = pneg %p96
    %p103 = scmp.eq.s32.totalorder %s13, 31
    %p104 = por %p102, %p103
    %p105 = scmp.ne.s32.totalorder %s97, %s100
    %p106 = scmp.eq.s32.totalorder %s13, 0
    %p107 = por %p105, %p106
    %p108 = scmp.ne.s32.totalorder %s97, %s100
    %p109 = scmp.eq.s32.totalorder %s18, 31
    %p110 = por %p108, %p109
    %p111 = scmp.ne.s32.totalorder %s100, %s101
    %p112 = scmp.eq.s32.totalorder %s18, 0
    %p113 = por %p111, %p112
    %p114 = scmp.ne.s32.totalorder %s100, %s101
    %p115 = scmp.eq.s32.totalorder %s19, 31
    %p116 = por %p114, %p115
    %p118 = scmp.ne.s32.totalorder %s101, %s117
    %p119 = scmp.eq.s32.totalorder %s19, 0
    %p120 = por %p118, %p119
    %s122 = sadd.s32 %s121, 1
    %p125 = scmp.eq.s32.totalorder %s13, 31
    %p126 = scmp.ne.s32.totalorder %s121, %s123
    %p127 = scmp.eq.s32.totalorder %s13, 0
    %p128 = por %p126, %p127
    %p129 = scmp.ne.s32.totalorder %s121, %s123
    %p130 = scmp.eq.s32.totalorder %s18, 31
    %p131 = por %p129, %p130
    %p132 = scmp.ne.s32.totalorder %s123, %s124
    %p133 = scmp.eq.s32.totalorder %s18, 0
    %p134 = por %p132, %p133
    %p135 = scmp.ne.s32.totalorder %s123, %s124
    %p136 = scmp.eq.s32.totalorder %s19, 31
    %p137 = por %p135, %p136
    %p139 = scmp.ne.s32.totalorder %s124, %s138
    %p140 = scmp.eq.s32.totalorder %s19, 0
    %p141 = por %p139, %p140
    %s143 = sadd.s32 %s142, 1
    %p146 = scmp.eq.s32.totalorder %s13, 31
    %p147 = scmp.ne.s32.totalorder %s142, %s144
    %p148 = scmp.eq.s32.totalorder %s13, 0
    %p149 = por %p147, %p148
    %p150 = scmp.ne.s32.totalorder %s142, %s144
    %p151 = scmp.eq.s32.totalorder %s18, 31
    %p152 = por %p150, %p151
    %p153 = scmp.ne.s32.totalorder %s144, %s145
    %p154 = scmp.eq.s32.totalorder %s18, 0
    %p155 = por %p153, %p154
    %p156 = scmp.ne.s32.totalorder %s144, %s145
    %p157 = scmp.eq.s32.totalorder %s19, 31
    %p158 = por %p156, %p157
    %p160 = scmp.ne.s32.totalorder %s145, %s159
    %p161 = scmp.eq.s32.totalorder %s19, 0
    %p162 = por %p160, %p161
    %s163 = ssub.s32 %s20, %s32
    %s164 = ssub.s32 %s21, %s28
    %s165 = sor.u32 %s163, %s164
    %p166 = scmp.eq.s32.totalorder %s165, 0
    %s168 = sadd.s32 %s167, 1
    %s169 = scalar_select %p166, %s167, %s168
    %p172 = pneg %p166
    %p173 = scmp.eq.s32.totalorder %s13, 31
    %p174 = por %p172, %p173
    %p175 = scmp.ne.s32.totalorder %s167, %s170
    %p176 = scmp.eq.s32.totalorder %s13, 0
    %p177 = por %p175, %p176
    %p178 = scmp.ne.s32.totalorder %s167, %s170
    %p179 = scmp.eq.s32.totalorder %s18, 31
    %p180 = por %p178, %p179
    %p181 = scmp.ne.s32.totalorder %s170, %s171
    %p182 = scmp.eq.s32.totalorder %s18, 0
    %p183 = por %p181, %p182
    %p184 = scmp.ne.s32.totalorder %s170, %s171
    %p185 = scmp.eq.s32.totalorder %s19, 31
    %p186 = por %p184, %p185
    %p188 = scmp.ne.s32.totalorder %s171, %s187
    %p189 = scmp.eq.s32.totalorder %s19, 0
    %p190 = por %p188, %p189
    %p191 = scmp.le.s32.totalorder 1, %s13
    %p192 = scmp.lt.s32.totalorder %s13, 33
    %p193 = pnand %p191, %p192
    %p194 = pneg %p193
    // Predicated region
    $region9: #{mpn_forward.17} parent=5 // pred_check
      _
    $region10: #{mpn_forward.17} parent=5 // pred_check_branch
      %196 = sbr.rel (%p193) target = $region12
    $region11: #{mpn_forward.17} parent=5 // pred_region
      %s197 = ssub.s32 %s13, 1
      // Predicated region
      $region13: #{mpn_forward.17} parent=11 // pred_check
        %p198 = pneg %p134
      $region14: #{mpn_forward.17} parent=11 // pred_check_branch
        %200 = sbr.rel (%p198) target = $region16
      $region15: #{mpn_forward.17} parent=11 // pred_region
        _
      $region16: #{mpn_forward.17} parent=11 // pred_fallthru
        _
      // Predicated region
      $region17: #{mpn_forward.17} parent=11 // pred_check
        %p201 = pneg %p155
      $region18: #{mpn_forward.17} parent=11 // pred_check_branch
        %203 = sbr.rel (%p201) target = $region20
      $region19: #{mpn_forward.17} parent=11 // pred_region
        _
      $region20: #{mpn_forward.17} parent=11 // pred_fallthru
        _
    $region12: #{mpn_forward.17} parent=5 // pred_fallthru
      _
    %p204 = scmp.lt.s32.totalorder %s13, 32
    // Predicated region
    $region21: #{mpn_forward.17} parent=5 // pred_check
      %p205 = pneg %p204
    $region22: #{mpn_forward.17} parent=5 // pred_check_branch
      %207 = sbr.rel (%p205) target = $region24
    $region23: #{mpn_forward.17} parent=5 // pred_region
      // Predicated region
      $region25: #{mpn_forward.17} parent=23 // pred_check
        %p208 = pneg %p47
      $region26: #{mpn_forward.17} parent=23 // pred_check_branch
        %210 = sbr.rel (%p208) target = $region28
      $region27: #{mpn_forward.17} parent=23 // pred_region
        %p211 = scmp.lt.s32.totalorder %s20, 1
        %s212 = scalar_select %p211, %s20, 1
        %p213 = scmp.lt.s32.totalorder %s21, 17
        %s214 = scalar_select %p213, %s21, 17
        %s215 = smul.addr %s214, 3
        %s216 = smul.addr %s212, 54
        %s217 = sadd.s32 %s215, %s216
        %s218 = smul.addr %s217, 4
        %s219 = scalar_lea.vmem %s0, %s218
      $region28: #{mpn_forward.17} parent=23 // pred_fallthru
        _
      // Predicated region
      $region29: #{mpn_forward.17} parent=23 // pred_check
        %p220 = pneg %p77
      $region30: #{mpn_forward.17} parent=23 // pred_check_branch
        %222 = sbr.rel (%p220) target = $region32
      $region31: #{mpn_forward.17} parent=23 // pred_region
        %s223 = sadd.s32 %s21, 1
        %p224 = scmp.lt.s32.totalorder %s20, 1
        %s225 = scalar_select %p224, %s20, 1
        %p226 = scmp.lt.s32.totalorder %s223, 17
        %s227 = scalar_select %p226, %s223, 17
        %s228 = smul.addr %s227, 3
        %s229 = smul.addr %s225, 54
        %s230 = sadd.s32 %s228, %s229
        %s231 = smul.addr %s230, 4
        %s232 = scalar_lea.vmem %s1, %s231
        %s233 = sadd.s32 %s21, 1
      $region32: #{mpn_forward.17} parent=23 // pred_fallthru
        _
      // Predicated region
      $region33: #{mpn_forward.17} parent=23 // pred_check
        %p234 = pneg %p107
      $region34: #{mpn_forward.17} parent=23 // pred_check_branch
        %236 = sbr.rel (%p234) target = $region36
      $region35: #{mpn_forward.17} parent=23 // pred_region
        %s237 = sadd.s32 %s21, 2
        %p238 = scmp.lt.s32.totalorder %s20, 1
        %s239 = scalar_select %p238, %s20, 1
        %p240 = scmp.lt.s32.totalorder %s237, 17
        %s241 = scalar_select %p240, %s237, 17
        %s242 = smul.addr %s241, 3
        %s243 = smul.addr %s239, 54
        %s244 = sadd.s32 %s242, %s243
        %s245 = smul.addr %s244, 4
        %s246 = scalar_lea.vmem %s2, %s245
        %s247 = sadd.s32 %s21, 2
      $region36: #{mpn_forward.17} parent=23 // pred_fallthru
        _
    $region24: #{mpn_forward.17} parent=5 // pred_fallthru
      _
    %p248 = scmp.le.s32.totalorder 1, %s13
    %p249 = scmp.lt.s32.totalorder %s13, 33
    %p250 = pnand %p248, %p249
    %p251 = pneg %p250
    // Predicated region
    $region37: #{mpn_forward.17} parent=5 // pred_check
      _
    $region38: #{mpn_forward.17} parent=5 // pred_check_branch
      %253 = sbr.rel (%p250) target = $region40
    $region39: #{mpn_forward.17} parent=5 // pred_region
      %s254 = ssub.s32 %s13, 1
      %p255 = scmp.lt.s32.totalorder %s22, 1
      %s256 = scalar_select %p255, %s22, 1
      %p257 = scmp.lt.s32.totalorder %s23, 17
      %s258 = scalar_select %p257, %s23, 17
      %s259 = smul.addr %s258, 3
      %s260 = smul.addr %s256, 54
      %s261 = sadd.s32 %s259, %s260
      %s262 = smul.addr %s261, 4
      %s263 = scalar_lea.vmem %s0, %s262
      %p264 = pneg %p53
      %p265 = pneg %p50
      %s266 = sadd.s32 %s23, 1
      %p267 = scmp.lt.s32.totalorder %s22, 1
      %s268 = scalar_select %p267, %s22, 1
      %p269 = scmp.lt.s32.totalorder %s266, 17
      %s270 = scalar_select %p269, %s266, 17
      %s271 = smul.addr %s270, 3
      %s272 = smul.addr %s268, 54
      %s273 = sadd.s32 %s271, %s272
      %s274 = smul.addr %s273, 4
      %s275 = scalar_lea.vmem %s1, %s274
      %p276 = pneg %p83
      %p277 = pneg %p80
      %s278 = sadd.s32 %s23, 2
      %p279 = scmp.lt.s32.totalorder %s22, 1
      %s280 = scalar_select %p279, %s22, 1
      %p281 = scmp.lt.s32.totalorder %s278, 17
      %s282 = scalar_select %p281, %s278, 17
      %s283 = smul.addr %s282, 3
      %s284 = smul.addr %s280, 54
      %s285 = sadd.s32 %s283, %s284
      %s286 = smul.addr %s285, 4
      %s287 = scalar_lea.vmem %s2, %s286
      %p288 = pneg %p113
      %p289 = pneg %p110
      %p290 = pneg %p134
      %p291 = pneg %p131
      %p292 = pneg %p155
      %p293 = pneg %p152
      %p294 = pneg %p183
      %p295 = pneg %p180
      %p296 = scmp.lt.s32.totalorder %s22, 1
      %s297 = scalar_select %p296, %s22, 1
      %p298 = scmp.lt.s32.totalorder %s23, 15
      %s299 = scalar_select %p298, %s23, 15
      %s300 = smul.addr %s299, 2
      %s301 = smul.addr %s297, 32
      %s302 = sadd.s32 %s300, %s301
      %s303 = smul.addr %s302, 4
      %s304 = scalar_lea.vmem %s5, %s303
      %p305 = scmp.lt.s32.totalorder %s22, 1
      %s306 = scalar_select %p305, %s22, 1
      %p307 = scmp.lt.s32.totalorder %s23, 17
      %s308 = scalar_select %p307, %s23, 17
      %s309 = smul.addr %s308, 3
      %s310 = smul.addr %s306, 54
      %s311 = sadd.s32 %s309, %s310
      %s312 = smul.addr %s311, 4
      %s313 = scalar_lea.vmem %s0, %s312
      %s314 = sadd.s32 %s23, 1
      %p315 = scmp.lt.s32.totalorder %s22, 1
      %s316 = scalar_select %p315, %s22, 1
      %p317 = scmp.lt.s32.totalorder %s314, 17
      %s318 = scalar_select %p317, %s314, 17
      %s319 = smul.addr %s318, 3
      %s320 = smul.addr %s316, 54
      %s321 = sadd.s32 %s319, %s320
      %s322 = smul.addr %s321, 4
      %s323 = scalar_lea.vmem %s1, %s322
      %s324 = sadd.s32 %s23, 1
      %s325 = sadd.s32 %s23, 2
      %p326 = scmp.lt.s32.totalorder %s22, 1
      %s327 = scalar_select %p326, %s22, 1
      %p328 = scmp.lt.s32.totalorder %s325, 17
      %s329 = scalar_select %p328, %s325, 17
      %s330 = smul.addr %s329, 3
      %s331 = smul.addr %s327, 54
      %s332 = sadd.s32 %s330, %s331
      %s333 = smul.addr %s332, 4
      %s334 = scalar_lea.vmem %s2, %s333
      %s335 = sadd.s32 %s23, 2
      %p336 = scmp.lt.s32.totalorder %s22, 1
      %s337 = scalar_select %p336, %s22, 1
      %p338 = scmp.lt.s32.totalorder %s23, 15
      %s339 = scalar_select %p338, %s23, 15
      %s340 = smul.addr %s339, 2
      %s341 = smul.addr %s337, 32
      %s342 = sadd.s32 %s340, %s341
      %s343 = smul.addr %s342, 4
      %s344 = scalar_lea.vmem %s5, %s343
      %v346 = vld [vmem:[%s313] sm:$0xf]
      %v347 = vld [vmem:[%s313 + $0x4] sm:$0xf]
      %v348 = vld [vmem:[%s313 + $0x8] sm:$0x1]
      %v349 = vld [vmem:[%s3] sm:$0xf]
      %v350 = vld [vmem:[%s3 + $0x4] sm:$0xf]
      %s351 = scalar_lea.vmem %s3, 8
      %v352 = vld [vmem:[%s351] sm:$0xf]
      %v353 = vld [vmem:[%s351 + $0x4] sm:$0xf]
      %v357 = vunpack.c.l.b16 %v346
      %v358 = vunpack.c.l.b16 %v347
      %v359 = vunpack.c.l.b16 %v348
      %v360 = vpack.c.b16 %v358, %v357
      %v361 = vpack.c.b16 %v359, %v359
      %vm362 = vsmask.f32 7424
      %v364 = vshrl.u32 %v360, 16
      %v366 = vshll.u32 %v360, 16
      %v368 = vrot.slane %v366, 1
      %v369 = vor.u32 %v364, %v368
      %v371 = vshll.u32 %v361, 16
      %v373 = vrot.slane %v371, 1
      %v374 = vsel %vm362, %v369, %v373
      %v377 = vunpack.c.l.b16 %v352
      %v378 = vunpack.c.l.b16 %v353
      %v379 = vpack.c.b16 %v378, %v377
      %vm381 = vcmask 130048
      %v383 = vsel %vm381, %v374, 0
      %385 = vmatpush.bf16.msra.mxu0 0
      %386 = vmatpush.bf16.msra.mxu0 0
      %387 = vmatpush.bf16.msra.mxu0 0
      %388 = vmatpush.bf16.msra.mxu0 0
      %389 = vmatpush.bf16.msra.mxu0 0
      %390 = vmatpush.bf16.msra.mxu0 0
      %391 = vmatpush.bf16.msra.mxu0 0
      %392 = vmatpush.bf16.msra.mxu0 %v379
      %393 = vmatmul.bf16.gmra.mxu0 %v383
      %v394 = vpop.f32.mrf.mxu0
      %v395 = vadd.f32 0.0, %v394
      %v396 = vpop.f32.mrf.mxu0
      %v397 = vadd.f32 0.0, %v396
      %398 = vdwg.mxu0
      %v401 = vunpack.c.l.b16 %v349
      %v402 = vunpack.c.l.b16 %v350
      %v403 = vpack.c.b16 %v402, %v401
      %v405 = vsel %vm381, %v360, 0
      %407 = vmatpush.bf16.msra.mxu0 0
      %408 = vmatpush.bf16.msra.mxu0 0
      %409 = vmatpush.bf16.msra.mxu0 0
      %410 = vmatpush.bf16.msra.mxu0 0
      %411 = vmatpush.bf16.msra.mxu0 0
      %412 = vmatpush.bf16.msra.mxu0 0
      %413 = vmatpush.bf16.msra.mxu0 0
      %414 = vmatpush.bf16.msra.mxu0 %v403
      %415 = vmatmul.bf16.gmra.mxu0 %v405
      %v416 = vpop.f32.mrf.mxu0
      %v417 = vadd.f32 %v395, %v416
      %v418 = vpop.f32.mrf.mxu0
      %v419 = vadd.f32 %v397, %v418
      %420 = vdwg.mxu0
      %s421 = scalar_lea.vmem %s3, 16
      %v422 = vld [vmem:[%s421] sm:$0xf]
      %v423 = vld [vmem:[%s421 + $0x4] sm:$0xf]
      %vm424 = vcmask 1046528
      %v425 = vrot.slane %v360, 1
      %v426 = vrot.slane %v361, 1
      %v427 = vsel %vm424, %v425, %v426
      %v430 = vunpack.c.l.b16 %v422
      %v431 = vunpack.c.l.b16 %v423
      %v432 = vpack.c.b16 %v431, %v430
      %v435 = vsel %vm381, %v427, 0
      %437 = vmatpush.bf16.msra.mxu0 0
      %438 = vmatpush.bf16.msra.mxu0 0
      %439 = vmatpush.bf16.msra.mxu0 0
      %440 = vmatpush.bf16.msra.mxu0 0
      %441 = vmatpush.bf16.msra.mxu0 0
      %442 = vmatpush.bf16.msra.mxu0 0
      %443 = vmatpush.bf16.msra.mxu0 0
      %444 = vmatpush.bf16.msra.mxu0 %v432
      %445 = vmatmul.bf16.gmra.mxu0 %v435
      %v446 = vpop.f32.mrf.mxu0
      %v447 = vadd.f32 0.0, %v446
      %v448 = vpop.f32.mrf.mxu0
      %v449 = vadd.f32 0.0, %v448
      %450 = vdwg.mxu0
      %v451 = vadd.f32 %v417, %v447
      %v452 = vadd.f32 %v419, %v449
      %v453 = vld [vmem:[%s323] sm:$0xf]
      %v454 = vld [vmem:[%s323 + $0x4] sm:$0xf]
      %v455 = vld [vmem:[%s323 + $0x8] sm:$0x1]
      %s456 = scalar_lea.vmem %s3, 24
      %v457 = vld [vmem:[%s456] sm:$0xf]
      %v458 = vld [vmem:[%s456 + $0x4] sm:$0xf]
      %v461 = vunpack.c.l.b16 %v453
      %v462 = vunpack.c.l.b16 %v454
      %v463 = vpack.c.b16 %v462, %v461
      %v466 = vunpack.c.l.b16 %v457
      %v467 = vunpack.c.l.b16 %v458
      %v468 = vpack.c.b16 %v467, %v466
      %v471 = vsel %vm381, %v463, 0
      %473 = vmatpush.bf16.msra.mxu0 0
      %474 = vmatpush.bf16.msra.mxu0 0
      %475 = vmatpush.bf16.msra.mxu0 0
      %476 = vmatpush.bf16.msra.mxu0 0
      %477 = vmatpush.bf16.msra.mxu0 0
      %478 = vmatpush.bf16.msra.mxu0 0
      %479 = vmatpush.bf16.msra.mxu0 0
      %480 = vmatpush.bf16.msra.mxu0 %v468
      %481 = vmatmul.bf16.gmra.mxu0 %v471
      %v482 = vpop.f32.mrf.mxu0
      %v483 = vadd.f32 0.0, %v482
      %v484 = vpop.f32.mrf.mxu0
      %v485 = vadd.f32 0.0, %v484
      %486 = vdwg.mxu0
      %v487 = vadd.f32 %v451, %v483
      %v488 = vadd.f32 %v452, %v485
      %s489 = scalar_lea.vmem %s3, 32
      %v490 = vld [vmem:[%s489] sm:$0xf]
      %v491 = vld [vmem:[%s489 + $0x4] sm:$0xf]
      %v493 = vunpack.c.l.b16 %v455
      %v494 = vpack.c.b16 %v493, %v493
      %v495 = vshrl.u32 %v463, 16
      %v497 = vshll.u32 %v463, 16
      %v499 = vrot.slane %v497, 1
      %v500 = vor.u32 %v495, %v499
      %v502 = vshll.u32 %v494, 16
      %v504 = vrot.slane %v502, 1
      %v505 = vsel %vm362, %v500, %v504
      %v508 = vunpack.c.l.b16 %v490
      %v509 = vunpack.c.l.b16 %v491
      %v510 = vpack.c.b16 %v509, %v508
      %v513 = vsel %vm381, %v505, 0
      %515 = vmatpush.bf16.msra.mxu0 0
      %516 = vmatpush.bf16.msra.mxu0 0
      %517 = vmatpush.bf16.msra.mxu0 0
      %518 = vmatpush.bf16.msra.mxu0 0
      %519 = vmatpush.bf16.msra.mxu0 0
      %520 = vmatpush.bf16.msra.mxu0 0
      %521 = vmatpush.bf16.msra.mxu0 0
      %522 = vmatpush.bf16.msra.mxu0 %v510
      %523 = vmatmul.bf16.gmra.mxu0 %v513
      %v524 = vpop.f32.mrf.mxu0
      %v525 = vadd.f32 0.0, %v524
      %v526 = vpop.f32.mrf.mxu0
      %v527 = vadd.f32 0.0, %v526
      %528 = vdwg.mxu0
      %v529 = vadd.f32 %v487, %v525
      %v530 = vadd.f32 %v488, %v527
      %s531 = scalar_lea.vmem %s3, 40
      %v532 = vld [vmem:[%s531] sm:$0xf]
      %v533 = vld [vmem:[%s531 + $0x4] sm:$0xf]
      %v534 = vrot.slane %v463, 1
      %v535 = vrot.slane %v494, 1
      %v536 = vsel %vm424, %v534, %v535
      %v539 = vunpack.c.l.b16 %v532
      %v540 = vunpack.c.l.b16 %v533
      %v541 = vpack.c.b16 %v540, %v539
      %v544 = vsel %vm381, %v536, 0
      %546 = vmatpush.bf16.msra.mxu0 0
      %547 = vmatpush.bf16.msra.mxu0 0
      %548 = vmatpush.bf16.msra.mxu0 0
      %549 = vmatpush.bf16.msra.mxu0 0
      %550 = vmatpush.bf16.msra.mxu0 0
      %551 = vmatpush.bf16.msra.mxu0 0
      %552 = vmatpush.bf16.msra.mxu0 0
      %553 = vmatpush.bf16.msra.mxu0 %v541
      %554 = vmatmul.bf16.gmra.mxu0 %v544
      %v555 = vpop.f32.mrf.mxu0
      %v556 = vadd.f32 0.0, %v555
      %v557 = vpop.f32.mrf.mxu0
      %v558 = vadd.f32 0.0, %v557
      %559 = vdwg.mxu0
      %v560 = vadd.f32 %v529, %v556
      %v561 = vadd.f32 %v530, %v558
      %v562 = vld [vmem:[%s334] sm:$0xf]
      %v563 = vld [vmem:[%s334 + $0x4] sm:$0xf]
      %v564 = vld [vmem:[%s334 + $0x8] sm:$0x1]
      %s565 = scalar_lea.vmem %s3, 48
      %v566 = vld [vmem:[%s565] sm:$0xf]
      %v567 = vld [vmem:[%s565 + $0x4] sm:$0xf]
      %v570 = vunpack.c.l.b16 %v562
      %v571 = vunpack.c.l.b16 %v563
      %v572 = vpack.c.b16 %v571, %v570
      %v575 = vunpack.c.l.b16 %v566
      %v576 = vunpack.c.l.b16 %v567
      %v577 = vpack.c.b16 %v576, %v575
      %v580 = vsel %vm381, %v572, 0
      %582 = vmatpush.bf16.msra.mxu0 0
      %583 = vmatpush.bf16.msra.mxu0 0
      %584 = vmatpush.bf16.msra.mxu0 0
      %585 = vmatpush.bf16.msra.mxu0 0
      %586 = vmatpush.bf16.msra.mxu0 0
      %587 = vmatpush.bf16.msra.mxu0 0
      %588 = vmatpush.bf16.msra.mxu0 0
      %589 = vmatpush.bf16.msra.mxu0 %v577
      %590 = vmatmul.bf16.gmra.mxu0 %v580
      %v591 = vpop.f32.mrf.mxu0
      %v592 = vadd.f32 0.0, %v591
      %v593 = vpop.f32.mrf.mxu0
      %v594 = vadd.f32 0.0, %v593
      %595 = vdwg.mxu0
      %v596 = vadd.f32 %v560, %v592
      %v597 = vadd.f32 %v561, %v594
      %s598 = scalar_lea.vmem %s3, 56
      %v599 = vld [vmem:[%s598] sm:$0xf]
      %v600 = vld [vmem:[%s598 + $0x4] sm:$0xf]
      %v602 = vunpack.c.l.b16 %v564
      %v603 = vpack.c.b16 %v602, %v602
      %v604 = vshrl.u32 %v572, 16
      %v606 = vshll.u32 %v572, 16
      %v608 = vrot.slane %v606, 1
      %v609 = vor.u32 %v604, %v608
      %v611 = vshll.u32 %v603, 16
      %v613 = vrot.slane %v611, 1
      %v614 = vsel %vm362, %v609, %v613
      %v617 = vunpack.c.l.b16 %v599
      %v618 = vunpack.c.l.b16 %v600
      %v619 = vpack.c.b16 %v618, %v617
      %v622 = vsel %vm381, %v614, 0
      %624 = vmatpush.bf16.msra.mxu0 0
      %625 = vmatpush.bf16.msra.mxu0 0
      %626 = vmatpush.bf16.msra.mxu0 0
      %627 = vmatpush.bf16.msra.mxu0 0
      %628 = vmatpush.bf16.msra.mxu0 0
      %629 = vmatpush.bf16.msra.mxu0 0
      %630 = vmatpush.bf16.msra.mxu0 0
      %631 = vmatpush.bf16.msra.mxu0 %v619
      %632 = vmatmul.bf16.gmra.mxu0 %v622
      %v633 = vpop.f32.mrf.mxu0
      %v634 = vadd.f32 0.0, %v633
      %v635 = vpop.f32.mrf.mxu0
      %v636 = vadd.f32 0.0, %v635
      %637 = vdwg.mxu0
      %v638 = vadd.f32 %v596, %v634
      %v639 = vadd.f32 %v597, %v636
      %s640 = scalar_lea.vmem %s3, 64
      %v641 = vld [vmem:[%s640] sm:$0xf]
      %v642 = vld [vmem:[%s640 + $0x4] sm:$0xf]
      %v643 = vrot.slane %v572, 1
      %v644 = vrot.slane %v603, 1
      %v645 = vsel %vm424, %v643, %v644
      %v648 = vunpack.c.l.b16 %v641
      %v649 = vunpack.c.l.b16 %v642
      %v650 = vpack.c.b16 %v649, %v648
      %v653 = vsel %vm381, %v645, 0
      %655 = vmatpush.bf16.msra.mxu0 0
      %656 = vmatpush.bf16.msra.mxu0 0
      %657 = vmatpush.bf16.msra.mxu0 0
      %658 = vmatpush.bf16.msra.mxu0 0
      %659 = vmatpush.bf16.msra.mxu0 0
      %660 = vmatpush.bf16.msra.mxu0 0
      %661 = vmatpush.bf16.msra.mxu0 0
      %662 = vmatpush.bf16.msra.mxu0 %v650
      %663 = vmatmul.bf16.gmra.mxu0 %v653
      %v664 = vpop.f32.mrf.mxu0
      %v665 = vadd.f32 0.0, %v664
      %v666 = vpop.f32.mrf.mxu0
      %v667 = vadd.f32 0.0, %v666
      %668 = vdwg.mxu0
      %v669 = vadd.f32 %v638, %v665
      %v670 = vadd.f32 %v639, %v667
      %v671 = vld [vmem:[#allocation2] sm:$0x1]
      %v673 = vperm.slane %v671, 0
      %v675 = vadd.f32 %v669, %v673
      %v676 = vadd.f32 %v670, %v673
      %v677 = vsub.f32 0.0, %v675
      %v678 = vsub.f32 0.0, %v676
      %v679 = vmul.f32 %v677, 1.442695
      %v680 = vpow.pop %v679
      %v681 = vmul.f32 %v678, 1.442695
      %v682 = vpow.pop %v681
      %v683 = vadd.f32 %v680, 1.0
      %v684 = vadd.f32 %v682, 1.0
      %v685 = vrcp.pop %v683
      %v686 = vrcp.pop %v684
      %v687 = vmax.f32 %v685, 0.0
      %v688 = vmax.f32 %v686, 0.0
      %v689 = vmin.f32 %v687, 1.0
      %v690 = vmin.f32 %v688, 1.0
      %v691 = vpack.c.bf16 %v689, %v689
      %v692 = vpack.c.bf16 %v690, %v690
      %vm693 = vcmask 3072
      %694 = vst.msk [vmem:[%s344] sm:$0xf] %vm693, %v691
      %695 = vst.msk [vmem:[%s344 + $0x4] sm:$0xf] %vm693, %v692
      %p696 = scmp.lt.s32.totalorder %s22, 1
      %s697 = scalar_select %p696, %s22, 1
      %p698 = scmp.lt.s32.totalorder %s23, 15
      %s699 = scalar_select %p698, %s23, 15
      %s700 = smul.addr %s699, 2
      %s701 = smul.addr %s697, 32
      %s702 = sadd.s32 %s700, %s701
      %s703 = smul.addr %s702, 4
      %s704 = scalar_lea.vmem %s5, %s703
      // Predicated region
      $region41: #{mpn_forward.17} parent=39 // pred_check
        %p705 = pneg %p180
      $region42: #{mpn_forward.17} parent=39 // pred_check_branch
        %707 = sbr.rel (%p705) target = $region44
      $region43: #{mpn_forward.17} parent=39 // pred_region
        _
      $region44: #{mpn_forward.17} parent=39 // pred_fallthru
        _
    $region40: #{mpn_forward.17} parent=5 // pred_fallthru
      _
    %p708 = scmp.le.s32.totalorder 2, %s13
    // Predicated region
    $region45: #{mpn_forward.17} parent=5 // pred_check
      %p709 = pneg %p708
    $region46: #{mpn_forward.17} parent=5 // pred_check_branch
      %711 = sbr.rel (%p709) target = $region48
    $region47: #{mpn_forward.17} parent=5 // pred_region
      %s712 = ssub.s32 %s13, 2
      // Predicated region
      $region49: #{mpn_forward.17} parent=47 // pred_check
        %p713 = pneg %p186
      $region50: #{mpn_forward.17} parent=47 // pred_check_branch
        %715 = sbr.rel (%p713) target = $region52
      $region51: #{mpn_forward.17} parent=47 // pred_region
        %p716 = scmp.lt.s32.totalorder %s24, 1
        %s717 = scalar_select %p716, %s24, 1
        %p718 = scmp.lt.s32.totalorder %s25, 15
        %s719 = scalar_select %p718, %s25, 15
        %s720 = smul.addr %s719, 2
        %s721 = smul.addr %s717, 32
        %s722 = sadd.s32 %s720, %s721
        %s723 = smul.addr %s722, 4
        %s724 = scalar_lea.vmem %s5, %s723
      $region52: #{mpn_forward.17} parent=47 // pred_fallthru
        _
    $region48: #{mpn_forward.17} parent=5 // pred_fallthru
      _
  $region6: #{mpn_forward.17} parent=0 // loop_footer
    %s17 = sadd.s32 1, %s13
  $region7: #{mpn_forward.17} parent=0 // loop_footer_branch
    %12 = sbr.rel target = $region3
  $region8: #{mpn_forward.17} parent=0 // loop_exit
    _

</llo_original>
